<compile_context>
chip_gen: v7x
topology: tpu7x:2x2x1
jax: 0.10.0
libtpu: 0.0.40
codegen_flags: <defaults>
</compile_context>

<pallas_src>
import functools
import math

import numpy as np
import jax
import jax.numpy as jnp
from jax.experimental import pallas as pl
from jax.experimental.pallas import tpu as pltpu


def _layernorm(x, w, b, eps=1e-5):
    mu = jnp.mean(x, axis=-1, keepdims=True)
    xc = x - mu
    var = jnp.mean(xc * xc, axis=-1, keepdims=True)
    return xc * jax.lax.rsqrt(var + eps) * w + b


def _price_attn_kernel(tb, sp, d,
                       price_ref, add_ref,
                       w_lin_ref, w_qkv_ref, b_qkv_ref,
                       w_o_ref, w_ff1_ref, b_ff1_ref, w_ff2_ref,
                       vecs_ref, w_mlp_ref, b_mlp_ref,
                       e_ref, et_ref, rowmask_ref, keymask_ref, clssel_ref,
                       out_ref,
                       attn_scratch):
    # input embedding: cls token, pos-emb and linear bias are pre-folded into add_ref
    # (price rows at the cls slot / padded slots are zero, so they pick up cls+pos only).
    x = jnp.dot(price_ref[...], w_lin_ref[...],
                preferred_element_type=jnp.float32) + add_ref[...]        # (tb*sp, d)

    # fused qkv projection (attention scale pre-folded into the q columns / bias)
    qkv = jnp.dot(x, w_qkv_ref[...],
                  preferred_element_type=jnp.float32) + b_qkv_ref[...]    # (tb*sp, 3d)
    q = qkv[:, 0:d]
    k = qkv[:, d:2 * d]
    v = qkv[:, 2 * d:3 * d]

    e = e_ref[...]            # (n_head*sp, sp)  replicate query rows once per head
    et = et_ref[...]          # (sp, n_head*sp)  fold per-head outputs back to (sp, d)
    rowmask = rowmask_ref[...]    # (n_head*sp, d) 0/1 head selector on the feature axis
    keymask = keymask_ref[...]    # (1, sp)        additive -1e9 on padded key positions

    # all heads of one example fused into one score block; static loop over TB examples.
    for b in range(tb):
        lo, hi = b * sp, (b + 1) * sp
        qb = q[lo:hi, :]
        kb = k[lo:hi, :]
        vb = v[lo:hi, :]
        qbig = jnp.dot(e, qb, preferred_element_type=jnp.float32) * rowmask
        s = jnp.dot(qbig, kb.T, preferred_element_type=jnp.float32) + keymask
        s = s - jnp.max(s, axis=-1, keepdims=True)
        p = jnp.exp(s)
        p = p * pl.reciprocal(jnp.sum(p, axis=-1, keepdims=True), approx=True)
        t = jnp.dot(p, vb, preferred_element_type=jnp.float32) * rowmask
        attn_scratch[lo:hi, :] = jnp.dot(et, t, preferred_element_type=jnp.float32)

    # small packed vectors: [b_o, ln1_w, ln1_b, b_ff2, ln2_w, ln2_b, ln3_w, ln3_b]
    b_o = vecs_ref[0:1, :]
    ln1_w, ln1_b = vecs_ref[1:2, :], vecs_ref[2:3, :]
    b_ff2 = vecs_ref[3:4, :]
    ln2_w, ln2_b = vecs_ref[4:5, :], vecs_ref[5:6, :]
    ln3_w, ln3_b = vecs_ref[6:7, :], vecs_ref[7:8, :]

    attn = jnp.dot(attn_scratch[...], w_o_ref[...],
                   preferred_element_type=jnp.float32) + b_o

    # post-norm encoder layer (norm_first=False, activation=relu)
    x = _layernorm(x + attn, ln1_w, ln1_b)
    ff = jnp.dot(x, w_ff1_ref[...], preferred_element_type=jnp.float32) + b_ff1_ref[...]
    ff = jnp.maximum(ff, 0.0)
    ff = jnp.dot(ff, w_ff2_ref[...], preferred_element_type=jnp.float32) + b_ff2
    x = _layernorm(x + ff, ln2_w, ln2_b)

    # gather the CLS row of each example with a tiny 0/1 matmul, then LayerNorm + Linear
    cls_x = jnp.dot(clssel_ref[...], x, preferred_element_type=jnp.float32)   # (tb, d)
    cls_x = _layernorm(cls_x, ln3_w, ln3_b)
    out_ref[...] = jnp.dot(cls_x, w_mlp_ref[...],
                           preferred_element_type=jnp.float32) + b_mlp_ref[...]


def prepare_params(params, history, n_head, tb=8):
    """One-time host-side weight prep: transposes, scale/cls/pos folding, packing."""
    D, input_dim = params["w_lin"].shape
    FF = params["w_ff1"].shape[0]
    OUT = params["w_mlp"].shape[0]
    assert D % n_head == 0, "hidden_dim must be divisible by n_head"
    hd = D // n_head
    S = history + 1                      # cls + history
    SP = ((S + 7) // 8) * 8              # sublane-aligned padded sequence length
    HSP = n_head * SP
    scale = 1.0 / math.sqrt(hd)

    # weights transposed to (in, out); attention scale folded into the q columns of w_qkv
    colscale = jnp.concatenate(
        [jnp.full((D,), scale, jnp.float32), jnp.ones((2 * D,), jnp.float32)])
    w_qkv_t = params["w_qkv"].T.astype(jnp.float32) * colscale[None, :]
    b_qkv = (params["b_qkv"].astype(jnp.float32) * colscale).reshape(1, 3 * D)

    # cls token + positional embedding + input-linear bias folded into one additive table
    pos = params["pos"].reshape(-1, D)[:S].astype(jnp.float32)
    add = jnp.zeros((SP, D), jnp.float32)
    add = add.at[0].set(params["cls"].reshape(D).astype(jnp.float32) + pos[0])
    add = add.at[1:S].set(params["b_lin"].astype(jnp.float32)[None, :] + pos[1:S])
    add_full = jnp.tile(add, (tb, 1))                                     # (TB*SP, D)

    # fused-head attention helper constants
    r = np.arange(HSP)
    e = np.zeros((HSP, SP), np.float32)
    e[r, r % SP] = 1.0
    rowmask = ((r // SP)[:, None] == (np.arange(D) // hd)[None, :]).astype(np.float32)
    keymask = np.where(np.arange(SP) < S, 0.0, -1e9).astype(np.float32).reshape(1, SP)
    cls_sel = np.zeros((tb, tb * SP), np.float32)
    cls_sel[np.arange(tb), np.arange(tb) * SP] = 1.0

    vecs = jnp.stack([
        params["b_o"], params["ln1_w"], params["ln1_b"], params["b_ff2"],
        params["ln2_w"], params["ln2_b"], params["ln3_w"], params["ln3_b"],
    ]).astype(jnp.float32)                                                # (8, D)

    return dict(
        tb=tb, sp=SP, s=S, d=D, input_dim=input_dim, ff=FF, out=OUT,
        add_full=add_full,
        w_lin_t=params["w_lin"].T.astype(jnp.float32),
        w_qkv_t=w_qkv_t, b_qkv=b_qkv,
        w_o_t=params["w_o"].T.astype(jnp.float32),
        w_ff1_t=params["w_ff1"].T.astype(jnp.float32),
        b_ff1=params["b_ff1"].reshape(1, FF).astype(jnp.float32),
        w_ff2_t=params["w_ff2"].T.astype(jnp.float32),
        vecs=vecs,
        w_mlp_t=params["w_mlp"].T.astype(jnp.float32),
        b_mlp=params["b_mlp"].reshape(1, OUT).astype(jnp.float32),
        e=jnp.asarray(e), e_t=jnp.asarray(e.T),
        rowmask=jnp.asarray(rowmask), keymask=jnp.asarray(keymask),
        cls_sel=jnp.asarray(cls_sel),
    )


def price_feature_extractor_attn(price, prep):
    tb, sp, s, d = prep["tb"], prep["sp"], prep["s"], prep["d"]
    input_dim, out_dim = prep["input_dim"], prep["out"]
    B, history = price.shape[0], price.shape[1]
    assert history + 1 == s

    price2 = price.reshape(B, history, -1).astype(jnp.float32)
    assert price2.shape[-1] == input_dim

    # zero-pad: slot 0 (cls) and slots S..SP-1 per example, plus batch pad to TB multiple
    b_pad = ((B + tb - 1) // tb) * tb
    price3 = jnp.zeros((b_pad, sp, input_dim), jnp.float32)
    price3 = price3.at[:B, 1:s, :].set(price2)
    price_flat = price3.reshape(b_pad * sp, input_dim)

    weight_args = [
        prep["add_full"], prep["w_lin_t"], prep["w_qkv_t"], prep["b_qkv"],
        prep["w_o_t"], prep["w_ff1_t"], prep["b_ff1"], prep["w_ff2_t"],
        prep["vecs"], prep["w_mlp_t"], prep["b_mlp"],
        prep["e"], prep["e_t"], prep["rowmask"], prep["keymask"], prep["cls_sel"],
    ]

    in_specs = [pl.BlockSpec((tb * sp, input_dim), lambda b: (b, 0))]
    in_specs += [pl.BlockSpec(a.shape, lambda b: (0, 0)) for a in weight_args]

    kernel = functools.partial(_price_attn_kernel, tb, sp, d)
    out = pl.pallas_call(
        kernel,
        out_shape=jax.ShapeDtypeStruct((b_pad, out_dim), jnp.float32),
        grid=(b_pad // tb,),
        in_specs=in_specs,
        out_specs=pl.BlockSpec((tb, out_dim), lambda b: (b, 0)),
        scratch_shapes=[pltpu.VMEM((tb * sp, d), jnp.float32)],
        compiler_params=pltpu.CompilerParams(dimension_semantics=("parallel",)),
    )(price_flat, *weight_args)
    return out[:B]


def init_params(key, history, input_dim, hidden_dim, output_dim, ff_dim):
    ks = jax.random.split(key, 14)

    def u(k, shape, scale=0.1):
        return jax.random.uniform(k, shape, jnp.float32, -scale, scale)

    return dict(
        w_lin=u(ks[0], (hidden_dim, input_dim)),
        b_lin=u(ks[1], (hidden_dim,)),
        pos=0.1 * jax.random.normal(ks[2], (1, history + 1, hidden_dim), jnp.float32),
        cls=0.1 * jax.random.normal(ks[3], (1, 1, hidden_dim), jnp.float32),
        w_qkv=u(ks[4], (3 * hidden_dim, hidden_dim)),
        b_qkv=u(ks[5], (3 * hidden_dim,)),
        w_o=u(ks[6], (hidden_dim, hidden_dim)),
        b_o=u(ks[7], (hidden_dim,)),
        ln1_w=jnp.ones((hidden_dim,), jnp.float32),
        ln1_b=jnp.zeros((hidden_dim,), jnp.float32),
        w_ff1=u(ks[8], (ff_dim, hidden_dim)),
        b_ff1=u(ks[9], (ff_dim,)),
        w_ff2=u(ks[10], (hidden_dim, ff_dim)),
        b_ff2=u(ks[11], (hidden_dim,)),
        ln2_w=jnp.ones((hidden_dim,), jnp.float32),
        ln2_b=jnp.zeros((hidden_dim,), jnp.float32),
        ln3_w=jnp.ones((hidden_dim,), jnp.float32),
        ln3_b=jnp.zeros((hidden_dim,), jnp.float32),
        w_mlp=u(ks[12], (output_dim, hidden_dim)),
        b_mlp=u(ks[13], (output_dim,)),
    )


def ref_forward(price, params, n_head):
    """Pure-JAX reference mirroring the PyTorch forward (eval mode)."""
    B, H = price.shape[0], price.shape[1]
    D = params["w_lin"].shape[0]
    x = price.reshape(B, H, -1).astype(jnp.float32)
    emb = x @ params["w_lin"].T + params["b_lin"]
    cls = jnp.broadcast_to(params["cls"], (B, 1, D))
    x = jnp.concatenate([cls, emb], axis=1) + params["pos"][:, :H + 1]
    qkv = x @ params["w_qkv"].T + params["b_qkv"]
    q, k, v = jnp.split(qkv, 3, axis=-1)
    hd = D // n_head

    def heads(t):
        return t.reshape(B, H + 1, n_head, hd).transpose(0, 2, 1, 3)

    q, k, v = heads(q), heads(k), heads(v)
    s = (q @ jnp.swapaxes(k, -1, -2)) / math.sqrt(hd)
    a = (jax.nn.softmax(s, axis=-1) @ v).transpose(0, 2, 1, 3).reshape(B, H + 1, D)
    a = a @ params["w_o"].T + params["b_o"]

    def ln(t, w, b):
        mu = t.mean(-1, keepdims=True)
        var = ((t - mu) ** 2).mean(-1, keepdims=True)
        return (t - mu) / jnp.sqrt(var + 1e-5) * w + b

    x = ln(x + a, params["ln1_w"], params["ln1_b"])
    ff = jax.nn.relu(x @ params["w_ff1"].T + params["b_ff1"]) @ params["w_ff2"].T + params["b_ff2"]
    x = ln(x + ff, params["ln2_w"], params["ln2_b"])
    c = x[:, 0]
    return ln(c, params["ln3_w"], params["ln3_b"]) @ params["w_mlp"].T + params["b_mlp"]


if __name__ == "__main__":
    B, history, h, w = 2, 8, 4, 4          # price: (B, history, 4, 4) -> input_dim = 16
    input_dim = h * w
    hidden_dim, output_dim, n_head, ff_dim = 32, 8, 8, 64

    key = jax.random.PRNGKey(0)
    k_price, k_params = jax.random.split(key)
    price = jax.random.normal(k_price, (B, history, h, w), jnp.float32)
    params = init_params(k_params, history, input_dim, hidden_dim, output_dim, ff_dim)

    prep = prepare_params(params, history, n_head, tb=8)   # one-time host prep
    out = price_feature_extractor_attn(price, prep)
    out = jax.block_until_ready(out)

    ref = ref_forward(price, params, n_head)
    assert out.shape == (B, output_dim)
    assert bool(jnp.all(jnp.isfinite(out)))
    assert bool(jnp.max(jnp.abs(out - ref)) < 1e-2), "mismatch vs pure-JAX reference"
    print("KERNEL_OK")
</pallas_src>

<mosaic_0001>
module attributes {stable_mosaic.version = 11 : i64} {
  func.func @_price_attn_kernel(%arg0: i32, %arg1: memref<128x16xf32, #tpu.memory_space<vmem>>, %arg2: memref<128x32xf32, #tpu.memory_space<vmem>>, %arg3: memref<16x32xf32, #tpu.memory_space<vmem>>, %arg4: memref<32x96xf32, #tpu.memory_space<vmem>>, %arg5: memref<1x96xf32, #tpu.memory_space<vmem>>, %arg6: memref<32x32xf32, #tpu.memory_space<vmem>>, %arg7: memref<32x64xf32, #tpu.memory_space<vmem>>, %arg8: memref<1x64xf32, #tpu.memory_space<vmem>>, %arg9: memref<64x32xf32, #tpu.memory_space<vmem>>, %arg10: memref<8x32xf32, #tpu.memory_space<vmem>>, %arg11: memref<32x8xf32, #tpu.memory_space<vmem>>, %arg12: memref<1x8xf32, #tpu.memory_space<vmem>>, %arg13: memref<128x16xf32, #tpu.memory_space<vmem>>, %arg14: memref<16x128xf32, #tpu.memory_space<vmem>>, %arg15: memref<128x32xf32, #tpu.memory_space<vmem>>, %arg16: memref<1x16xf32, #tpu.memory_space<vmem>>, %arg17: memref<8x128xf32, #tpu.memory_space<vmem>>, %arg18: memref<8x8xf32, #tpu.memory_space<vmem>>, %arg19: memref<128x32xf32, #tpu.memory_space<vmem>>) attributes {dimension_semantics = [#tpu.dimension_semantics<parallel>], iteration_bounds = array<i64: 1>, scalar_prefetch = 0 : i64, scratch_operands = 1 : i64, tpu.core_type = #tpu.core_type<tc>, window_params = [{transform_indices = @transform_0, window_bounds = array<i64: 128, 16>}, {pipeline_mode = #tpu.pipeline_mode<synchronous>, transform_indices = @transform_1, window_bounds = array<i64: 128, 32>}, {pipeline_mode = #tpu.pipeline_mode<synchronous>, transform_indices = @transform_2, window_bounds = array<i64: 16, 32>}, {pipeline_mode = #tpu.pipeline_mode<synchronous>, transform_indices = @transform_3, window_bounds = array<i64: 32, 96>}, {pipeline_mode = #tpu.pipeline_mode<synchronous>, transform_indices = @transform_4, window_bounds = array<i64: 1, 96>}, {pipeline_mode = #tpu.pipeline_mode<synchronous>, transform_indices = @transform_5, window_bounds = array<i64: 32, 32>}, {pipeline_mode = #tpu.pipeline_mode<synchronous>, transform_indices = @transform_6, window_bounds = array<i64: 32, 64>}, {pipeline_mode = #tpu.pipeline_mode<synchronous>, transform_indices = @transform_7, window_bounds = array<i64: 1, 64>}, {pipeline_mode = #tpu.pipeline_mode<synchronous>, transform_indices = @transform_8, window_bounds = array<i64: 64, 32>}, {pipeline_mode = #tpu.pipeline_mode<synchronous>, transform_indices = @transform_9, window_bounds = array<i64: 8, 32>}, {pipeline_mode = #tpu.pipeline_mode<synchronous>, transform_indices = @transform_10, window_bounds = array<i64: 32, 8>}, {pipeline_mode = #tpu.pipeline_mode<synchronous>, transform_indices = @transform_11, window_bounds = array<i64: 1, 8>}, {pipeline_mode = #tpu.pipeline_mode<synchronous>, transform_indices = @transform_12, window_bounds = array<i64: 128, 16>}, {pipeline_mode = #tpu.pipeline_mode<synchronous>, transform_indices = @transform_13, window_bounds = array<i64: 16, 128>}, {pipeline_mode = #tpu.pipeline_mode<synchronous>, transform_indices = @transform_14, window_bounds = array<i64: 128, 32>}, {pipeline_mode = #tpu.pipeline_mode<synchronous>, transform_indices = @transform_15, window_bounds = array<i64: 1, 16>}, {pipeline_mode = #tpu.pipeline_mode<synchronous>, transform_indices = @transform_16, window_bounds = array<i64: 8, 128>}, {transform_indices = @transform_17, window_bounds = array<i64: 8, 8>}]} {
    %c0 = arith.constant 0 : index
    %c0_0 = arith.constant 0 : index
    %0 = vector.load %arg1[%c0, %c0_0] : memref<128x16xf32, #tpu.memory_space<vmem>>, vector<128x16xf32>
    %c0_1 = arith.constant 0 : index
    %c0_2 = arith.constant 0 : index
    %1 = vector.load %arg3[%c0_1, %c0_2] : memref<16x32xf32, #tpu.memory_space<vmem>>, vector<16x32xf32>
    %cst = arith.constant dense<0.000000e+00> : vector<128x32xf32>
    %2 = tpu.matmul %0, %1, %cst {dimension_numbers = #tpu.dot_dimension_numbers<[1], [0], [0], [1], [0, 0, 1, 1], [], []>} : vector<128x16xf32>, vector<16x32xf32>, vector<128x32xf32> -> vector<128x32xf32>
    %c0_3 = arith.constant 0 : index
    %c0_4 = arith.constant 0 : index
    %3 = vector.load %arg2[%c0_3, %c0_4] : memref<128x32xf32, #tpu.memory_space<vmem>>, vector<128x32xf32>
    %4 = arith.addf %2, %3 : vector<128x32xf32>
    %c0_5 = arith.constant 0 : index
    %c0_6 = arith.constant 0 : index
    %5 = vector.load %arg4[%c0_5, %c0_6] : memref<32x96xf32, #tpu.memory_space<vmem>>, vector<32x96xf32>
    %cst_7 = arith.constant dense<0.000000e+00> : vector<128x96xf32>
    %6 = tpu.matmul %4, %5, %cst_7 {dimension_numbers = #tpu.dot_dimension_numbers<[1], [0], [0], [1], [0, 0, 1, 1], [], []>} : vector<128x32xf32>, vector<32x96xf32>, vector<128x96xf32> -> vector<128x96xf32>
    %c0_8 = arith.constant 0 : index
    %c0_9 = arith.constant 0 : index
    %7 = vector.load %arg5[%c0_8, %c0_9] : memref<1x96xf32, #tpu.memory_space<vmem>>, vector<1x96xf32>
    %8 = vector.broadcast %7 : vector<1x96xf32> to vector<128x96xf32>
    %9 = arith.addf %6, %8 : vector<128x96xf32>
    %10 = vector.extract_strided_slice %9 {offsets = [0, 0], sizes = [128, 32], strides = [1, 1]} : vector<128x96xf32> to vector<128x32xf32>
    %11 = vector.extract_strided_slice %9 {offsets = [0, 32], sizes = [128, 32], strides = [1, 1]} : vector<128x96xf32> to vector<128x32xf32>
    %12 = vector.extract_strided_slice %9 {offsets = [0, 64], sizes = [128, 32], strides = [1, 1]} : vector<128x96xf32> to vector<128x32xf32>
    %c0_10 = arith.constant 0 : index
    %c0_11 = arith.constant 0 : index
    %13 = vector.load %arg13[%c0_10, %c0_11] : memref<128x16xf32, #tpu.memory_space<vmem>>, vector<128x16xf32>
    %c0_12 = arith.constant 0 : index
    %c0_13 = arith.constant 0 : index
    %14 = vector.load %arg14[%c0_12, %c0_13] : memref<16x128xf32, #tpu.memory_space<vmem>>, vector<16x128xf32>
    %c0_14 = arith.constant 0 : index
    %c0_15 = arith.constant 0 : index
    %15 = vector.load %arg15[%c0_14, %c0_15] : memref<128x32xf32, #tpu.memory_space<vmem>>, vector<128x32xf32>
    %c0_16 = arith.constant 0 : index
    %c0_17 = arith.constant 0 : index
    %16 = vector.load %arg16[%c0_16, %c0_17] : memref<1x16xf32, #tpu.memory_space<vmem>>, vector<1x16xf32>
    %17 = vector.extract_strided_slice %10 {offsets = [0, 0], sizes = [16, 32], strides = [1, 1]} : vector<128x32xf32> to vector<16x32xf32>
    %18 = vector.extract_strided_slice %11 {offsets = [0, 0], sizes = [16, 32], strides = [1, 1]} : vector<128x32xf32> to vector<16x32xf32>
    %19 = vector.extract_strided_slice %12 {offsets = [0, 0], sizes = [16, 32], strides = [1, 1]} : vector<128x32xf32> to vector<16x32xf32>
    %cst_18 = arith.constant dense<0.000000e+00> : vector<128x32xf32>
    %20 = tpu.matmul %13, %17, %cst_18 {dimension_numbers = #tpu.dot_dimension_numbers<[1], [0], [0], [1], [0, 0, 1, 1], [], []>} : vector<128x16xf32>, vector<16x32xf32>, vector<128x32xf32> -> vector<128x32xf32>
    %21 = arith.mulf %20, %15 : vector<128x32xf32>
    %22 = tpu.transpose %18, [1, 0] : vector<16x32xf32> -> vector<32x16xf32>
    %cst_19 = arith.constant dense<0.000000e+00> : vector<128x16xf32>
    %23 = tpu.matmul %21, %22, %cst_19 {dimension_numbers = #tpu.dot_dimension_numbers<[1], [0], [0], [1], [0, 0, 1, 1], [], []>} : vector<128x32xf32>, vector<32x16xf32>, vector<128x16xf32> -> vector<128x16xf32>
    %24 = vector.broadcast %16 : vector<1x16xf32> to vector<128x16xf32>
    %25 = arith.addf %23, %24 : vector<128x16xf32>
    %cst_20 = arith.constant dense<0xFF800000> : vector<128xf32>
    %26 = vector.multi_reduction <maximumf>, %25, %cst_20 [1] : vector<128x16xf32> to vector<128xf32>
    %27 = vector.shape_cast %26 : vector<128xf32> to vector<128x1xf32>
    %28 = vector.broadcast %27 : vector<128x1xf32> to vector<128x16xf32>
    %29 = arith.subf %25, %28 : vector<128x16xf32>
    %30 = math.exp %29 : vector<128x16xf32>
    %cst_21 = arith.constant dense<0.000000e+00> : vector<128xf32>
    %31 = vector.multi_reduction <add>, %30, %cst_21 [1] : vector<128x16xf32> to vector<128xf32>
    %32 = vector.shape_cast %31 : vector<128xf32> to vector<128x1xf32>
    %33 = tpu.reciprocal %32 {approx = true} : vector<128x1xf32> -> vector<128x1xf32>
    %34 = vector.broadcast %33 : vector<128x1xf32> to vector<128x16xf32>
    %35 = arith.mulf %30, %34 : vector<128x16xf32>
    %cst_22 = arith.constant dense<0.000000e+00> : vector<128x32xf32>
    %36 = tpu.matmul %35, %19, %cst_22 {dimension_numbers = #tpu.dot_dimension_numbers<[1], [0], [0], [1], [0, 0, 1, 1], [], []>} : vector<128x16xf32>, vector<16x32xf32>, vector<128x32xf32> -> vector<128x32xf32>
    %37 = arith.mulf %36, %15 : vector<128x32xf32>
    %cst_23 = arith.constant dense<0.000000e+00> : vector<16x32xf32>
    %38 = tpu.matmul %14, %37, %cst_23 {dimension_numbers = #tpu.dot_dimension_numbers<[1], [0], [0], [1], [0, 0, 1, 1], [], []>} : vector<16x128xf32>, vector<128x32xf32>, vector<16x32xf32> -> vector<16x32xf32>
    %c0_24 = arith.constant 0 : index
    %c0_25 = arith.constant 0 : index
    %39 = vector.load %arg19[%c0_24, %c0_25] : memref<128x32xf32, #tpu.memory_space<vmem>>, vector<16x32xf32>
    tpu.vector_store %arg19[%c0_24, %c0_25], %38 {strides = array<i32>} : memref<128x32xf32, #tpu.memory_space<vmem>>, vector<16x32xf32>,
    %40 = vector.extract_strided_slice %10 {offsets = [16, 0], sizes = [16, 32], strides = [1, 1]} : vector<128x32xf32> to vector<16x32xf32>
    %41 = vector.extract_strided_slice %11 {offsets = [16, 0], sizes = [16, 32], strides = [1, 1]} : vector<128x32xf32> to vector<16x32xf32>
    %42 = vector.extract_strided_slice %12 {offsets = [16, 0], sizes = [16, 32], strides = [1, 1]} : vector<128x32xf32> to vector<16x32xf32>
    %cst_26 = arith.constant dense<0.000000e+00> : vector<128x32xf32>
    %43 = tpu.matmul %13, %40, %cst_26 {dimension_numbers = #tpu.dot_dimension_numbers<[1], [0], [0], [1], [0, 0, 1, 1], [], []>} : vector<128x16xf32>, vector<16x32xf32>, vector<128x32xf32> -> vector<128x32xf32>
    %44 = arith.mulf %43, %15 : vector<128x32xf32>
    %45 = tpu.transpose %41, [1, 0] : vector<16x32xf32> -> vector<32x16xf32>
    %cst_27 = arith.constant dense<0.000000e+00> : vector<128x16xf32>
    %46 = tpu.matmul %44, %45, %cst_27 {dimension_numbers = #tpu.dot_dimension_numbers<[1], [0], [0], [1], [0, 0, 1, 1], [], []>} : vector<128x32xf32>, vector<32x16xf32>, vector<128x16xf32> -> vector<128x16xf32>
    %47 = vector.broadcast %16 : vector<1x16xf32> to vector<128x16xf32>
    %48 = arith.addf %46, %47 : vector<128x16xf32>
    %cst_28 = arith.constant dense<0xFF800000> : vector<128xf32>
    %49 = vector.multi_reduction <maximumf>, %48, %cst_28 [1] : vector<128x16xf32> to vector<128xf32>
    %50 = vector.shape_cast %49 : vector<128xf32> to vector<128x1xf32>
    %51 = vector.broadcast %50 : vector<128x1xf32> to vector<128x16xf32>
    %52 = arith.subf %48, %51 : vector<128x16xf32>
    %53 = math.exp %52 : vector<128x16xf32>
    %cst_29 = arith.constant dense<0.000000e+00> : vector<128xf32>
    %54 = vector.multi_reduction <add>, %53, %cst_29 [1] : vector<128x16xf32> to vector<128xf32>
    %55 = vector.shape_cast %54 : vector<128xf32> to vector<128x1xf32>
    %56 = tpu.reciprocal %55 {approx = true} : vector<128x1xf32> -> vector<128x1xf32>
    %57 = vector.broadcast %56 : vector<128x1xf32> to vector<128x16xf32>
    %58 = arith.mulf %53, %57 : vector<128x16xf32>
    %cst_30 = arith.constant dense<0.000000e+00> : vector<128x32xf32>
    %59 = tpu.matmul %58, %42, %cst_30 {dimension_numbers = #tpu.dot_dimension_numbers<[1], [0], [0], [1], [0, 0, 1, 1], [], []>} : vector<128x16xf32>, vector<16x32xf32>, vector<128x32xf32> -> vector<128x32xf32>
    %60 = arith.mulf %59, %15 : vector<128x32xf32>
    %cst_31 = arith.constant dense<0.000000e+00> : vector<16x32xf32>
    %61 = tpu.matmul %14, %60, %cst_31 {dimension_numbers = #tpu.dot_dimension_numbers<[1], [0], [0], [1], [0, 0, 1, 1], [], []>} : vector<16x128xf32>, vector<128x32xf32>, vector<16x32xf32> -> vector<16x32xf32>
    %c16 = arith.constant 16 : index
    %c0_32 = arith.constant 0 : index
    %62 = vector.load %arg19[%c16, %c0_32] : memref<128x32xf32, #tpu.memory_space<vmem>>, vector<16x32xf32>
    tpu.vector_store %arg19[%c16, %c0_32], %61 {strides = array<i32>} : memref<128x32xf32, #tpu.memory_space<vmem>>, vector<16x32xf32>,
    %63 = vector.extract_strided_slice %10 {offsets = [32, 0], sizes = [16, 32], strides = [1, 1]} : vector<128x32xf32> to vector<16x32xf32>
    %64 = vector.extract_strided_slice %11 {offsets = [32, 0], sizes = [16, 32], strides = [1, 1]} : vector<128x32xf32> to vector<16x32xf32>
    %65 = vector.extract_strided_slice %12 {offsets = [32, 0], sizes = [16, 32], strides = [1, 1]} : vector<128x32xf32> to vector<16x32xf32>
    %cst_33 = arith.constant dense<0.000000e+00> : vector<128x32xf32>
    %66 = tpu.matmul %13, %63, %cst_33 {dimension_numbers = #tpu.dot_dimension_numbers<[1], [0], [0], [1], [0, 0, 1, 1], [], []>} : vector<128x16xf32>, vector<16x32xf32>, vector<128x32xf32> -> vector<128x32xf32>
    %67 = arith.mulf %66, %15 : vector<128x32xf32>
    %68 = tpu.transpose %64, [1, 0] : vector<16x32xf32> -> vector<32x16xf32>
    %cst_34 = arith.constant dense<0.000000e+00> : vector<128x16xf32>
    %69 = tpu.matmul %67, %68, %cst_34 {dimension_numbers = #tpu.dot_dimension_numbers<[1], [0], [0], [1], [0, 0, 1, 1], [], []>} : vector<128x32xf32>, vector<32x16xf32>, vector<128x16xf32> -> vector<128x16xf32>
    %70 = vector.broadcast %16 : vector<1x16xf32> to vector<128x16xf32>
    %71 = arith.addf %69, %70 : vector<128x16xf32>
    %cst_35 = arith.constant dense<0xFF800000> : vector<128xf32>
    %72 = vector.multi_reduction <maximumf>, %71, %cst_35 [1] : vector<128x16xf32> to vector<128xf32>
    %73 = vector.shape_cast %72 : vector<128xf32> to vector<128x1xf32>
    %74 = vector.broadcast %73 : vector<128x1xf32> to vector<128x16xf32>
    %75 = arith.subf %71, %74 : vector<128x16xf32>
    %76 = math.exp %75 : vector<128x16xf32>
    %cst_36 = arith.constant dense<0.000000e+00> : vector<128xf32>
    %77 = vector.multi_reduction <add>, %76, %cst_36 [1] : vector<128x16xf32> to vector<128xf32>
    %78 = vector.shape_cast %77 : vector<128xf32> to vector<128x1xf32>
    %79 = tpu.reciprocal %78 {approx = true} : vector<128x1xf32> -> vector<128x1xf32>
    %80 = vector.broadcast %79 : vector<128x1xf32> to vector<128x16xf32>
    %81 = arith.mulf %76, %80 : vector<128x16xf32>
    %cst_37 = arith.constant dense<0.000000e+00> : vector<128x32xf32>
    %82 = tpu.matmul %81, %65, %cst_37 {dimension_numbers = #tpu.dot_dimension_numbers<[1], [0], [0], [1], [0, 0, 1, 1], [], []>} : vector<128x16xf32>, vector<16x32xf32>, vector<128x32xf32> -> vector<128x32xf32>
    %83 = arith.mulf %82, %15 : vector<128x32xf32>
    %cst_38 = arith.constant dense<0.000000e+00> : vector<16x32xf32>
    %84 = tpu.matmul %14, %83, %cst_38 {dimension_numbers = #tpu.dot_dimension_numbers<[1], [0], [0], [1], [0, 0, 1, 1], [], []>} : vector<16x128xf32>, vector<128x32xf32>, vector<16x32xf32> -> vector<16x32xf32>
    %c32 = arith.constant 32 : index
    %c0_39 = arith.constant 0 : index
    %85 = vector.load %arg19[%c32, %c0_39] : memref<128x32xf32, #tpu.memory_space<vmem>>, vector<16x32xf32>
    tpu.vector_store %arg19[%c32, %c0_39], %84 {strides = array<i32>} : memref<128x32xf32, #tpu.memory_space<vmem>>, vector<16x32xf32>,
    %86 = vector.extract_strided_slice %10 {offsets = [48, 0], sizes = [16, 32], strides = [1, 1]} : vector<128x32xf32> to vector<16x32xf32>
    %87 = vector.extract_strided_slice %11 {offsets = [48, 0], sizes = [16, 32], strides = [1, 1]} : vector<128x32xf32> to vector<16x32xf32>
    %88 = vector.extract_strided_slice %12 {offsets = [48, 0], sizes = [16, 32], strides = [1, 1]} : vector<128x32xf32> to vector<16x32xf32>
    %cst_40 = arith.constant dense<0.000000e+00> : vector<128x32xf32>
    %89 = tpu.matmul %13, %86, %cst_40 {dimension_numbers = #tpu.dot_dimension_numbers<[1], [0], [0], [1], [0, 0, 1, 1], [], []>} : vector<128x16xf32>, vector<16x32xf32>, vector<128x32xf32> -> vector<128x32xf32>
    %90 = arith.mulf %89, %15 : vector<128x32xf32>
    %91 = tpu.transpose %87, [1, 0] : vector<16x32xf32> -> vector<32x16xf32>
    %cst_41 = arith.constant dense<0.000000e+00> : vector<128x16xf32>
    %92 = tpu.matmul %90, %91, %cst_41 {dimension_numbers = #tpu.dot_dimension_numbers<[1], [0], [0], [1], [0, 0, 1, 1], [], []>} : vector<128x32xf32>, vector<32x16xf32>, vector<128x16xf32> -> vector<128x16xf32>
    %93 = vector.broadcast %16 : vector<1x16xf32> to vector<128x16xf32>
    %94 = arith.addf %92, %93 : vector<128x16xf32>
    %cst_42 = arith.constant dense<0xFF800000> : vector<128xf32>
    %95 = vector.multi_reduction <maximumf>, %94, %cst_42 [1] : vector<128x16xf32> to vector<128xf32>
    %96 = vector.shape_cast %95 : vector<128xf32> to vector<128x1xf32>
    %97 = vector.broadcast %96 : vector<128x1xf32> to vector<128x16xf32>
    %98 = arith.subf %94, %97 : vector<128x16xf32>
    %99 = math.exp %98 : vector<128x16xf32>
    %cst_43 = arith.constant dense<0.000000e+00> : vector<128xf32>
    %100 = vector.multi_reduction <add>, %99, %cst_43 [1] : vector<128x16xf32> to vector<128xf32>
    %101 = vector.shape_cast %100 : vector<128xf32> to vector<128x1xf32>
    %102 = tpu.reciprocal %101 {approx = true} : vector<128x1xf32> -> vector<128x1xf32>
    %103 = vector.broadcast %102 : vector<128x1xf32> to vector<128x16xf32>
    %104 = arith.mulf %99, %103 : vector<128x16xf32>
    %cst_44 = arith.constant dense<0.000000e+00> : vector<128x32xf32>
    %105 = tpu.matmul %104, %88, %cst_44 {dimension_numbers = #tpu.dot_dimension_numbers<[1], [0], [0], [1], [0, 0, 1, 1], [], []>} : vector<128x16xf32>, vector<16x32xf32>, vector<128x32xf32> -> vector<128x32xf32>
    %106 = arith.mulf %105, %15 : vector<128x32xf32>
    %cst_45 = arith.constant dense<0.000000e+00> : vector<16x32xf32>
    %107 = tpu.matmul %14, %106, %cst_45 {dimension_numbers = #tpu.dot_dimension_numbers<[1], [0], [0], [1], [0, 0, 1, 1], [], []>} : vector<16x128xf32>, vector<128x32xf32>, vector<16x32xf32> -> vector<16x32xf32>
    %c48 = arith.constant 48 : index
    %c0_46 = arith.constant 0 : index
    %108 = vector.load %arg19[%c48, %c0_46] : memref<128x32xf32, #tpu.memory_space<vmem>>, vector<16x32xf32>
    tpu.vector_store %arg19[%c48, %c0_46], %107 {strides = array<i32>} : memref<128x32xf32, #tpu.memory_space<vmem>>, vector<16x32xf32>,
    %109 = vector.extract_strided_slice %10 {offsets = [64, 0], sizes = [16, 32], strides = [1, 1]} : vector<128x32xf32> to vector<16x32xf32>
    %110 = vector.extract_strided_slice %11 {offsets = [64, 0], sizes = [16, 32], strides = [1, 1]} : vector<128x32xf32> to vector<16x32xf32>
    %111 = vector.extract_strided_slice %12 {offsets = [64, 0], sizes = [16, 32], strides = [1, 1]} : vector<128x32xf32> to vector<16x32xf32>
    %cst_47 = arith.constant dense<0.000000e+00> : vector<128x32xf32>
    %112 = tpu.matmul %13, %109, %cst_47 {dimension_numbers = #tpu.dot_dimension_numbers<[1], [0], [0], [1], [0, 0, 1, 1], [], []>} : vector<128x16xf32>, vector<16x32xf32>, vector<128x32xf32> -> vector<128x32xf32>
    %113 = arith.mulf %112, %15 : vector<128x32xf32>
    %114 = tpu.transpose %110, [1, 0] : vector<16x32xf32> -> vector<32x16xf32>
    %cst_48 = arith.constant dense<0.000000e+00> : vector<128x16xf32>
    %115 = tpu.matmul %113, %114, %cst_48 {dimension_numbers = #tpu.dot_dimension_numbers<[1], [0], [0], [1], [0, 0, 1, 1], [], []>} : vector<128x32xf32>, vector<32x16xf32>, vector<128x16xf32> -> vector<128x16xf32>
    %116 = vector.broadcast %16 : vector<1x16xf32> to vector<128x16xf32>
    %117 = arith.addf %115, %116 : vector<128x16xf32>
    %cst_49 = arith.constant dense<0xFF800000> : vector<128xf32>
    %118 = vector.multi_reduction <maximumf>, %117, %cst_49 [1] : vector<128x16xf32> to vector<128xf32>
    %119 = vector.shape_cast %118 : vector<128xf32> to vector<128x1xf32>
    %120 = vector.broadcast %119 : vector<128x1xf32> to vector<128x16xf32>
    %121 = arith.subf %117, %120 : vector<128x16xf32>
    %122 = math.exp %121 : vector<128x16xf32>
    %cst_50 = arith.constant dense<0.000000e+00> : vector<128xf32>
    %123 = vector.multi_reduction <add>, %122, %cst_50 [1] : vector<128x16xf32> to vector<128xf32>
    %124 = vector.shape_cast %123 : vector<128xf32> to vector<128x1xf32>
    %125 = tpu.reciprocal %124 {approx = true} : vector<128x1xf32> -> vector<128x1xf32>
    %126 = vector.broadcast %125 : vector<128x1xf32> to vector<128x16xf32>
    %127 = arith.mulf %122, %126 : vector<128x16xf32>
    %cst_51 = arith.constant dense<0.000000e+00> : vector<128x32xf32>
    %128 = tpu.matmul %127, %111, %cst_51 {dimension_numbers = #tpu.dot_dimension_numbers<[1], [0], [0], [1], [0, 0, 1, 1], [], []>} : vector<128x16xf32>, vector<16x32xf32>, vector<128x32xf32> -> vector<128x32xf32>
    %129 = arith.mulf %128, %15 : vector<128x32xf32>
    %cst_52 = arith.constant dense<0.000000e+00> : vector<16x32xf32>
    %130 = tpu.matmul %14, %129, %cst_52 {dimension_numbers = #tpu.dot_dimension_numbers<[1], [0], [0], [1], [0, 0, 1, 1], [], []>} : vector<16x128xf32>, vector<128x32xf32>, vector<16x32xf32> -> vector<16x32xf32>
    %c64 = arith.constant 64 : index
    %c0_53 = arith.constant 0 : index
    %131 = vector.load %arg19[%c64, %c0_53] : memref<128x32xf32, #tpu.memory_space<vmem>>, vector<16x32xf32>
    tpu.vector_store %arg19[%c64, %c0_53], %130 {strides = array<i32>} : memref<128x32xf32, #tpu.memory_space<vmem>>, vector<16x32xf32>,
    %132 = vector.extract_strided_slice %10 {offsets = [80, 0], sizes = [16, 32], strides = [1, 1]} : vector<128x32xf32> to vector<16x32xf32>
    %133 = vector.extract_strided_slice %11 {offsets = [80, 0], sizes = [16, 32], strides = [1, 1]} : vector<128x32xf32> to vector<16x32xf32>
    %134 = vector.extract_strided_slice %12 {offsets = [80, 0], sizes = [16, 32], strides = [1, 1]} : vector<128x32xf32> to vector<16x32xf32>
    %cst_54 = arith.constant dense<0.000000e+00> : vector<128x32xf32>
    %135 = tpu.matmul %13, %132, %cst_54 {dimension_numbers = #tpu.dot_dimension_numbers<[1], [0], [0], [1], [0, 0, 1, 1], [], []>} : vector<128x16xf32>, vector<16x32xf32>, vector<128x32xf32> -> vector<128x32xf32>
    %136 = arith.mulf %135, %15 : vector<128x32xf32>
    %137 = tpu.transpose %133, [1, 0] : vector<16x32xf32> -> vector<32x16xf32>
    %cst_55 = arith.constant dense<0.000000e+00> : vector<128x16xf32>
    %138 = tpu.matmul %136, %137, %cst_55 {dimension_numbers = #tpu.dot_dimension_numbers<[1], [0], [0], [1], [0, 0, 1, 1], [], []>} : vector<128x32xf32>, vector<32x16xf32>, vector<128x16xf32> -> vector<128x16xf32>
    %139 = vector.broadcast %16 : vector<1x16xf32> to vector<128x16xf32>
    %140 = arith.addf %138, %139 : vector<128x16xf32>
    %cst_56 = arith.constant dense<0xFF800000> : vector<128xf32>
    %141 = vector.multi_reduction <maximumf>, %140, %cst_56 [1] : vector<128x16xf32> to vector<128xf32>
    %142 = vector.shape_cast %141 : vector<128xf32> to vector<128x1xf32>
    %143 = vector.broadcast %142 : vector<128x1xf32> to vector<128x16xf32>
    %144 = arith.subf %140, %143 : vector<128x16xf32>
    %145 = math.exp %144 : vector<128x16xf32>
    %cst_57 = arith.constant dense<0.000000e+00> : vector<128xf32>
    %146 = vector.multi_reduction <add>, %145, %cst_57 [1] : vector<128x16xf32> to vector<128xf32>
    %147 = vector.shape_cast %146 : vector<128xf32> to vector<128x1xf32>
    %148 = tpu.reciprocal %147 {approx = true} : vector<128x1xf32> -> vector<128x1xf32>
    %149 = vector.broadcast %148 : vector<128x1xf32> to vector<128x16xf32>
    %150 = arith.mulf %145, %149 : vector<128x16xf32>
    %cst_58 = arith.constant dense<0.000000e+00> : vector<128x32xf32>
    %151 = tpu.matmul %150, %134, %cst_58 {dimension_numbers = #tpu.dot_dimension_numbers<[1], [0], [0], [1], [0, 0, 1, 1], [], []>} : vector<128x16xf32>, vector<16x32xf32>, vector<128x32xf32> -> vector<128x32xf32>
    %152 = arith.mulf %151, %15 : vector<128x32xf32>
    %cst_59 = arith.constant dense<0.000000e+00> : vector<16x32xf32>
    %153 = tpu.matmul %14, %152, %cst_59 {dimension_numbers = #tpu.dot_dimension_numbers<[1], [0], [0], [1], [0, 0, 1, 1], [], []>} : vector<16x128xf32>, vector<128x32xf32>, vector<16x32xf32> -> vector<16x32xf32>
    %c80 = arith.constant 80 : index
    %c0_60 = arith.constant 0 : index
    %154 = vector.load %arg19[%c80, %c0_60] : memref<128x32xf32, #tpu.memory_space<vmem>>, vector<16x32xf32>
    tpu.vector_store %arg19[%c80, %c0_60], %153 {strides = array<i32>} : memref<128x32xf32, #tpu.memory_space<vmem>>, vector<16x32xf32>,
    %155 = vector.extract_strided_slice %10 {offsets = [96, 0], sizes = [16, 32], strides = [1, 1]} : vector<128x32xf32> to vector<16x32xf32>
    %156 = vector.extract_strided_slice %11 {offsets = [96, 0], sizes = [16, 32], strides = [1, 1]} : vector<128x32xf32> to vector<16x32xf32>
    %157 = vector.extract_strided_slice %12 {offsets = [96, 0], sizes = [16, 32], strides = [1, 1]} : vector<128x32xf32> to vector<16x32xf32>
    %cst_61 = arith.constant dense<0.000000e+00> : vector<128x32xf32>
    %158 = tpu.matmul %13, %155, %cst_61 {dimension_numbers = #tpu.dot_dimension_numbers<[1], [0], [0], [1], [0, 0, 1, 1], [], []>} : vector<128x16xf32>, vector<16x32xf32>, vector<128x32xf32> -> vector<128x32xf32>
    %159 = arith.mulf %158, %15 : vector<128x32xf32>
    %160 = tpu.transpose %156, [1, 0] : vector<16x32xf32> -> vector<32x16xf32>
    %cst_62 = arith.constant dense<0.000000e+00> : vector<128x16xf32>
    %161 = tpu.matmul %159, %160, %cst_62 {dimension_numbers = #tpu.dot_dimension_numbers<[1], [0], [0], [1], [0, 0, 1, 1], [], []>} : vector<128x32xf32>, vector<32x16xf32>, vector<128x16xf32> -> vector<128x16xf32>
    %162 = vector.broadcast %16 : vector<1x16xf32> to vector<128x16xf32>
    %163 = arith.addf %161, %162 : vector<128x16xf32>
    %cst_63 = arith.constant dense<0xFF800000> : vector<128xf32>
    %164 = vector.multi_reduction <maximumf>, %163, %cst_63 [1] : vector<128x16xf32> to vector<128xf32>
    %165 = vector.shape_cast %164 : vector<128xf32> to vector<128x1xf32>
    %166 = vector.broadcast %165 : vector<128x1xf32> to vector<128x16xf32>
    %167 = arith.subf %163, %166 : vector<128x16xf32>
    %168 = math.exp %167 : vector<128x16xf32>
    %cst_64 = arith.constant dense<0.000000e+00> : vector<128xf32>
    %169 = vector.multi_reduction <add>, %168, %cst_64 [1] : vector<128x16xf32> to vector<128xf32>
    %170 = vector.shape_cast %169 : vector<128xf32> to vector<128x1xf32>
    %171 = tpu.reciprocal %170 {approx = true} : vector<128x1xf32> -> vector<128x1xf32>
    %172 = vector.broadcast %171 : vector<128x1xf32> to vector<128x16xf32>
    %173 = arith.mulf %168, %172 : vector<128x16xf32>
    %cst_65 = arith.constant dense<0.000000e+00> : vector<128x32xf32>
    %174 = tpu.matmul %173, %157, %cst_65 {dimension_numbers = #tpu.dot_dimension_numbers<[1], [0], [0], [1], [0, 0, 1, 1], [], []>} : vector<128x16xf32>, vector<16x32xf32>, vector<128x32xf32> -> vector<128x32xf32>
    %175 = arith.mulf %174, %15 : vector<128x32xf32>
    %cst_66 = arith.constant dense<0.000000e+00> : vector<16x32xf32>
    %176 = tpu.matmul %14, %175, %cst_66 {dimension_numbers = #tpu.dot_dimension_numbers<[1], [0], [0], [1], [0, 0, 1, 1], [], []>} : vector<16x128xf32>, vector<128x32xf32>, vector<16x32xf32> -> vector<16x32xf32>
    %c96 = arith.constant 96 : index
    %c0_67 = arith.constant 0 : index
    %177 = vector.load %arg19[%c96, %c0_67] : memref<128x32xf32, #tpu.memory_space<vmem>>, vector<16x32xf32>
    tpu.vector_store %arg19[%c96, %c0_67], %176 {strides = array<i32>} : memref<128x32xf32, #tpu.memory_space<vmem>>, vector<16x32xf32>,
    %178 = vector.extract_strided_slice %10 {offsets = [112, 0], sizes = [16, 32], strides = [1, 1]} : vector<128x32xf32> to vector<16x32xf32>
    %179 = vector.extract_strided_slice %11 {offsets = [112, 0], sizes = [16, 32], strides = [1, 1]} : vector<128x32xf32> to vector<16x32xf32>
    %180 = vector.extract_strided_slice %12 {offsets = [112, 0], sizes = [16, 32], strides = [1, 1]} : vector<128x32xf32> to vector<16x32xf32>
    %cst_68 = arith.constant dense<0.000000e+00> : vector<128x32xf32>
    %181 = tpu.matmul %13, %178, %cst_68 {dimension_numbers = #tpu.dot_dimension_numbers<[1], [0], [0], [1], [0, 0, 1, 1], [], []>} : vector<128x16xf32>, vector<16x32xf32>, vector<128x32xf32> -> vector<128x32xf32>
    %182 = arith.mulf %181, %15 : vector<128x32xf32>
    %183 = tpu.transpose %179, [1, 0] : vector<16x32xf32> -> vector<32x16xf32>
    %cst_69 = arith.constant dense<0.000000e+00> : vector<128x16xf32>
    %184 = tpu.matmul %182, %183, %cst_69 {dimension_numbers = #tpu.dot_dimension_numbers<[1], [0], [0], [1], [0, 0, 1, 1], [], []>} : vector<128x32xf32>, vector<32x16xf32>, vector<128x16xf32> -> vector<128x16xf32>
    %185 = vector.broadcast %16 : vector<1x16xf32> to vector<128x16xf32>
    %186 = arith.addf %184, %185 : vector<128x16xf32>
    %cst_70 = arith.constant dense<0xFF800000> : vector<128xf32>
    %187 = vector.multi_reduction <maximumf>, %186, %cst_70 [1] : vector<128x16xf32> to vector<128xf32>
    %188 = vector.shape_cast %187 : vector<128xf32> to vector<128x1xf32>
    %189 = vector.broadcast %188 : vector<128x1xf32> to vector<128x16xf32>
    %190 = arith.subf %186, %189 : vector<128x16xf32>
    %191 = math.exp %190 : vector<128x16xf32>
    %cst_71 = arith.constant dense<0.000000e+00> : vector<128xf32>
    %192 = vector.multi_reduction <add>, %191, %cst_71 [1] : vector<128x16xf32> to vector<128xf32>
    %193 = vector.shape_cast %192 : vector<128xf32> to vector<128x1xf32>
    %194 = tpu.reciprocal %193 {approx = true} : vector<128x1xf32> -> vector<128x1xf32>
    %195 = vector.broadcast %194 : vector<128x1xf32> to vector<128x16xf32>
    %196 = arith.mulf %191, %195 : vector<128x16xf32>
    %cst_72 = arith.constant dense<0.000000e+00> : vector<128x32xf32>
    %197 = tpu.matmul %196, %180, %cst_72 {dimension_numbers = #tpu.dot_dimension_numbers<[1], [0], [0], [1], [0, 0, 1, 1], [], []>} : vector<128x16xf32>, vector<16x32xf32>, vector<128x32xf32> -> vector<128x32xf32>
    %198 = arith.mulf %197, %15 : vector<128x32xf32>
    %cst_73 = arith.constant dense<0.000000e+00> : vector<16x32xf32>
    %199 = tpu.matmul %14, %198, %cst_73 {dimension_numbers = #tpu.dot_dimension_numbers<[1], [0], [0], [1], [0, 0, 1, 1], [], []>} : vector<16x128xf32>, vector<128x32xf32>, vector<16x32xf32> -> vector<16x32xf32>
    %c112 = arith.constant 112 : index
    %c0_74 = arith.constant 0 : index
    %200 = vector.load %arg19[%c112, %c0_74] : memref<128x32xf32, #tpu.memory_space<vmem>>, vector<16x32xf32>
    tpu.vector_store %arg19[%c112, %c0_74], %199 {strides = array<i32>} : memref<128x32xf32, #tpu.memory_space<vmem>>, vector<16x32xf32>,
    %c0_75 = arith.constant 0 : index
    %c0_76 = arith.constant 0 : index
    %201 = vector.load %arg10[%c0_75, %c0_76] : memref<8x32xf32, #tpu.memory_space<vmem>>, vector<1x32xf32>
    %c1 = arith.constant 1 : index
    %c0_77 = arith.constant 0 : index
    %202 = vector.load %arg10[%c1, %c0_77] : memref<8x32xf32, #tpu.memory_space<vmem>>, vector<1x32xf32>
    %c2 = arith.constant 2 : index
    %c0_78 = arith.constant 0 : index
    %203 = vector.load %arg10[%c2, %c0_78] : memref<8x32xf32, #tpu.memory_space<vmem>>, vector<1x32xf32>
    %c3 = arith.constant 3 : index
    %c0_79 = arith.constant 0 : index
    %204 = vector.load %arg10[%c3, %c0_79] : memref<8x32xf32, #tpu.memory_space<vmem>>, vector<1x32xf32>
    %c4 = arith.constant 4 : index
    %c0_80 = arith.constant 0 : index
    %205 = vector.load %arg10[%c4, %c0_80] : memref<8x32xf32, #tpu.memory_space<vmem>>, vector<1x32xf32>
    %c5 = arith.constant 5 : index
    %c0_81 = arith.constant 0 : index
    %206 = vector.load %arg10[%c5, %c0_81] : memref<8x32xf32, #tpu.memory_space<vmem>>, vector<1x32xf32>
    %c6 = arith.constant 6 : index
    %c0_82 = arith.constant 0 : index
    %207 = vector.load %arg10[%c6, %c0_82] : memref<8x32xf32, #tpu.memory_space<vmem>>, vector<1x32xf32>
    %c7 = arith.constant 7 : index
    %c0_83 = arith.constant 0 : index
    %208 = vector.load %arg10[%c7, %c0_83] : memref<8x32xf32, #tpu.memory_space<vmem>>, vector<1x32xf32>
    %c0_84 = arith.constant 0 : index
    %c0_85 = arith.constant 0 : index
    %209 = vector.load %arg19[%c0_84, %c0_85] : memref<128x32xf32, #tpu.memory_space<vmem>>, vector<128x32xf32>
    %c0_86 = arith.constant 0 : index
    %c0_87 = arith.constant 0 : index
    %210 = vector.load %arg6[%c0_86, %c0_87] : memref<32x32xf32, #tpu.memory_space<vmem>>, vector<32x32xf32>
    %cst_88 = arith.constant dense<0.000000e+00> : vector<128x32xf32>
    %211 = tpu.matmul %209, %210, %cst_88 {dimension_numbers = #tpu.dot_dimension_numbers<[1], [0], [0], [1], [0, 0, 1, 1], [], []>} : vector<128x32xf32>, vector<32x32xf32>, vector<128x32xf32> -> vector<128x32xf32>
    %212 = vector.broadcast %201 : vector<1x32xf32> to vector<128x32xf32>
    %213 = arith.addf %211, %212 : vector<128x32xf32>
    %214 = arith.addf %4, %213 : vector<128x32xf32>
    %cst_89 = arith.constant dense<0.000000e+00> : vector<128xf32>
    %215 = vector.multi_reduction <add>, %214, %cst_89 [1] : vector<128x32xf32> to vector<128xf32>
    %216 = vector.shape_cast %215 : vector<128xf32> to vector<128x1xf32>
    %cst_90 = arith.constant 3.200000e+01 : f32
    %217 = vector.broadcast %cst_90 : f32 to vector<128x1xf32>
    %218 = arith.divf %216, %217 : vector<128x1xf32>
    %219 = vector.broadcast %218 : vector<128x1xf32> to vector<128x32xf32>
    %220 = arith.subf %214, %219 : vector<128x32xf32>
    %221 = arith.mulf %220, %220 : vector<128x32xf32>
    %cst_91 = arith.constant dense<0.000000e+00> : vector<128xf32>
    %222 = vector.multi_reduction <add>, %221, %cst_91 [1] : vector<128x32xf32> to vector<128xf32>
    %223 = vector.shape_cast %222 : vector<128xf32> to vector<128x1xf32>
    %cst_92 = arith.constant 3.200000e+01 : f32
    %224 = vector.broadcast %cst_92 : f32 to vector<128x1xf32>
    %225 = arith.divf %223, %224 : vector<128x1xf32>
    %cst_93 = arith.constant 9.99999974E-6 : f32
    %226 = vector.broadcast %cst_93 : f32 to vector<128x1xf32>
    %227 = arith.addf %225, %226 : vector<128x1xf32>
    %228 = math.rsqrt %227 : vector<128x1xf32>
    %229 = vector.broadcast %228 : vector<128x1xf32> to vector<128x32xf32>
    %230 = arith.mulf %220, %229 : vector<128x32xf32>
    %231 = vector.broadcast %202 : vector<1x32xf32> to vector<128x32xf32>
    %232 = arith.mulf %230, %231 : vector<128x32xf32>
    %233 = vector.broadcast %203 : vector<1x32xf32> to vector<128x32xf32>
    %234 = arith.addf %232, %233 : vector<128x32xf32>
    %c0_94 = arith.constant 0 : index
    %c0_95 = arith.constant 0 : index
    %235 = vector.load %arg7[%c0_94, %c0_95] : memref<32x64xf32, #tpu.memory_space<vmem>>, vector<32x64xf32>
    %cst_96 = arith.constant dense<0.000000e+00> : vector<128x64xf32>
    %236 = tpu.matmul %234, %235, %cst_96 {dimension_numbers = #tpu.dot_dimension_numbers<[1], [0], [0], [1], [0, 0, 1, 1], [], []>} : vector<128x32xf32>, vector<32x64xf32>, vector<128x64xf32> -> vector<128x64xf32>
    %c0_97 = arith.constant 0 : index
    %c0_98 = arith.constant 0 : index
    %237 = vector.load %arg8[%c0_97, %c0_98] : memref<1x64xf32, #tpu.memory_space<vmem>>, vector<1x64xf32>
    %238 = vector.broadcast %237 : vector<1x64xf32> to vector<128x64xf32>
    %239 = arith.addf %236, %238 : vector<128x64xf32>
    %cst_99 = arith.constant 0.000000e+00 : f32
    %240 = vector.broadcast %cst_99 : f32 to vector<128x64xf32>
    %241 = arith.maximumf %239, %240 : vector<128x64xf32>
    %c0_100 = arith.constant 0 : index
    %c0_101 = arith.constant 0 : index
    %242 = vector.load %arg9[%c0_100, %c0_101] : memref<64x32xf32, #tpu.memory_space<vmem>>, vector<64x32xf32>
    %cst_102 = arith.constant dense<0.000000e+00> : vector<128x32xf32>
    %243 = tpu.matmul %241, %242, %cst_102 {dimension_numbers = #tpu.dot_dimension_numbers<[1], [0], [0], [1], [0, 0, 1, 1], [], []>} : vector<128x64xf32>, vector<64x32xf32>, vector<128x32xf32> -> vector<128x32xf32>
    %244 = vector.broadcast %204 : vector<1x32xf32> to vector<128x32xf32>
    %245 = arith.addf %243, %244 : vector<128x32xf32>
    %246 = arith.addf %234, %245 : vector<128x32xf32>
    %cst_103 = arith.constant dense<0.000000e+00> : vector<128xf32>
    %247 = vector.multi_reduction <add>, %246, %cst_103 [1] : vector<128x32xf32> to vector<128xf32>
    %248 = vector.shape_cast %247 : vector<128xf32> to vector<128x1xf32>
    %cst_104 = arith.constant 3.200000e+01 : f32
    %249 = vector.broadcast %cst_104 : f32 to vector<128x1xf32>
    %250 = arith.divf %248, %249 : vector<128x1xf32>
    %251 = vector.broadcast %250 : vector<128x1xf32> to vector<128x32xf32>
    %252 = arith.subf %246, %251 : vector<128x32xf32>
    %253 = arith.mulf %252, %252 : vector<128x32xf32>
    %cst_105 = arith.constant dense<0.000000e+00> : vector<128xf32>
    %254 = vector.multi_reduction <add>, %253, %cst_105 [1] : vector<128x32xf32> to vector<128xf32>
    %255 = vector.shape_cast %254 : vector<128xf32> to vector<128x1xf32>
    %cst_106 = arith.constant 3.200000e+01 : f32
    %256 = vector.broadcast %cst_106 : f32 to vector<128x1xf32>
    %257 = arith.divf %255, %256 : vector<128x1xf32>
    %cst_107 = arith.constant 9.99999974E-6 : f32
    %258 = vector.broadcast %cst_107 : f32 to vector<128x1xf32>
    %259 = arith.addf %257, %258 : vector<128x1xf32>
    %260 = math.rsqrt %259 : vector<128x1xf32>
    %261 = vector.broadcast %260 : vector<128x1xf32> to vector<128x32xf32>
    %262 = arith.mulf %252, %261 : vector<128x32xf32>
    %263 = vector.broadcast %205 : vector<1x32xf32> to vector<128x32xf32>
    %264 = arith.mulf %262, %263 : vector<128x32xf32>
    %265 = vector.broadcast %206 : vector<1x32xf32> to vector<128x32xf32>
    %266 = arith.addf %264, %265 : vector<128x32xf32>
    %c0_108 = arith.constant 0 : index
    %c0_109 = arith.constant 0 : index
    %267 = vector.load %arg17[%c0_108, %c0_109] : memref<8x128xf32, #tpu.memory_space<vmem>>, vector<8x128xf32>
    %cst_110 = arith.constant dense<0.000000e+00> : vector<8x32xf32>
    %268 = tpu.matmul %267, %266, %cst_110 {dimension_numbers = #tpu.dot_dimension_numbers<[1], [0], [0], [1], [0, 0, 1, 1], [], []>} : vector<8x128xf32>, vector<128x32xf32>, vector<8x32xf32> -> vector<8x32xf32>
    %cst_111 = arith.constant dense<0.000000e+00> : vector<8xf32>
    %269 = vector.multi_reduction <add>, %268, %cst_111 [1] : vector<8x32xf32> to vector<8xf32>
    %270 = vector.shape_cast %269 : vector<8xf32> to vector<8x1xf32>
    %cst_112 = arith.constant 3.200000e+01 : f32
    %271 = vector.broadcast %cst_112 : f32 to vector<8x1xf32>
    %272 = arith.divf %270, %271 : vector<8x1xf32>
    %273 = vector.broadcast %272 : vector<8x1xf32> to vector<8x32xf32>
    %274 = arith.subf %268, %273 : vector<8x32xf32>
    %275 = arith.mulf %274, %274 : vector<8x32xf32>
    %cst_113 = arith.constant dense<0.000000e+00> : vector<8xf32>
    %276 = vector.multi_reduction <add>, %275, %cst_113 [1] : vector<8x32xf32> to vector<8xf32>
    %277 = vector.shape_cast %276 : vector<8xf32> to vector<8x1xf32>
    %cst_114 = arith.constant 3.200000e+01 : f32
    %278 = vector.broadcast %cst_114 : f32 to vector<8x1xf32>
    %279 = arith.divf %277, %278 : vector<8x1xf32>
    %cst_115 = arith.constant 9.99999974E-6 : f32
    %280 = vector.broadcast %cst_115 : f32 to vector<8x1xf32>
    %281 = arith.addf %279, %280 : vector<8x1xf32>
    %282 = math.rsqrt %281 : vector<8x1xf32>
    %283 = vector.broadcast %282 : vector<8x1xf32> to vector<8x32xf32>
    %284 = arith.mulf %274, %283 : vector<8x32xf32>
    %285 = vector.broadcast %207 : vector<1x32xf32> to vector<8x32xf32>
    %286 = arith.mulf %284, %285 : vector<8x32xf32>
    %287 = vector.broadcast %208 : vector<1x32xf32> to vector<8x32xf32>
    %288 = arith.addf %286, %287 : vector<8x32xf32>
    %c0_116 = arith.constant 0 : index
    %c0_117 = arith.constant 0 : index
    %289 = vector.load %arg11[%c0_116, %c0_117] : memref<32x8xf32, #tpu.memory_space<vmem>>, vector<32x8xf32>
    %cst_118 = arith.constant dense<0.000000e+00> : vector<8x8xf32>
    %290 = tpu.matmul %288, %289, %cst_118 {dimension_numbers = #tpu.dot_dimension_numbers<[1], [0], [0], [1], [0, 0, 1, 1], [], []>} : vector<8x32xf32>, vector<32x8xf32>, vector<8x8xf32> -> vector<8x8xf32>
    %c0_119 = arith.constant 0 : index
    %c0_120 = arith.constant 0 : index
    %291 = vector.load %arg12[%c0_119, %c0_120] : memref<1x8xf32, #tpu.memory_space<vmem>>, vector<1x8xf32>
    %292 = vector.broadcast %291 : vector<1x8xf32> to vector<8x8xf32>
    %293 = arith.addf %290, %292 : vector<8x8xf32>
    %c0_121 = arith.constant 0 : index
    %c0_122 = arith.constant 0 : index
    %294 = vector.load %arg18[%c0_121, %c0_122] : memref<8x8xf32, #tpu.memory_space<vmem>>, vector<8x8xf32>
    tpu.vector_store %arg18[%c0_121, %c0_122], %293 {strides = array<i32>} : memref<8x8xf32, #tpu.memory_space<vmem>>, vector<8x8xf32>,
    return
  }
  func.func @transform_0(%arg0: i32) -> (i32, i32) {
    %c0_i32 = arith.constant 0 : i32
    %c0_i32_0 = arith.constant 0 : i32
    return %arg0, %c0_i32 : i32, i32
  }
  func.func @transform_1(%arg0: i32) -> (i32, i32) {
    %c0_i32 = arith.constant 0 : i32
    %c0_i32_0 = arith.constant 0 : i32
    %c0_i32_1 = arith.constant 0 : i32
    return %c0_i32, %c0_i32_0 : i32, i32
  }
  func.func @transform_2(%arg0: i32) -> (i32, i32) {
    %c0_i32 = arith.constant 0 : i32
    %c0_i32_0 = arith.constant 0 : i32
    %c0_i32_1 = arith.constant 0 : i32
    return %c0_i32, %c0_i32_0 : i32, i32
  }
  func.func @transform_3(%arg0: i32) -> (i32, i32) {
    %c0_i32 = arith.constant 0 : i32
    %c0_i32_0 = arith.constant 0 : i32
    %c0_i32_1 = arith.constant 0 : i32
    return %c0_i32, %c0_i32_0 : i32, i32
  }
  func.func @transform_4(%arg0: i32) -> (i32, i32) {
    %c0_i32 = arith.constant 0 : i32
    %c0_i32_0 = arith.constant 0 : i32
    %c0_i32_1 = arith.constant 0 : i32
    return %c0_i32, %c0_i32_0 : i32, i32
  }
  func.func @transform_5(%arg0: i32) -> (i32, i32) {
    %c0_i32 = arith.constant 0 : i32
    %c0_i32_0 = arith.constant 0 : i32
    %c0_i32_1 = arith.constant 0 : i32
    return %c0_i32, %c0_i32_0 : i32, i32
  }
  func.func @transform_6(%arg0: i32) -> (i32, i32) {
    %c0_i32 = arith.constant 0 : i32
    %c0_i32_0 = arith.constant 0 : i32
    %c0_i32_1 = arith.constant 0 : i32
    return %c0_i32, %c0_i32_0 : i32, i32
  }
  func.func @transform_7(%arg0: i32) -> (i32, i32) {
    %c0_i32 = arith.constant 0 : i32
    %c0_i32_0 = arith.constant 0 : i32
    %c0_i32_1 = arith.constant 0 : i32
    return %c0_i32, %c0_i32_0 : i32, i32
  }
  func.func @transform_8(%arg0: i32) -> (i32, i32) {
    %c0_i32 = arith.constant 0 : i32
    %c0_i32_0 = arith.constant 0 : i32
    %c0_i32_1 = arith.constant 0 : i32
    return %c0_i32, %c0_i32_0 : i32, i32
  }
  func.func @transform_9(%arg0: i32) -> (i32, i32) {
    %c0_i32 = arith.constant 0 : i32
    %c0_i32_0 = arith.constant 0 : i32
    %c0_i32_1 = arith.constant 0 : i32
    return %c0_i32, %c0_i32_0 : i32, i32
  }
  func.func @transform_10(%arg0: i32) -> (i32, i32) {
    %c0_i32 = arith.constant 0 : i32
    %c0_i32_0 = arith.constant 0 : i32
    %c0_i32_1 = arith.constant 0 : i32
    return %c0_i32, %c0_i32_0 : i32, i32
  }
  func.func @transform_11(%arg0: i32) -> (i32, i32) {
    %c0_i32 = arith.constant 0 : i32
    %c0_i32_0 = arith.constant 0 : i32
    %c0_i32_1 = arith.constant 0 : i32
    return %c0_i32, %c0_i32_0 : i32, i32
  }
  func.func @transform_12(%arg0: i32) -> (i32, i32) {
    %c0_i32 = arith.constant 0 : i32
    %c0_i32_0 = arith.constant 0 : i32
    %c0_i32_1 = arith.constant 0 : i32
    return %c0_i32, %c0_i32_0 : i32, i32
  }
  func.func @transform_13(%arg0: i32) -> (i32, i32) {
    %c0_i32 = arith.constant 0 : i32
    %c0_i32_0 = arith.constant 0 : i32
    %c0_i32_1 = arith.constant 0 : i32
    return %c0_i32, %c0_i32_0 : i32, i32
  }
  func.func @transform_14(%arg0: i32) -> (i32, i32) {
    %c0_i32 = arith.constant 0 : i32
    %c0_i32_0 = arith.constant 0 : i32
    %c0_i32_1 = arith.constant 0 : i32
    return %c0_i32, %c0_i32_0 : i32, i32
  }
  func.func @transform_15(%arg0: i32) -> (i32, i32) {
    %c0_i32 = arith.constant 0 : i32
    %c0_i32_0 = arith.constant 0 : i32
    %c0_i32_1 = arith.constant 0 : i32
    return %c0_i32, %c0_i32_0 : i32, i32
  }
  func.func @transform_16(%arg0: i32) -> (i32, i32) {
    %c0_i32 = arith.constant 0 : i32
    %c0_i32_0 = arith.constant 0 : i32
    %c0_i32_1 = arith.constant 0 : i32
    return %c0_i32, %c0_i32_0 : i32, i32
  }
  func.func @transform_17(%arg0: i32) -> (i32, i32) {
    %c0_i32 = arith.constant 0 : i32
    %c0_i32_0 = arith.constant 0 : i32
    return %arg0, %c0_i32 : i32, i32
  }
}

</mosaic_0001>

<llo_original>
// kernel: tpu_custom_call.1
$region0: #{tpu_custom_call.1}
  #allocation0 [shape = 'u32[]', space=smem, size = 0x4, offset = 0x4, fixed_abs, tag = 'smem constant byte address 0x4 - core index']
  #allocation1 [shape = 'u32[144,128]{1,0:T(1,128)}', space=vmem, size = 0x12000, scoped, tag = 'internal scratch']
  #allocation2 [shape = 'f32[128,32]{1,0:T(8,128)}', space=vmem, size = 0x10000, scoped, tag = 'scratch operand']
  %s0 = inlined_call_operand.vmem [shape: f32[128,16], index: 0, kind: input, shape index: {}]
  %s1 = inlined_call_operand.vmem [shape: f32[128,32], index: 1, kind: input, shape index: {}]
  %s2 = inlined_call_operand.vmem [shape: f32[16,32], index: 2, kind: input, shape index: {}]
  %s3 = inlined_call_operand.vmem [shape: f32[32,96], index: 3, kind: input, shape index: {}]
  %s4 = inlined_call_operand.vmem [shape: f32[1,96], index: 4, kind: input, shape index: {}]
  %s5 = inlined_call_operand.vmem [shape: f32[32,32], index: 5, kind: input, shape index: {}]
  %s6 = inlined_call_operand.vmem [shape: f32[32,64], index: 6, kind: input, shape index: {}]
  %s7 = inlined_call_operand.vmem [shape: f32[1,64], index: 7, kind: input, shape index: {}]
  %s8 = inlined_call_operand.vmem [shape: f32[64,32], index: 8, kind: input, shape index: {}]
  %s9 = inlined_call_operand.vmem [shape: f32[8,32], index: 9, kind: input, shape index: {}]
  %s10 = inlined_call_operand.vmem [shape: f32[32,8], index: 10, kind: input, shape index: {}]
  %s11 = inlined_call_operand.vmem [shape: f32[1,8], index: 11, kind: input, shape index: {}]
  %s12 = inlined_call_operand.vmem [shape: f32[128,16], index: 12, kind: input, shape index: {}]
  %s13 = inlined_call_operand.vmem [shape: f32[16,128], index: 13, kind: input, shape index: {}]
  %s14 = inlined_call_operand.vmem [shape: f32[128,32], index: 14, kind: input, shape index: {}]
  %s15 = inlined_call_operand.vmem [shape: f32[1,16], index: 15, kind: input, shape index: {}]
  %s16 = inlined_call_operand.vmem [shape: f32[8,128], index: 16, kind: input, shape index: {}]
  %s17 = inlined_call_operand.hbm [shape: f32[8,8], index: 17, kind: output, shape index: {}]
  %s18 = sld [smem:[#allocation0]]
  $region78: #{tpu_custom_call.1} parent=0
    _
  %s20 = ssub.s32 1, %s18
  %s21 = scalar_select 0, %s20, %s18
  $region1: #{tpu_custom_call.1} parent=0
    #allocation3 [shape = 'u8[4096]{0}', space=vmem, size = 0x1000, scoped, tag = 'output window, operand 0, single buffered']
    #allocation4 [shape = 's32[1]{0}', space=sflag, size = 0x4, scoped, tag = 'scoped memory for tpu_custom_call.1']
    %22 = vsyncpa [#allocation4], 0
    // Predicated region
    $region2: #{tpu_custom_call.1} parent=1 // pred_check
      _
    $region3: #{tpu_custom_call.1} parent=1 // pred_check_branch
      %24 = sbr.rel (0) target = $region5
    $region4: #{tpu_custom_call.1} parent=1 // pred_region
      _
    $region5: #{tpu_custom_call.1} parent=1 // pred_fallthru
      _
    // Predicated region
    $region6: #{tpu_custom_call.1} parent=1 // pred_check
      _
    $region7: #{tpu_custom_call.1} parent=1 // pred_check_branch
      %26 = sbr.rel (0) target = $region9
    $region8: #{tpu_custom_call.1} parent=1 // pred_region
      _
    $region9: #{tpu_custom_call.1} parent=1 // pred_fallthru
      _
    // Predicated region
    $region10: #{tpu_custom_call.1} parent=1 // pred_check
      _
    $region11: #{tpu_custom_call.1} parent=1 // pred_check_branch
      %28 = sbr.rel (0) target = $region13
    $region12: #{tpu_custom_call.1} parent=1 // pred_region
      _
    $region13: #{tpu_custom_call.1} parent=1 // pred_fallthru
      _
    // Predicated region
    $region14: #{tpu_custom_call.1} parent=1 // pred_check
      _
    $region15: #{tpu_custom_call.1} parent=1 // pred_check_branch
      %30 = sbr.rel (0) target = $region17
    $region16: #{tpu_custom_call.1} parent=1 // pred_region
      _
    $region17: #{tpu_custom_call.1} parent=1 // pred_fallthru
      _
    // Predicated region
    $region18: #{tpu_custom_call.1} parent=1 // pred_check
      _
    $region19: #{tpu_custom_call.1} parent=1 // pred_check_branch
      %32 = sbr.rel (0) target = $region21
    $region20: #{tpu_custom_call.1} parent=1 // pred_region
      _
    $region21: #{tpu_custom_call.1} parent=1 // pred_fallthru
      _
    // Predicated region
    $region22: #{tpu_custom_call.1} parent=1 // pred_check
      _
    $region23: #{tpu_custom_call.1} parent=1 // pred_check_branch
      %34 = sbr.rel (0) target = $region25
    $region24: #{tpu_custom_call.1} parent=1 // pred_region
      _
    $region25: #{tpu_custom_call.1} parent=1 // pred_fallthru
      _
    // Predicated region
    $region26: #{tpu_custom_call.1} parent=1 // pred_check
      _
    $region27: #{tpu_custom_call.1} parent=1 // pred_check_branch
      %36 = sbr.rel (0) target = $region29
    $region28: #{tpu_custom_call.1} parent=1 // pred_region
      _
    $region29: #{tpu_custom_call.1} parent=1 // pred_fallthru
      _
    // Predicated region
    $region30: #{tpu_custom_call.1} parent=1 // pred_check
      _
    $region31: #{tpu_custom_call.1} parent=1 // pred_check_branch
      %38 = sbr.rel (0) target = $region33
    $region32: #{tpu_custom_call.1} parent=1 // pred_region
      _
    $region33: #{tpu_custom_call.1} parent=1 // pred_fallthru
      _
    // Predicated region
    $region34: #{tpu_custom_call.1} parent=1 // pred_check
      _
    $region35: #{tpu_custom_call.1} parent=1 // pred_check_branch
      %40 = sbr.rel (0) target = $region37
    $region36: #{tpu_custom_call.1} parent=1 // pred_region
      _
    $region37: #{tpu_custom_call.1} parent=1 // pred_fallthru
      _
    // Predicated region
    $region38: #{tpu_custom_call.1} parent=1 // pred_check
      _
    $region39: #{tpu_custom_call.1} parent=1 // pred_check_branch
      %42 = sbr.rel (0) target = $region41
    $region40: #{tpu_custom_call.1} parent=1 // pred_region
      _
    $region41: #{tpu_custom_call.1} parent=1 // pred_fallthru
      _
    // Predicated region
    $region42: #{tpu_custom_call.1} parent=1 // pred_check
      _
    $region43: #{tpu_custom_call.1} parent=1 // pred_check_branch
      %44 = sbr.rel (0) target = $region45
    $region44: #{tpu_custom_call.1} parent=1 // pred_region
      _
    $region45: #{tpu_custom_call.1} parent=1 // pred_fallthru
      _
    // Predicated region
    $region46: #{tpu_custom_call.1} parent=1 // pred_check
      _
    $region47: #{tpu_custom_call.1} parent=1 // pred_check_branch
      %46 = sbr.rel (0) target = $region49
    $region48: #{tpu_custom_call.1} parent=1 // pred_region
      _
    $region49: #{tpu_custom_call.1} parent=1 // pred_fallthru
      _
    // Predicated region
    $region50: #{tpu_custom_call.1} parent=1 // pred_check
      _
    $region51: #{tpu_custom_call.1} parent=1 // pred_check_branch
      %48 = sbr.rel (0) target = $region53
    $region52: #{tpu_custom_call.1} parent=1 // pred_region
      _
    $region53: #{tpu_custom_call.1} parent=1 // pred_fallthru
      _
    // Predicated region
    $region54: #{tpu_custom_call.1} parent=1 // pred_check
      _
    $region55: #{tpu_custom_call.1} parent=1 // pred_check_branch
      %50 = sbr.rel (0) target = $region57
    $region56: #{tpu_custom_call.1} parent=1 // pred_region
      _
    $region57: #{tpu_custom_call.1} parent=1 // pred_fallthru
      _
    // Predicated region
    $region58: #{tpu_custom_call.1} parent=1 // pred_check
      _
    $region59: #{tpu_custom_call.1} parent=1 // pred_check_branch
      %52 = sbr.rel (0) target = $region61
    $region60: #{tpu_custom_call.1} parent=1 // pred_region
      _
    $region61: #{tpu_custom_call.1} parent=1 // pred_fallthru
      _
    // Predicated region
    $region62: #{tpu_custom_call.1} parent=1 // pred_check
      _
    $region63: #{tpu_custom_call.1} parent=1 // pred_check_branch
      %54 = sbr.rel (0) target = $region65
    $region64: #{tpu_custom_call.1} parent=1 // pred_region
      _
    $region65: #{tpu_custom_call.1} parent=1 // pred_fallthru
      _
    // Predicated region
    $region66: #{tpu_custom_call.1} parent=1 // pred_check
      _
    $region67: #{tpu_custom_call.1} parent=1 // pred_check_branch
      %56 = sbr.rel (0) target = $region69
    $region68: #{tpu_custom_call.1} parent=1 // pred_region
      _
    $region69: #{tpu_custom_call.1} parent=1 // pred_fallthru
      _
    %v57 = vld [vmem:[%s0] sm:$0xff]
    %v58 = vld [vmem:[%s0 + $0x8] sm:$0xff]
    %v59 = vld [vmem:[%s0 + $0x10] sm:$0xff]
    %v60 = vld [vmem:[%s0 + $0x18] sm:$0xff]
    %v61 = vld [vmem:[%s0 + $0x20] sm:$0xff]
    %v62 = vld [vmem:[%s0 + $0x28] sm:$0xff]
    %v63 = vld [vmem:[%s0 + $0x30] sm:$0xff]
    %v64 = vld [vmem:[%s0 + $0x38] sm:$0xff]
    %v65 = vld [vmem:[%s0 + $0x40] sm:$0xff]
    %v66 = vld [vmem:[%s0 + $0x48] sm:$0xff]
    %v67 = vld [vmem:[%s0 + $0x50] sm:$0xff]
    %v68 = vld [vmem:[%s0 + $0x58] sm:$0xff]
    %v69 = vld [vmem:[%s0 + $0x60] sm:$0xff]
    %v70 = vld [vmem:[%s0 + $0x68] sm:$0xff]
    %v71 = vld [vmem:[%s0 + $0x70] sm:$0xff]
    %v72 = vld [vmem:[%s0 + $0x78] sm:$0xff]
    %v73 = vld [vmem:[%s2] sm:$0xff]
    %v74 = vld [vmem:[%s2 + $0x8] sm:$0xff]
    %v75 = vld [vmem:[%s1] sm:$0xff]
    %v76 = vld [vmem:[%s1 + $0x8] sm:$0xff]
    %v77 = vld [vmem:[%s1 + $0x10] sm:$0xff]
    %v78 = vld [vmem:[%s1 + $0x18] sm:$0xff]
    %v79 = vld [vmem:[%s1 + $0x20] sm:$0xff]
    %v80 = vld [vmem:[%s1 + $0x28] sm:$0xff]
    %v81 = vld [vmem:[%s1 + $0x30] sm:$0xff]
    %v82 = vld [vmem:[%s1 + $0x38] sm:$0xff]
    %v83 = vld [vmem:[%s1 + $0x40] sm:$0xff]
    %v84 = vld [vmem:[%s1 + $0x48] sm:$0xff]
    %v85 = vld [vmem:[%s1 + $0x50] sm:$0xff]
    %v86 = vld [vmem:[%s1 + $0x58] sm:$0xff]
    %v87 = vld [vmem:[%s1 + $0x60] sm:$0xff]
    %v88 = vld [vmem:[%s1 + $0x68] sm:$0xff]
    %v89 = vld [vmem:[%s1 + $0x70] sm:$0xff]
    %v90 = vld [vmem:[%s1 + $0x78] sm:$0xff]
    %vm91 = vcmask 130048
    %v93 = vsel %vm91, %v57, 0
    %v96 = vsel %vm91, %v58, 0
    %v99 = vsel %vm91, %v59, 0
    %v102 = vsel %vm91, %v60, 0
    %v105 = vsel %vm91, %v61, 0
    %v108 = vsel %vm91, %v62, 0
    %v111 = vsel %vm91, %v63, 0
    %v114 = vsel %vm91, %v64, 0
    %v117 = vsel %vm91, %v65, 0
    %v120 = vsel %vm91, %v66, 0
    %v123 = vsel %vm91, %v67, 0
    %v126 = vsel %vm91, %v68, 0
    %v129 = vsel %vm91, %v69, 0
    %v132 = vsel %vm91, %v70, 0
    %v135 = vsel %vm91, %v71, 0
    %v138 = vsel %vm91, %v72, 0
    %140 = vmatprep.subr.mxu0 0.0
    %141 = vmatpush1.msra.mxu0 %v73
    %142 = vmatprep.subr.mxu0 0.0
    %143 = vmatpush1.msra.mxu0 %v74
    %144 = vmatprep.subr.mxu0 0.0
    %145 = vmatpush1.msra.mxu0 0.0
    %146 = vmatprep.subr.mxu0 0.0
    %147 = vmatpush1.msra.mxu0 0.0
    %148 = vmatprep.subr.mxu0 0.0
    %149 = vmatpush1.msra.mxu0 0.0
    %150 = vmatprep.subr.mxu0 0.0
    %151 = vmatpush1.msra.mxu0 0.0
    %152 = vmatprep.subr.mxu0 0.0
    %153 = vmatpush1.msra.mxu0 0.0
    %154 = vmatprep.subr.mxu0 0.0
    %155 = vmatpush1.msra.mxu0 0.0
    %156 = vmatprep.subr.mxu0 0.0
    %157 = vmatpush1.msra.mxu0 0.0
    %158 = vmatprep.subr.mxu0 0.0
    %159 = vmatpush1.msra.mxu0 0.0
    %160 = vmatprep.subr.mxu0 0.0
    %161 = vmatpush1.msra.mxu0 0.0
    %162 = vmatprep.subr.mxu0 0.0
    %163 = vmatpush1.msra.mxu0 0.0
    %164 = vmatprep.subr.mxu0 0.0
    %165 = vmatpush1.msra.mxu0 0.0
    %166 = vmatprep.subr.mxu0 0.0
    %167 = vmatpush1.msra.mxu0 0.0
    %168 = vmatprep.subr.mxu0 0.0
    %169 = vmatpush1.msra.mxu0 0.0
    %170 = vmatprep.subr.mxu0 0.0
    %171 = vmatpush1.msra.mxu0 0.0
    %172 = vmatprep.subr.mxu0 0.0
    %173 = vmatpush1.msra.mxu0 0.0
    %174 = vmatprep.subr.mxu0 0.0
    %175 = vmatpush1.msra.mxu0 0.0
    %176 = vmatprep.subr.mxu0 0.0
    %177 = vmatpush1.msra.mxu0 0.0
    %178 = vmatprep.subr.mxu0 0.0
    %179 = vmatpush1.msra.mxu0 0.0
    %180 = vmatprep.subr.mxu0 0.0
    %181 = vmatpush1.msra.mxu0 0.0
    %182 = vmatprep.subr.mxu0 0.0
    %183 = vmatpush1.msra.mxu0 0.0
    %184 = vmatprep.subr.mxu0 0.0
    %185 = vmatpush1.msra.mxu0 0.0
    %186 = vmatprep.subr.mxu0 0.0
    %187 = vmatpush1.msra.mxu0 0.0
    %188 = vmatprep.subr.mxu0 0.0
    %189 = vmatpush1.msra.mxu0 0.0
    %190 = vmatprep.subr.mxu0 0.0
    %191 = vmatpush1.msra.mxu0 0.0
    %192 = vmatprep.subr.mxu0 0.0
    %193 = vmatpush1.msra.mxu0 0.0
    %194 = vmatprep.subr.mxu0 0.0
    %195 = vmatpush1.msra.mxu0 0.0
    %196 = vmatprep.subr.mxu0 0.0
    %197 = vmatpush1.msra.mxu0 0.0
    %198 = vmatprep.subr.mxu0 0.0
    %199 = vmatpush1.msra.mxu0 0.0
    %200 = vmatprep.subr.mxu0 0.0
    %201 = vmatpush1.msra.mxu0 0.0
    %202 = vmatprep.subr.mxu0 0.0
    %203 = vmatpush1.msra.mxu0 0.0
    %204 = vmatprep.mubr.f32.mxu0 0.0
    %205 = vmatmul.mubr.f32.gmra.mrb[0].mxu0 %v93
    %v206 = vpop.f32.mrb[0].mxu0
    %v207 = vadd.f32 %v75, %v206
    %v208 = vpop.f32.mrb[0].mxu0
    %209 = vmatprep.mubr.f32.mxu0 0.0
    %210 = vmatmul.mubr.f32.gmra.mrb[0].mxu0 %v96
    %v211 = vpop.f32.mrb[0].mxu0
    %v212 = vadd.f32 %v76, %v211
    %v213 = vpop.f32.mrb[0].mxu0
    %214 = vmatprep.mubr.f32.mxu0 0.0
    %215 = vmatmul.mubr.f32.gmra.mrb[0].mxu0 %v99
    %v216 = vpop.f32.mrb[0].mxu0
    %v217 = vadd.f32 %v77, %v216
    %v218 = vpop.f32.mrb[0].mxu0
    %219 = vmatprep.mubr.f32.mxu0 0.0
    %220 = vmatmul.mubr.f32.gmra.mrb[0].mxu0 %v102
    %v221 = vpop.f32.mrb[0].mxu0
    %v222 = vadd.f32 %v78, %v221
    %v223 = vpop.f32.mrb[0].mxu0
    %224 = vmatprep.mubr.f32.mxu0 0.0
    %225 = vmatmul.mubr.f32.gmra.mrb[0].mxu0 %v105
    %v226 = vpop.f32.mrb[0].mxu0
    %v227 = vadd.f32 %v79, %v226
    %v228 = vpop.f32.mrb[0].mxu0
    %229 = vmatprep.mubr.f32.mxu0 0.0
    %230 = vmatmul.mubr.f32.gmra.mrb[0].mxu0 %v108
    %v231 = vpop.f32.mrb[0].mxu0
    %v232 = vadd.f32 %v80, %v231
    %v233 = vpop.f32.mrb[0].mxu0
    %234 = vmatprep.mubr.f32.mxu0 0.0
    %235 = vmatmul.mubr.f32.gmra.mrb[0].mxu0 %v111
    %v236 = vpop.f32.mrb[0].mxu0
    %v237 = vadd.f32 %v81, %v236
    %v238 = vpop.f32.mrb[0].mxu0
    %239 = vmatprep.mubr.f32.mxu0 0.0
    %240 = vmatmul.mubr.f32.gmra.mrb[0].mxu0 %v114
    %v241 = vpop.f32.mrb[0].mxu0
    %v242 = vadd.f32 %v82, %v241
    %v243 = vpop.f32.mrb[0].mxu0
    %244 = vmatprep.mubr.f32.mxu0 0.0
    %245 = vmatmul.mubr.f32.gmra.mrb[0].mxu0 %v117
    %v246 = vpop.f32.mrb[0].mxu0
    %v247 = vadd.f32 %v83, %v246
    %v248 = vpop.f32.mrb[0].mxu0
    %249 = vmatprep.mubr.f32.mxu0 0.0
    %250 = vmatmul.mubr.f32.gmra.mrb[0].mxu0 %v120
    %v251 = vpop.f32.mrb[0].mxu0
    %v252 = vadd.f32 %v84, %v251
    %v253 = vpop.f32.mrb[0].mxu0
    %254 = vmatprep.mubr.f32.mxu0 0.0
    %255 = vmatmul.mubr.f32.gmra.mrb[0].mxu0 %v123
    %v256 = vpop.f32.mrb[0].mxu0
    %v257 = vadd.f32 %v85, %v256
    %v258 = vpop.f32.mrb[0].mxu0
    %259 = vmatprep.mubr.f32.mxu0 0.0
    %260 = vmatmul.mubr.f32.gmra.mrb[0].mxu0 %v126
    %v261 = vpop.f32.mrb[0].mxu0
    %v262 = vadd.f32 %v86, %v261
    %v263 = vpop.f32.mrb[0].mxu0
    %264 = vmatprep.mubr.f32.mxu0 0.0
    %265 = vmatmul.mubr.f32.gmra.mrb[0].mxu0 %v129
    %v266 = vpop.f32.mrb[0].mxu0
    %v267 = vadd.f32 %v87, %v266
    %v268 = vpop.f32.mrb[0].mxu0
    %269 = vmatprep.mubr.f32.mxu0 0.0
    %270 = vmatmul.mubr.f32.gmra.mrb[0].mxu0 %v132
    %v271 = vpop.f32.mrb[0].mxu0
    %v272 = vadd.f32 %v88, %v271
    %v273 = vpop.f32.mrb[0].mxu0
    %274 = vmatprep.mubr.f32.mxu0 0.0
    %275 = vmatmul.mubr.f32.gmra.mrb[0].mxu0 %v135
    %v276 = vpop.f32.mrb[0].mxu0
    %v277 = vadd.f32 %v89, %v276
    %v278 = vpop.f32.mrb[0].mxu0
    %279 = vmatprep.mubr.f32.mxu0 0.0
    %280 = vmatmul.mubr.f32.gmra.mrb[0].mxu0 %v138
    %v281 = vpop.f32.mrb[0].mxu0
    %v282 = vadd.f32 %v90, %v281
    %v283 = vpop.f32.mrb[0].mxu0
    %284 = vdwg.mxu0
    %v285 = vld [vmem:[%s3] sm:$0xff]
    %v286 = vld [vmem:[%s3 + $0x8] sm:$0xff]
    %v287 = vld [vmem:[%s3 + $0x10] sm:$0xff]
    %v288 = vld [vmem:[%s3 + $0x18] sm:$0xff]
    %v289 = vld [vmem:[%s4] sm:$0x1]
    %v291 = vlaneseq
    %v292 = vshrl.u32 %v291, 7
    %v293 = vsub.s32 0, %v292
    %v294 = vrot.slane %v289, %v293
    %vm296 = vcmask 261120
    %v298 = vsel %vm296, %v207, 0
    %v301 = vsel %vm296, %v212, 0
    %v304 = vsel %vm296, %v217, 0
    %v307 = vsel %vm296, %v222, 0
    %v310 = vsel %vm296, %v227, 0
    %v313 = vsel %vm296, %v232, 0
    %v316 = vsel %vm296, %v237, 0
    %v319 = vsel %vm296, %v242, 0
    %v322 = vsel %vm296, %v247, 0
    %v325 = vsel %vm296, %v252, 0
    %v328 = vsel %vm296, %v257, 0
    %v331 = vsel %vm296, %v262, 0
    %v334 = vsel %vm296, %v267, 0
    %v337 = vsel %vm296, %v272, 0
    %v340 = vsel %vm296, %v277, 0
    %v343 = vsel %vm296, %v282, 0
    %345 = vmatprep.subr.mxu0 0.0
    %346 = vmatpush1.msra.mxu0 %v285
    %347 = vmatprep.subr.mxu0 0.0
    %348 = vmatpush1.msra.mxu0 %v286
    %349 = vmatprep.subr.mxu0 0.0
    %350 = vmatpush1.msra.mxu0 %v287
    %351 = vmatprep.subr.mxu0 0.0
    %352 = vmatpush1.msra.mxu0 %v288
    %353 = vmatprep.subr.mxu0 0.0
    %354 = vmatpush1.msra.mxu0 0.0
    %355 = vmatprep.subr.mxu0 0.0
    %356 = vmatpush1.msra.mxu0 0.0
    %357 = vmatprep.subr.mxu0 0.0
    %358 = vmatpush1.msra.mxu0 0.0
    %359 = vmatprep.subr.mxu0 0.0
    %360 = vmatpush1.msra.mxu0 0.0
    %361 = vmatprep.subr.mxu0 0.0
    %362 = vmatpush1.msra.mxu0 0.0
    %363 = vmatprep.subr.mxu0 0.0
    %364 = vmatpush1.msra.mxu0 0.0
    %365 = vmatprep.subr.mxu0 0.0
    %366 = vmatpush1.msra.mxu0 0.0
    %367 = vmatprep.subr.mxu0 0.0
    %368 = vmatpush1.msra.mxu0 0.0
    %369 = vmatprep.subr.mxu0 0.0
    %370 = vmatpush1.msra.mxu0 0.0
    %371 = vmatprep.subr.mxu0 0.0
    %372 = vmatpush1.msra.mxu0 0.0
    %373 = vmatprep.subr.mxu0 0.0
    %374 = vmatpush1.msra.mxu0 0.0
    %375 = vmatprep.subr.mxu0 0.0
    %376 = vmatpush1.msra.mxu0 0.0
    %377 = vmatprep.subr.mxu0 0.0
    %378 = vmatpush1.msra.mxu0 0.0
    %379 = vmatprep.subr.mxu0 0.0
    %380 = vmatpush1.msra.mxu0 0.0
    %381 = vmatprep.subr.mxu0 0.0
    %382 = vmatpush1.msra.mxu0 0.0
    %383 = vmatprep.subr.mxu0 0.0
    %384 = vmatpush1.msra.mxu0 0.0
    %385 = vmatprep.subr.mxu0 0.0
    %386 = vmatpush1.msra.mxu0 0.0
    %387 = vmatprep.subr.mxu0 0.0
    %388 = vmatpush1.msra.mxu0 0.0
    %389 = vmatprep.subr.mxu0 0.0
    %390 = vmatpush1.msra.mxu0 0.0
    %391 = vmatprep.subr.mxu0 0.0
    %392 = vmatpush1.msra.mxu0 0.0
    %393 = vmatprep.subr.mxu0 0.0
    %394 = vmatpush1.msra.mxu0 0.0
    %395 = vmatprep.subr.mxu0 0.0
    %396 = vmatpush1.msra.mxu0 0.0
    %397 = vmatprep.subr.mxu0 0.0
    %398 = vmatpush1.msra.mxu0 0.0
    %399 = vmatprep.subr.mxu0 0.0
    %400 = vmatpush1.msra.mxu0 0.0
    %401 = vmatprep.subr.mxu0 0.0
    %402 = vmatpush1.msra.mxu0 0.0
    %403 = vmatprep.subr.mxu0 0.0
    %404 = vmatpush1.msra.mxu0 0.0
    %405 = vmatprep.subr.mxu0 0.0
    %406 = vmatpush1.msra.mxu0 0.0
    %407 = vmatprep.subr.mxu0 0.0
    %408 = vmatpush1.msra.mxu0 0.0
    %409 = vmatprep.mubr.f32.mxu0 0.0
    %410 = vmatmul.mubr.f32.gmra.mrb[0].mxu0 %v298
    %v411 = vpop.f32.mrb[0].mxu0
    %v412 = vadd.f32 %v294, %v411
    %v413 = vpop.f32.mrb[0].mxu0
    %414 = vmatprep.mubr.f32.mxu0 0.0
    %415 = vmatmul.mubr.f32.gmra.mrb[0].mxu0 %v301
    %v416 = vpop.f32.mrb[0].mxu0
    %v417 = vadd.f32 %v294, %v416
    %v418 = vpop.f32.mrb[0].mxu0
    %419 = vmatprep.mubr.f32.mxu0 0.0
    %420 = vmatmul.mubr.f32.gmra.mrb[0].mxu0 %v304
    %v421 = vpop.f32.mrb[0].mxu0
    %v422 = vadd.f32 %v294, %v421
    %v423 = vpop.f32.mrb[0].mxu0
    %424 = vmatprep.mubr.f32.mxu0 0.0
    %425 = vmatmul.mubr.f32.gmra.mrb[0].mxu0 %v307
    %v426 = vpop.f32.mrb[0].mxu0
    %v427 = vadd.f32 %v294, %v426
    %v428 = vpop.f32.mrb[0].mxu0
    %429 = vmatprep.mubr.f32.mxu0 0.0
    %430 = vmatmul.mubr.f32.gmra.mrb[0].mxu0 %v310
    %v431 = vpop.f32.mrb[0].mxu0
    %v432 = vadd.f32 %v294, %v431
    %v433 = vpop.f32.mrb[0].mxu0
    %434 = vmatprep.mubr.f32.mxu0 0.0
    %435 = vmatmul.mubr.f32.gmra.mrb[0].mxu0 %v313
    %v436 = vpop.f32.mrb[0].mxu0
    %v437 = vadd.f32 %v294, %v436
    %v438 = vpop.f32.mrb[0].mxu0
    %439 = vmatprep.mubr.f32.mxu0 0.0
    %440 = vmatmul.mubr.f32.gmra.mrb[0].mxu0 %v316
    %v441 = vpop.f32.mrb[0].mxu0
    %v442 = vadd.f32 %v294, %v441
    %v443 = vpop.f32.mrb[0].mxu0
    %444 = vmatprep.mubr.f32.mxu0 0.0
    %445 = vmatmul.mubr.f32.gmra.mrb[0].mxu0 %v319
    %v446 = vpop.f32.mrb[0].mxu0
    %v447 = vadd.f32 %v294, %v446
    %v448 = vpop.f32.mrb[0].mxu0
    %449 = vmatprep.mubr.f32.mxu0 0.0
    %450 = vmatmul.mubr.f32.gmra.mrb[0].mxu0 %v322
    %v451 = vpop.f32.mrb[0].mxu0
    %v452 = vadd.f32 %v294, %v451
    %v453 = vpop.f32.mrb[0].mxu0
    %454 = vmatprep.mubr.f32.mxu0 0.0
    %455 = vmatmul.mubr.f32.gmra.mrb[0].mxu0 %v325
    %v456 = vpop.f32.mrb[0].mxu0
    %v457 = vadd.f32 %v294, %v456
    %v458 = vpop.f32.mrb[0].mxu0
    %459 = vmatprep.mubr.f32.mxu0 0.0
    %460 = vmatmul.mubr.f32.gmra.mrb[0].mxu0 %v328
    %v461 = vpop.f32.mrb[0].mxu0
    %v462 = vadd.f32 %v294, %v461
    %v463 = vpop.f32.mrb[0].mxu0
    %464 = vmatprep.mubr.f32.mxu0 0.0
    %465 = vmatmul.mubr.f32.gmra.mrb[0].mxu0 %v331
    %v466 = vpop.f32.mrb[0].mxu0
    %v467 = vadd.f32 %v294, %v466
    %v468 = vpop.f32.mrb[0].mxu0
    %469 = vmatprep.mubr.f32.mxu0 0.0
    %470 = vmatmul.mubr.f32.gmra.mrb[0].mxu0 %v334
    %v471 = vpop.f32.mrb[0].mxu0
    %v472 = vadd.f32 %v294, %v471
    %v473 = vpop.f32.mrb[0].mxu0
    %474 = vmatprep.mubr.f32.mxu0 0.0
    %475 = vmatmul.mubr.f32.gmra.mrb[0].mxu0 %v337
    %v476 = vpop.f32.mrb[0].mxu0
    %v477 = vadd.f32 %v294, %v476
    %v478 = vpop.f32.mrb[0].mxu0
    %479 = vmatprep.mubr.f32.mxu0 0.0
    %480 = vmatmul.mubr.f32.gmra.mrb[0].mxu0 %v340
    %v481 = vpop.f32.mrb[0].mxu0
    %v482 = vadd.f32 %v294, %v481
    %v483 = vpop.f32.mrb[0].mxu0
    %484 = vmatprep.mubr.f32.mxu0 0.0
    %485 = vmatmul.mubr.f32.gmra.mrb[0].mxu0 %v343
    %v486 = vpop.f32.mrb[0].mxu0
    %v487 = vadd.f32 %v294, %v486
    %v488 = vpop.f32.mrb[0].mxu0
    %489 = vdwg.mxu0
    %v490 = vld [vmem:[%s12] sm:$0xff]
    %v491 = vld [vmem:[%s12 + $0x8] sm:$0xff]
    %v492 = vld [vmem:[%s12 + $0x10] sm:$0xff]
    %v493 = vld [vmem:[%s12 + $0x18] sm:$0xff]
    %v494 = vld [vmem:[%s12 + $0x20] sm:$0xff]
    %v495 = vld [vmem:[%s12 + $0x28] sm:$0xff]
    %v496 = vld [vmem:[%s12 + $0x30] sm:$0xff]
    %v497 = vld [vmem:[%s12 + $0x38] sm:$0xff]
    %v498 = vld [vmem:[%s12 + $0x40] sm:$0xff]
    %v499 = vld [vmem:[%s12 + $0x48] sm:$0xff]
    %v500 = vld [vmem:[%s12 + $0x50] sm:$0xff]
    %v501 = vld [vmem:[%s12 + $0x58] sm:$0xff]
    %v502 = vld [vmem:[%s12 + $0x60] sm:$0xff]
    %v503 = vld [vmem:[%s12 + $0x68] sm:$0xff]
    %v504 = vld [vmem:[%s12 + $0x70] sm:$0xff]
    %v505 = vld [vmem:[%s12 + $0x78] sm:$0xff]
    %v506 = vld [vmem:[%s13] sm:$0xff]
    %v507 = vld [vmem:[%s13 + $0x8] sm:$0xff]
    %v508 = vld [vmem:[%s14] sm:$0xff]
    %v509 = vld [vmem:[%s14 + $0x8] sm:$0xff]
    %v510 = vld [vmem:[%s14 + $0x10] sm:$0xff]
    %v511 = vld [vmem:[%s14 + $0x18] sm:$0xff]
    %v512 = vld [vmem:[%s14 + $0x20] sm:$0xff]
    %v513 = vld [vmem:[%s14 + $0x28] sm:$0xff]
    %v514 = vld [vmem:[%s14 + $0x30] sm:$0xff]
    %v515 = vld [vmem:[%s14 + $0x38] sm:$0xff]
    %v516 = vld [vmem:[%s14 + $0x40] sm:$0xff]
    %v517 = vld [vmem:[%s14 + $0x48] sm:$0xff]
    %v518 = vld [vmem:[%s14 + $0x50] sm:$0xff]
    %v519 = vld [vmem:[%s14 + $0x58] sm:$0xff]
    %v520 = vld [vmem:[%s14 + $0x60] sm:$0xff]
    %v521 = vld [vmem:[%s14 + $0x68] sm:$0xff]
    %v522 = vld [vmem:[%s14 + $0x70] sm:$0xff]
    %v523 = vld [vmem:[%s14 + $0x78] sm:$0xff]
    %v524 = vld [vmem:[%s15] sm:$0x1]
    %v526 = vsel %vm91, %v490, 0
    %v529 = vsel %vm91, %v491, 0
    %v532 = vsel %vm91, %v492, 0
    %v535 = vsel %vm91, %v493, 0
    %v538 = vsel %vm91, %v494, 0
    %v541 = vsel %vm91, %v495, 0
    %v544 = vsel %vm91, %v496, 0
    %v547 = vsel %vm91, %v497, 0
    %v550 = vsel %vm91, %v498, 0
    %v553 = vsel %vm91, %v499, 0
    %v556 = vsel %vm91, %v500, 0
    %v559 = vsel %vm91, %v501, 0
    %v562 = vsel %vm91, %v502, 0
    %v565 = vsel %vm91, %v503, 0
    %v568 = vsel %vm91, %v504, 0
    %v571 = vsel %vm91, %v505, 0
    %573 = vmatprep.subr.mxu0 0.0
    %574 = vmatpush1.msra.mxu0 %v412
    %575 = vmatprep.subr.mxu0 0.0
    %576 = vmatpush1.msra.mxu0 %v417
    %577 = vmatprep.subr.mxu0 0.0
    %578 = vmatpush1.msra.mxu0 0.0
    %579 = vmatprep.subr.mxu0 0.0
    %580 = vmatpush1.msra.mxu0 0.0
    %581 = vmatprep.subr.mxu0 0.0
    %582 = vmatpush1.msra.mxu0 0.0
    %583 = vmatprep.subr.mxu0 0.0
    %584 = vmatpush1.msra.mxu0 0.0
    %585 = vmatprep.subr.mxu0 0.0
    %586 = vmatpush1.msra.mxu0 0.0
    %587 = vmatprep.subr.mxu0 0.0
    %588 = vmatpush1.msra.mxu0 0.0
    %589 = vmatprep.subr.mxu0 0.0
    %590 = vmatpush1.msra.mxu0 0.0
    %591 = vmatprep.subr.mxu0 0.0
    %592 = vmatpush1.msra.mxu0 0.0
    %593 = vmatprep.subr.mxu0 0.0
    %594 = vmatpush1.msra.mxu0 0.0
    %595 = vmatprep.subr.mxu0 0.0
    %596 = vmatpush1.msra.mxu0 0.0
    %597 = vmatprep.subr.mxu0 0.0
    %598 = vmatpush1.msra.mxu0 0.0
    %599 = vmatprep.subr.mxu0 0.0
    %600 = vmatpush1.msra.mxu0 0.0
    %601 = vmatprep.subr.mxu0 0.0
    %602 = vmatpush1.msra.mxu0 0.0
    %603 = vmatprep.subr.mxu0 0.0
    %604 = vmatpush1.msra.mxu0 0.0
    %605 = vmatprep.subr.mxu0 0.0
    %606 = vmatpush1.msra.mxu0 0.0
    %607 = vmatprep.subr.mxu0 0.0
    %608 = vmatpush1.msra.mxu0 0.0
    %609 = vmatprep.subr.mxu0 0.0
    %610 = vmatpush1.msra.mxu0 0.0
    %611 = vmatprep.subr.mxu0 0.0
    %612 = vmatpush1.msra.mxu0 0.0
    %613 = vmatprep.subr.mxu0 0.0
    %614 = vmatpush1.msra.mxu0 0.0
    %615 = vmatprep.subr.mxu0 0.0
    %616 = vmatpush1.msra.mxu0 0.0
    %617 = vmatprep.subr.mxu0 0.0
    %618 = vmatpush1.msra.mxu0 0.0
    %619 = vmatprep.subr.mxu0 0.0
    %620 = vmatpush1.msra.mxu0 0.0
    %621 = vmatprep.subr.mxu0 0.0
    %622 = vmatpush1.msra.mxu0 0.0
    %623 = vmatprep.subr.mxu0 0.0
    %624 = vmatpush1.msra.mxu0 0.0
    %625 = vmatprep.subr.mxu0 0.0
    %626 = vmatpush1.msra.mxu0 0.0
    %627 = vmatprep.subr.mxu0 0.0
    %628 = vmatpush1.msra.mxu0 0.0
    %629 = vmatprep.subr.mxu0 0.0
    %630 = vmatpush1.msra.mxu0 0.0
    %631 = vmatprep.subr.mxu0 0.0
    %632 = vmatpush1.msra.mxu0 0.0
    %633 = vmatprep.subr.mxu0 0.0
    %634 = vmatpush1.msra.mxu0 0.0
    %635 = vmatprep.subr.mxu0 0.0
    %636 = vmatpush1.msra.mxu0 0.0
    %637 = vmatprep.mubr.f32.mxu0 0.0
    %638 = vmatmul.mubr.f32.gmra.mrb[0].mxu0 %v526
    %v639 = vpop.f32.mrb[0].mxu0
    %v640 = vadd.f32 0.0, %v639
    %v641 = vpop.f32.mrb[0].mxu0
    %642 = vmatprep.mubr.f32.mxu0 0.0
    %643 = vmatmul.mubr.f32.gmra.mrb[0].mxu0 %v529
    %v644 = vpop.f32.mrb[0].mxu0
    %v645 = vadd.f32 0.0, %v644
    %v646 = vpop.f32.mrb[0].mxu0
    %647 = vmatprep.mubr.f32.mxu0 0.0
    %648 = vmatmul.mubr.f32.gmra.mrb[0].mxu0 %v532
    %v649 = vpop.f32.mrb[0].mxu0
    %v650 = vadd.f32 0.0, %v649
    %v651 = vpop.f32.mrb[0].mxu0
    %652 = vmatprep.mubr.f32.mxu0 0.0
    %653 = vmatmul.mubr.f32.gmra.mrb[0].mxu0 %v535
    %v654 = vpop.f32.mrb[0].mxu0
    %v655 = vadd.f32 0.0, %v654
    %v656 = vpop.f32.mrb[0].mxu0
    %657 = vmatprep.mubr.f32.mxu0 0.0
    %658 = vmatmul.mubr.f32.gmra.mrb[0].mxu0 %v538
    %v659 = vpop.f32.mrb[0].mxu0
    %v660 = vadd.f32 0.0, %v659
    %v661 = vpop.f32.mrb[0].mxu0
    %662 = vmatprep.mubr.f32.mxu0 0.0
    %663 = vmatmul.mubr.f32.gmra.mrb[0].mxu0 %v541
    %v664 = vpop.f32.mrb[0].mxu0
    %v665 = vadd.f32 0.0, %v664
    %v666 = vpop.f32.mrb[0].mxu0
    %667 = vmatprep.mubr.f32.mxu0 0.0
    %668 = vmatmul.mubr.f32.gmra.mrb[0].mxu0 %v544
    %v669 = vpop.f32.mrb[0].mxu0
    %v670 = vadd.f32 0.0, %v669
    %v671 = vpop.f32.mrb[0].mxu0
    %672 = vmatprep.mubr.f32.mxu0 0.0
    %673 = vmatmul.mubr.f32.gmra.mrb[0].mxu0 %v547
    %v674 = vpop.f32.mrb[0].mxu0
    %v675 = vadd.f32 0.0, %v674
    %v676 = vpop.f32.mrb[0].mxu0
    %677 = vmatprep.mubr.f32.mxu0 0.0
    %678 = vmatmul.mubr.f32.gmra.mrb[0].mxu0 %v550
    %v679 = vpop.f32.mrb[0].mxu0
    %v680 = vadd.f32 0.0, %v679
    %v681 = vpop.f32.mrb[0].mxu0
    %682 = vmatprep.mubr.f32.mxu0 0.0
    %683 = vmatmul.mubr.f32.gmra.mrb[0].mxu0 %v553
    %v684 = vpop.f32.mrb[0].mxu0
    %v685 = vadd.f32 0.0, %v684
    %v686 = vpop.f32.mrb[0].mxu0
    %687 = vmatprep.mubr.f32.mxu0 0.0
    %688 = vmatmul.mubr.f32.gmra.mrb[0].mxu0 %v556
    %v689 = vpop.f32.mrb[0].mxu0
    %v690 = vadd.f32 0.0, %v689
    %v691 = vpop.f32.mrb[0].mxu0
    %692 = vmatprep.mubr.f32.mxu0 0.0
    %693 = vmatmul.mubr.f32.gmra.mrb[0].mxu0 %v559
    %v694 = vpop.f32.mrb[0].mxu0
    %v695 = vadd.f32 0.0, %v694
    %v696 = vpop.f32.mrb[0].mxu0
    %697 = vmatprep.mubr.f32.mxu0 0.0
    %698 = vmatmul.mubr.f32.gmra.mrb[0].mxu0 %v562
    %v699 = vpop.f32.mrb[0].mxu0
    %v700 = vadd.f32 0.0, %v699
    %v701 = vpop.f32.mrb[0].mxu0
    %702 = vmatprep.mubr.f32.mxu0 0.0
    %703 = vmatmul.mubr.f32.gmra.mrb[0].mxu0 %v565
    %v704 = vpop.f32.mrb[0].mxu0
    %v705 = vadd.f32 0.0, %v704
    %v706 = vpop.f32.mrb[0].mxu0
    %707 = vmatprep.mubr.f32.mxu0 0.0
    %708 = vmatmul.mubr.f32.gmra.mrb[0].mxu0 %v568
    %v709 = vpop.f32.mrb[0].mxu0
    %v710 = vadd.f32 0.0, %v709
    %v711 = vpop.f32.mrb[0].mxu0
    %712 = vmatprep.mubr.f32.mxu0 0.0
    %713 = vmatmul.mubr.f32.gmra.mrb[0].mxu0 %v571
    %v714 = vpop.f32.mrb[0].mxu0
    %v715 = vadd.f32 0.0, %v714
    %v716 = vpop.f32.mrb[0].mxu0
    %717 = vdwg.mxu0
    %v718 = vmul.f32 %v640, %v508
    %v719 = vmul.f32 %v645, %v509
    %v720 = vmul.f32 %v650, %v510
    %v721 = vmul.f32 %v655, %v511
    %v722 = vmul.f32 %v660, %v512
    %v723 = vmul.f32 %v665, %v513
    %v724 = vmul.f32 %v670, %v514
    %v725 = vmul.f32 %v675, %v515
    %v726 = vmul.f32 %v680, %v516
    %v727 = vmul.f32 %v685, %v517
    %v728 = vmul.f32 %v690, %v518
    %v729 = vmul.f32 %v695, %v519
    %v730 = vmul.f32 %v700, %v520
    %v731 = vmul.f32 %v705, %v521
    %v732 = vmul.f32 %v710, %v522
    %v733 = vmul.f32 %v715, %v523
    %v735 = vlaneseq
    %v736 = vshrl.u32 %v735, 7
    %v737 = vsub.s32 0, %v736
    %v738 = vrot.slane %v524, %v737
    %742 = vrot.lane.b32.xlu0 %v412, 96
    %v743 = vpop.permute.xlu0 %742
    %744 = vrot.lane.b32.xlu0 %v417, 96
    %v745 = vpop.permute.xlu0 %744
    %v747 = vsel %vm296, %v718, 0
    %v750 = vsel %vm296, %v719, 0
    %v753 = vsel %vm296, %v720, 0
    %v756 = vsel %vm296, %v721, 0
    %v759 = vsel %vm296, %v722, 0
    %v762 = vsel %vm296, %v723, 0
    %v765 = vsel %vm296, %v724, 0
    %v768 = vsel %vm296, %v725, 0
    %v771 = vsel %vm296, %v726, 0
    %v774 = vsel %vm296, %v727, 0
    %v777 = vsel %vm296, %v728, 0
    %v780 = vsel %vm296, %v729, 0
    %v783 = vsel %vm296, %v730, 0
    %v786 = vsel %vm296, %v731, 0
    %v789 = vsel %vm296, %v732, 0
    %v792 = vsel %vm296, %v733, 0
    %v794 = vsel %vm296, %v743, 0
    %v796 = vsel %vm296, %v745, 0
    %798 = vmatprep.subr.mxu0 0.0
    %799 = vmatpush1.xpose.msra.mxu0 %v794
    %800 = vmatprep.subr.mxu0 0.0
    %801 = vmatpush1.xpose.msra.mxu0 %v796
    %802 = vmatprep.subr.mxu0 0.0
    %803 = vmatpush1.xpose.msra.mxu0 0.0
    %804 = vmatprep.subr.mxu0 0.0
    %805 = vmatpush1.xpose.msra.mxu0 0.0
    %806 = vmatprep.subr.mxu0 0.0
    %807 = vmatpush1.xpose.msra.mxu0 0.0
    %808 = vmatprep.subr.mxu0 0.0
    %809 = vmatpush1.xpose.msra.mxu0 0.0
    %810 = vmatprep.subr.mxu0 0.0
    %811 = vmatpush1.xpose.msra.mxu0 0.0
    %812 = vmatprep.subr.mxu0 0.0
    %813 = vmatpush1.xpose.msra.mxu0 0.0
    %814 = vmatprep.subr.mxu0 0.0
    %815 = vmatpush1.xpose.msra.mxu0 0.0
    %816 = vmatprep.subr.mxu0 0.0
    %817 = vmatpush1.xpose.msra.mxu0 0.0
    %818 = vmatprep.subr.mxu0 0.0
    %819 = vmatpush1.xpose.msra.mxu0 0.0
    %820 = vmatprep.subr.mxu0 0.0
    %821 = vmatpush1.xpose.msra.mxu0 0.0
    %822 = vmatprep.subr.mxu0 0.0
    %823 = vmatpush1.xpose.msra.mxu0 0.0
    %824 = vmatprep.subr.mxu0 0.0
    %825 = vmatpush1.xpose.msra.mxu0 0.0
    %826 = vmatprep.subr.mxu0 0.0
    %827 = vmatpush1.xpose.msra.mxu0 0.0
    %828 = vmatprep.subr.mxu0 0.0
    %829 = vmatpush1.xpose.msra.mxu0 0.0
    %830 = vmatprep.subr.mxu0 0.0
    %831 = vmatpush1.xpose.msra.mxu0 0.0
    %832 = vmatprep.subr.mxu0 0.0
    %833 = vmatpush1.xpose.msra.mxu0 0.0
    %834 = vmatprep.subr.mxu0 0.0
    %835 = vmatpush1.xpose.msra.mxu0 0.0
    %836 = vmatprep.subr.mxu0 0.0
    %837 = vmatpush1.xpose.msra.mxu0 0.0
    %838 = vmatprep.subr.mxu0 0.0
    %839 = vmatpush1.xpose.msra.mxu0 0.0
    %840 = vmatprep.subr.mxu0 0.0
    %841 = vmatpush1.xpose.msra.mxu0 0.0
    %842 = vmatprep.subr.mxu0 0.0
    %843 = vmatpush1.xpose.msra.mxu0 0.0
    %844 = vmatprep.subr.mxu0 0.0
    %845 = vmatpush1.xpose.msra.mxu0 0.0
    %846 = vmatprep.subr.mxu0 0.0
    %847 = vmatpush1.xpose.msra.mxu0 0.0
    %848 = vmatprep.subr.mxu0 0.0
    %849 = vmatpush1.xpose.msra.mxu0 0.0
    %850 = vmatprep.subr.mxu0 0.0
    %851 = vmatpush1.xpose.msra.mxu0 0.0
    %852 = vmatprep.subr.mxu0 0.0
    %853 = vmatpush1.xpose.msra.mxu0 0.0
    %854 = vmatprep.subr.mxu0 0.0
    %855 = vmatpush1.xpose.msra.mxu0 0.0
    %856 = vmatprep.subr.mxu0 0.0
    %857 = vmatpush1.xpose.msra.mxu0 0.0
    %858 = vmatprep.subr.mxu0 0.0
    %859 = vmatpush1.xpose.msra.mxu0 0.0
    %860 = vmatprep.subr.mxu0 0.0
    %861 = vmatpush1.xpose.msra.mxu0 0.0
    %862 = vmatprep.mubr.f32.mxu0 0.0
    %863 = vmatmul.mubr.f32.gmra.mrb[0].mxu0 %v747
    %v864 = vpop.f32.mrb[0].mxu0
    %v865 = vadd.f32 %v738, %v864
    %v866 = vpop.f32.mrb[0].mxu0
    %867 = vmatprep.mubr.f32.mxu0 0.0
    %868 = vmatmul.mubr.f32.gmra.mrb[0].mxu0 %v750
    %v869 = vpop.f32.mrb[0].mxu0
    %v870 = vadd.f32 %v738, %v869
    %v871 = vpop.f32.mrb[0].mxu0
    %872 = vmatprep.mubr.f32.mxu0 0.0
    %873 = vmatmul.mubr.f32.gmra.mrb[0].mxu0 %v753
    %v874 = vpop.f32.mrb[0].mxu0
    %v875 = vadd.f32 %v738, %v874
    %v876 = vpop.f32.mrb[0].mxu0
    %877 = vmatprep.mubr.f32.mxu0 0.0
    %878 = vmatmul.mubr.f32.gmra.mrb[0].mxu0 %v756
    %v879 = vpop.f32.mrb[0].mxu0
    %v880 = vadd.f32 %v738, %v879
    %v881 = vpop.f32.mrb[0].mxu0
    %882 = vmatprep.mubr.f32.mxu0 0.0
    %883 = vmatmul.mubr.f32.gmra.mrb[0].mxu0 %v759
    %v884 = vpop.f32.mrb[0].mxu0
    %v885 = vadd.f32 %v738, %v884
    %v886 = vpop.f32.mrb[0].mxu0
    %887 = vmatprep.mubr.f32.mxu0 0.0
    %888 = vmatmul.mubr.f32.gmra.mrb[0].mxu0 %v762
    %v889 = vpop.f32.mrb[0].mxu0
    %v890 = vadd.f32 %v738, %v889
    %v891 = vpop.f32.mrb[0].mxu0
    %892 = vmatprep.mubr.f32.mxu0 0.0
    %893 = vmatmul.mubr.f32.gmra.mrb[0].mxu0 %v765
    %v894 = vpop.f32.mrb[0].mxu0
    %v895 = vadd.f32 %v738, %v894
    %v896 = vpop.f32.mrb[0].mxu0
    %897 = vmatprep.mubr.f32.mxu0 0.0
    %898 = vmatmul.mubr.f32.gmra.mrb[0].mxu0 %v768
    %v899 = vpop.f32.mrb[0].mxu0
    %v900 = vadd.f32 %v738, %v899
    %v901 = vpop.f32.mrb[0].mxu0
    %902 = vmatprep.mubr.f32.mxu0 0.0
    %903 = vmatmul.mubr.f32.gmra.mrb[0].mxu0 %v771
    %v904 = vpop.f32.mrb[0].mxu0
    %v905 = vadd.f32 %v738, %v904
    %v906 = vpop.f32.mrb[0].mxu0
    %907 = vmatprep.mubr.f32.mxu0 0.0
    %908 = vmatmul.mubr.f32.gmra.mrb[0].mxu0 %v774
    %v909 = vpop.f32.mrb[0].mxu0
    %v910 = vadd.f32 %v738, %v909
    %v911 = vpop.f32.mrb[0].mxu0
    %912 = vmatprep.mubr.f32.mxu0 0.0
    %913 = vmatmul.mubr.f32.gmra.mrb[0].mxu0 %v777
    %v914 = vpop.f32.mrb[0].mxu0
    %v915 = vadd.f32 %v738, %v914
    %v916 = vpop.f32.mrb[0].mxu0
    %917 = vmatprep.mubr.f32.mxu0 0.0
    %918 = vmatmul.mubr.f32.gmra.mrb[0].mxu0 %v780
    %v919 = vpop.f32.mrb[0].mxu0
    %v920 = vadd.f32 %v738, %v919
    %v921 = vpop.f32.mrb[0].mxu0
    %922 = vmatprep.mubr.f32.mxu0 0.0
    %923 = vmatmul.mubr.f32.gmra.mrb[0].mxu0 %v783
    %v924 = vpop.f32.mrb[0].mxu0
    %v925 = vadd.f32 %v738, %v924
    %v926 = vpop.f32.mrb[0].mxu0
    %927 = vmatprep.mubr.f32.mxu0 0.0
    %928 = vmatmul.mubr.f32.gmra.mrb[0].mxu0 %v786
    %v929 = vpop.f32.mrb[0].mxu0
    %v930 = vadd.f32 %v738, %v929
    %v931 = vpop.f32.mrb[0].mxu0
    %932 = vmatprep.mubr.f32.mxu0 0.0
    %933 = vmatmul.mubr.f32.gmra.mrb[0].mxu0 %v789
    %v934 = vpop.f32.mrb[0].mxu0
    %v935 = vadd.f32 %v738, %v934
    %v936 = vpop.f32.mrb[0].mxu0
    %937 = vmatprep.mubr.f32.mxu0 0.0
    %938 = vmatmul.mubr.f32.gmra.mrb[0].mxu0 %v792
    %v939 = vpop.f32.mrb[0].mxu0
    %v940 = vadd.f32 %v738, %v939
    %v941 = vpop.f32.mrb[0].mxu0
    %942 = vdwg.mxu0
    %v943 = vsel %vm91, %v865, -inf
    %944 = vmax.xlane.f32.xlu0 %v943
    %v945 = vpop.xlane.xlu0 %944
    %v946 = vsel %vm91, %v870, -inf
    %947 = vmax.xlane.f32.xlu0 %v946
    %v948 = vpop.xlane.xlu0 %947
    %v949 = vsel %vm91, %v875, -inf
    %950 = vmax.xlane.f32.xlu0 %v949
    %v951 = vpop.xlane.xlu0 %950
    %v952 = vsel %vm91, %v880, -inf
    %953 = vmax.xlane.f32.xlu0 %v952
    %v954 = vpop.xlane.xlu0 %953
    %v955 = vsel %vm91, %v885, -inf
    %956 = vmax.xlane.f32.xlu0 %v955
    %v957 = vpop.xlane.xlu0 %956
    %v958 = vsel %vm91, %v890, -inf
    %959 = vmax.xlane.f32.xlu0 %v958
    %v960 = vpop.xlane.xlu0 %959
    %v961 = vsel %vm91, %v895, -inf
    %962 = vmax.xlane.f32.xlu0 %v961
    %v963 = vpop.xlane.xlu0 %962
    %v964 = vsel %vm91, %v900, -inf
    %965 = vmax.xlane.f32.xlu0 %v964
    %v966 = vpop.xlane.xlu0 %965
    %v967 = vsel %vm91, %v905, -inf
    %968 = vmax.xlane.f32.xlu0 %v967
    %v969 = vpop.xlane.xlu0 %968
    %v970 = vsel %vm91, %v910, -inf
    %971 = vmax.xlane.f32.xlu0 %v970
    %v972 = vpop.xlane.xlu0 %971
    %v973 = vsel %vm91, %v915, -inf
    %974 = vmax.xlane.f32.xlu0 %v973
    %v975 = vpop.xlane.xlu0 %974
    %v976 = vsel %vm91, %v920, -inf
    %977 = vmax.xlane.f32.xlu0 %v976
    %v978 = vpop.xlane.xlu0 %977
    %v979 = vsel %vm91, %v925, -inf
    %980 = vmax.xlane.f32.xlu0 %v979
    %v981 = vpop.xlane.xlu0 %980
    %v982 = vsel %vm91, %v930, -inf
    %983 = vmax.xlane.f32.xlu0 %v982
    %v984 = vpop.xlane.xlu0 %983
    %v985 = vsel %vm91, %v935, -inf
    %986 = vmax.xlane.f32.xlu0 %v985
    %v987 = vpop.xlane.xlu0 %986
    %v988 = vsel %vm91, %v940, -inf
    %989 = vmax.xlane.f32.xlu0 %v988
    %v990 = vpop.xlane.xlu0 %989
    %v991 = vsub.f32 %v865, %v945
    %v992 = vsub.f32 %v870, %v948
    %v993 = vsub.f32 %v875, %v951
    %v994 = vsub.f32 %v880, %v954
    %v995 = vsub.f32 %v885, %v957
    %v996 = vsub.f32 %v890, %v960
    %v997 = vsub.f32 %v895, %v963
    %v998 = vsub.f32 %v900, %v966
    %v999 = vsub.f32 %v905, %v969
    %v1000 = vsub.f32 %v910, %v972
    %v1001 = vsub.f32 %v915, %v975
    %v1002 = vsub.f32 %v920, %v978
    %v1003 = vsub.f32 %v925, %v981
    %v1004 = vsub.f32 %v930, %v984
    %v1005 = vsub.f32 %v935, %v987
    %v1006 = vsub.f32 %v940, %v990
    %v1007 = vmul.f32 %v991, 1.442695
    %v1008 = vpow.pop %v1007
    %v1009 = vmul.f32 %v992, 1.442695
    %v1010 = vpow.pop %v1009
    %v1011 = vmul.f32 %v993, 1.442695
    %v1012 = vpow.pop %v1011
    %v1013 = vmul.f32 %v994, 1.442695
    %v1014 = vpow.pop %v1013
    %v1015 = vmul.f32 %v995, 1.442695
    %v1016 = vpow.pop %v1015
    %v1017 = vmul.f32 %v996, 1.442695
    %v1018 = vpow.pop %v1017
    %v1019 = vmul.f32 %v997, 1.442695
    %v1020 = vpow.pop %v1019
    %v1021 = vmul.f32 %v998, 1.442695
    %v1022 = vpow.pop %v1021
    %v1023 = vmul.f32 %v999, 1.442695
    %v1024 = vpow.pop %v1023
    %v1025 = vmul.f32 %v1000, 1.442695
    %v1026 = vpow.pop %v1025
    %v1027 = vmul.f32 %v1001, 1.442695
    %v1028 = vpow.pop %v1027
    %v1029 = vmul.f32 %v1002, 1.442695
    %v1030 = vpow.pop %v1029
    %v1031 = vmul.f32 %v1003, 1.442695
    %v1032 = vpow.pop %v1031
    %v1033 = vmul.f32 %v1004, 1.442695
    %v1034 = vpow.pop %v1033
    %v1035 = vmul.f32 %v1005, 1.442695
    %v1036 = vpow.pop %v1035
    %v1037 = vmul.f32 %v1006, 1.442695
    %v1038 = vpow.pop %v1037
    %v1039 = vsel %vm91, %v1008, 0.0
    %1040 = vadd.xlane.f32.xlu0 %v1039
    %v1041 = vpop.xlane.xlu0 %1040
    %v1042 = vsel %vm91, %v1010, 0.0
    %1043 = vadd.xlane.f32.xlu0 %v1042
    %v1044 = vpop.xlane.xlu0 %1043
    %v1045 = vsel %vm91, %v1012, 0.0
    %1046 = vadd.xlane.f32.xlu0 %v1045
    %v1047 = vpop.xlane.xlu0 %1046
    %v1048 = vsel %vm91, %v1014, 0.0
    %1049 = vadd.xlane.f32.xlu0 %v1048
    %v1050 = vpop.xlane.xlu0 %1049
    %v1051 = vsel %vm91, %v1016, 0.0
    %1052 = vadd.xlane.f32.xlu0 %v1051
    %v1053 = vpop.xlane.xlu0 %1052
    %v1054 = vsel %vm91, %v1018, 0.0
    %1055 = vadd.xlane.f32.xlu0 %v1054
    %v1056 = vpop.xlane.xlu0 %1055
    %v1057 = vsel %vm91, %v1020, 0.0
    %1058 = vadd.xlane.f32.xlu0 %v1057
    %v1059 = vpop.xlane.xlu0 %1058
    %v1060 = vsel %vm91, %v1022, 0.0
    %1061 = vadd.xlane.f32.xlu0 %v1060
    %v1062 = vpop.xlane.xlu0 %1061
    %v1063 = vsel %vm91, %v1024, 0.0
    %1064 = vadd.xlane.f32.xlu0 %v1063
    %v1065 = vpop.xlane.xlu0 %1064
    %v1066 = vsel %vm91, %v1026, 0.0
    %1067 = vadd.xlane.f32.xlu0 %v1066
    %v1068 = vpop.xlane.xlu0 %1067
    %v1069 = vsel %vm91, %v1028, 0.0
    %1070 = vadd.xlane.f32.xlu0 %v1069
    %v1071 = vpop.xlane.xlu0 %1070
    %v1072 = vsel %vm91, %v1030, 0.0
    %1073 = vadd.xlane.f32.xlu0 %v1072
    %v1074 = vpop.xlane.xlu0 %1073
    %v1075 = vsel %vm91, %v1032, 0.0
    %1076 = vadd.xlane.f32.xlu0 %v1075
    %v1077 = vpop.xlane.xlu0 %1076
    %v1078 = vsel %vm91, %v1034, 0.0
    %1079 = vadd.xlane.f32.xlu0 %v1078
    %v1080 = vpop.xlane.xlu0 %1079
    %v1081 = vsel %vm91, %v1036, 0.0
    %1082 = vadd.xlane.f32.xlu0 %v1081
    %v1083 = vpop.xlane.xlu0 %1082
    %v1084 = vsel %vm91, %v1038, 0.0
    %1085 = vadd.xlane.f32.xlu0 %v1084
    %v1086 = vpop.xlane.xlu0 %1085
    %v1087 = vrcp.pop %v1041
    %v1088 = vrcp.pop %v1044
    %v1089 = vrcp.pop %v1047
    %v1090 = vrcp.pop %v1050
    %v1091 = vrcp.pop %v1053
    %v1092 = vrcp.pop %v1056
    %v1093 = vrcp.pop %v1059
    %v1094 = vrcp.pop %v1062
    %v1095 = vrcp.pop %v1065
    %v1096 = vrcp.pop %v1068
    %v1097 = vrcp.pop %v1071
    %v1098 = vrcp.pop %v1074
    %v1099 = vrcp.pop %v1077
    %v1100 = vrcp.pop %v1080
    %v1101 = vrcp.pop %v1083
    %v1102 = vrcp.pop %v1086
    %v1103 = vmul.f32 %v1008, %v1087
    %v1104 = vmul.f32 %v1010, %v1088
    %v1105 = vmul.f32 %v1012, %v1089
    %v1106 = vmul.f32 %v1014, %v1090
    %v1107 = vmul.f32 %v1016, %v1091
    %v1108 = vmul.f32 %v1018, %v1092
    %v1109 = vmul.f32 %v1020, %v1093
    %v1110 = vmul.f32 %v1022, %v1094
    %v1111 = vmul.f32 %v1024, %v1095
    %v1112 = vmul.f32 %v1026, %v1096
    %v1113 = vmul.f32 %v1028, %v1097
    %v1114 = vmul.f32 %v1030, %v1098
    %v1115 = vmul.f32 %v1032, %v1099
    %v1116 = vmul.f32 %v1034, %v1100
    %v1117 = vmul.f32 %v1036, %v1101
    %v1118 = vmul.f32 %v1038, %v1102
    %1119 = vrot.lane.b32.xlu0 %v412, 64
    %v1120 = vpop.permute.xlu0 %1119
    %1121 = vrot.lane.b32.xlu0 %v417, 64
    %v1122 = vpop.permute.xlu0 %1121
    %v1126 = vsel %vm91, %v1103, 0
    %v1129 = vsel %vm91, %v1104, 0
    %v1132 = vsel %vm91, %v1105, 0
    %v1135 = vsel %vm91, %v1106, 0
    %v1138 = vsel %vm91, %v1107, 0
    %v1141 = vsel %vm91, %v1108, 0
    %v1144 = vsel %vm91, %v1109, 0
    %v1147 = vsel %vm91, %v1110, 0
    %v1150 = vsel %vm91, %v1111, 0
    %v1153 = vsel %vm91, %v1112, 0
    %v1156 = vsel %vm91, %v1113, 0
    %v1159 = vsel %vm91, %v1114, 0
    %v1162 = vsel %vm91, %v1115, 0
    %v1165 = vsel %vm91, %v1116, 0
    %v1168 = vsel %vm91, %v1117, 0
    %v1171 = vsel %vm91, %v1118, 0
    %1173 = vmatprep.subr.mxu0 0.0
    %1174 = vmatpush1.msra.mxu0 %v1120
    %1175 = vmatprep.subr.mxu0 0.0
    %1176 = vmatpush1.msra.mxu0 %v1122
    %1177 = vmatprep.subr.mxu0 0.0
    %1178 = vmatpush1.msra.mxu0 0.0
    %1179 = vmatprep.subr.mxu0 0.0
    %1180 = vmatpush1.msra.mxu0 0.0
    %1181 = vmatprep.subr.mxu0 0.0
    %1182 = vmatpush1.msra.mxu0 0.0
    %1183 = vmatprep.subr.mxu0 0.0
    %1184 = vmatpush1.msra.mxu0 0.0
    %1185 = vmatprep.subr.mxu0 0.0
    %1186 = vmatpush1.msra.mxu0 0.0
    %1187 = vmatprep.subr.mxu0 0.0
    %1188 = vmatpush1.msra.mxu0 0.0
    %1189 = vmatprep.subr.mxu0 0.0
    %1190 = vmatpush1.msra.mxu0 0.0
    %1191 = vmatprep.subr.mxu0 0.0
    %1192 = vmatpush1.msra.mxu0 0.0
    %1193 = vmatprep.subr.mxu0 0.0
    %1194 = vmatpush1.msra.mxu0 0.0
    %1195 = vmatprep.subr.mxu0 0.0
    %1196 = vmatpush1.msra.mxu0 0.0
    %1197 = vmatprep.subr.mxu0 0.0
    %1198 = vmatpush1.msra.mxu0 0.0
    %1199 = vmatprep.subr.mxu0 0.0
    %1200 = vmatpush1.msra.mxu0 0.0
    %1201 = vmatprep.subr.mxu0 0.0
    %1202 = vmatpush1.msra.mxu0 0.0
    %1203 = vmatprep.subr.mxu0 0.0
    %1204 = vmatpush1.msra.mxu0 0.0
    %1205 = vmatprep.subr.mxu0 0.0
    %1206 = vmatpush1.msra.mxu0 0.0
    %1207 = vmatprep.subr.mxu0 0.0
    %1208 = vmatpush1.msra.mxu0 0.0
    %1209 = vmatprep.subr.mxu0 0.0
    %1210 = vmatpush1.msra.mxu0 0.0
    %1211 = vmatprep.subr.mxu0 0.0
    %1212 = vmatpush1.msra.mxu0 0.0
    %1213 = vmatprep.subr.mxu0 0.0
    %1214 = vmatpush1.msra.mxu0 0.0
    %1215 = vmatprep.subr.mxu0 0.0
    %1216 = vmatpush1.msra.mxu0 0.0
    %1217 = vmatprep.subr.mxu0 0.0
    %1218 = vmatpush1.msra.mxu0 0.0
    %1219 = vmatprep.subr.mxu0 0.0
    %1220 = vmatpush1.msra.mxu0 0.0
    %1221 = vmatprep.subr.mxu0 0.0
    %1222 = vmatpush1.msra.mxu0 0.0
    %1223 = vmatprep.subr.mxu0 0.0
    %1224 = vmatpush1.msra.mxu0 0.0
    %1225 = vmatprep.subr.mxu0 0.0
    %1226 = vmatpush1.msra.mxu0 0.0
    %1227 = vmatprep.subr.mxu0 0.0
    %1228 = vmatpush1.msra.mxu0 0.0
    %1229 = vmatprep.subr.mxu0 0.0
    %1230 = vmatpush1.msra.mxu0 0.0
    %1231 = vmatprep.subr.mxu0 0.0
    %1232 = vmatpush1.msra.mxu0 0.0
    %1233 = vmatprep.subr.mxu0 0.0
    %1234 = vmatpush1.msra.mxu0 0.0
    %1235 = vmatprep.subr.mxu0 0.0
    %1236 = vmatpush1.msra.mxu0 0.0
    %1237 = vmatprep.mubr.f32.mxu0 0.0
    %1238 = vmatmul.mubr.f32.gmra.mrb[0].mxu0 %v1126
    %v1239 = vpop.f32.mrb[0].mxu0
    %v1240 = vadd.f32 0.0, %v1239
    %v1241 = vpop.f32.mrb[0].mxu0
    %1242 = vmatprep.mubr.f32.mxu0 0.0
    %1243 = vmatmul.mubr.f32.gmra.mrb[0].mxu0 %v1129
    %v1244 = vpop.f32.mrb[0].mxu0
    %v1245 = vadd.f32 0.0, %v1244
    %v1246 = vpop.f32.mrb[0].mxu0
    %1247 = vmatprep.mubr.f32.mxu0 0.0
    %1248 = vmatmul.mubr.f32.gmra.mrb[0].mxu0 %v1132
    %v1249 = vpop.f32.mrb[0].mxu0
    %v1250 = vadd.f32 0.0, %v1249
    %v1251 = vpop.f32.mrb[0].mxu0
    %1252 = vmatprep.mubr.f32.mxu0 0.0
    %1253 = vmatmul.mubr.f32.gmra.mrb[0].mxu0 %v1135
    %v1254 = vpop.f32.mrb[0].mxu0
    %v1255 = vadd.f32 0.0, %v1254
    %v1256 = vpop.f32.mrb[0].mxu0
    %1257 = vmatprep.mubr.f32.mxu0 0.0
    %1258 = vmatmul.mubr.f32.gmra.mrb[0].mxu0 %v1138
    %v1259 = vpop.f32.mrb[0].mxu0
    %v1260 = vadd.f32 0.0, %v1259
    %v1261 = vpop.f32.mrb[0].mxu0
    %1262 = vmatprep.mubr.f32.mxu0 0.0
    %1263 = vmatmul.mubr.f32.gmra.mrb[0].mxu0 %v1141
    %v1264 = vpop.f32.mrb[0].mxu0
    %v1265 = vadd.f32 0.0, %v1264
    %v1266 = vpop.f32.mrb[0].mxu0
    %1267 = vmatprep.mubr.f32.mxu0 0.0
    %1268 = vmatmul.mubr.f32.gmra.mrb[0].mxu0 %v1144
    %v1269 = vpop.f32.mrb[0].mxu0
    %v1270 = vadd.f32 0.0, %v1269
    %v1271 = vpop.f32.mrb[0].mxu0
    %1272 = vmatprep.mubr.f32.mxu0 0.0
    %1273 = vmatmul.mubr.f32.gmra.mrb[0].mxu0 %v1147
    %v1274 = vpop.f32.mrb[0].mxu0
    %v1275 = vadd.f32 0.0, %v1274
    %v1276 = vpop.f32.mrb[0].mxu0
    %1277 = vmatprep.mubr.f32.mxu0 0.0
    %1278 = vmatmul.mubr.f32.gmra.mrb[0].mxu0 %v1150
    %v1279 = vpop.f32.mrb[0].mxu0
    %v1280 = vadd.f32 0.0, %v1279
    %v1281 = vpop.f32.mrb[0].mxu0
    %1282 = vmatprep.mubr.f32.mxu0 0.0
    %1283 = vmatmul.mubr.f32.gmra.mrb[0].mxu0 %v1153
    %v1284 = vpop.f32.mrb[0].mxu0
    %v1285 = vadd.f32 0.0, %v1284
    %v1286 = vpop.f32.mrb[0].mxu0
    %1287 = vmatprep.mubr.f32.mxu0 0.0
    %1288 = vmatmul.mubr.f32.gmra.mrb[0].mxu0 %v1156
    %v1289 = vpop.f32.mrb[0].mxu0
    %v1290 = vadd.f32 0.0, %v1289
    %v1291 = vpop.f32.mrb[0].mxu0
    %1292 = vmatprep.mubr.f32.mxu0 0.0
    %1293 = vmatmul.mubr.f32.gmra.mrb[0].mxu0 %v1159
    %v1294 = vpop.f32.mrb[0].mxu0
    %v1295 = vadd.f32 0.0, %v1294
    %v1296 = vpop.f32.mrb[0].mxu0
    %1297 = vmatprep.mubr.f32.mxu0 0.0
    %1298 = vmatmul.mubr.f32.gmra.mrb[0].mxu0 %v1162
    %v1299 = vpop.f32.mrb[0].mxu0
    %v1300 = vadd.f32 0.0, %v1299
    %v1301 = vpop.f32.mrb[0].mxu0
    %1302 = vmatprep.mubr.f32.mxu0 0.0
    %1303 = vmatmul.mubr.f32.gmra.mrb[0].mxu0 %v1165
    %v1304 = vpop.f32.mrb[0].mxu0
    %v1305 = vadd.f32 0.0, %v1304
    %v1306 = vpop.f32.mrb[0].mxu0
    %1307 = vmatprep.mubr.f32.mxu0 0.0
    %1308 = vmatmul.mubr.f32.gmra.mrb[0].mxu0 %v1168
    %v1309 = vpop.f32.mrb[0].mxu0
    %v1310 = vadd.f32 0.0, %v1309
    %v1311 = vpop.f32.mrb[0].mxu0
    %1312 = vmatprep.mubr.f32.mxu0 0.0
    %1313 = vmatmul.mubr.f32.gmra.mrb[0].mxu0 %v1171
    %v1314 = vpop.f32.mrb[0].mxu0
    %v1315 = vadd.f32 0.0, %v1314
    %v1316 = vpop.f32.mrb[0].mxu0
    %1317 = vdwg.mxu0
    %v1318 = vmul.f32 %v1240, %v508
    %v1319 = vmul.f32 %v1245, %v509
    %v1320 = vmul.f32 %v1250, %v510
    %v1321 = vmul.f32 %v1255, %v511
    %v1322 = vmul.f32 %v1260, %v512
    %v1323 = vmul.f32 %v1265, %v513
    %v1324 = vmul.f32 %v1270, %v514
    %v1325 = vmul.f32 %v1275, %v515
    %v1326 = vmul.f32 %v1280, %v516
    %v1327 = vmul.f32 %v1285, %v517
    %v1328 = vmul.f32 %v1290, %v518
    %v1329 = vmul.f32 %v1295, %v519
    %v1330 = vmul.f32 %v1300, %v520
    %v1331 = vmul.f32 %v1305, %v521
    %v1332 = vmul.f32 %v1310, %v522
    %v1333 = vmul.f32 %v1315, %v523
    %1334 = vmatprep.subr.mxu0 0.0
    %1335 = vmatpush1.msra.mxu0 %v1318
    %1336 = vmatprep.subr.mxu0 0.0
    %1337 = vmatpush1.msra.mxu0 %v1319
    %1338 = vmatprep.subr.mxu0 0.0
    %1339 = vmatpush1.msra.mxu0 %v1320
    %1340 = vmatprep.subr.mxu0 0.0
    %1341 = vmatpush1.msra.mxu0 %v1321
    %1342 = vmatprep.subr.mxu0 0.0
    %1343 = vmatpush1.msra.mxu0 %v1322
    %1344 = vmatprep.subr.mxu0 0.0
    %1345 = vmatpush1.msra.mxu0 %v1323
    %1346 = vmatprep.subr.mxu0 0.0
    %1347 = vmatpush1.msra.mxu0 %v1324
    %1348 = vmatprep.subr.mxu0 0.0
    %1349 = vmatpush1.msra.mxu0 %v1325
    %1350 = vmatprep.subr.mxu0 0.0
    %1351 = vmatpush1.msra.mxu0 %v1326
    %1352 = vmatprep.subr.mxu0 0.0
    %1353 = vmatpush1.msra.mxu0 %v1327
    %1354 = vmatprep.subr.mxu0 0.0
    %1355 = vmatpush1.msra.mxu0 %v1328
    %1356 = vmatprep.subr.mxu0 0.0
    %1357 = vmatpush1.msra.mxu0 %v1329
    %1358 = vmatprep.subr.mxu0 0.0
    %1359 = vmatpush1.msra.mxu0 %v1330
    %1360 = vmatprep.subr.mxu0 0.0
    %1361 = vmatpush1.msra.mxu0 %v1331
    %1362 = vmatprep.subr.mxu0 0.0
    %1363 = vmatpush1.msra.mxu0 %v1332
    %1364 = vmatprep.subr.mxu0 0.0
    %1365 = vmatpush1.msra.mxu0 %v1333
    %1366 = vmatprep.subr.mxu0 0.0
    %1367 = vmatpush1.msra.mxu0 0.0
    %1368 = vmatprep.subr.mxu0 0.0
    %1369 = vmatpush1.msra.mxu0 0.0
    %1370 = vmatprep.subr.mxu0 0.0
    %1371 = vmatpush1.msra.mxu0 0.0
    %1372 = vmatprep.subr.mxu0 0.0
    %1373 = vmatpush1.msra.mxu0 0.0
    %1374 = vmatprep.subr.mxu0 0.0
    %1375 = vmatpush1.msra.mxu0 0.0
    %1376 = vmatprep.subr.mxu0 0.0
    %1377 = vmatpush1.msra.mxu0 0.0
    %1378 = vmatprep.subr.mxu0 0.0
    %1379 = vmatpush1.msra.mxu0 0.0
    %1380 = vmatprep.subr.mxu0 0.0
    %1381 = vmatpush1.msra.mxu0 0.0
    %1382 = vmatprep.subr.mxu0 0.0
    %1383 = vmatpush1.msra.mxu0 0.0
    %1384 = vmatprep.subr.mxu0 0.0
    %1385 = vmatpush1.msra.mxu0 0.0
    %1386 = vmatprep.subr.mxu0 0.0
    %1387 = vmatpush1.msra.mxu0 0.0
    %1388 = vmatprep.subr.mxu0 0.0
    %1389 = vmatpush1.msra.mxu0 0.0
    %1390 = vmatprep.subr.mxu0 0.0
    %1391 = vmatpush1.msra.mxu0 0.0
    %1392 = vmatprep.subr.mxu0 0.0
    %1393 = vmatpush1.msra.mxu0 0.0
    %1394 = vmatprep.subr.mxu0 0.0
    %1395 = vmatpush1.msra.mxu0 0.0
    %1396 = vmatprep.subr.mxu0 0.0
    %1397 = vmatpush1.msra.mxu0 0.0
    %1398 = vmatprep.mubr.f32.mxu0 0.0
    %1399 = vmatmul.mubr.f32.gmra.mrb[0].mxu0 %v506
    %v1400 = vpop.f32.mrb[0].mxu0
    %v1401 = vadd.f32 0.0, %v1400
    %v1402 = vpop.f32.mrb[0].mxu0
    %1403 = vmatprep.mubr.f32.mxu0 0.0
    %1404 = vmatmul.mubr.f32.gmra.mrb[0].mxu0 %v507
    %v1405 = vpop.f32.mrb[0].mxu0
    %v1406 = vadd.f32 0.0, %v1405
    %v1407 = vpop.f32.mrb[0].mxu0
    %1408 = vdwg.mxu0
    %1409 = vst.msk [vmem:[#allocation2] sm:$0xff] %vm296, %v1401
    %1410 = vst.msk [vmem:[#allocation2 + $0x8] sm:$0xff] %vm296, %v1406
    %1411 = vmatprep.subr.mxu0 0.0
    %1412 = vmatpush1.msra.mxu0 %v422
    %1413 = vmatprep.subr.mxu0 0.0
    %1414 = vmatpush1.msra.mxu0 %v427
    %1415 = vmatprep.subr.mxu0 0.0
    %1416 = vmatpush1.msra.mxu0 0.0
    %1417 = vmatprep.subr.mxu0 0.0
    %1418 = vmatpush1.msra.mxu0 0.0
    %1419 = vmatprep.subr.mxu0 0.0
    %1420 = vmatpush1.msra.mxu0 0.0
    %1421 = vmatprep.subr.mxu0 0.0
    %1422 = vmatpush1.msra.mxu0 0.0
    %1423 = vmatprep.subr.mxu0 0.0
    %1424 = vmatpush1.msra.mxu0 0.0
    %1425 = vmatprep.subr.mxu0 0.0
    %1426 = vmatpush1.msra.mxu0 0.0
    %1427 = vmatprep.subr.mxu0 0.0
    %1428 = vmatpush1.msra.mxu0 0.0
    %1429 = vmatprep.subr.mxu0 0.0
    %1430 = vmatpush1.msra.mxu0 0.0
    %1431 = vmatprep.subr.mxu0 0.0
    %1432 = vmatpush1.msra.mxu0 0.0
    %1433 = vmatprep.subr.mxu0 0.0
    %1434 = vmatpush1.msra.mxu0 0.0
    %1435 = vmatprep.subr.mxu0 0.0
    %1436 = vmatpush1.msra.mxu0 0.0
    %1437 = vmatprep.subr.mxu0 0.0
    %1438 = vmatpush1.msra.mxu0 0.0
    %1439 = vmatprep.subr.mxu0 0.0
    %1440 = vmatpush1.msra.mxu0 0.0
    %1441 = vmatprep.subr.mxu0 0.0
    %1442 = vmatpush1.msra.mxu0 0.0
    %1443 = vmatprep.subr.mxu0 0.0
    %1444 = vmatpush1.msra.mxu0 0.0
    %1445 = vmatprep.subr.mxu0 0.0
    %1446 = vmatpush1.msra.mxu0 0.0
    %1447 = vmatprep.subr.mxu0 0.0
    %1448 = vmatpush1.msra.mxu0 0.0
    %1449 = vmatprep.subr.mxu0 0.0
    %1450 = vmatpush1.msra.mxu0 0.0
    %1451 = vmatprep.subr.mxu0 0.0
    %1452 = vmatpush1.msra.mxu0 0.0
    %1453 = vmatprep.subr.mxu0 0.0
    %1454 = vmatpush1.msra.mxu0 0.0
    %1455 = vmatprep.subr.mxu0 0.0
    %1456 = vmatpush1.msra.mxu0 0.0
    %1457 = vmatprep.subr.mxu0 0.0
    %1458 = vmatpush1.msra.mxu0 0.0
    %1459 = vmatprep.subr.mxu0 0.0
    %1460 = vmatpush1.msra.mxu0 0.0
    %1461 = vmatprep.subr.mxu0 0.0
    %1462 = vmatpush1.msra.mxu0 0.0
    %1463 = vmatprep.subr.mxu0 0.0
    %1464 = vmatpush1.msra.mxu0 0.0
    %1465 = vmatprep.subr.mxu0 0.0
    %1466 = vmatpush1.msra.mxu0 0.0
    %1467 = vmatprep.subr.mxu0 0.0
    %1468 = vmatpush1.msra.mxu0 0.0
    %1469 = vmatprep.subr.mxu0 0.0
    %1470 = vmatpush1.msra.mxu0 0.0
    %1471 = vmatprep.subr.mxu0 0.0
    %1472 = vmatpush1.msra.mxu0 0.0
    %1473 = vmatprep.subr.mxu0 0.0
    %1474 = vmatpush1.msra.mxu0 0.0
    %1475 = vmatprep.mubr.f32.mxu0 0.0
    %1476 = vmatmul.mubr.f32.gmra.mrb[0].mxu0 %v526
    %v1477 = vpop.f32.mrb[0].mxu0
    %v1478 = vadd.f32 0.0, %v1477
    %v1479 = vpop.f32.mrb[0].mxu0
    %1480 = vmatprep.mubr.f32.mxu0 0.0
    %1481 = vmatmul.mubr.f32.gmra.mrb[0].mxu0 %v529
    %v1482 = vpop.f32.mrb[0].mxu0
    %v1483 = vadd.f32 0.0, %v1482
    %v1484 = vpop.f32.mrb[0].mxu0
    %1485 = vmatprep.mubr.f32.mxu0 0.0
    %1486 = vmatmul.mubr.f32.gmra.mrb[0].mxu0 %v532
    %v1487 = vpop.f32.mrb[0].mxu0
    %v1488 = vadd.f32 0.0, %v1487
    %v1489 = vpop.f32.mrb[0].mxu0
    %1490 = vmatprep.mubr.f32.mxu0 0.0
    %1491 = vmatmul.mubr.f32.gmra.mrb[0].mxu0 %v535
    %v1492 = vpop.f32.mrb[0].mxu0
    %v1493 = vadd.f32 0.0, %v1492
    %v1494 = vpop.f32.mrb[0].mxu0
    %1495 = vmatprep.mubr.f32.mxu0 0.0
    %1496 = vmatmul.mubr.f32.gmra.mrb[0].mxu0 %v538
    %v1497 = vpop.f32.mrb[0].mxu0
    %v1498 = vadd.f32 0.0, %v1497
    %v1499 = vpop.f32.mrb[0].mxu0
    %1500 = vmatprep.mubr.f32.mxu0 0.0
    %1501 = vmatmul.mubr.f32.gmra.mrb[0].mxu0 %v541
    %v1502 = vpop.f32.mrb[0].mxu0
    %v1503 = vadd.f32 0.0, %v1502
    %v1504 = vpop.f32.mrb[0].mxu0
    %1505 = vmatprep.mubr.f32.mxu0 0.0
    %1506 = vmatmul.mubr.f32.gmra.mrb[0].mxu0 %v544
    %v1507 = vpop.f32.mrb[0].mxu0
    %v1508 = vadd.f32 0.0, %v1507
    %v1509 = vpop.f32.mrb[0].mxu0
    %1510 = vmatprep.mubr.f32.mxu0 0.0
    %1511 = vmatmul.mubr.f32.gmra.mrb[0].mxu0 %v547
    %v1512 = vpop.f32.mrb[0].mxu0
    %v1513 = vadd.f32 0.0, %v1512
    %v1514 = vpop.f32.mrb[0].mxu0
    %1515 = vmatprep.mubr.f32.mxu0 0.0
    %1516 = vmatmul.mubr.f32.gmra.mrb[0].mxu0 %v550
    %v1517 = vpop.f32.mrb[0].mxu0
    %v1518 = vadd.f32 0.0, %v1517
    %v1519 = vpop.f32.mrb[0].mxu0
    %1520 = vmatprep.mubr.f32.mxu0 0.0
    %1521 = vmatmul.mubr.f32.gmra.mrb[0].mxu0 %v553
    %v1522 = vpop.f32.mrb[0].mxu0
    %v1523 = vadd.f32 0.0, %v1522
    %v1524 = vpop.f32.mrb[0].mxu0
    %1525 = vmatprep.mubr.f32.mxu0 0.0
    %1526 = vmatmul.mubr.f32.gmra.mrb[0].mxu0 %v556
    %v1527 = vpop.f32.mrb[0].mxu0
    %v1528 = vadd.f32 0.0, %v1527
    %v1529 = vpop.f32.mrb[0].mxu0
    %1530 = vmatprep.mubr.f32.mxu0 0.0
    %1531 = vmatmul.mubr.f32.gmra.mrb[0].mxu0 %v559
    %v1532 = vpop.f32.mrb[0].mxu0
    %v1533 = vadd.f32 0.0, %v1532
    %v1534 = vpop.f32.mrb[0].mxu0
    %1535 = vmatprep.mubr.f32.mxu0 0.0
    %1536 = vmatmul.mubr.f32.gmra.mrb[0].mxu0 %v562
    %v1537 = vpop.f32.mrb[0].mxu0
    %v1538 = vadd.f32 0.0, %v1537
    %v1539 = vpop.f32.mrb[0].mxu0
    %1540 = vmatprep.mubr.f32.mxu0 0.0
    %1541 = vmatmul.mubr.f32.gmra.mrb[0].mxu0 %v565
    %v1542 = vpop.f32.mrb[0].mxu0
    %v1543 = vadd.f32 0.0, %v1542
    %v1544 = vpop.f32.mrb[0].mxu0
    %1545 = vmatprep.mubr.f32.mxu0 0.0
    %1546 = vmatmul.mubr.f32.gmra.mrb[0].mxu0 %v568
    %v1547 = vpop.f32.mrb[0].mxu0
    %v1548 = vadd.f32 0.0, %v1547
    %v1549 = vpop.f32.mrb[0].mxu0
    %1550 = vmatprep.mubr.f32.mxu0 0.0
    %1551 = vmatmul.mubr.f32.gmra.mrb[0].mxu0 %v571
    %v1552 = vpop.f32.mrb[0].mxu0
    %v1553 = vadd.f32 0.0, %v1552
    %v1554 = vpop.f32.mrb[0].mxu0
    %1555 = vdwg.mxu0
    %v1556 = vmul.f32 %v1478, %v508
    %v1557 = vmul.f32 %v1483, %v509
    %v1558 = vmul.f32 %v1488, %v510
    %v1559 = vmul.f32 %v1493, %v511
    %v1560 = vmul.f32 %v1498, %v512
    %v1561 = vmul.f32 %v1503, %v513
    %v1562 = vmul.f32 %v1508, %v514
    %v1563 = vmul.f32 %v1513, %v515
    %v1564 = vmul.f32 %v1518, %v516
    %v1565 = vmul.f32 %v1523, %v517
    %v1566 = vmul.f32 %v1528, %v518
    %v1567 = vmul.f32 %v1533, %v519
    %v1568 = vmul.f32 %v1538, %v520
    %v1569 = vmul.f32 %v1543, %v521
    %v1570 = vmul.f32 %v1548, %v522
    %v1571 = vmul.f32 %v1553, %v523
    %1574 = vrot.lane.b32.xlu0 %v422, 96
    %v1575 = vpop.permute.xlu0 %1574
    %1576 = vrot.lane.b32.xlu0 %v427, 96
    %v1577 = vpop.permute.xlu0 %1576
    %v1579 = vsel %vm296, %v1556, 0
    %v1582 = vsel %vm296, %v1557, 0
    %v1585 = vsel %vm296, %v1558, 0
    %v1588 = vsel %vm296, %v1559, 0
    %v1591 = vsel %vm296, %v1560, 0
    %v1594 = vsel %vm296, %v1561, 0
    %v1597 = vsel %vm296, %v1562, 0
    %v1600 = vsel %vm296, %v1563, 0
    %v1603 = vsel %vm296, %v1564, 0
    %v1606 = vsel %vm296, %v1565, 0
    %v1609 = vsel %vm296, %v1566, 0
    %v1612 = vsel %vm296, %v1567, 0
    %v1615 = vsel %vm296, %v1568, 0
    %v1618 = vsel %vm296, %v1569, 0
    %v1621 = vsel %vm296, %v1570, 0
    %v1624 = vsel %vm296, %v1571, 0
    %v1626 = vsel %vm296, %v1575, 0
    %v1628 = vsel %vm296, %v1577, 0
    %1630 = vmatprep.subr.mxu0 0.0
    %1631 = vmatpush1.xpose.msra.mxu0 %v1626
    %1632 = vmatprep.subr.mxu0 0.0
    %1633 = vmatpush1.xpose.msra.mxu0 %v1628
    %1634 = vmatprep.subr.mxu0 0.0
    %1635 = vmatpush1.xpose.msra.mxu0 0.0
    %1636 = vmatprep.subr.mxu0 0.0
    %1637 = vmatpush1.xpose.msra.mxu0 0.0
    %1638 = vmatprep.subr.mxu0 0.0
    %1639 = vmatpush1.xpose.msra.mxu0 0.0
    %1640 = vmatprep.subr.mxu0 0.0
    %1641 = vmatpush1.xpose.msra.mxu0 0.0
    %1642 = vmatprep.subr.mxu0 0.0
    %1643 = vmatpush1.xpose.msra.mxu0 0.0
    %1644 = vmatprep.subr.mxu0 0.0
    %1645 = vmatpush1.xpose.msra.mxu0 0.0
    %1646 = vmatprep.subr.mxu0 0.0
    %1647 = vmatpush1.xpose.msra.mxu0 0.0
    %1648 = vmatprep.subr.mxu0 0.0
    %1649 = vmatpush1.xpose.msra.mxu0 0.0
    %1650 = vmatprep.subr.mxu0 0.0
    %1651 = vmatpush1.xpose.msra.mxu0 0.0
    %1652 = vmatprep.subr.mxu0 0.0
    %1653 = vmatpush1.xpose.msra.mxu0 0.0
    %1654 = vmatprep.subr.mxu0 0.0
    %1655 = vmatpush1.xpose.msra.mxu0 0.0
    %1656 = vmatprep.subr.mxu0 0.0
    %1657 = vmatpush1.xpose.msra.mxu0 0.0
    %1658 = vmatprep.subr.mxu0 0.0
    %1659 = vmatpush1.xpose.msra.mxu0 0.0
    %1660 = vmatprep.subr.mxu0 0.0
    %1661 = vmatpush1.xpose.msra.mxu0 0.0
    %1662 = vmatprep.subr.mxu0 0.0
    %1663 = vmatpush1.xpose.msra.mxu0 0.0
    %1664 = vmatprep.subr.mxu0 0.0
    %1665 = vmatpush1.xpose.msra.mxu0 0.0
    %1666 = vmatprep.subr.mxu0 0.0
    %1667 = vmatpush1.xpose.msra.mxu0 0.0
    %1668 = vmatprep.subr.mxu0 0.0
    %1669 = vmatpush1.xpose.msra.mxu0 0.0
    %1670 = vmatprep.subr.mxu0 0.0
    %1671 = vmatpush1.xpose.msra.mxu0 0.0
    %1672 = vmatprep.subr.mxu0 0.0
    %1673 = vmatpush1.xpose.msra.mxu0 0.0
    %1674 = vmatprep.subr.mxu0 0.0
    %1675 = vmatpush1.xpose.msra.mxu0 0.0
    %1676 = vmatprep.subr.mxu0 0.0
    %1677 = vmatpush1.xpose.msra.mxu0 0.0
    %1678 = vmatprep.subr.mxu0 0.0
    %1679 = vmatpush1.xpose.msra.mxu0 0.0
    %1680 = vmatprep.subr.mxu0 0.0
    %1681 = vmatpush1.xpose.msra.mxu0 0.0
    %1682 = vmatprep.subr.mxu0 0.0
    %1683 = vmatpush1.xpose.msra.mxu0 0.0
    %1684 = vmatprep.subr.mxu0 0.0
    %1685 = vmatpush1.xpose.msra.mxu0 0.0
    %1686 = vmatprep.subr.mxu0 0.0
    %1687 = vmatpush1.xpose.msra.mxu0 0.0
    %1688 = vmatprep.subr.mxu0 0.0
    %1689 = vmatpush1.xpose.msra.mxu0 0.0
    %1690 = vmatprep.subr.mxu0 0.0
    %1691 = vmatpush1.xpose.msra.mxu0 0.0
    %1692 = vmatprep.subr.mxu0 0.0
    %1693 = vmatpush1.xpose.msra.mxu0 0.0
    %1694 = vmatprep.mubr.f32.mxu0 0.0
    %1695 = vmatmul.mubr.f32.gmra.mrb[0].mxu0 %v1579
    %v1696 = vpop.f32.mrb[0].mxu0
    %v1697 = vadd.f32 %v738, %v1696
    %v1698 = vpop.f32.mrb[0].mxu0
    %1699 = vmatprep.mubr.f32.mxu0 0.0
    %1700 = vmatmul.mubr.f32.gmra.mrb[0].mxu0 %v1582
    %v1701 = vpop.f32.mrb[0].mxu0
    %v1702 = vadd.f32 %v738, %v1701
    %v1703 = vpop.f32.mrb[0].mxu0
    %1704 = vmatprep.mubr.f32.mxu0 0.0
    %1705 = vmatmul.mubr.f32.gmra.mrb[0].mxu0 %v1585
    %v1706 = vpop.f32.mrb[0].mxu0
    %v1707 = vadd.f32 %v738, %v1706
    %v1708 = vpop.f32.mrb[0].mxu0
    %1709 = vmatprep.mubr.f32.mxu0 0.0
    %1710 = vmatmul.mubr.f32.gmra.mrb[0].mxu0 %v1588
    %v1711 = vpop.f32.mrb[0].mxu0
    %v1712 = vadd.f32 %v738, %v1711
    %v1713 = vpop.f32.mrb[0].mxu0
    %1714 = vmatprep.mubr.f32.mxu0 0.0
    %1715 = vmatmul.mubr.f32.gmra.mrb[0].mxu0 %v1591
    %v1716 = vpop.f32.mrb[0].mxu0
    %v1717 = vadd.f32 %v738, %v1716
    %v1718 = vpop.f32.mrb[0].mxu0
    %1719 = vmatprep.mubr.f32.mxu0 0.0
    %1720 = vmatmul.mubr.f32.gmra.mrb[0].mxu0 %v1594
    %v1721 = vpop.f32.mrb[0].mxu0
    %v1722 = vadd.f32 %v738, %v1721
    %v1723 = vpop.f32.mrb[0].mxu0
    %1724 = vmatprep.mubr.f32.mxu0 0.0
    %1725 = vmatmul.mubr.f32.gmra.mrb[0].mxu0 %v1597
    %v1726 = vpop.f32.mrb[0].mxu0
    %v1727 = vadd.f32 %v738, %v1726
    %v1728 = vpop.f32.mrb[0].mxu0
    %1729 = vmatprep.mubr.f32.mxu0 0.0
    %1730 = vmatmul.mubr.f32.gmra.mrb[0].mxu0 %v1600
    %v1731 = vpop.f32.mrb[0].mxu0
    %v1732 = vadd.f32 %v738, %v1731
    %v1733 = vpop.f32.mrb[0].mxu0
    %1734 = vmatprep.mubr.f32.mxu0 0.0
    %1735 = vmatmul.mubr.f32.gmra.mrb[0].mxu0 %v1603
    %v1736 = vpop.f32.mrb[0].mxu0
    %v1737 = vadd.f32 %v738, %v1736
    %v1738 = vpop.f32.mrb[0].mxu0
    %1739 = vmatprep.mubr.f32.mxu0 0.0
    %1740 = vmatmul.mubr.f32.gmra.mrb[0].mxu0 %v1606
    %v1741 = vpop.f32.mrb[0].mxu0
    %v1742 = vadd.f32 %v738, %v1741
    %v1743 = vpop.f32.mrb[0].mxu0
    %1744 = vmatprep.mubr.f32.mxu0 0.0
    %1745 = vmatmul.mubr.f32.gmra.mrb[0].mxu0 %v1609
    %v1746 = vpop.f32.mrb[0].mxu0
    %v1747 = vadd.f32 %v738, %v1746
    %v1748 = vpop.f32.mrb[0].mxu0
    %1749 = vmatprep.mubr.f32.mxu0 0.0
    %1750 = vmatmul.mubr.f32.gmra.mrb[0].mxu0 %v1612
    %v1751 = vpop.f32.mrb[0].mxu0
    %v1752 = vadd.f32 %v738, %v1751
    %v1753 = vpop.f32.mrb[0].mxu0
    %1754 = vmatprep.mubr.f32.mxu0 0.0
    %1755 = vmatmul.mubr.f32.gmra.mrb[0].mxu0 %v1615
    %v1756 = vpop.f32.mrb[0].mxu0
    %v1757 = vadd.f32 %v738, %v1756
    %v1758 = vpop.f32.mrb[0].mxu0
    %1759 = vmatprep.mubr.f32.mxu0 0.0
    %1760 = vmatmul.mubr.f32.gmra.mrb[0].mxu0 %v1618
    %v1761 = vpop.f32.mrb[0].mxu0
    %v1762 = vadd.f32 %v738, %v1761
    %v1763 = vpop.f32.mrb[0].mxu0
    %1764 = vmatprep.mubr.f32.mxu0 0.0
    %1765 = vmatmul.mubr.f32.gmra.mrb[0].mxu0 %v1621
    %v1766 = vpop.f32.mrb[0].mxu0
    %v1767 = vadd.f32 %v738, %v1766
    %v1768 = vpop.f32.mrb[0].mxu0
    %1769 = vmatprep.mubr.f32.mxu0 0.0
    %1770 = vmatmul.mubr.f32.gmra.mrb[0].mxu0 %v1624
    %v1771 = vpop.f32.mrb[0].mxu0
    %v1772 = vadd.f32 %v738, %v1771
    %v1773 = vpop.f32.mrb[0].mxu0
    %1774 = vdwg.mxu0
    %v1775 = vsel %vm91, %v1697, -inf
    %1776 = vmax.xlane.f32.xlu0 %v1775
    %v1777 = vpop.xlane.xlu0 %1776
    %v1778 = vsel %vm91, %v1702, -inf
    %1779 = vmax.xlane.f32.xlu0 %v1778
    %v1780 = vpop.xlane.xlu0 %1779
    %v1781 = vsel %vm91, %v1707, -inf
    %1782 = vmax.xlane.f32.xlu0 %v1781
    %v1783 = vpop.xlane.xlu0 %1782
    %v1784 = vsel %vm91, %v1712, -inf
    %1785 = vmax.xlane.f32.xlu0 %v1784
    %v1786 = vpop.xlane.xlu0 %1785
    %v1787 = vsel %vm91, %v1717, -inf
    %1788 = vmax.xlane.f32.xlu0 %v1787
    %v1789 = vpop.xlane.xlu0 %1788
    %v1790 = vsel %vm91, %v1722, -inf
    %1791 = vmax.xlane.f32.xlu0 %v1790
    %v1792 = vpop.xlane.xlu0 %1791
    %v1793 = vsel %vm91, %v1727, -inf
    %1794 = vmax.xlane.f32.xlu0 %v1793
    %v1795 = vpop.xlane.xlu0 %1794
    %v1796 = vsel %vm91, %v1732, -inf
    %1797 = vmax.xlane.f32.xlu0 %v1796
    %v1798 = vpop.xlane.xlu0 %1797
    %v1799 = vsel %vm91, %v1737, -inf
    %1800 = vmax.xlane.f32.xlu0 %v1799
    %v1801 = vpop.xlane.xlu0 %1800
    %v1802 = vsel %vm91, %v1742, -inf
    %1803 = vmax.xlane.f32.xlu0 %v1802
    %v1804 = vpop.xlane.xlu0 %1803
    %v1805 = vsel %vm91, %v1747, -inf
    %1806 = vmax.xlane.f32.xlu0 %v1805
    %v1807 = vpop.xlane.xlu0 %1806
    %v1808 = vsel %vm91, %v1752, -inf
    %1809 = vmax.xlane.f32.xlu0 %v1808
    %v1810 = vpop.xlane.xlu0 %1809
    %v1811 = vsel %vm91, %v1757, -inf
    %1812 = vmax.xlane.f32.xlu0 %v1811
    %v1813 = vpop.xlane.xlu0 %1812
    %v1814 = vsel %vm91, %v1762, -inf
    %1815 = vmax.xlane.f32.xlu0 %v1814
    %v1816 = vpop.xlane.xlu0 %1815
    %v1817 = vsel %vm91, %v1767, -inf
    %1818 = vmax.xlane.f32.xlu0 %v1817
    %v1819 = vpop.xlane.xlu0 %1818
    %v1820 = vsel %vm91, %v1772, -inf
    %1821 = vmax.xlane.f32.xlu0 %v1820
    %v1822 = vpop.xlane.xlu0 %1821
    %v1823 = vsub.f32 %v1697, %v1777
    %v1824 = vsub.f32 %v1702, %v1780
    %v1825 = vsub.f32 %v1707, %v1783
    %v1826 = vsub.f32 %v1712, %v1786
    %v1827 = vsub.f32 %v1717, %v1789
    %v1828 = vsub.f32 %v1722, %v1792
    %v1829 = vsub.f32 %v1727, %v1795
    %v1830 = vsub.f32 %v1732, %v1798
    %v1831 = vsub.f32 %v1737, %v1801
    %v1832 = vsub.f32 %v1742, %v1804
    %v1833 = vsub.f32 %v1747, %v1807
    %v1834 = vsub.f32 %v1752, %v1810
    %v1835 = vsub.f32 %v1757, %v1813
    %v1836 = vsub.f32 %v1762, %v1816
    %v1837 = vsub.f32 %v1767, %v1819
    %v1838 = vsub.f32 %v1772, %v1822
    %v1839 = vmul.f32 %v1823, 1.442695
    %v1840 = vpow.pop %v1839
    %v1841 = vmul.f32 %v1824, 1.442695
    %v1842 = vpow.pop %v1841
    %v1843 = vmul.f32 %v1825, 1.442695
    %v1844 = vpow.pop %v1843
    %v1845 = vmul.f32 %v1826, 1.442695
    %v1846 = vpow.pop %v1845
    %v1847 = vmul.f32 %v1827, 1.442695
    %v1848 = vpow.pop %v1847
    %v1849 = vmul.f32 %v1828, 1.442695
    %v1850 = vpow.pop %v1849
    %v1851 = vmul.f32 %v1829, 1.442695
    %v1852 = vpow.pop %v1851
    %v1853 = vmul.f32 %v1830, 1.442695
    %v1854 = vpow.pop %v1853
    %v1855 = vmul.f32 %v1831, 1.442695
    %v1856 = vpow.pop %v1855
    %v1857 = vmul.f32 %v1832, 1.442695
    %v1858 = vpow.pop %v1857
    %v1859 = vmul.f32 %v1833, 1.442695
    %v1860 = vpow.pop %v1859
    %v1861 = vmul.f32 %v1834, 1.442695
    %v1862 = vpow.pop %v1861
    %v1863 = vmul.f32 %v1835, 1.442695
    %v1864 = vpow.pop %v1863
    %v1865 = vmul.f32 %v1836, 1.442695
    %v1866 = vpow.pop %v1865
    %v1867 = vmul.f32 %v1837, 1.442695
    %v1868 = vpow.pop %v1867
    %v1869 = vmul.f32 %v1838, 1.442695
    %v1870 = vpow.pop %v1869
    %v1871 = vsel %vm91, %v1840, 0.0
    %1872 = vadd.xlane.f32.xlu0 %v1871
    %v1873 = vpop.xlane.xlu0 %1872
    %v1874 = vsel %vm91, %v1842, 0.0
    %1875 = vadd.xlane.f32.xlu0 %v1874
    %v1876 = vpop.xlane.xlu0 %1875
    %v1877 = vsel %vm91, %v1844, 0.0
    %1878 = vadd.xlane.f32.xlu0 %v1877
    %v1879 = vpop.xlane.xlu0 %1878
    %v1880 = vsel %vm91, %v1846, 0.0
    %1881 = vadd.xlane.f32.xlu0 %v1880
    %v1882 = vpop.xlane.xlu0 %1881
    %v1883 = vsel %vm91, %v1848, 0.0
    %1884 = vadd.xlane.f32.xlu0 %v1883
    %v1885 = vpop.xlane.xlu0 %1884
    %v1886 = vsel %vm91, %v1850, 0.0
    %1887 = vadd.xlane.f32.xlu0 %v1886
    %v1888 = vpop.xlane.xlu0 %1887
    %v1889 = vsel %vm91, %v1852, 0.0
    %1890 = vadd.xlane.f32.xlu0 %v1889
    %v1891 = vpop.xlane.xlu0 %1890
    %v1892 = vsel %vm91, %v1854, 0.0
    %1893 = vadd.xlane.f32.xlu0 %v1892
    %v1894 = vpop.xlane.xlu0 %1893
    %v1895 = vsel %vm91, %v1856, 0.0
    %1896 = vadd.xlane.f32.xlu0 %v1895
    %v1897 = vpop.xlane.xlu0 %1896
    %v1898 = vsel %vm91, %v1858, 0.0
    %1899 = vadd.xlane.f32.xlu0 %v1898
    %v1900 = vpop.xlane.xlu0 %1899
    %v1901 = vsel %vm91, %v1860, 0.0
    %1902 = vadd.xlane.f32.xlu0 %v1901
    %v1903 = vpop.xlane.xlu0 %1902
    %v1904 = vsel %vm91, %v1862, 0.0
    %1905 = vadd.xlane.f32.xlu0 %v1904
    %v1906 = vpop.xlane.xlu0 %1905
    %v1907 = vsel %vm91, %v1864, 0.0
    %1908 = vadd.xlane.f32.xlu0 %v1907
    %v1909 = vpop.xlane.xlu0 %1908
    %v1910 = vsel %vm91, %v1866, 0.0
    %1911 = vadd.xlane.f32.xlu0 %v1910
    %v1912 = vpop.xlane.xlu0 %1911
    %v1913 = vsel %vm91, %v1868, 0.0
    %1914 = vadd.xlane.f32.xlu0 %v1913
    %v1915 = vpop.xlane.xlu0 %1914
    %v1916 = vsel %vm91, %v1870, 0.0
    %1917 = vadd.xlane.f32.xlu0 %v1916
    %v1918 = vpop.xlane.xlu0 %1917
    %v1919 = vrcp.pop %v1873
    %v1920 = vrcp.pop %v1876
    %v1921 = vrcp.pop %v1879
    %v1922 = vrcp.pop %v1882
    %v1923 = vrcp.pop %v1885
    %v1924 = vrcp.pop %v1888
    %v1925 = vrcp.pop %v1891
    %v1926 = vrcp.pop %v1894
    %v1927 = vrcp.pop %v1897
    %v1928 = vrcp.pop %v1900
    %v1929 = vrcp.pop %v1903
    %v1930 = vrcp.pop %v1906
    %v1931 = vrcp.pop %v1909
    %v1932 = vrcp.pop %v1912
    %v1933 = vrcp.pop %v1915
    %v1934 = vrcp.pop %v1918
    %v1935 = vmul.f32 %v1840, %v1919
    %v1936 = vmul.f32 %v1842, %v1920
    %v1937 = vmul.f32 %v1844, %v1921
    %v1938 = vmul.f32 %v1846, %v1922
    %v1939 = vmul.f32 %v1848, %v1923
    %v1940 = vmul.f32 %v1850, %v1924
    %v1941 = vmul.f32 %v1852, %v1925
    %v1942 = vmul.f32 %v1854, %v1926
    %v1943 = vmul.f32 %v1856, %v1927
    %v1944 = vmul.f32 %v1858, %v1928
    %v1945 = vmul.f32 %v1860, %v1929
    %v1946 = vmul.f32 %v1862, %v1930
    %v1947 = vmul.f32 %v1864, %v1931
    %v1948 = vmul.f32 %v1866, %v1932
    %v1949 = vmul.f32 %v1868, %v1933
    %v1950 = vmul.f32 %v1870, %v1934
    %1951 = vrot.lane.b32.xlu0 %v422, 64
    %v1952 = vpop.permute.xlu0 %1951
    %1953 = vrot.lane.b32.xlu0 %v427, 64
    %v1954 = vpop.permute.xlu0 %1953
    %v1958 = vsel %vm91, %v1935, 0
    %v1961 = vsel %vm91, %v1936, 0
    %v1964 = vsel %vm91, %v1937, 0
    %v1967 = vsel %vm91, %v1938, 0
    %v1970 = vsel %vm91, %v1939, 0
    %v1973 = vsel %vm91, %v1940, 0
    %v1976 = vsel %vm91, %v1941, 0
    %v1979 = vsel %vm91, %v1942, 0
    %v1982 = vsel %vm91, %v1943, 0
    %v1985 = vsel %vm91, %v1944, 0
    %v1988 = vsel %vm91, %v1945, 0
    %v1991 = vsel %vm91, %v1946, 0
    %v1994 = vsel %vm91, %v1947, 0
    %v1997 = vsel %vm91, %v1948, 0
    %v2000 = vsel %vm91, %v1949, 0
    %v2003 = vsel %vm91, %v1950, 0
    %2005 = vmatprep.subr.mxu0 0.0
    %2006 = vmatpush1.msra.mxu0 %v1952
    %2007 = vmatprep.subr.mxu0 0.0
    %2008 = vmatpush1.msra.mxu0 %v1954
    %2009 = vmatprep.subr.mxu0 0.0
    %2010 = vmatpush1.msra.mxu0 0.0
    %2011 = vmatprep.subr.mxu0 0.0
    %2012 = vmatpush1.msra.mxu0 0.0
    %2013 = vmatprep.subr.mxu0 0.0
    %2014 = vmatpush1.msra.mxu0 0.0
    %2015 = vmatprep.subr.mxu0 0.0
    %2016 = vmatpush1.msra.mxu0 0.0
    %2017 = vmatprep.subr.mxu0 0.0
    %2018 = vmatpush1.msra.mxu0 0.0
    %2019 = vmatprep.subr.mxu0 0.0
    %2020 = vmatpush1.msra.mxu0 0.0
    %2021 = vmatprep.subr.mxu0 0.0
    %2022 = vmatpush1.msra.mxu0 0.0
    %2023 = vmatprep.subr.mxu0 0.0
    %2024 = vmatpush1.msra.mxu0 0.0
    %2025 = vmatprep.subr.mxu0 0.0
    %2026 = vmatpush1.msra.mxu0 0.0
    %2027 = vmatprep.subr.mxu0 0.0
    %2028 = vmatpush1.msra.mxu0 0.0
    %2029 = vmatprep.subr.mxu0 0.0
    %2030 = vmatpush1.msra.mxu0 0.0
    %2031 = vmatprep.subr.mxu0 0.0
    %2032 = vmatpush1.msra.mxu0 0.0
    %2033 = vmatprep.subr.mxu0 0.0
    %2034 = vmatpush1.msra.mxu0 0.0
    %2035 = vmatprep.subr.mxu0 0.0
    %2036 = vmatpush1.msra.mxu0 0.0
    %2037 = vmatprep.subr.mxu0 0.0
    %2038 = vmatpush1.msra.mxu0 0.0
    %2039 = vmatprep.subr.mxu0 0.0
    %2040 = vmatpush1.msra.mxu0 0.0
    %2041 = vmatprep.subr.mxu0 0.0
    %2042 = vmatpush1.msra.mxu0 0.0
    %2043 = vmatprep.subr.mxu0 0.0
    %2044 = vmatpush1.msra.mxu0 0.0
    %2045 = vmatprep.subr.mxu0 0.0
    %2046 = vmatpush1.msra.mxu0 0.0
    %2047 = vmatprep.subr.mxu0 0.0
    %2048 = vmatpush1.msra.mxu0 0.0
    %2049 = vmatprep.subr.mxu0 0.0
    %2050 = vmatpush1.msra.mxu0 0.0
    %2051 = vmatprep.subr.mxu0 0.0
    %2052 = vmatpush1.msra.mxu0 0.0
    %2053 = vmatprep.subr.mxu0 0.0
    %2054 = vmatpush1.msra.mxu0 0.0
    %2055 = vmatprep.subr.mxu0 0.0
    %2056 = vmatpush1.msra.mxu0 0.0
    %2057 = vmatprep.subr.mxu0 0.0
    %2058 = vmatpush1.msra.mxu0 0.0
    %2059 = vmatprep.subr.mxu0 0.0
    %2060 = vmatpush1.msra.mxu0 0.0
    %2061 = vmatprep.subr.mxu0 0.0
    %2062 = vmatpush1.msra.mxu0 0.0
    %2063 = vmatprep.subr.mxu0 0.0
    %2064 = vmatpush1.msra.mxu0 0.0
    %2065 = vmatprep.subr.mxu0 0.0
    %2066 = vmatpush1.msra.mxu0 0.0
    %2067 = vmatprep.subr.mxu0 0.0
    %2068 = vmatpush1.msra.mxu0 0.0
    %2069 = vmatprep.mubr.f32.mxu0 0.0
    %2070 = vmatmul.mubr.f32.gmra.mrb[0].mxu0 %v1958
    %v2071 = vpop.f32.mrb[0].mxu0
    %v2072 = vadd.f32 0.0, %v2071
    %v2073 = vpop.f32.mrb[0].mxu0
    %2074 = vmatprep.mubr.f32.mxu0 0.0
    %2075 = vmatmul.mubr.f32.gmra.mrb[0].mxu0 %v1961
    %v2076 = vpop.f32.mrb[0].mxu0
    %v2077 = vadd.f32 0.0, %v2076
    %v2078 = vpop.f32.mrb[0].mxu0
    %2079 = vmatprep.mubr.f32.mxu0 0.0
    %2080 = vmatmul.mubr.f32.gmra.mrb[0].mxu0 %v1964
    %v2081 = vpop.f32.mrb[0].mxu0
    %v2082 = vadd.f32 0.0, %v2081
    %v2083 = vpop.f32.mrb[0].mxu0
    %2084 = vmatprep.mubr.f32.mxu0 0.0
    %2085 = vmatmul.mubr.f32.gmra.mrb[0].mxu0 %v1967
    %v2086 = vpop.f32.mrb[0].mxu0
    %v2087 = vadd.f32 0.0, %v2086
    %v2088 = vpop.f32.mrb[0].mxu0
    %2089 = vmatprep.mubr.f32.mxu0 0.0
    %2090 = vmatmul.mubr.f32.gmra.mrb[0].mxu0 %v1970
    %v2091 = vpop.f32.mrb[0].mxu0
    %v2092 = vadd.f32 0.0, %v2091
    %v2093 = vpop.f32.mrb[0].mxu0
    %2094 = vmatprep.mubr.f32.mxu0 0.0
    %2095 = vmatmul.mubr.f32.gmra.mrb[0].mxu0 %v1973
    %v2096 = vpop.f32.mrb[0].mxu0
    %v2097 = vadd.f32 0.0, %v2096
    %v2098 = vpop.f32.mrb[0].mxu0
    %2099 = vmatprep.mubr.f32.mxu0 0.0
    %2100 = vmatmul.mubr.f32.gmra.mrb[0].mxu0 %v1976
    %v2101 = vpop.f32.mrb[0].mxu0
    %v2102 = vadd.f32 0.0, %v2101
    %v2103 = vpop.f32.mrb[0].mxu0
    %2104 = vmatprep.mubr.f32.mxu0 0.0
    %2105 = vmatmul.mubr.f32.gmra.mrb[0].mxu0 %v1979
    %v2106 = vpop.f32.mrb[0].mxu0
    %v2107 = vadd.f32 0.0, %v2106
    %v2108 = vpop.f32.mrb[0].mxu0
    %2109 = vmatprep.mubr.f32.mxu0 0.0
    %2110 = vmatmul.mubr.f32.gmra.mrb[0].mxu0 %v1982
    %v2111 = vpop.f32.mrb[0].mxu0
    %v2112 = vadd.f32 0.0, %v2111
    %v2113 = vpop.f32.mrb[0].mxu0
    %2114 = vmatprep.mubr.f32.mxu0 0.0
    %2115 = vmatmul.mubr.f32.gmra.mrb[0].mxu0 %v1985
    %v2116 = vpop.f32.mrb[0].mxu0
    %v2117 = vadd.f32 0.0, %v2116
    %v2118 = vpop.f32.mrb[0].mxu0
    %2119 = vmatprep.mubr.f32.mxu0 0.0
    %2120 = vmatmul.mubr.f32.gmra.mrb[0].mxu0 %v1988
    %v2121 = vpop.f32.mrb[0].mxu0
    %v2122 = vadd.f32 0.0, %v2121
    %v2123 = vpop.f32.mrb[0].mxu0
    %2124 = vmatprep.mubr.f32.mxu0 0.0
    %2125 = vmatmul.mubr.f32.gmra.mrb[0].mxu0 %v1991
    %v2126 = vpop.f32.mrb[0].mxu0
    %v2127 = vadd.f32 0.0, %v2126
    %v2128 = vpop.f32.mrb[0].mxu0
    %2129 = vmatprep.mubr.f32.mxu0 0.0
    %2130 = vmatmul.mubr.f32.gmra.mrb[0].mxu0 %v1994
    %v2131 = vpop.f32.mrb[0].mxu0
    %v2132 = vadd.f32 0.0, %v2131
    %v2133 = vpop.f32.mrb[0].mxu0
    %2134 = vmatprep.mubr.f32.mxu0 0.0
    %2135 = vmatmul.mubr.f32.gmra.mrb[0].mxu0 %v1997
    %v2136 = vpop.f32.mrb[0].mxu0
    %v2137 = vadd.f32 0.0, %v2136
    %v2138 = vpop.f32.mrb[0].mxu0
    %2139 = vmatprep.mubr.f32.mxu0 0.0
    %2140 = vmatmul.mubr.f32.gmra.mrb[0].mxu0 %v2000
    %v2141 = vpop.f32.mrb[0].mxu0
    %v2142 = vadd.f32 0.0, %v2141
    %v2143 = vpop.f32.mrb[0].mxu0
    %2144 = vmatprep.mubr.f32.mxu0 0.0
    %2145 = vmatmul.mubr.f32.gmra.mrb[0].mxu0 %v2003
    %v2146 = vpop.f32.mrb[0].mxu0
    %v2147 = vadd.f32 0.0, %v2146
    %v2148 = vpop.f32.mrb[0].mxu0
    %2149 = vdwg.mxu0
    %v2150 = vmul.f32 %v2072, %v508
    %v2151 = vmul.f32 %v2077, %v509
    %v2152 = vmul.f32 %v2082, %v510
    %v2153 = vmul.f32 %v2087, %v511
    %v2154 = vmul.f32 %v2092, %v512
    %v2155 = vmul.f32 %v2097, %v513
    %v2156 = vmul.f32 %v2102, %v514
    %v2157 = vmul.f32 %v2107, %v515
    %v2158 = vmul.f32 %v2112, %v516
    %v2159 = vmul.f32 %v2117, %v517
    %v2160 = vmul.f32 %v2122, %v518
    %v2161 = vmul.f32 %v2127, %v519
    %v2162 = vmul.f32 %v2132, %v520
    %v2163 = vmul.f32 %v2137, %v521
    %v2164 = vmul.f32 %v2142, %v522
    %v2165 = vmul.f32 %v2147, %v523
    %2166 = vmatprep.subr.mxu0 0.0
    %2167 = vmatpush1.msra.mxu0 %v2150
    %2168 = vmatprep.subr.mxu0 0.0
    %2169 = vmatpush1.msra.mxu0 %v2151
    %2170 = vmatprep.subr.mxu0 0.0
    %2171 = vmatpush1.msra.mxu0 %v2152
    %2172 = vmatprep.subr.mxu0 0.0
    %2173 = vmatpush1.msra.mxu0 %v2153
    %2174 = vmatprep.subr.mxu0 0.0
    %2175 = vmatpush1.msra.mxu0 %v2154
    %2176 = vmatprep.subr.mxu0 0.0
    %2177 = vmatpush1.msra.mxu0 %v2155
    %2178 = vmatprep.subr.mxu0 0.0
    %2179 = vmatpush1.msra.mxu0 %v2156
    %2180 = vmatprep.subr.mxu0 0.0
    %2181 = vmatpush1.msra.mxu0 %v2157
    %2182 = vmatprep.subr.mxu0 0.0
    %2183 = vmatpush1.msra.mxu0 %v2158
    %2184 = vmatprep.subr.mxu0 0.0
    %2185 = vmatpush1.msra.mxu0 %v2159
    %2186 = vmatprep.subr.mxu0 0.0
    %2187 = vmatpush1.msra.mxu0 %v2160
    %2188 = vmatprep.subr.mxu0 0.0
    %2189 = vmatpush1.msra.mxu0 %v2161
    %2190 = vmatprep.subr.mxu0 0.0
    %2191 = vmatpush1.msra.mxu0 %v2162
    %2192 = vmatprep.subr.mxu0 0.0
    %2193 = vmatpush1.msra.mxu0 %v2163
    %2194 = vmatprep.subr.mxu0 0.0
    %2195 = vmatpush1.msra.mxu0 %v2164
    %2196 = vmatprep.subr.mxu0 0.0
    %2197 = vmatpush1.msra.mxu0 %v2165
    %2198 = vmatprep.subr.mxu0 0.0
    %2199 = vmatpush1.msra.mxu0 0.0
    %2200 = vmatprep.subr.mxu0 0.0
    %2201 = vmatpush1.msra.mxu0 0.0
    %2202 = vmatprep.subr.mxu0 0.0
    %2203 = vmatpush1.msra.mxu0 0.0
    %2204 = vmatprep.subr.mxu0 0.0
    %2205 = vmatpush1.msra.mxu0 0.0
    %2206 = vmatprep.subr.mxu0 0.0
    %2207 = vmatpush1.msra.mxu0 0.0
    %2208 = vmatprep.subr.mxu0 0.0
    %2209 = vmatpush1.msra.mxu0 0.0
    %2210 = vmatprep.subr.mxu0 0.0
    %2211 = vmatpush1.msra.mxu0 0.0
    %2212 = vmatprep.subr.mxu0 0.0
    %2213 = vmatpush1.msra.mxu0 0.0
    %2214 = vmatprep.subr.mxu0 0.0
    %2215 = vmatpush1.msra.mxu0 0.0
    %2216 = vmatprep.subr.mxu0 0.0
    %2217 = vmatpush1.msra.mxu0 0.0
    %2218 = vmatprep.subr.mxu0 0.0
    %2219 = vmatpush1.msra.mxu0 0.0
    %2220 = vmatprep.subr.mxu0 0.0
    %2221 = vmatpush1.msra.mxu0 0.0
    %2222 = vmatprep.subr.mxu0 0.0
    %2223 = vmatpush1.msra.mxu0 0.0
    %2224 = vmatprep.subr.mxu0 0.0
    %2225 = vmatpush1.msra.mxu0 0.0
    %2226 = vmatprep.subr.mxu0 0.0
    %2227 = vmatpush1.msra.mxu0 0.0
    %2228 = vmatprep.subr.mxu0 0.0
    %2229 = vmatpush1.msra.mxu0 0.0
    %2230 = vmatprep.mubr.f32.mxu0 0.0
    %2231 = vmatmul.mubr.f32.gmra.mrb[0].mxu0 %v506
    %v2232 = vpop.f32.mrb[0].mxu0
    %v2233 = vadd.f32 0.0, %v2232
    %v2234 = vpop.f32.mrb[0].mxu0
    %2235 = vmatprep.mubr.f32.mxu0 0.0
    %2236 = vmatmul.mubr.f32.gmra.mrb[0].mxu0 %v507
    %v2237 = vpop.f32.mrb[0].mxu0
    %v2238 = vadd.f32 0.0, %v2237
    %v2239 = vpop.f32.mrb[0].mxu0
    %2240 = vdwg.mxu0
    %2241 = vst.msk [vmem:[#allocation2 + $0x10] sm:$0xff] %vm296, %v2233
    %2242 = vst.msk [vmem:[#allocation2 + $0x18] sm:$0xff] %vm296, %v2238
    %2243 = vmatprep.subr.mxu0 0.0
    %2244 = vmatpush1.msra.mxu0 %v432
    %2245 = vmatprep.subr.mxu0 0.0
    %2246 = vmatpush1.msra.mxu0 %v437
    %2247 = vmatprep.subr.mxu0 0.0
    %2248 = vmatpush1.msra.mxu0 0.0
    %2249 = vmatprep.subr.mxu0 0.0
    %2250 = vmatpush1.msra.mxu0 0.0
    %2251 = vmatprep.subr.mxu0 0.0
    %2252 = vmatpush1.msra.mxu0 0.0
    %2253 = vmatprep.subr.mxu0 0.0
    %2254 = vmatpush1.msra.mxu0 0.0
    %2255 = vmatprep.subr.mxu0 0.0
    %2256 = vmatpush1.msra.mxu0 0.0
    %2257 = vmatprep.subr.mxu0 0.0
    %2258 = vmatpush1.msra.mxu0 0.0
    %2259 = vmatprep.subr.mxu0 0.0
    %2260 = vmatpush1.msra.mxu0 0.0
    %2261 = vmatprep.subr.mxu0 0.0
    %2262 = vmatpush1.msra.mxu0 0.0
    %2263 = vmatprep.subr.mxu0 0.0
    %2264 = vmatpush1.msra.mxu0 0.0
    %2265 = vmatprep.subr.mxu0 0.0
    %2266 = vmatpush1.msra.mxu0 0.0
    %2267 = vmatprep.subr.mxu0 0.0
    %2268 = vmatpush1.msra.mxu0 0.0
    %2269 = vmatprep.subr.mxu0 0.0
    %2270 = vmatpush1.msra.mxu0 0.0
    %2271 = vmatprep.subr.mxu0 0.0
    %2272 = vmatpush1.msra.mxu0 0.0
    %2273 = vmatprep.subr.mxu0 0.0
    %2274 = vmatpush1.msra.mxu0 0.0
    %2275 = vmatprep.subr.mxu0 0.0
    %2276 = vmatpush1.msra.mxu0 0.0
    %2277 = vmatprep.subr.mxu0 0.0
    %2278 = vmatpush1.msra.mxu0 0.0
    %2279 = vmatprep.subr.mxu0 0.0
    %2280 = vmatpush1.msra.mxu0 0.0
    %2281 = vmatprep.subr.mxu0 0.0
    %2282 = vmatpush1.msra.mxu0 0.0
    %2283 = vmatprep.subr.mxu0 0.0
    %2284 = vmatpush1.msra.mxu0 0.0
    %2285 = vmatprep.subr.mxu0 0.0
    %2286 = vmatpush1.msra.mxu0 0.0
    %2287 = vmatprep.subr.mxu0 0.0
    %2288 = vmatpush1.msra.mxu0 0.0
    %2289 = vmatprep.subr.mxu0 0.0
    %2290 = vmatpush1.msra.mxu0 0.0
    %2291 = vmatprep.subr.mxu0 0.0
    %2292 = vmatpush1.msra.mxu0 0.0
    %2293 = vmatprep.subr.mxu0 0.0
    %2294 = vmatpush1.msra.mxu0 0.0
    %2295 = vmatprep.subr.mxu0 0.0
    %2296 = vmatpush1.msra.mxu0 0.0
    %2297 = vmatprep.subr.mxu0 0.0
    %2298 = vmatpush1.msra.mxu0 0.0
    %2299 = vmatprep.subr.mxu0 0.0
    %2300 = vmatpush1.msra.mxu0 0.0
    %2301 = vmatprep.subr.mxu0 0.0
    %2302 = vmatpush1.msra.mxu0 0.0
    %2303 = vmatprep.subr.mxu0 0.0
    %2304 = vmatpush1.msra.mxu0 0.0
    %2305 = vmatprep.subr.mxu0 0.0
    %2306 = vmatpush1.msra.mxu0 0.0
    %2307 = vmatprep.mubr.f32.mxu0 0.0
    %2308 = vmatmul.mubr.f32.gmra.mrb[0].mxu0 %v526
    %v2309 = vpop.f32.mrb[0].mxu0
    %v2310 = vadd.f32 0.0, %v2309
    %v2311 = vpop.f32.mrb[0].mxu0
    %2312 = vmatprep.mubr.f32.mxu0 0.0
    %2313 = vmatmul.mubr.f32.gmra.mrb[0].mxu0 %v529
    %v2314 = vpop.f32.mrb[0].mxu0
    %v2315 = vadd.f32 0.0, %v2314
    %v2316 = vpop.f32.mrb[0].mxu0
    %2317 = vmatprep.mubr.f32.mxu0 0.0
    %2318 = vmatmul.mubr.f32.gmra.mrb[0].mxu0 %v532
    %v2319 = vpop.f32.mrb[0].mxu0
    %v2320 = vadd.f32 0.0, %v2319
    %v2321 = vpop.f32.mrb[0].mxu0
    %2322 = vmatprep.mubr.f32.mxu0 0.0
    %2323 = vmatmul.mubr.f32.gmra.mrb[0].mxu0 %v535
    %v2324 = vpop.f32.mrb[0].mxu0
    %v2325 = vadd.f32 0.0, %v2324
    %v2326 = vpop.f32.mrb[0].mxu0
    %2327 = vmatprep.mubr.f32.mxu0 0.0
    %2328 = vmatmul.mubr.f32.gmra.mrb[0].mxu0 %v538
    %v2329 = vpop.f32.mrb[0].mxu0
    %v2330 = vadd.f32 0.0, %v2329
    %v2331 = vpop.f32.mrb[0].mxu0
    %2332 = vmatprep.mubr.f32.mxu0 0.0
    %2333 = vmatmul.mubr.f32.gmra.mrb[0].mxu0 %v541
    %v2334 = vpop.f32.mrb[0].mxu0
    %v2335 = vadd.f32 0.0, %v2334
    %v2336 = vpop.f32.mrb[0].mxu0
    %2337 = vmatprep.mubr.f32.mxu0 0.0
    %2338 = vmatmul.mubr.f32.gmra.mrb[0].mxu0 %v544
    %v2339 = vpop.f32.mrb[0].mxu0
    %v2340 = vadd.f32 0.0, %v2339
    %v2341 = vpop.f32.mrb[0].mxu0
    %2342 = vmatprep.mubr.f32.mxu0 0.0
    %2343 = vmatmul.mubr.f32.gmra.mrb[0].mxu0 %v547
    %v2344 = vpop.f32.mrb[0].mxu0
    %v2345 = vadd.f32 0.0, %v2344
    %v2346 = vpop.f32.mrb[0].mxu0
    %2347 = vmatprep.mubr.f32.mxu0 0.0
    %2348 = vmatmul.mubr.f32.gmra.mrb[0].mxu0 %v550
    %v2349 = vpop.f32.mrb[0].mxu0
    %v2350 = vadd.f32 0.0, %v2349
    %v2351 = vpop.f32.mrb[0].mxu0
    %2352 = vmatprep.mubr.f32.mxu0 0.0
    %2353 = vmatmul.mubr.f32.gmra.mrb[0].mxu0 %v553
    %v2354 = vpop.f32.mrb[0].mxu0
    %v2355 = vadd.f32 0.0, %v2354
    %v2356 = vpop.f32.mrb[0].mxu0
    %2357 = vmatprep.mubr.f32.mxu0 0.0
    %2358 = vmatmul.mubr.f32.gmra.mrb[0].mxu0 %v556
    %v2359 = vpop.f32.mrb[0].mxu0
    %v2360 = vadd.f32 0.0, %v2359
    %v2361 = vpop.f32.mrb[0].mxu0
    %2362 = vmatprep.mubr.f32.mxu0 0.0
    %2363 = vmatmul.mubr.f32.gmra.mrb[0].mxu0 %v559
    %v2364 = vpop.f32.mrb[0].mxu0
    %v2365 = vadd.f32 0.0, %v2364
    %v2366 = vpop.f32.mrb[0].mxu0
    %2367 = vmatprep.mubr.f32.mxu0 0.0
    %2368 = vmatmul.mubr.f32.gmra.mrb[0].mxu0 %v562
    %v2369 = vpop.f32.mrb[0].mxu0
    %v2370 = vadd.f32 0.0, %v2369
    %v2371 = vpop.f32.mrb[0].mxu0
    %2372 = vmatprep.mubr.f32.mxu0 0.0
    %2373 = vmatmul.mubr.f32.gmra.mrb[0].mxu0 %v565
    %v2374 = vpop.f32.mrb[0].mxu0
    %v2375 = vadd.f32 0.0, %v2374
    %v2376 = vpop.f32.mrb[0].mxu0
    %2377 = vmatprep.mubr.f32.mxu0 0.0
    %2378 = vmatmul.mubr.f32.gmra.mrb[0].mxu0 %v568
    %v2379 = vpop.f32.mrb[0].mxu0
    %v2380 = vadd.f32 0.0, %v2379
    %v2381 = vpop.f32.mrb[0].mxu0
    %2382 = vmatprep.mubr.f32.mxu0 0.0
    %2383 = vmatmul.mubr.f32.gmra.mrb[0].mxu0 %v571
    %v2384 = vpop.f32.mrb[0].mxu0
    %v2385 = vadd.f32 0.0, %v2384
    %v2386 = vpop.f32.mrb[0].mxu0
    %2387 = vdwg.mxu0
    %v2388 = vmul.f32 %v2310, %v508
    %v2389 = vmul.f32 %v2315, %v509
    %v2390 = vmul.f32 %v2320, %v510
    %v2391 = vmul.f32 %v2325, %v511
    %v2392 = vmul.f32 %v2330, %v512
    %v2393 = vmul.f32 %v2335, %v513
    %v2394 = vmul.f32 %v2340, %v514
    %v2395 = vmul.f32 %v2345, %v515
    %v2396 = vmul.f32 %v2350, %v516
    %v2397 = vmul.f32 %v2355, %v517
    %v2398 = vmul.f32 %v2360, %v518
    %v2399 = vmul.f32 %v2365, %v519
    %v2400 = vmul.f32 %v2370, %v520
    %v2401 = vmul.f32 %v2375, %v521
    %v2402 = vmul.f32 %v2380, %v522
    %v2403 = vmul.f32 %v2385, %v523
    %2406 = vrot.lane.b32.xlu0 %v432, 96
    %v2407 = vpop.permute.xlu0 %2406
    %2408 = vrot.lane.b32.xlu0 %v437, 96
    %v2409 = vpop.permute.xlu0 %2408
    %v2411 = vsel %vm296, %v2388, 0
    %v2414 = vsel %vm296, %v2389, 0
    %v2417 = vsel %vm296, %v2390, 0
    %v2420 = vsel %vm296, %v2391, 0
    %v2423 = vsel %vm296, %v2392, 0
    %v2426 = vsel %vm296, %v2393, 0
    %v2429 = vsel %vm296, %v2394, 0
    %v2432 = vsel %vm296, %v2395, 0
    %v2435 = vsel %vm296, %v2396, 0
    %v2438 = vsel %vm296, %v2397, 0
    %v2441 = vsel %vm296, %v2398, 0
    %v2444 = vsel %vm296, %v2399, 0
    %v2447 = vsel %vm296, %v2400, 0
    %v2450 = vsel %vm296, %v2401, 0
    %v2453 = vsel %vm296, %v2402, 0
    %v2456 = vsel %vm296, %v2403, 0
    %v2458 = vsel %vm296, %v2407, 0
    %v2460 = vsel %vm296, %v2409, 0
    %2462 = vmatprep.subr.mxu0 0.0
    %2463 = vmatpush1.xpose.msra.mxu0 %v2458
    %2464 = vmatprep.subr.mxu0 0.0
    %2465 = vmatpush1.xpose.msra.mxu0 %v2460
    %2466 = vmatprep.subr.mxu0 0.0
    %2467 = vmatpush1.xpose.msra.mxu0 0.0
    %2468 = vmatprep.subr.mxu0 0.0
    %2469 = vmatpush1.xpose.msra.mxu0 0.0
    %2470 = vmatprep.subr.mxu0 0.0
    %2471 = vmatpush1.xpose.msra.mxu0 0.0
    %2472 = vmatprep.subr.mxu0 0.0
    %2473 = vmatpush1.xpose.msra.mxu0 0.0
    %2474 = vmatprep.subr.mxu0 0.0
    %2475 = vmatpush1.xpose.msra.mxu0 0.0
    %2476 = vmatprep.subr.mxu0 0.0
    %2477 = vmatpush1.xpose.msra.mxu0 0.0
    %2478 = vmatprep.subr.mxu0 0.0
    %2479 = vmatpush1.xpose.msra.mxu0 0.0
    %2480 = vmatprep.subr.mxu0 0.0
    %2481 = vmatpush1.xpose.msra.mxu0 0.0
    %2482 = vmatprep.subr.mxu0 0.0
    %2483 = vmatpush1.xpose.msra.mxu0 0.0
    %2484 = vmatprep.subr.mxu0 0.0
    %2485 = vmatpush1.xpose.msra.mxu0 0.0
    %2486 = vmatprep.subr.mxu0 0.0
    %2487 = vmatpush1.xpose.msra.mxu0 0.0
    %2488 = vmatprep.subr.mxu0 0.0
    %2489 = vmatpush1.xpose.msra.mxu0 0.0
    %2490 = vmatprep.subr.mxu0 0.0
    %2491 = vmatpush1.xpose.msra.mxu0 0.0
    %2492 = vmatprep.subr.mxu0 0.0
    %2493 = vmatpush1.xpose.msra.mxu0 0.0
    %2494 = vmatprep.subr.mxu0 0.0
    %2495 = vmatpush1.xpose.msra.mxu0 0.0
    %2496 = vmatprep.subr.mxu0 0.0
    %2497 = vmatpush1.xpose.msra.mxu0 0.0
    %2498 = vmatprep.subr.mxu0 0.0
    %2499 = vmatpush1.xpose.msra.mxu0 0.0
    %2500 = vmatprep.subr.mxu0 0.0
    %2501 = vmatpush1.xpose.msra.mxu0 0.0
    %2502 = vmatprep.subr.mxu0 0.0
    %2503 = vmatpush1.xpose.msra.mxu0 0.0
    %2504 = vmatprep.subr.mxu0 0.0
    %2505 = vmatpush1.xpose.msra.mxu0 0.0
    %2506 = vmatprep.subr.mxu0 0.0
    %2507 = vmatpush1.xpose.msra.mxu0 0.0
    %2508 = vmatprep.subr.mxu0 0.0
    %2509 = vmatpush1.xpose.msra.mxu0 0.0
    %2510 = vmatprep.subr.mxu0 0.0
    %2511 = vmatpush1.xpose.msra.mxu0 0.0
    %2512 = vmatprep.subr.mxu0 0.0
    %2513 = vmatpush1.xpose.msra.mxu0 0.0
    %2514 = vmatprep.subr.mxu0 0.0
    %2515 = vmatpush1.xpose.msra.mxu0 0.0
    %2516 = vmatprep.subr.mxu0 0.0
    %2517 = vmatpush1.xpose.msra.mxu0 0.0
    %2518 = vmatprep.subr.mxu0 0.0
    %2519 = vmatpush1.xpose.msra.mxu0 0.0
    %2520 = vmatprep.subr.mxu0 0.0
    %2521 = vmatpush1.xpose.msra.mxu0 0.0
    %2522 = vmatprep.subr.mxu0 0.0
    %2523 = vmatpush1.xpose.msra.mxu0 0.0
    %2524 = vmatprep.subr.mxu0 0.0
    %2525 = vmatpush1.xpose.msra.mxu0 0.0
    %2526 = vmatprep.mubr.f32.mxu0 0.0
    %2527 = vmatmul.mubr.f32.gmra.mrb[0].mxu0 %v2411
    %v2528 = vpop.f32.mrb[0].mxu0
    %v2529 = vadd.f32 %v738, %v2528
    %v2530 = vpop.f32.mrb[0].mxu0
    %2531 = vmatprep.mubr.f32.mxu0 0.0
    %2532 = vmatmul.mubr.f32.gmra.mrb[0].mxu0 %v2414
    %v2533 = vpop.f32.mrb[0].mxu0
    %v2534 = vadd.f32 %v738, %v2533
    %v2535 = vpop.f32.mrb[0].mxu0
    %2536 = vmatprep.mubr.f32.mxu0 0.0
    %2537 = vmatmul.mubr.f32.gmra.mrb[0].mxu0 %v2417
    %v2538 = vpop.f32.mrb[0].mxu0
    %v2539 = vadd.f32 %v738, %v2538
    %v2540 = vpop.f32.mrb[0].mxu0
    %2541 = vmatprep.mubr.f32.mxu0 0.0
    %2542 = vmatmul.mubr.f32.gmra.mrb[0].mxu0 %v2420
    %v2543 = vpop.f32.mrb[0].mxu0
    %v2544 = vadd.f32 %v738, %v2543
    %v2545 = vpop.f32.mrb[0].mxu0
    %2546 = vmatprep.mubr.f32.mxu0 0.0
    %2547 = vmatmul.mubr.f32.gmra.mrb[0].mxu0 %v2423
    %v2548 = vpop.f32.mrb[0].mxu0
    %v2549 = vadd.f32 %v738, %v2548
    %v2550 = vpop.f32.mrb[0].mxu0
    %2551 = vmatprep.mubr.f32.mxu0 0.0
    %2552 = vmatmul.mubr.f32.gmra.mrb[0].mxu0 %v2426
    %v2553 = vpop.f32.mrb[0].mxu0
    %v2554 = vadd.f32 %v738, %v2553
    %v2555 = vpop.f32.mrb[0].mxu0
    %2556 = vmatprep.mubr.f32.mxu0 0.0
    %2557 = vmatmul.mubr.f32.gmra.mrb[0].mxu0 %v2429
    %v2558 = vpop.f32.mrb[0].mxu0
    %v2559 = vadd.f32 %v738, %v2558
    %v2560 = vpop.f32.mrb[0].mxu0
    %2561 = vmatprep.mubr.f32.mxu0 0.0
    %2562 = vmatmul.mubr.f32.gmra.mrb[0].mxu0 %v2432
    %v2563 = vpop.f32.mrb[0].mxu0
    %v2564 = vadd.f32 %v738, %v2563
    %v2565 = vpop.f32.mrb[0].mxu0
    %2566 = vmatprep.mubr.f32.mxu0 0.0
    %2567 = vmatmul.mubr.f32.gmra.mrb[0].mxu0 %v2435
    %v2568 = vpop.f32.mrb[0].mxu0
    %v2569 = vadd.f32 %v738, %v2568
    %v2570 = vpop.f32.mrb[0].mxu0
    %2571 = vmatprep.mubr.f32.mxu0 0.0
    %2572 = vmatmul.mubr.f32.gmra.mrb[0].mxu0 %v2438
    %v2573 = vpop.f32.mrb[0].mxu0
    %v2574 = vadd.f32 %v738, %v2573
    %v2575 = vpop.f32.mrb[0].mxu0
    %2576 = vmatprep.mubr.f32.mxu0 0.0
    %2577 = vmatmul.mubr.f32.gmra.mrb[0].mxu0 %v2441
    %v2578 = vpop.f32.mrb[0].mxu0
    %v2579 = vadd.f32 %v738, %v2578
    %v2580 = vpop.f32.mrb[0].mxu0
    %2581 = vmatprep.mubr.f32.mxu0 0.0
    %2582 = vmatmul.mubr.f32.gmra.mrb[0].mxu0 %v2444
    %v2583 = vpop.f32.mrb[0].mxu0
    %v2584 = vadd.f32 %v738, %v2583
    %v2585 = vpop.f32.mrb[0].mxu0
    %2586 = vmatprep.mubr.f32.mxu0 0.0
    %2587 = vmatmul.mubr.f32.gmra.mrb[0].mxu0 %v2447
    %v2588 = vpop.f32.mrb[0].mxu0
    %v2589 = vadd.f32 %v738, %v2588
    %v2590 = vpop.f32.mrb[0].mxu0
    %2591 = vmatprep.mubr.f32.mxu0 0.0
    %2592 = vmatmul.mubr.f32.gmra.mrb[0].mxu0 %v2450
    %v2593 = vpop.f32.mrb[0].mxu0
    %v2594 = vadd.f32 %v738, %v2593
    %v2595 = vpop.f32.mrb[0].mxu0
    %2596 = vmatprep.mubr.f32.mxu0 0.0
    %2597 = vmatmul.mubr.f32.gmra.mrb[0].mxu0 %v2453
    %v2598 = vpop.f32.mrb[0].mxu0
    %v2599 = vadd.f32 %v738, %v2598
    %v2600 = vpop.f32.mrb[0].mxu0
    %2601 = vmatprep.mubr.f32.mxu0 0.0
    %2602 = vmatmul.mubr.f32.gmra.mrb[0].mxu0 %v2456
    %v2603 = vpop.f32.mrb[0].mxu0
    %v2604 = vadd.f32 %v738, %v2603
    %v2605 = vpop.f32.mrb[0].mxu0
    %2606 = vdwg.mxu0
    %v2607 = vsel %vm91, %v2529, -inf
    %2608 = vmax.xlane.f32.xlu0 %v2607
    %v2609 = vpop.xlane.xlu0 %2608
    %v2610 = vsel %vm91, %v2534, -inf
    %2611 = vmax.xlane.f32.xlu0 %v2610
    %v2612 = vpop.xlane.xlu0 %2611
    %v2613 = vsel %vm91, %v2539, -inf
    %2614 = vmax.xlane.f32.xlu0 %v2613
    %v2615 = vpop.xlane.xlu0 %2614
    %v2616 = vsel %vm91, %v2544, -inf
    %2617 = vmax.xlane.f32.xlu0 %v2616
    %v2618 = vpop.xlane.xlu0 %2617
    %v2619 = vsel %vm91, %v2549, -inf
    %2620 = vmax.xlane.f32.xlu0 %v2619
    %v2621 = vpop.xlane.xlu0 %2620
    %v2622 = vsel %vm91, %v2554, -inf
    %2623 = vmax.xlane.f32.xlu0 %v2622
    %v2624 = vpop.xlane.xlu0 %2623
    %v2625 = vsel %vm91, %v2559, -inf
    %2626 = vmax.xlane.f32.xlu0 %v2625
    %v2627 = vpop.xlane.xlu0 %2626
    %v2628 = vsel %vm91, %v2564, -inf
    %2629 = vmax.xlane.f32.xlu0 %v2628
    %v2630 = vpop.xlane.xlu0 %2629
    %v2631 = vsel %vm91, %v2569, -inf
    %2632 = vmax.xlane.f32.xlu0 %v2631
    %v2633 = vpop.xlane.xlu0 %2632
    %v2634 = vsel %vm91, %v2574, -inf
    %2635 = vmax.xlane.f32.xlu0 %v2634
    %v2636 = vpop.xlane.xlu0 %2635
    %v2637 = vsel %vm91, %v2579, -inf
    %2638 = vmax.xlane.f32.xlu0 %v2637
    %v2639 = vpop.xlane.xlu0 %2638
    %v2640 = vsel %vm91, %v2584, -inf
    %2641 = vmax.xlane.f32.xlu0 %v2640
    %v2642 = vpop.xlane.xlu0 %2641
    %v2643 = vsel %vm91, %v2589, -inf
    %2644 = vmax.xlane.f32.xlu0 %v2643
    %v2645 = vpop.xlane.xlu0 %2644
    %v2646 = vsel %vm91, %v2594, -inf
    %2647 = vmax.xlane.f32.xlu0 %v2646
    %v2648 = vpop.xlane.xlu0 %2647
    %v2649 = vsel %vm91, %v2599, -inf
    %2650 = vmax.xlane.f32.xlu0 %v2649
    %v2651 = vpop.xlane.xlu0 %2650
    %v2652 = vsel %vm91, %v2604, -inf
    %2653 = vmax.xlane.f32.xlu0 %v2652
    %v2654 = vpop.xlane.xlu0 %2653
    %v2655 = vsub.f32 %v2529, %v2609
    %v2656 = vsub.f32 %v2534, %v2612
    %v2657 = vsub.f32 %v2539, %v2615
    %v2658 = vsub.f32 %v2544, %v2618
    %v2659 = vsub.f32 %v2549, %v2621
    %v2660 = vsub.f32 %v2554, %v2624
    %v2661 = vsub.f32 %v2559, %v2627
    %v2662 = vsub.f32 %v2564, %v2630
    %v2663 = vsub.f32 %v2569, %v2633
    %v2664 = vsub.f32 %v2574, %v2636
    %v2665 = vsub.f32 %v2579, %v2639
    %v2666 = vsub.f32 %v2584, %v2642
    %v2667 = vsub.f32 %v2589, %v2645
    %v2668 = vsub.f32 %v2594, %v2648
    %v2669 = vsub.f32 %v2599, %v2651
    %v2670 = vsub.f32 %v2604, %v2654
    %v2671 = vmul.f32 %v2655, 1.442695
    %v2672 = vpow.pop %v2671
    %v2673 = vmul.f32 %v2656, 1.442695
    %v2674 = vpow.pop %v2673
    %v2675 = vmul.f32 %v2657, 1.442695
    %v2676 = vpow.pop %v2675
    %v2677 = vmul.f32 %v2658, 1.442695
    %v2678 = vpow.pop %v2677
    %v2679 = vmul.f32 %v2659, 1.442695
    %v2680 = vpow.pop %v2679
    %v2681 = vmul.f32 %v2660, 1.442695
    %v2682 = vpow.pop %v2681
    %v2683 = vmul.f32 %v2661, 1.442695
    %v2684 = vpow.pop %v2683
    %v2685 = vmul.f32 %v2662, 1.442695
    %v2686 = vpow.pop %v2685
    %v2687 = vmul.f32 %v2663, 1.442695
    %v2688 = vpow.pop %v2687
    %v2689 = vmul.f32 %v2664, 1.442695
    %v2690 = vpow.pop %v2689
    %v2691 = vmul.f32 %v2665, 1.442695
    %v2692 = vpow.pop %v2691
    %v2693 = vmul.f32 %v2666, 1.442695
    %v2694 = vpow.pop %v2693
    %v2695 = vmul.f32 %v2667, 1.442695
    %v2696 = vpow.pop %v2695
    %v2697 = vmul.f32 %v2668, 1.442695
    %v2698 = vpow.pop %v2697
    %v2699 = vmul.f32 %v2669, 1.442695
    %v2700 = vpow.pop %v2699
    %v2701 = vmul.f32 %v2670, 1.442695
    %v2702 = vpow.pop %v2701
    %v2703 = vsel %vm91, %v2672, 0.0
    %2704 = vadd.xlane.f32.xlu0 %v2703
    %v2705 = vpop.xlane.xlu0 %2704
    %v2706 = vsel %vm91, %v2674, 0.0
    %2707 = vadd.xlane.f32.xlu0 %v2706
    %v2708 = vpop.xlane.xlu0 %2707
    %v2709 = vsel %vm91, %v2676, 0.0
    %2710 = vadd.xlane.f32.xlu0 %v2709
    %v2711 = vpop.xlane.xlu0 %2710
    %v2712 = vsel %vm91, %v2678, 0.0
    %2713 = vadd.xlane.f32.xlu0 %v2712
    %v2714 = vpop.xlane.xlu0 %2713
    %v2715 = vsel %vm91, %v2680, 0.0
    %2716 = vadd.xlane.f32.xlu0 %v2715
    %v2717 = vpop.xlane.xlu0 %2716
    %v2718 = vsel %vm91, %v2682, 0.0
    %2719 = vadd.xlane.f32.xlu0 %v2718
    %v2720 = vpop.xlane.xlu0 %2719
    %v2721 = vsel %vm91, %v2684, 0.0
    %2722 = vadd.xlane.f32.xlu0 %v2721
    %v2723 = vpop.xlane.xlu0 %2722
    %v2724 = vsel %vm91, %v2686, 0.0
    %2725 = vadd.xlane.f32.xlu0 %v2724
    %v2726 = vpop.xlane.xlu0 %2725
    %v2727 = vsel %vm91, %v2688, 0.0
    %2728 = vadd.xlane.f32.xlu0 %v2727
    %v2729 = vpop.xlane.xlu0 %2728
    %v2730 = vsel %vm91, %v2690, 0.0
    %2731 = vadd.xlane.f32.xlu0 %v2730
    %v2732 = vpop.xlane.xlu0 %2731
    %v2733 = vsel %vm91, %v2692, 0.0
    %2734 = vadd.xlane.f32.xlu0 %v2733
    %v2735 = vpop.xlane.xlu0 %2734
    %v2736 = vsel %vm91, %v2694, 0.0
    %2737 = vadd.xlane.f32.xlu0 %v2736
    %v2738 = vpop.xlane.xlu0 %2737
    %v2739 = vsel %vm91, %v2696, 0.0
    %2740 = vadd.xlane.f32.xlu0 %v2739
    %v2741 = vpop.xlane.xlu0 %2740
    %v2742 = vsel %vm91, %v2698, 0.0
    %2743 = vadd.xlane.f32.xlu0 %v2742
    %v2744 = vpop.xlane.xlu0 %2743
    %v2745 = vsel %vm91, %v2700, 0.0
    %2746 = vadd.xlane.f32.xlu0 %v2745
    %v2747 = vpop.xlane.xlu0 %2746
    %v2748 = vsel %vm91, %v2702, 0.0
    %2749 = vadd.xlane.f32.xlu0 %v2748
    %v2750 = vpop.xlane.xlu0 %2749
    %v2751 = vrcp.pop %v2705
    %v2752 = vrcp.pop %v2708
    %v2753 = vrcp.pop %v2711
    %v2754 = vrcp.pop %v2714
    %v2755 = vrcp.pop %v2717
    %v2756 = vrcp.pop %v2720
    %v2757 = vrcp.pop %v2723
    %v2758 = vrcp.pop %v2726
    %v2759 = vrcp.pop %v2729
    %v2760 = vrcp.pop %v2732
    %v2761 = vrcp.pop %v2735
    %v2762 = vrcp.pop %v2738
    %v2763 = vrcp.pop %v2741
    %v2764 = vrcp.pop %v2744
    %v2765 = vrcp.pop %v2747
    %v2766 = vrcp.pop %v2750
    %v2767 = vmul.f32 %v2672, %v2751
    %v2768 = vmul.f32 %v2674, %v2752
    %v2769 = vmul.f32 %v2676, %v2753
    %v2770 = vmul.f32 %v2678, %v2754
    %v2771 = vmul.f32 %v2680, %v2755
    %v2772 = vmul.f32 %v2682, %v2756
    %v2773 = vmul.f32 %v2684, %v2757
    %v2774 = vmul.f32 %v2686, %v2758
    %v2775 = vmul.f32 %v2688, %v2759
    %v2776 = vmul.f32 %v2690, %v2760
    %v2777 = vmul.f32 %v2692, %v2761
    %v2778 = vmul.f32 %v2694, %v2762
    %v2779 = vmul.f32 %v2696, %v2763
    %v2780 = vmul.f32 %v2698, %v2764
    %v2781 = vmul.f32 %v2700, %v2765
    %v2782 = vmul.f32 %v2702, %v2766
    %2783 = vrot.lane.b32.xlu0 %v432, 64
    %v2784 = vpop.permute.xlu0 %2783
    %2785 = vrot.lane.b32.xlu0 %v437, 64
    %v2786 = vpop.permute.xlu0 %2785
    %v2790 = vsel %vm91, %v2767, 0
    %v2793 = vsel %vm91, %v2768, 0
    %v2796 = vsel %vm91, %v2769, 0
    %v2799 = vsel %vm91, %v2770, 0
    %v2802 = vsel %vm91, %v2771, 0
    %v2805 = vsel %vm91, %v2772, 0
    %v2808 = vsel %vm91, %v2773, 0
    %v2811 = vsel %vm91, %v2774, 0
    %v2814 = vsel %vm91, %v2775, 0
    %v2817 = vsel %vm91, %v2776, 0
    %v2820 = vsel %vm91, %v2777, 0
    %v2823 = vsel %vm91, %v2778, 0
    %v2826 = vsel %vm91, %v2779, 0
    %v2829 = vsel %vm91, %v2780, 0
    %v2832 = vsel %vm91, %v2781, 0
    %v2835 = vsel %vm91, %v2782, 0
    %2837 = vmatprep.subr.mxu0 0.0
    %2838 = vmatpush1.msra.mxu0 %v2784
    %2839 = vmatprep.subr.mxu0 0.0
    %2840 = vmatpush1.msra.mxu0 %v2786
    %2841 = vmatprep.subr.mxu0 0.0
    %2842 = vmatpush1.msra.mxu0 0.0
    %2843 = vmatprep.subr.mxu0 0.0
    %2844 = vmatpush1.msra.mxu0 0.0
    %2845 = vmatprep.subr.mxu0 0.0
    %2846 = vmatpush1.msra.mxu0 0.0
    %2847 = vmatprep.subr.mxu0 0.0
    %2848 = vmatpush1.msra.mxu0 0.0
    %2849 = vmatprep.subr.mxu0 0.0
    %2850 = vmatpush1.msra.mxu0 0.0
    %2851 = vmatprep.subr.mxu0 0.0
    %2852 = vmatpush1.msra.mxu0 0.0
    %2853 = vmatprep.subr.mxu0 0.0
    %2854 = vmatpush1.msra.mxu0 0.0
    %2855 = vmatprep.subr.mxu0 0.0
    %2856 = vmatpush1.msra.mxu0 0.0
    %2857 = vmatprep.subr.mxu0 0.0
    %2858 = vmatpush1.msra.mxu0 0.0
    %2859 = vmatprep.subr.mxu0 0.0
    %2860 = vmatpush1.msra.mxu0 0.0
    %2861 = vmatprep.subr.mxu0 0.0
    %2862 = vmatpush1.msra.mxu0 0.0
    %2863 = vmatprep.subr.mxu0 0.0
    %2864 = vmatpush1.msra.mxu0 0.0
    %2865 = vmatprep.subr.mxu0 0.0
    %2866 = vmatpush1.msra.mxu0 0.0
    %2867 = vmatprep.subr.mxu0 0.0
    %2868 = vmatpush1.msra.mxu0 0.0
    %2869 = vmatprep.subr.mxu0 0.0
    %2870 = vmatpush1.msra.mxu0 0.0
    %2871 = vmatprep.subr.mxu0 0.0
    %2872 = vmatpush1.msra.mxu0 0.0
    %2873 = vmatprep.subr.mxu0 0.0
    %2874 = vmatpush1.msra.mxu0 0.0
    %2875 = vmatprep.subr.mxu0 0.0
    %2876 = vmatpush1.msra.mxu0 0.0
    %2877 = vmatprep.subr.mxu0 0.0
    %2878 = vmatpush1.msra.mxu0 0.0
    %2879 = vmatprep.subr.mxu0 0.0
    %2880 = vmatpush1.msra.mxu0 0.0
    %2881 = vmatprep.subr.mxu0 0.0
    %2882 = vmatpush1.msra.mxu0 0.0
    %2883 = vmatprep.subr.mxu0 0.0
    %2884 = vmatpush1.msra.mxu0 0.0
    %2885 = vmatprep.subr.mxu0 0.0
    %2886 = vmatpush1.msra.mxu0 0.0
    %2887 = vmatprep.subr.mxu0 0.0
    %2888 = vmatpush1.msra.mxu0 0.0
    %2889 = vmatprep.subr.mxu0 0.0
    %2890 = vmatpush1.msra.mxu0 0.0
    %2891 = vmatprep.subr.mxu0 0.0
    %2892 = vmatpush1.msra.mxu0 0.0
    %2893 = vmatprep.subr.mxu0 0.0
    %2894 = vmatpush1.msra.mxu0 0.0
    %2895 = vmatprep.subr.mxu0 0.0
    %2896 = vmatpush1.msra.mxu0 0.0
    %2897 = vmatprep.subr.mxu0 0.0
    %2898 = vmatpush1.msra.mxu0 0.0
    %2899 = vmatprep.subr.mxu0 0.0
    %2900 = vmatpush1.msra.mxu0 0.0
    %2901 = vmatprep.mubr.f32.mxu0 0.0
    %2902 = vmatmul.mubr.f32.gmra.mrb[0].mxu0 %v2790
    %v2903 = vpop.f32.mrb[0].mxu0
    %v2904 = vadd.f32 0.0, %v2903
    %v2905 = vpop.f32.mrb[0].mxu0
    %2906 = vmatprep.mubr.f32.mxu0 0.0
    %2907 = vmatmul.mubr.f32.gmra.mrb[0].mxu0 %v2793
    %v2908 = vpop.f32.mrb[0].mxu0
    %v2909 = vadd.f32 0.0, %v2908
    %v2910 = vpop.f32.mrb[0].mxu0
    %2911 = vmatprep.mubr.f32.mxu0 0.0
    %2912 = vmatmul.mubr.f32.gmra.mrb[0].mxu0 %v2796
    %v2913 = vpop.f32.mrb[0].mxu0
    %v2914 = vadd.f32 0.0, %v2913
    %v2915 = vpop.f32.mrb[0].mxu0
    %2916 = vmatprep.mubr.f32.mxu0 0.0
    %2917 = vmatmul.mubr.f32.gmra.mrb[0].mxu0 %v2799
    %v2918 = vpop.f32.mrb[0].mxu0
    %v2919 = vadd.f32 0.0, %v2918
    %v2920 = vpop.f32.mrb[0].mxu0
    %2921 = vmatprep.mubr.f32.mxu0 0.0
    %2922 = vmatmul.mubr.f32.gmra.mrb[0].mxu0 %v2802
    %v2923 = vpop.f32.mrb[0].mxu0
    %v2924 = vadd.f32 0.0, %v2923
    %v2925 = vpop.f32.mrb[0].mxu0
    %2926 = vmatprep.mubr.f32.mxu0 0.0
    %2927 = vmatmul.mubr.f32.gmra.mrb[0].mxu0 %v2805
    %v2928 = vpop.f32.mrb[0].mxu0
    %v2929 = vadd.f32 0.0, %v2928
    %v2930 = vpop.f32.mrb[0].mxu0
    %2931 = vmatprep.mubr.f32.mxu0 0.0
    %2932 = vmatmul.mubr.f32.gmra.mrb[0].mxu0 %v2808
    %v2933 = vpop.f32.mrb[0].mxu0
    %v2934 = vadd.f32 0.0, %v2933
    %v2935 = vpop.f32.mrb[0].mxu0
    %2936 = vmatprep.mubr.f32.mxu0 0.0
    %2937 = vmatmul.mubr.f32.gmra.mrb[0].mxu0 %v2811
    %v2938 = vpop.f32.mrb[0].mxu0
    %v2939 = vadd.f32 0.0, %v2938
    %v2940 = vpop.f32.mrb[0].mxu0
    %2941 = vmatprep.mubr.f32.mxu0 0.0
    %2942 = vmatmul.mubr.f32.gmra.mrb[0].mxu0 %v2814
    %v2943 = vpop.f32.mrb[0].mxu0
    %v2944 = vadd.f32 0.0, %v2943
    %v2945 = vpop.f32.mrb[0].mxu0
    %2946 = vmatprep.mubr.f32.mxu0 0.0
    %2947 = vmatmul.mubr.f32.gmra.mrb[0].mxu0 %v2817
    %v2948 = vpop.f32.mrb[0].mxu0
    %v2949 = vadd.f32 0.0, %v2948
    %v2950 = vpop.f32.mrb[0].mxu0
    %2951 = vmatprep.mubr.f32.mxu0 0.0
    %2952 = vmatmul.mubr.f32.gmra.mrb[0].mxu0 %v2820
    %v2953 = vpop.f32.mrb[0].mxu0
    %v2954 = vadd.f32 0.0, %v2953
    %v2955 = vpop.f32.mrb[0].mxu0
    %2956 = vmatprep.mubr.f32.mxu0 0.0
    %2957 = vmatmul.mubr.f32.gmra.mrb[0].mxu0 %v2823
    %v2958 = vpop.f32.mrb[0].mxu0
    %v2959 = vadd.f32 0.0, %v2958
    %v2960 = vpop.f32.mrb[0].mxu0
    %2961 = vmatprep.mubr.f32.mxu0 0.0
    %2962 = vmatmul.mubr.f32.gmra.mrb[0].mxu0 %v2826
    %v2963 = vpop.f32.mrb[0].mxu0
    %v2964 = vadd.f32 0.0, %v2963
    %v2965 = vpop.f32.mrb[0].mxu0
    %2966 = vmatprep.mubr.f32.mxu0 0.0
    %2967 = vmatmul.mubr.f32.gmra.mrb[0].mxu0 %v2829
    %v2968 = vpop.f32.mrb[0].mxu0
    %v2969 = vadd.f32 0.0, %v2968
    %v2970 = vpop.f32.mrb[0].mxu0
    %2971 = vmatprep.mubr.f32.mxu0 0.0
    %2972 = vmatmul.mubr.f32.gmra.mrb[0].mxu0 %v2832
    %v2973 = vpop.f32.mrb[0].mxu0
    %v2974 = vadd.f32 0.0, %v2973
    %v2975 = vpop.f32.mrb[0].mxu0
    %2976 = vmatprep.mubr.f32.mxu0 0.0
    %2977 = vmatmul.mubr.f32.gmra.mrb[0].mxu0 %v2835
    %v2978 = vpop.f32.mrb[0].mxu0
    %v2979 = vadd.f32 0.0, %v2978
    %v2980 = vpop.f32.mrb[0].mxu0
    %2981 = vdwg.mxu0
    %v2982 = vmul.f32 %v2904, %v508
    %v2983 = vmul.f32 %v2909, %v509
    %v2984 = vmul.f32 %v2914, %v510
    %v2985 = vmul.f32 %v2919, %v511
    %v2986 = vmul.f32 %v2924, %v512
    %v2987 = vmul.f32 %v2929, %v513
    %v2988 = vmul.f32 %v2934, %v514
    %v2989 = vmul.f32 %v2939, %v515
    %v2990 = vmul.f32 %v2944, %v516
    %v2991 = vmul.f32 %v2949, %v517
    %v2992 = vmul.f32 %v2954, %v518
    %v2993 = vmul.f32 %v2959, %v519
    %v2994 = vmul.f32 %v2964, %v520
    %v2995 = vmul.f32 %v2969, %v521
    %v2996 = vmul.f32 %v2974, %v522
    %v2997 = vmul.f32 %v2979, %v523
    %2998 = vmatprep.subr.mxu0 0.0
    %2999 = vmatpush1.msra.mxu0 %v2982
    %3000 = vmatprep.subr.mxu0 0.0
    %3001 = vmatpush1.msra.mxu0 %v2983
    %3002 = vmatprep.subr.mxu0 0.0
    %3003 = vmatpush1.msra.mxu0 %v2984
    %3004 = vmatprep.subr.mxu0 0.0
    %3005 = vmatpush1.msra.mxu0 %v2985
    %3006 = vmatprep.subr.mxu0 0.0
    %3007 = vmatpush1.msra.mxu0 %v2986
    %3008 = vmatprep.subr.mxu0 0.0
    %3009 = vmatpush1.msra.mxu0 %v2987
    %3010 = vmatprep.subr.mxu0 0.0
    %3011 = vmatpush1.msra.mxu0 %v2988
    %3012 = vmatprep.subr.mxu0 0.0
    %3013 = vmatpush1.msra.mxu0 %v2989
    %3014 = vmatprep.subr.mxu0 0.0
    %3015 = vmatpush1.msra.mxu0 %v2990
    %3016 = vmatprep.subr.mxu0 0.0
    %3017 = vmatpush1.msra.mxu0 %v2991
    %3018 = vmatprep.subr.mxu0 0.0
    %3019 = vmatpush1.msra.mxu0 %v2992
    %3020 = vmatprep.subr.mxu0 0.0
    %3021 = vmatpush1.msra.mxu0 %v2993
    %3022 = vmatprep.subr.mxu0 0.0
    %3023 = vmatpush1.msra.mxu0 %v2994
    %3024 = vmatprep.subr.mxu0 0.0
    %3025 = vmatpush1.msra.mxu0 %v2995
    %3026 = vmatprep.subr.mxu0 0.0
    %3027 = vmatpush1.msra.mxu0 %v2996
    %3028 = vmatprep.subr.mxu0 0.0
    %3029 = vmatpush1.msra.mxu0 %v2997
    %3030 = vmatprep.subr.mxu0 0.0
    %3031 = vmatpush1.msra.mxu0 0.0
    %3032 = vmatprep.subr.mxu0 0.0
    %3033 = vmatpush1.msra.mxu0 0.0
    %3034 = vmatprep.subr.mxu0 0.0
    %3035 = vmatpush1.msra.mxu0 0.0
    %3036 = vmatprep.subr.mxu0 0.0
    %3037 = vmatpush1.msra.mxu0 0.0
    %3038 = vmatprep.subr.mxu0 0.0
    %3039 = vmatpush1.msra.mxu0 0.0
    %3040 = vmatprep.subr.mxu0 0.0
    %3041 = vmatpush1.msra.mxu0 0.0
    %3042 = vmatprep.subr.mxu0 0.0
    %3043 = vmatpush1.msra.mxu0 0.0
    %3044 = vmatprep.subr.mxu0 0.0
    %3045 = vmatpush1.msra.mxu0 0.0
    %3046 = vmatprep.subr.mxu0 0.0
    %3047 = vmatpush1.msra.mxu0 0.0
    %3048 = vmatprep.subr.mxu0 0.0
    %3049 = vmatpush1.msra.mxu0 0.0
    %3050 = vmatprep.subr.mxu0 0.0
    %3051 = vmatpush1.msra.mxu0 0.0
    %3052 = vmatprep.subr.mxu0 0.0
    %3053 = vmatpush1.msra.mxu0 0.0
    %3054 = vmatprep.subr.mxu0 0.0
    %3055 = vmatpush1.msra.mxu0 0.0
    %3056 = vmatprep.subr.mxu0 0.0
    %3057 = vmatpush1.msra.mxu0 0.0
    %3058 = vmatprep.subr.mxu0 0.0
    %3059 = vmatpush1.msra.mxu0 0.0
    %3060 = vmatprep.subr.mxu0 0.0
    %3061 = vmatpush1.msra.mxu0 0.0
    %3062 = vmatprep.mubr.f32.mxu0 0.0
    %3063 = vmatmul.mubr.f32.gmra.mrb[0].mxu0 %v506
    %v3064 = vpop.f32.mrb[0].mxu0
    %v3065 = vadd.f32 0.0, %v3064
    %v3066 = vpop.f32.mrb[0].mxu0
    %3067 = vmatprep.mubr.f32.mxu0 0.0
    %3068 = vmatmul.mubr.f32.gmra.mrb[0].mxu0 %v507
    %v3069 = vpop.f32.mrb[0].mxu0
    %v3070 = vadd.f32 0.0, %v3069
    %v3071 = vpop.f32.mrb[0].mxu0
    %3072 = vdwg.mxu0
    %3073 = vst.msk [vmem:[#allocation2 + $0x20] sm:$0xff] %vm296, %v3065
    %3074 = vst.msk [vmem:[#allocation2 + $0x28] sm:$0xff] %vm296, %v3070
    %3075 = vmatprep.subr.mxu0 0.0
    %3076 = vmatpush1.msra.mxu0 %v442
    %3077 = vmatprep.subr.mxu0 0.0
    %3078 = vmatpush1.msra.mxu0 %v447
    %3079 = vmatprep.subr.mxu0 0.0
    %3080 = vmatpush1.msra.mxu0 0.0
    %3081 = vmatprep.subr.mxu0 0.0
    %3082 = vmatpush1.msra.mxu0 0.0
    %3083 = vmatprep.subr.mxu0 0.0
    %3084 = vmatpush1.msra.mxu0 0.0
    %3085 = vmatprep.subr.mxu0 0.0
    %3086 = vmatpush1.msra.mxu0 0.0
    %3087 = vmatprep.subr.mxu0 0.0
    %3088 = vmatpush1.msra.mxu0 0.0
    %3089 = vmatprep.subr.mxu0 0.0
    %3090 = vmatpush1.msra.mxu0 0.0
    %3091 = vmatprep.subr.mxu0 0.0
    %3092 = vmatpush1.msra.mxu0 0.0
    %3093 = vmatprep.subr.mxu0 0.0
    %3094 = vmatpush1.msra.mxu0 0.0
    %3095 = vmatprep.subr.mxu0 0.0
    %3096 = vmatpush1.msra.mxu0 0.0
    %3097 = vmatprep.subr.mxu0 0.0
    %3098 = vmatpush1.msra.mxu0 0.0
    %3099 = vmatprep.subr.mxu0 0.0
    %3100 = vmatpush1.msra.mxu0 0.0
    %3101 = vmatprep.subr.mxu0 0.0
    %3102 = vmatpush1.msra.mxu0 0.0
    %3103 = vmatprep.subr.mxu0 0.0
    %3104 = vmatpush1.msra.mxu0 0.0
    %3105 = vmatprep.subr.mxu0 0.0
    %3106 = vmatpush1.msra.mxu0 0.0
    %3107 = vmatprep.subr.mxu0 0.0
    %3108 = vmatpush1.msra.mxu0 0.0
    %3109 = vmatprep.subr.mxu0 0.0
    %3110 = vmatpush1.msra.mxu0 0.0
    %3111 = vmatprep.subr.mxu0 0.0
    %3112 = vmatpush1.msra.mxu0 0.0
    %3113 = vmatprep.subr.mxu0 0.0
    %3114 = vmatpush1.msra.mxu0 0.0
    %3115 = vmatprep.subr.mxu0 0.0
    %3116 = vmatpush1.msra.mxu0 0.0
    %3117 = vmatprep.subr.mxu0 0.0
    %3118 = vmatpush1.msra.mxu0 0.0
    %3119 = vmatprep.subr.mxu0 0.0
    %3120 = vmatpush1.msra.mxu0 0.0
    %3121 = vmatprep.subr.mxu0 0.0
    %3122 = vmatpush1.msra.mxu0 0.0
    %3123 = vmatprep.subr.mxu0 0.0
    %3124 = vmatpush1.msra.mxu0 0.0
    %3125 = vmatprep.subr.mxu0 0.0
    %3126 = vmatpush1.msra.mxu0 0.0
    %3127 = vmatprep.subr.mxu0 0.0
    %3128 = vmatpush1.msra.mxu0 0.0
    %3129 = vmatprep.subr.mxu0 0.0
    %3130 = vmatpush1.msra.mxu0 0.0
    %3131 = vmatprep.subr.mxu0 0.0
    %3132 = vmatpush1.msra.mxu0 0.0
    %3133 = vmatprep.subr.mxu0 0.0
    %3134 = vmatpush1.msra.mxu0 0.0
    %3135 = vmatprep.subr.mxu0 0.0
    %3136 = vmatpush1.msra.mxu0 0.0
    %3137 = vmatprep.subr.mxu0 0.0
    %3138 = vmatpush1.msra.mxu0 0.0
    %3139 = vmatprep.mubr.f32.mxu0 0.0
    %3140 = vmatmul.mubr.f32.gmra.mrb[0].mxu0 %v526
    %v3141 = vpop.f32.mrb[0].mxu0
    %v3142 = vadd.f32 0.0, %v3141
    %v3143 = vpop.f32.mrb[0].mxu0
    %3144 = vmatprep.mubr.f32.mxu0 0.0
    %3145 = vmatmul.mubr.f32.gmra.mrb[0].mxu0 %v529
    %v3146 = vpop.f32.mrb[0].mxu0
    %v3147 = vadd.f32 0.0, %v3146
    %v3148 = vpop.f32.mrb[0].mxu0
    %3149 = vmatprep.mubr.f32.mxu0 0.0
    %3150 = vmatmul.mubr.f32.gmra.mrb[0].mxu0 %v532
    %v3151 = vpop.f32.mrb[0].mxu0
    %v3152 = vadd.f32 0.0, %v3151
    %v3153 = vpop.f32.mrb[0].mxu0
    %3154 = vmatprep.mubr.f32.mxu0 0.0
    %3155 = vmatmul.mubr.f32.gmra.mrb[0].mxu0 %v535
    %v3156 = vpop.f32.mrb[0].mxu0
    %v3157 = vadd.f32 0.0, %v3156
    %v3158 = vpop.f32.mrb[0].mxu0
    %3159 = vmatprep.mubr.f32.mxu0 0.0
    %3160 = vmatmul.mubr.f32.gmra.mrb[0].mxu0 %v538
    %v3161 = vpop.f32.mrb[0].mxu0
    %v3162 = vadd.f32 0.0, %v3161
    %v3163 = vpop.f32.mrb[0].mxu0
    %3164 = vmatprep.mubr.f32.mxu0 0.0
    %3165 = vmatmul.mubr.f32.gmra.mrb[0].mxu0 %v541
    %v3166 = vpop.f32.mrb[0].mxu0
    %v3167 = vadd.f32 0.0, %v3166
    %v3168 = vpop.f32.mrb[0].mxu0
    %3169 = vmatprep.mubr.f32.mxu0 0.0
    %3170 = vmatmul.mubr.f32.gmra.mrb[0].mxu0 %v544
    %v3171 = vpop.f32.mrb[0].mxu0
    %v3172 = vadd.f32 0.0, %v3171
    %v3173 = vpop.f32.mrb[0].mxu0
    %3174 = vmatprep.mubr.f32.mxu0 0.0
    %3175 = vmatmul.mubr.f32.gmra.mrb[0].mxu0 %v547
    %v3176 = vpop.f32.mrb[0].mxu0
    %v3177 = vadd.f32 0.0, %v3176
    %v3178 = vpop.f32.mrb[0].mxu0
    %3179 = vmatprep.mubr.f32.mxu0 0.0
    %3180 = vmatmul.mubr.f32.gmra.mrb[0].mxu0 %v550
    %v3181 = vpop.f32.mrb[0].mxu0
    %v3182 = vadd.f32 0.0, %v3181
    %v3183 = vpop.f32.mrb[0].mxu0
    %3184 = vmatprep.mubr.f32.mxu0 0.0
    %3185 = vmatmul.mubr.f32.gmra.mrb[0].mxu0 %v553
    %v3186 = vpop.f32.mrb[0].mxu0
    %v3187 = vadd.f32 0.0, %v3186
    %v3188 = vpop.f32.mrb[0].mxu0
    %3189 = vmatprep.mubr.f32.mxu0 0.0
    %3190 = vmatmul.mubr.f32.gmra.mrb[0].mxu0 %v556
    %v3191 = vpop.f32.mrb[0].mxu0
    %v3192 = vadd.f32 0.0, %v3191
    %v3193 = vpop.f32.mrb[0].mxu0
    %3194 = vmatprep.mubr.f32.mxu0 0.0
    %3195 = vmatmul.mubr.f32.gmra.mrb[0].mxu0 %v559
    %v3196 = vpop.f32.mrb[0].mxu0
    %v3197 = vadd.f32 0.0, %v3196
    %v3198 = vpop.f32.mrb[0].mxu0
    %3199 = vmatprep.mubr.f32.mxu0 0.0
    %3200 = vmatmul.mubr.f32.gmra.mrb[0].mxu0 %v562
    %v3201 = vpop.f32.mrb[0].mxu0
    %v3202 = vadd.f32 0.0, %v3201
    %v3203 = vpop.f32.mrb[0].mxu0
    %3204 = vmatprep.mubr.f32.mxu0 0.0
    %3205 = vmatmul.mubr.f32.gmra.mrb[0].mxu0 %v565
    %v3206 = vpop.f32.mrb[0].mxu0
    %v3207 = vadd.f32 0.0, %v3206
    %v3208 = vpop.f32.mrb[0].mxu0
    %3209 = vmatprep.mubr.f32.mxu0 0.0
    %3210 = vmatmul.mubr.f32.gmra.mrb[0].mxu0 %v568
    %v3211 = vpop.f32.mrb[0].mxu0
    %v3212 = vadd.f32 0.0, %v3211
    %v3213 = vpop.f32.mrb[0].mxu0
    %3214 = vmatprep.mubr.f32.mxu0 0.0
    %3215 = vmatmul.mubr.f32.gmra.mrb[0].mxu0 %v571
    %v3216 = vpop.f32.mrb[0].mxu0
    %v3217 = vadd.f32 0.0, %v3216
    %v3218 = vpop.f32.mrb[0].mxu0
    %3219 = vdwg.mxu0
    %v3220 = vmul.f32 %v3142, %v508
    %v3221 = vmul.f32 %v3147, %v509
    %v3222 = vmul.f32 %v3152, %v510
    %v3223 = vmul.f32 %v3157, %v511
    %v3224 = vmul.f32 %v3162, %v512
    %v3225 = vmul.f32 %v3167, %v513
    %v3226 = vmul.f32 %v3172, %v514
    %v3227 = vmul.f32 %v3177, %v515
    %v3228 = vmul.f32 %v3182, %v516
    %v3229 = vmul.f32 %v3187, %v517
    %v3230 = vmul.f32 %v3192, %v518
    %v3231 = vmul.f32 %v3197, %v519
    %v3232 = vmul.f32 %v3202, %v520
    %v3233 = vmul.f32 %v3207, %v521
    %v3234 = vmul.f32 %v3212, %v522
    %v3235 = vmul.f32 %v3217, %v523
    %3238 = vrot.lane.b32.xlu0 %v442, 96
    %v3239 = vpop.permute.xlu0 %3238
    %3240 = vrot.lane.b32.xlu0 %v447, 96
    %v3241 = vpop.permute.xlu0 %3240
    %v3243 = vsel %vm296, %v3220, 0
    %v3246 = vsel %vm296, %v3221, 0
    %v3249 = vsel %vm296, %v3222, 0
    %v3252 = vsel %vm296, %v3223, 0
    %v3255 = vsel %vm296, %v3224, 0
    %v3258 = vsel %vm296, %v3225, 0
    %v3261 = vsel %vm296, %v3226, 0
    %v3264 = vsel %vm296, %v3227, 0
    %v3267 = vsel %vm296, %v3228, 0
    %v3270 = vsel %vm296, %v3229, 0
    %v3273 = vsel %vm296, %v3230, 0
    %v3276 = vsel %vm296, %v3231, 0
    %v3279 = vsel %vm296, %v3232, 0
    %v3282 = vsel %vm296, %v3233, 0
    %v3285 = vsel %vm296, %v3234, 0
    %v3288 = vsel %vm296, %v3235, 0
    %v3290 = vsel %vm296, %v3239, 0
    %v3292 = vsel %vm296, %v3241, 0
    %3294 = vmatprep.subr.mxu0 0.0
    %3295 = vmatpush1.xpose.msra.mxu0 %v3290
    %3296 = vmatprep.subr.mxu0 0.0
    %3297 = vmatpush1.xpose.msra.mxu0 %v3292
    %3298 = vmatprep.subr.mxu0 0.0
    %3299 = vmatpush1.xpose.msra.mxu0 0.0
    %3300 = vmatprep.subr.mxu0 0.0
    %3301 = vmatpush1.xpose.msra.mxu0 0.0
    %3302 = vmatprep.subr.mxu0 0.0
    %3303 = vmatpush1.xpose.msra.mxu0 0.0
    %3304 = vmatprep.subr.mxu0 0.0
    %3305 = vmatpush1.xpose.msra.mxu0 0.0
    %3306 = vmatprep.subr.mxu0 0.0
    %3307 = vmatpush1.xpose.msra.mxu0 0.0
    %3308 = vmatprep.subr.mxu0 0.0
    %3309 = vmatpush1.xpose.msra.mxu0 0.0
    %3310 = vmatprep.subr.mxu0 0.0
    %3311 = vmatpush1.xpose.msra.mxu0 0.0
    %3312 = vmatprep.subr.mxu0 0.0
    %3313 = vmatpush1.xpose.msra.mxu0 0.0
    %3314 = vmatprep.subr.mxu0 0.0
    %3315 = vmatpush1.xpose.msra.mxu0 0.0
    %3316 = vmatprep.subr.mxu0 0.0
    %3317 = vmatpush1.xpose.msra.mxu0 0.0
    %3318 = vmatprep.subr.mxu0 0.0
    %3319 = vmatpush1.xpose.msra.mxu0 0.0
    %3320 = vmatprep.subr.mxu0 0.0
    %3321 = vmatpush1.xpose.msra.mxu0 0.0
    %3322 = vmatprep.subr.mxu0 0.0
    %3323 = vmatpush1.xpose.msra.mxu0 0.0
    %3324 = vmatprep.subr.mxu0 0.0
    %3325 = vmatpush1.xpose.msra.mxu0 0.0
    %3326 = vmatprep.subr.mxu0 0.0
    %3327 = vmatpush1.xpose.msra.mxu0 0.0
    %3328 = vmatprep.subr.mxu0 0.0
    %3329 = vmatpush1.xpose.msra.mxu0 0.0
    %3330 = vmatprep.subr.mxu0 0.0
    %3331 = vmatpush1.xpose.msra.mxu0 0.0
    %3332 = vmatprep.subr.mxu0 0.0
    %3333 = vmatpush1.xpose.msra.mxu0 0.0
    %3334 = vmatprep.subr.mxu0 0.0
    %3335 = vmatpush1.xpose.msra.mxu0 0.0
    %3336 = vmatprep.subr.mxu0 0.0
    %3337 = vmatpush1.xpose.msra.mxu0 0.0
    %3338 = vmatprep.subr.mxu0 0.0
    %3339 = vmatpush1.xpose.msra.mxu0 0.0
    %3340 = vmatprep.subr.mxu0 0.0
    %3341 = vmatpush1.xpose.msra.mxu0 0.0
    %3342 = vmatprep.subr.mxu0 0.0
    %3343 = vmatpush1.xpose.msra.mxu0 0.0
    %3344 = vmatprep.subr.mxu0 0.0
    %3345 = vmatpush1.xpose.msra.mxu0 0.0
    %3346 = vmatprep.subr.mxu0 0.0
    %3347 = vmatpush1.xpose.msra.mxu0 0.0
    %3348 = vmatprep.subr.mxu0 0.0
    %3349 = vmatpush1.xpose.msra.mxu0 0.0
    %3350 = vmatprep.subr.mxu0 0.0
    %3351 = vmatpush1.xpose.msra.mxu0 0.0
    %3352 = vmatprep.subr.mxu0 0.0
    %3353 = vmatpush1.xpose.msra.mxu0 0.0
    %3354 = vmatprep.subr.mxu0 0.0
    %3355 = vmatpush1.xpose.msra.mxu0 0.0
    %3356 = vmatprep.subr.mxu0 0.0
    %3357 = vmatpush1.xpose.msra.mxu0 0.0
    %3358 = vmatprep.mubr.f32.mxu0 0.0
    %3359 = vmatmul.mubr.f32.gmra.mrb[0].mxu0 %v3243
    %v3360 = vpop.f32.mrb[0].mxu0
    %v3361 = vadd.f32 %v738, %v3360
    %v3362 = vpop.f32.mrb[0].mxu0
    %3363 = vmatprep.mubr.f32.mxu0 0.0
    %3364 = vmatmul.mubr.f32.gmra.mrb[0].mxu0 %v3246
    %v3365 = vpop.f32.mrb[0].mxu0
    %v3366 = vadd.f32 %v738, %v3365
    %v3367 = vpop.f32.mrb[0].mxu0
    %3368 = vmatprep.mubr.f32.mxu0 0.0
    %3369 = vmatmul.mubr.f32.gmra.mrb[0].mxu0 %v3249
    %v3370 = vpop.f32.mrb[0].mxu0
    %v3371 = vadd.f32 %v738, %v3370
    %v3372 = vpop.f32.mrb[0].mxu0
    %3373 = vmatprep.mubr.f32.mxu0 0.0
    %3374 = vmatmul.mubr.f32.gmra.mrb[0].mxu0 %v3252
    %v3375 = vpop.f32.mrb[0].mxu0
    %v3376 = vadd.f32 %v738, %v3375
    %v3377 = vpop.f32.mrb[0].mxu0
    %3378 = vmatprep.mubr.f32.mxu0 0.0
    %3379 = vmatmul.mubr.f32.gmra.mrb[0].mxu0 %v3255
    %v3380 = vpop.f32.mrb[0].mxu0
    %v3381 = vadd.f32 %v738, %v3380
    %v3382 = vpop.f32.mrb[0].mxu0
    %3383 = vmatprep.mubr.f32.mxu0 0.0
    %3384 = vmatmul.mubr.f32.gmra.mrb[0].mxu0 %v3258
    %v3385 = vpop.f32.mrb[0].mxu0
    %v3386 = vadd.f32 %v738, %v3385
    %v3387 = vpop.f32.mrb[0].mxu0
    %3388 = vmatprep.mubr.f32.mxu0 0.0
    %3389 = vmatmul.mubr.f32.gmra.mrb[0].mxu0 %v3261
    %v3390 = vpop.f32.mrb[0].mxu0
    %v3391 = vadd.f32 %v738, %v3390
    %v3392 = vpop.f32.mrb[0].mxu0
    %3393 = vmatprep.mubr.f32.mxu0 0.0
    %3394 = vmatmul.mubr.f32.gmra.mrb[0].mxu0 %v3264
    %v3395 = vpop.f32.mrb[0].mxu0
    %v3396 = vadd.f32 %v738, %v3395
    %v3397 = vpop.f32.mrb[0].mxu0
    %3398 = vmatprep.mubr.f32.mxu0 0.0
    %3399 = vmatmul.mubr.f32.gmra.mrb[0].mxu0 %v3267
    %v3400 = vpop.f32.mrb[0].mxu0
    %v3401 = vadd.f32 %v738, %v3400
    %v3402 = vpop.f32.mrb[0].mxu0
    %3403 = vmatprep.mubr.f32.mxu0 0.0
    %3404 = vmatmul.mubr.f32.gmra.mrb[0].mxu0 %v3270
    %v3405 = vpop.f32.mrb[0].mxu0
    %v3406 = vadd.f32 %v738, %v3405
    %v3407 = vpop.f32.mrb[0].mxu0
    %3408 = vmatprep.mubr.f32.mxu0 0.0
    %3409 = vmatmul.mubr.f32.gmra.mrb[0].mxu0 %v3273
    %v3410 = vpop.f32.mrb[0].mxu0
    %v3411 = vadd.f32 %v738, %v3410
    %v3412 = vpop.f32.mrb[0].mxu0
    %3413 = vmatprep.mubr.f32.mxu0 0.0
    %3414 = vmatmul.mubr.f32.gmra.mrb[0].mxu0 %v3276
    %v3415 = vpop.f32.mrb[0].mxu0
    %v3416 = vadd.f32 %v738, %v3415
    %v3417 = vpop.f32.mrb[0].mxu0
    %3418 = vmatprep.mubr.f32.mxu0 0.0
    %3419 = vmatmul.mubr.f32.gmra.mrb[0].mxu0 %v3279
    %v3420 = vpop.f32.mrb[0].mxu0
    %v3421 = vadd.f32 %v738, %v3420
    %v3422 = vpop.f32.mrb[0].mxu0
    %3423 = vmatprep.mubr.f32.mxu0 0.0
    %3424 = vmatmul.mubr.f32.gmra.mrb[0].mxu0 %v3282
    %v3425 = vpop.f32.mrb[0].mxu0
    %v3426 = vadd.f32 %v738, %v3425
    %v3427 = vpop.f32.mrb[0].mxu0
    %3428 = vmatprep.mubr.f32.mxu0 0.0
    %3429 = vmatmul.mubr.f32.gmra.mrb[0].mxu0 %v3285
    %v3430 = vpop.f32.mrb[0].mxu0
    %v3431 = vadd.f32 %v738, %v3430
    %v3432 = vpop.f32.mrb[0].mxu0
    %3433 = vmatprep.mubr.f32.mxu0 0.0
    %3434 = vmatmul.mubr.f32.gmra.mrb[0].mxu0 %v3288
    %v3435 = vpop.f32.mrb[0].mxu0
    %v3436 = vadd.f32 %v738, %v3435
    %v3437 = vpop.f32.mrb[0].mxu0
    %3438 = vdwg.mxu0
    %v3439 = vsel %vm91, %v3361, -inf
    %3440 = vmax.xlane.f32.xlu0 %v3439
    %v3441 = vpop.xlane.xlu0 %3440
    %v3442 = vsel %vm91, %v3366, -inf
    %3443 = vmax.xlane.f32.xlu0 %v3442
    %v3444 = vpop.xlane.xlu0 %3443
    %v3445 = vsel %vm91, %v3371, -inf
    %3446 = vmax.xlane.f32.xlu0 %v3445
    %v3447 = vpop.xlane.xlu0 %3446
    %v3448 = vsel %vm91, %v3376, -inf
    %3449 = vmax.xlane.f32.xlu0 %v3448
    %v3450 = vpop.xlane.xlu0 %3449
    %v3451 = vsel %vm91, %v3381, -inf
    %3452 = vmax.xlane.f32.xlu0 %v3451
    %v3453 = vpop.xlane.xlu0 %3452
    %v3454 = vsel %vm91, %v3386, -inf
    %3455 = vmax.xlane.f32.xlu0 %v3454
    %v3456 = vpop.xlane.xlu0 %3455
    %v3457 = vsel %vm91, %v3391, -inf
    %3458 = vmax.xlane.f32.xlu0 %v3457
    %v3459 = vpop.xlane.xlu0 %3458
    %v3460 = vsel %vm91, %v3396, -inf
    %3461 = vmax.xlane.f32.xlu0 %v3460
    %v3462 = vpop.xlane.xlu0 %3461
    %v3463 = vsel %vm91, %v3401, -inf
    %3464 = vmax.xlane.f32.xlu0 %v3463
    %v3465 = vpop.xlane.xlu0 %3464
    %v3466 = vsel %vm91, %v3406, -inf
    %3467 = vmax.xlane.f32.xlu0 %v3466
    %v3468 = vpop.xlane.xlu0 %3467
    %v3469 = vsel %vm91, %v3411, -inf
    %3470 = vmax.xlane.f32.xlu0 %v3469
    %v3471 = vpop.xlane.xlu0 %3470
    %v3472 = vsel %vm91, %v3416, -inf
    %3473 = vmax.xlane.f32.xlu0 %v3472
    %v3474 = vpop.xlane.xlu0 %3473
    %v3475 = vsel %vm91, %v3421, -inf
    %3476 = vmax.xlane.f32.xlu0 %v3475
    %v3477 = vpop.xlane.xlu0 %3476
    %v3478 = vsel %vm91, %v3426, -inf
    %3479 = vmax.xlane.f32.xlu0 %v3478
    %v3480 = vpop.xlane.xlu0 %3479
    %v3481 = vsel %vm91, %v3431, -inf
    %3482 = vmax.xlane.f32.xlu0 %v3481
    %v3483 = vpop.xlane.xlu0 %3482
    %v3484 = vsel %vm91, %v3436, -inf
    %3485 = vmax.xlane.f32.xlu0 %v3484
    %v3486 = vpop.xlane.xlu0 %3485
    %v3487 = vsub.f32 %v3361, %v3441
    %v3488 = vsub.f32 %v3366, %v3444
    %v3489 = vsub.f32 %v3371, %v3447
    %v3490 = vsub.f32 %v3376, %v3450
    %v3491 = vsub.f32 %v3381, %v3453
    %v3492 = vsub.f32 %v3386, %v3456
    %v3493 = vsub.f32 %v3391, %v3459
    %v3494 = vsub.f32 %v3396, %v3462
    %v3495 = vsub.f32 %v3401, %v3465
    %v3496 = vsub.f32 %v3406, %v3468
    %v3497 = vsub.f32 %v3411, %v3471
    %v3498 = vsub.f32 %v3416, %v3474
    %v3499 = vsub.f32 %v3421, %v3477
    %v3500 = vsub.f32 %v3426, %v3480
    %v3501 = vsub.f32 %v3431, %v3483
    %v3502 = vsub.f32 %v3436, %v3486
    %v3503 = vmul.f32 %v3487, 1.442695
    %v3504 = vpow.pop %v3503
    %v3505 = vmul.f32 %v3488, 1.442695
    %v3506 = vpow.pop %v3505
    %v3507 = vmul.f32 %v3489, 1.442695
    %v3508 = vpow.pop %v3507
    %v3509 = vmul.f32 %v3490, 1.442695
    %v3510 = vpow.pop %v3509
    %v3511 = vmul.f32 %v3491, 1.442695
    %v3512 = vpow.pop %v3511
    %v3513 = vmul.f32 %v3492, 1.442695
    %v3514 = vpow.pop %v3513
    %v3515 = vmul.f32 %v3493, 1.442695
    %v3516 = vpow.pop %v3515
    %v3517 = vmul.f32 %v3494, 1.442695
    %v3518 = vpow.pop %v3517
    %v3519 = vmul.f32 %v3495, 1.442695
    %v3520 = vpow.pop %v3519
    %v3521 = vmul.f32 %v3496, 1.442695
    %v3522 = vpow.pop %v3521
    %v3523 = vmul.f32 %v3497, 1.442695
    %v3524 = vpow.pop %v3523
    %v3525 = vmul.f32 %v3498, 1.442695
    %v3526 = vpow.pop %v3525
    %v3527 = vmul.f32 %v3499, 1.442695
    %v3528 = vpow.pop %v3527
    %v3529 = vmul.f32 %v3500, 1.442695
    %v3530 = vpow.pop %v3529
    %v3531 = vmul.f32 %v3501, 1.442695
    %v3532 = vpow.pop %v3531
    %v3533 = vmul.f32 %v3502, 1.442695
    %v3534 = vpow.pop %v3533
    %v3535 = vsel %vm91, %v3504, 0.0
    %3536 = vadd.xlane.f32.xlu0 %v3535
    %v3537 = vpop.xlane.xlu0 %3536
    %v3538 = vsel %vm91, %v3506, 0.0
    %3539 = vadd.xlane.f32.xlu0 %v3538
    %v3540 = vpop.xlane.xlu0 %3539
    %v3541 = vsel %vm91, %v3508, 0.0
    %3542 = vadd.xlane.f32.xlu0 %v3541
    %v3543 = vpop.xlane.xlu0 %3542
    %v3544 = vsel %vm91, %v3510, 0.0
    %3545 = vadd.xlane.f32.xlu0 %v3544
    %v3546 = vpop.xlane.xlu0 %3545
    %v3547 = vsel %vm91, %v3512, 0.0
    %3548 = vadd.xlane.f32.xlu0 %v3547
    %v3549 = vpop.xlane.xlu0 %3548
    %v3550 = vsel %vm91, %v3514, 0.0
    %3551 = vadd.xlane.f32.xlu0 %v3550
    %v3552 = vpop.xlane.xlu0 %3551
    %v3553 = vsel %vm91, %v3516, 0.0
    %3554 = vadd.xlane.f32.xlu0 %v3553
    %v3555 = vpop.xlane.xlu0 %3554
    %v3556 = vsel %vm91, %v3518, 0.0
    %3557 = vadd.xlane.f32.xlu0 %v3556
    %v3558 = vpop.xlane.xlu0 %3557
    %v3559 = vsel %vm91, %v3520, 0.0
    %3560 = vadd.xlane.f32.xlu0 %v3559
    %v3561 = vpop.xlane.xlu0 %3560
    %v3562 = vsel %vm91, %v3522, 0.0
    %3563 = vadd.xlane.f32.xlu0 %v3562
    %v3564 = vpop.xlane.xlu0 %3563
    %v3565 = vsel %vm91, %v3524, 0.0
    %3566 = vadd.xlane.f32.xlu0 %v3565
    %v3567 = vpop.xlane.xlu0 %3566
    %v3568 = vsel %vm91, %v3526, 0.0
    %3569 = vadd.xlane.f32.xlu0 %v3568
    %v3570 = vpop.xlane.xlu0 %3569
    %v3571 = vsel %vm91, %v3528, 0.0
    %3572 = vadd.xlane.f32.xlu0 %v3571
    %v3573 = vpop.xlane.xlu0 %3572
    %v3574 = vsel %vm91, %v3530, 0.0
    %3575 = vadd.xlane.f32.xlu0 %v3574
    %v3576 = vpop.xlane.xlu0 %3575
    %v3577 = vsel %vm91, %v3532, 0.0
    %3578 = vadd.xlane.f32.xlu0 %v3577
    %v3579 = vpop.xlane.xlu0 %3578
    %v3580 = vsel %vm91, %v3534, 0.0
    %3581 = vadd.xlane.f32.xlu0 %v3580
    %v3582 = vpop.xlane.xlu0 %3581
    %v3583 = vrcp.pop %v3537
    %v3584 = vrcp.pop %v3540
    %v3585 = vrcp.pop %v3543
    %v3586 = vrcp.pop %v3546
    %v3587 = vrcp.pop %v3549
    %v3588 = vrcp.pop %v3552
    %v3589 = vrcp.pop %v3555
    %v3590 = vrcp.pop %v3558
    %v3591 = vrcp.pop %v3561
    %v3592 = vrcp.pop %v3564
    %v3593 = vrcp.pop %v3567
    %v3594 = vrcp.pop %v3570
    %v3595 = vrcp.pop %v3573
    %v3596 = vrcp.pop %v3576
    %v3597 = vrcp.pop %v3579
    %v3598 = vrcp.pop %v3582
    %v3599 = vmul.f32 %v3504, %v3583
    %v3600 = vmul.f32 %v3506, %v3584
    %v3601 = vmul.f32 %v3508, %v3585
    %v3602 = vmul.f32 %v3510, %v3586
    %v3603 = vmul.f32 %v3512, %v3587
    %v3604 = vmul.f32 %v3514, %v3588
    %v3605 = vmul.f32 %v3516, %v3589
    %v3606 = vmul.f32 %v3518, %v3590
    %v3607 = vmul.f32 %v3520, %v3591
    %v3608 = vmul.f32 %v3522, %v3592
    %v3609 = vmul.f32 %v3524, %v3593
    %v3610 = vmul.f32 %v3526, %v3594
    %v3611 = vmul.f32 %v3528, %v3595
    %v3612 = vmul.f32 %v3530, %v3596
    %v3613 = vmul.f32 %v3532, %v3597
    %v3614 = vmul.f32 %v3534, %v3598
    %3615 = vrot.lane.b32.xlu0 %v442, 64
    %v3616 = vpop.permute.xlu0 %3615
    %3617 = vrot.lane.b32.xlu0 %v447, 64
    %v3618 = vpop.permute.xlu0 %3617
    %v3622 = vsel %vm91, %v3599, 0
    %v3625 = vsel %vm91, %v3600, 0
    %v3628 = vsel %vm91, %v3601, 0
    %v3631 = vsel %vm91, %v3602, 0
    %v3634 = vsel %vm91, %v3603, 0
    %v3637 = vsel %vm91, %v3604, 0
    %v3640 = vsel %vm91, %v3605, 0
    %v3643 = vsel %vm91, %v3606, 0
    %v3646 = vsel %vm91, %v3607, 0
    %v3649 = vsel %vm91, %v3608, 0
    %v3652 = vsel %vm91, %v3609, 0
    %v3655 = vsel %vm91, %v3610, 0
    %v3658 = vsel %vm91, %v3611, 0
    %v3661 = vsel %vm91, %v3612, 0
    %v3664 = vsel %vm91, %v3613, 0
    %v3667 = vsel %vm91, %v3614, 0
    %3669 = vmatprep.subr.mxu0 0.0
    %3670 = vmatpush1.msra.mxu0 %v3616
    %3671 = vmatprep.subr.mxu0 0.0
    %3672 = vmatpush1.msra.mxu0 %v3618
    %3673 = vmatprep.subr.mxu0 0.0
    %3674 = vmatpush1.msra.mxu0 0.0
    %3675 = vmatprep.subr.mxu0 0.0
    %3676 = vmatpush1.msra.mxu0 0.0
    %3677 = vmatprep.subr.mxu0 0.0
    %3678 = vmatpush1.msra.mxu0 0.0
    %3679 = vmatprep.subr.mxu0 0.0
    %3680 = vmatpush1.msra.mxu0 0.0
    %3681 = vmatprep.subr.mxu0 0.0
    %3682 = vmatpush1.msra.mxu0 0.0
    %3683 = vmatprep.subr.mxu0 0.0
    %3684 = vmatpush1.msra.mxu0 0.0
    %3685 = vmatprep.subr.mxu0 0.0
    %3686 = vmatpush1.msra.mxu0 0.0
    %3687 = vmatprep.subr.mxu0 0.0
    %3688 = vmatpush1.msra.mxu0 0.0
    %3689 = vmatprep.subr.mxu0 0.0
    %3690 = vmatpush1.msra.mxu0 0.0
    %3691 = vmatprep.subr.mxu0 0.0
    %3692 = vmatpush1.msra.mxu0 0.0
    %3693 = vmatprep.subr.mxu0 0.0
    %3694 = vmatpush1.msra.mxu0 0.0
    %3695 = vmatprep.subr.mxu0 0.0
    %3696 = vmatpush1.msra.mxu0 0.0
    %3697 = vmatprep.subr.mxu0 0.0
    %3698 = vmatpush1.msra.mxu0 0.0
    %3699 = vmatprep.subr.mxu0 0.0
    %3700 = vmatpush1.msra.mxu0 0.0
    %3701 = vmatprep.subr.mxu0 0.0
    %3702 = vmatpush1.msra.mxu0 0.0
    %3703 = vmatprep.subr.mxu0 0.0
    %3704 = vmatpush1.msra.mxu0 0.0
    %3705 = vmatprep.subr.mxu0 0.0
    %3706 = vmatpush1.msra.mxu0 0.0
    %3707 = vmatprep.subr.mxu0 0.0
    %3708 = vmatpush1.msra.mxu0 0.0
    %3709 = vmatprep.subr.mxu0 0.0
    %3710 = vmatpush1.msra.mxu0 0.0
    %3711 = vmatprep.subr.mxu0 0.0
    %3712 = vmatpush1.msra.mxu0 0.0
    %3713 = vmatprep.subr.mxu0 0.0
    %3714 = vmatpush1.msra.mxu0 0.0
    %3715 = vmatprep.subr.mxu0 0.0
    %3716 = vmatpush1.msra.mxu0 0.0
    %3717 = vmatprep.subr.mxu0 0.0
    %3718 = vmatpush1.msra.mxu0 0.0
    %3719 = vmatprep.subr.mxu0 0.0
    %3720 = vmatpush1.msra.mxu0 0.0
    %3721 = vmatprep.subr.mxu0 0.0
    %3722 = vmatpush1.msra.mxu0 0.0
    %3723 = vmatprep.subr.mxu0 0.0
    %3724 = vmatpush1.msra.mxu0 0.0
    %3725 = vmatprep.subr.mxu0 0.0
    %3726 = vmatpush1.msra.mxu0 0.0
    %3727 = vmatprep.subr.mxu0 0.0
    %3728 = vmatpush1.msra.mxu0 0.0
    %3729 = vmatprep.subr.mxu0 0.0
    %3730 = vmatpush1.msra.mxu0 0.0
    %3731 = vmatprep.subr.mxu0 0.0
    %3732 = vmatpush1.msra.mxu0 0.0
    %3733 = vmatprep.mubr.f32.mxu0 0.0
    %3734 = vmatmul.mubr.f32.gmra.mrb[0].mxu0 %v3622
    %v3735 = vpop.f32.mrb[0].mxu0
    %v3736 = vadd.f32 0.0, %v3735
    %v3737 = vpop.f32.mrb[0].mxu0
    %3738 = vmatprep.mubr.f32.mxu0 0.0
    %3739 = vmatmul.mubr.f32.gmra.mrb[0].mxu0 %v3625
    %v3740 = vpop.f32.mrb[0].mxu0
    %v3741 = vadd.f32 0.0, %v3740
    %v3742 = vpop.f32.mrb[0].mxu0
    %3743 = vmatprep.mubr.f32.mxu0 0.0
    %3744 = vmatmul.mubr.f32.gmra.mrb[0].mxu0 %v3628
    %v3745 = vpop.f32.mrb[0].mxu0
    %v3746 = vadd.f32 0.0, %v3745
    %v3747 = vpop.f32.mrb[0].mxu0
    %3748 = vmatprep.mubr.f32.mxu0 0.0
    %3749 = vmatmul.mubr.f32.gmra.mrb[0].mxu0 %v3631
    %v3750 = vpop.f32.mrb[0].mxu0
    %v3751 = vadd.f32 0.0, %v3750
    %v3752 = vpop.f32.mrb[0].mxu0
    %3753 = vmatprep.mubr.f32.mxu0 0.0
    %3754 = vmatmul.mubr.f32.gmra.mrb[0].mxu0 %v3634
    %v3755 = vpop.f32.mrb[0].mxu0
    %v3756 = vadd.f32 0.0, %v3755
    %v3757 = vpop.f32.mrb[0].mxu0
    %3758 = vmatprep.mubr.f32.mxu0 0.0
    %3759 = vmatmul.mubr.f32.gmra.mrb[0].mxu0 %v3637
    %v3760 = vpop.f32.mrb[0].mxu0
    %v3761 = vadd.f32 0.0, %v3760
    %v3762 = vpop.f32.mrb[0].mxu0
    %3763 = vmatprep.mubr.f32.mxu0 0.0
    %3764 = vmatmul.mubr.f32.gmra.mrb[0].mxu0 %v3640
    %v3765 = vpop.f32.mrb[0].mxu0
    %v3766 = vadd.f32 0.0, %v3765
    %v3767 = vpop.f32.mrb[0].mxu0
    %3768 = vmatprep.mubr.f32.mxu0 0.0
    %3769 = vmatmul.mubr.f32.gmra.mrb[0].mxu0 %v3643
    %v3770 = vpop.f32.mrb[0].mxu0
    %v3771 = vadd.f32 0.0, %v3770
    %v3772 = vpop.f32.mrb[0].mxu0
    %3773 = vmatprep.mubr.f32.mxu0 0.0
    %3774 = vmatmul.mubr.f32.gmra.mrb[0].mxu0 %v3646
    %v3775 = vpop.f32.mrb[0].mxu0
    %v3776 = vadd.f32 0.0, %v3775
    %v3777 = vpop.f32.mrb[0].mxu0
    %3778 = vmatprep.mubr.f32.mxu0 0.0
    %3779 = vmatmul.mubr.f32.gmra.mrb[0].mxu0 %v3649
    %v3780 = vpop.f32.mrb[0].mxu0
    %v3781 = vadd.f32 0.0, %v3780
    %v3782 = vpop.f32.mrb[0].mxu0
    %3783 = vmatprep.mubr.f32.mxu0 0.0
    %3784 = vmatmul.mubr.f32.gmra.mrb[0].mxu0 %v3652
    %v3785 = vpop.f32.mrb[0].mxu0
    %v3786 = vadd.f32 0.0, %v3785
    %v3787 = vpop.f32.mrb[0].mxu0
    %3788 = vmatprep.mubr.f32.mxu0 0.0
    %3789 = vmatmul.mubr.f32.gmra.mrb[0].mxu0 %v3655
    %v3790 = vpop.f32.mrb[0].mxu0
    %v3791 = vadd.f32 0.0, %v3790
    %v3792 = vpop.f32.mrb[0].mxu0
    %3793 = vmatprep.mubr.f32.mxu0 0.0
    %3794 = vmatmul.mubr.f32.gmra.mrb[0].mxu0 %v3658
    %v3795 = vpop.f32.mrb[0].mxu0
    %v3796 = vadd.f32 0.0, %v3795
    %v3797 = vpop.f32.mrb[0].mxu0
    %3798 = vmatprep.mubr.f32.mxu0 0.0
    %3799 = vmatmul.mubr.f32.gmra.mrb[0].mxu0 %v3661
    %v3800 = vpop.f32.mrb[0].mxu0
    %v3801 = vadd.f32 0.0, %v3800
    %v3802 = vpop.f32.mrb[0].mxu0
    %3803 = vmatprep.mubr.f32.mxu0 0.0
    %3804 = vmatmul.mubr.f32.gmra.mrb[0].mxu0 %v3664
    %v3805 = vpop.f32.mrb[0].mxu0
    %v3806 = vadd.f32 0.0, %v3805
    %v3807 = vpop.f32.mrb[0].mxu0
    %3808 = vmatprep.mubr.f32.mxu0 0.0
    %3809 = vmatmul.mubr.f32.gmra.mrb[0].mxu0 %v3667
    %v3810 = vpop.f32.mrb[0].mxu0
    %v3811 = vadd.f32 0.0, %v3810
    %v3812 = vpop.f32.mrb[0].mxu0
    %3813 = vdwg.mxu0
    %v3814 = vmul.f32 %v3736, %v508
    %v3815 = vmul.f32 %v3741, %v509
    %v3816 = vmul.f32 %v3746, %v510
    %v3817 = vmul.f32 %v3751, %v511
    %v3818 = vmul.f32 %v3756, %v512
    %v3819 = vmul.f32 %v3761, %v513
    %v3820 = vmul.f32 %v3766, %v514
    %v3821 = vmul.f32 %v3771, %v515
    %v3822 = vmul.f32 %v3776, %v516
    %v3823 = vmul.f32 %v3781, %v517
    %v3824 = vmul.f32 %v3786, %v518
    %v3825 = vmul.f32 %v3791, %v519
    %v3826 = vmul.f32 %v3796, %v520
    %v3827 = vmul.f32 %v3801, %v521
    %v3828 = vmul.f32 %v3806, %v522
    %v3829 = vmul.f32 %v3811, %v523
    %3830 = vmatprep.subr.mxu0 0.0
    %3831 = vmatpush1.msra.mxu0 %v3814
    %3832 = vmatprep.subr.mxu0 0.0
    %3833 = vmatpush1.msra.mxu0 %v3815
    %3834 = vmatprep.subr.mxu0 0.0
    %3835 = vmatpush1.msra.mxu0 %v3816
    %3836 = vmatprep.subr.mxu0 0.0
    %3837 = vmatpush1.msra.mxu0 %v3817
    %3838 = vmatprep.subr.mxu0 0.0
    %3839 = vmatpush1.msra.mxu0 %v3818
    %3840 = vmatprep.subr.mxu0 0.0
    %3841 = vmatpush1.msra.mxu0 %v3819
    %3842 = vmatprep.subr.mxu0 0.0
    %3843 = vmatpush1.msra.mxu0 %v3820
    %3844 = vmatprep.subr.mxu0 0.0
    %3845 = vmatpush1.msra.mxu0 %v3821
    %3846 = vmatprep.subr.mxu0 0.0
    %3847 = vmatpush1.msra.mxu0 %v3822
    %3848 = vmatprep.subr.mxu0 0.0
    %3849 = vmatpush1.msra.mxu0 %v3823
    %3850 = vmatprep.subr.mxu0 0.0
    %3851 = vmatpush1.msra.mxu0 %v3824
    %3852 = vmatprep.subr.mxu0 0.0
    %3853 = vmatpush1.msra.mxu0 %v3825
    %3854 = vmatprep.subr.mxu0 0.0
    %3855 = vmatpush1.msra.mxu0 %v3826
    %3856 = vmatprep.subr.mxu0 0.0
    %3857 = vmatpush1.msra.mxu0 %v3827
    %3858 = vmatprep.subr.mxu0 0.0
    %3859 = vmatpush1.msra.mxu0 %v3828
    %3860 = vmatprep.subr.mxu0 0.0
    %3861 = vmatpush1.msra.mxu0 %v3829
    %3862 = vmatprep.subr.mxu0 0.0
    %3863 = vmatpush1.msra.mxu0 0.0
    %3864 = vmatprep.subr.mxu0 0.0
    %3865 = vmatpush1.msra.mxu0 0.0
    %3866 = vmatprep.subr.mxu0 0.0
    %3867 = vmatpush1.msra.mxu0 0.0
    %3868 = vmatprep.subr.mxu0 0.0
    %3869 = vmatpush1.msra.mxu0 0.0
    %3870 = vmatprep.subr.mxu0 0.0
    %3871 = vmatpush1.msra.mxu0 0.0
    %3872 = vmatprep.subr.mxu0 0.0
    %3873 = vmatpush1.msra.mxu0 0.0
    %3874 = vmatprep.subr.mxu0 0.0
    %3875 = vmatpush1.msra.mxu0 0.0
    %3876 = vmatprep.subr.mxu0 0.0
    %3877 = vmatpush1.msra.mxu0 0.0
    %3878 = vmatprep.subr.mxu0 0.0
    %3879 = vmatpush1.msra.mxu0 0.0
    %3880 = vmatprep.subr.mxu0 0.0
    %3881 = vmatpush1.msra.mxu0 0.0
    %3882 = vmatprep.subr.mxu0 0.0
    %3883 = vmatpush1.msra.mxu0 0.0
    %3884 = vmatprep.subr.mxu0 0.0
    %3885 = vmatpush1.msra.mxu0 0.0
    %3886 = vmatprep.subr.mxu0 0.0
    %3887 = vmatpush1.msra.mxu0 0.0
    %3888 = vmatprep.subr.mxu0 0.0
    %3889 = vmatpush1.msra.mxu0 0.0
    %3890 = vmatprep.subr.mxu0 0.0
    %3891 = vmatpush1.msra.mxu0 0.0
    %3892 = vmatprep.subr.mxu0 0.0
    %3893 = vmatpush1.msra.mxu0 0.0
    %3894 = vmatprep.mubr.f32.mxu0 0.0
    %3895 = vmatmul.mubr.f32.gmra.mrb[0].mxu0 %v506
    %v3896 = vpop.f32.mrb[0].mxu0
    %v3897 = vadd.f32 0.0, %v3896
    %v3898 = vpop.f32.mrb[0].mxu0
    %3899 = vmatprep.mubr.f32.mxu0 0.0
    %3900 = vmatmul.mubr.f32.gmra.mrb[0].mxu0 %v507
    %v3901 = vpop.f32.mrb[0].mxu0
    %v3902 = vadd.f32 0.0, %v3901
    %v3903 = vpop.f32.mrb[0].mxu0
    %3904 = vdwg.mxu0
    %3905 = vst.msk [vmem:[#allocation2 + $0x30] sm:$0xff] %vm296, %v3897
    %3906 = vst.msk [vmem:[#allocation2 + $0x38] sm:$0xff] %vm296, %v3902
    %3907 = vmatprep.subr.mxu0 0.0
    %3908 = vmatpush1.msra.mxu0 %v452
    %3909 = vmatprep.subr.mxu0 0.0
    %3910 = vmatpush1.msra.mxu0 %v457
    %3911 = vmatprep.subr.mxu0 0.0
    %3912 = vmatpush1.msra.mxu0 0.0
    %3913 = vmatprep.subr.mxu0 0.0
    %3914 = vmatpush1.msra.mxu0 0.0
    %3915 = vmatprep.subr.mxu0 0.0
    %3916 = vmatpush1.msra.mxu0 0.0
    %3917 = vmatprep.subr.mxu0 0.0
    %3918 = vmatpush1.msra.mxu0 0.0
    %3919 = vmatprep.subr.mxu0 0.0
    %3920 = vmatpush1.msra.mxu0 0.0
    %3921 = vmatprep.subr.mxu0 0.0
    %3922 = vmatpush1.msra.mxu0 0.0
    %3923 = vmatprep.subr.mxu0 0.0
    %3924 = vmatpush1.msra.mxu0 0.0
    %3925 = vmatprep.subr.mxu0 0.0
    %3926 = vmatpush1.msra.mxu0 0.0
    %3927 = vmatprep.subr.mxu0 0.0
    %3928 = vmatpush1.msra.mxu0 0.0
    %3929 = vmatprep.subr.mxu0 0.0
    %3930 = vmatpush1.msra.mxu0 0.0
    %3931 = vmatprep.subr.mxu0 0.0
    %3932 = vmatpush1.msra.mxu0 0.0
    %3933 = vmatprep.subr.mxu0 0.0
    %3934 = vmatpush1.msra.mxu0 0.0
    %3935 = vmatprep.subr.mxu0 0.0
    %3936 = vmatpush1.msra.mxu0 0.0
    %3937 = vmatprep.subr.mxu0 0.0
    %3938 = vmatpush1.msra.mxu0 0.0
    %3939 = vmatprep.subr.mxu0 0.0
    %3940 = vmatpush1.msra.mxu0 0.0
    %3941 = vmatprep.subr.mxu0 0.0
    %3942 = vmatpush1.msra.mxu0 0.0
    %3943 = vmatprep.subr.mxu0 0.0
    %3944 = vmatpush1.msra.mxu0 0.0
    %3945 = vmatprep.subr.mxu0 0.0
    %3946 = vmatpush1.msra.mxu0 0.0
    %3947 = vmatprep.subr.mxu0 0.0
    %3948 = vmatpush1.msra.mxu0 0.0
    %3949 = vmatprep.subr.mxu0 0.0
    %3950 = vmatpush1.msra.mxu0 0.0
    %3951 = vmatprep.subr.mxu0 0.0
    %3952 = vmatpush1.msra.mxu0 0.0
    %3953 = vmatprep.subr.mxu0 0.0
    %3954 = vmatpush1.msra.mxu0 0.0
    %3955 = vmatprep.subr.mxu0 0.0
    %3956 = vmatpush1.msra.mxu0 0.0
    %3957 = vmatprep.subr.mxu0 0.0
    %3958 = vmatpush1.msra.mxu0 0.0
    %3959 = vmatprep.subr.mxu0 0.0
    %3960 = vmatpush1.msra.mxu0 0.0
    %3961 = vmatprep.subr.mxu0 0.0
    %3962 = vmatpush1.msra.mxu0 0.0
    %3963 = vmatprep.subr.mxu0 0.0
    %3964 = vmatpush1.msra.mxu0 0.0
    %3965 = vmatprep.subr.mxu0 0.0
    %3966 = vmatpush1.msra.mxu0 0.0
    %3967 = vmatprep.subr.mxu0 0.0
    %3968 = vmatpush1.msra.mxu0 0.0
    %3969 = vmatprep.subr.mxu0 0.0
    %3970 = vmatpush1.msra.mxu0 0.0
    %3971 = vmatprep.mubr.f32.mxu0 0.0
    %3972 = vmatmul.mubr.f32.gmra.mrb[0].mxu0 %v526
    %v3973 = vpop.f32.mrb[0].mxu0
    %v3974 = vadd.f32 0.0, %v3973
    %v3975 = vpop.f32.mrb[0].mxu0
    %3976 = vmatprep.mubr.f32.mxu0 0.0
    %3977 = vmatmul.mubr.f32.gmra.mrb[0].mxu0 %v529
    %v3978 = vpop.f32.mrb[0].mxu0
    %v3979 = vadd.f32 0.0, %v3978
    %v3980 = vpop.f32.mrb[0].mxu0
    %3981 = vmatprep.mubr.f32.mxu0 0.0
    %3982 = vmatmul.mubr.f32.gmra.mrb[0].mxu0 %v532
    %v3983 = vpop.f32.mrb[0].mxu0
    %v3984 = vadd.f32 0.0, %v3983
    %v3985 = vpop.f32.mrb[0].mxu0
    %3986 = vmatprep.mubr.f32.mxu0 0.0
    %3987 = vmatmul.mubr.f32.gmra.mrb[0].mxu0 %v535
    %v3988 = vpop.f32.mrb[0].mxu0
    %v3989 = vadd.f32 0.0, %v3988
    %v3990 = vpop.f32.mrb[0].mxu0
    %3991 = vmatprep.mubr.f32.mxu0 0.0
    %3992 = vmatmul.mubr.f32.gmra.mrb[0].mxu0 %v538
    %v3993 = vpop.f32.mrb[0].mxu0
    %v3994 = vadd.f32 0.0, %v3993
    %v3995 = vpop.f32.mrb[0].mxu0
    %3996 = vmatprep.mubr.f32.mxu0 0.0
    %3997 = vmatmul.mubr.f32.gmra.mrb[0].mxu0 %v541
    %v3998 = vpop.f32.mrb[0].mxu0
    %v3999 = vadd.f32 0.0, %v3998
    %v4000 = vpop.f32.mrb[0].mxu0
    %4001 = vmatprep.mubr.f32.mxu0 0.0
    %4002 = vmatmul.mubr.f32.gmra.mrb[0].mxu0 %v544
    %v4003 = vpop.f32.mrb[0].mxu0
    %v4004 = vadd.f32 0.0, %v4003
    %v4005 = vpop.f32.mrb[0].mxu0
    %4006 = vmatprep.mubr.f32.mxu0 0.0
    %4007 = vmatmul.mubr.f32.gmra.mrb[0].mxu0 %v547
    %v4008 = vpop.f32.mrb[0].mxu0
    %v4009 = vadd.f32 0.0, %v4008
    %v4010 = vpop.f32.mrb[0].mxu0
    %4011 = vmatprep.mubr.f32.mxu0 0.0
    %4012 = vmatmul.mubr.f32.gmra.mrb[0].mxu0 %v550
    %v4013 = vpop.f32.mrb[0].mxu0
    %v4014 = vadd.f32 0.0, %v4013
    %v4015 = vpop.f32.mrb[0].mxu0
    %4016 = vmatprep.mubr.f32.mxu0 0.0
    %4017 = vmatmul.mubr.f32.gmra.mrb[0].mxu0 %v553
    %v4018 = vpop.f32.mrb[0].mxu0
    %v4019 = vadd.f32 0.0, %v4018
    %v4020 = vpop.f32.mrb[0].mxu0
    %4021 = vmatprep.mubr.f32.mxu0 0.0
    %4022 = vmatmul.mubr.f32.gmra.mrb[0].mxu0 %v556
    %v4023 = vpop.f32.mrb[0].mxu0
    %v4024 = vadd.f32 0.0, %v4023
    %v4025 = vpop.f32.mrb[0].mxu0
    %4026 = vmatprep.mubr.f32.mxu0 0.0
    %4027 = vmatmul.mubr.f32.gmra.mrb[0].mxu0 %v559
    %v4028 = vpop.f32.mrb[0].mxu0
    %v4029 = vadd.f32 0.0, %v4028
    %v4030 = vpop.f32.mrb[0].mxu0
    %4031 = vmatprep.mubr.f32.mxu0 0.0
    %4032 = vmatmul.mubr.f32.gmra.mrb[0].mxu0 %v562
    %v4033 = vpop.f32.mrb[0].mxu0
    %v4034 = vadd.f32 0.0, %v4033
    %v4035 = vpop.f32.mrb[0].mxu0
    %4036 = vmatprep.mubr.f32.mxu0 0.0
    %4037 = vmatmul.mubr.f32.gmra.mrb[0].mxu0 %v565
    %v4038 = vpop.f32.mrb[0].mxu0
    %v4039 = vadd.f32 0.0, %v4038
    %v4040 = vpop.f32.mrb[0].mxu0
    %4041 = vmatprep.mubr.f32.mxu0 0.0
    %4042 = vmatmul.mubr.f32.gmra.mrb[0].mxu0 %v568
    %v4043 = vpop.f32.mrb[0].mxu0
    %v4044 = vadd.f32 0.0, %v4043
    %v4045 = vpop.f32.mrb[0].mxu0
    %4046 = vmatprep.mubr.f32.mxu0 0.0
    %4047 = vmatmul.mubr.f32.gmra.mrb[0].mxu0 %v571
    %v4048 = vpop.f32.mrb[0].mxu0
    %v4049 = vadd.f32 0.0, %v4048
    %v4050 = vpop.f32.mrb[0].mxu0
    %4051 = vdwg.mxu0
    %v4052 = vmul.f32 %v3974, %v508
    %v4053 = vmul.f32 %v3979, %v509
    %v4054 = vmul.f32 %v3984, %v510
    %v4055 = vmul.f32 %v3989, %v511
    %v4056 = vmul.f32 %v3994, %v512
    %v4057 = vmul.f32 %v3999, %v513
    %v4058 = vmul.f32 %v4004, %v514
    %v4059 = vmul.f32 %v4009, %v515
    %v4060 = vmul.f32 %v4014, %v516
    %v4061 = vmul.f32 %v4019, %v517
    %v4062 = vmul.f32 %v4024, %v518
    %v4063 = vmul.f32 %v4029, %v519
    %v4064 = vmul.f32 %v4034, %v520
    %v4065 = vmul.f32 %v4039, %v521
    %v4066 = vmul.f32 %v4044, %v522
    %v4067 = vmul.f32 %v4049, %v523
    %4070 = vrot.lane.b32.xlu0 %v452, 96
    %v4071 = vpop.permute.xlu0 %4070
    %4072 = vrot.lane.b32.xlu0 %v457, 96
    %v4073 = vpop.permute.xlu0 %4072
    %v4075 = vsel %vm296, %v4052, 0
    %v4078 = vsel %vm296, %v4053, 0
    %v4081 = vsel %vm296, %v4054, 0
    %v4084 = vsel %vm296, %v4055, 0
    %v4087 = vsel %vm296, %v4056, 0
    %v4090 = vsel %vm296, %v4057, 0
    %v4093 = vsel %vm296, %v4058, 0
    %v4096 = vsel %vm296, %v4059, 0
    %v4099 = vsel %vm296, %v4060, 0
    %v4102 = vsel %vm296, %v4061, 0
    %v4105 = vsel %vm296, %v4062, 0
    %v4108 = vsel %vm296, %v4063, 0
    %v4111 = vsel %vm296, %v4064, 0
    %v4114 = vsel %vm296, %v4065, 0
    %v4117 = vsel %vm296, %v4066, 0
    %v4120 = vsel %vm296, %v4067, 0
    %v4122 = vsel %vm296, %v4071, 0
    %v4124 = vsel %vm296, %v4073, 0
    %4126 = vmatprep.subr.mxu0 0.0
    %4127 = vmatpush1.xpose.msra.mxu0 %v4122
    %4128 = vmatprep.subr.mxu0 0.0
    %4129 = vmatpush1.xpose.msra.mxu0 %v4124
    %4130 = vmatprep.subr.mxu0 0.0
    %4131 = vmatpush1.xpose.msra.mxu0 0.0
    %4132 = vmatprep.subr.mxu0 0.0
    %4133 = vmatpush1.xpose.msra.mxu0 0.0
    %4134 = vmatprep.subr.mxu0 0.0
    %4135 = vmatpush1.xpose.msra.mxu0 0.0
    %4136 = vmatprep.subr.mxu0 0.0
    %4137 = vmatpush1.xpose.msra.mxu0 0.0
    %4138 = vmatprep.subr.mxu0 0.0
    %4139 = vmatpush1.xpose.msra.mxu0 0.0
    %4140 = vmatprep.subr.mxu0 0.0
    %4141 = vmatpush1.xpose.msra.mxu0 0.0
    %4142 = vmatprep.subr.mxu0 0.0
    %4143 = vmatpush1.xpose.msra.mxu0 0.0
    %4144 = vmatprep.subr.mxu0 0.0
    %4145 = vmatpush1.xpose.msra.mxu0 0.0
    %4146 = vmatprep.subr.mxu0 0.0
    %4147 = vmatpush1.xpose.msra.mxu0 0.0
    %4148 = vmatprep.subr.mxu0 0.0
    %4149 = vmatpush1.xpose.msra.mxu0 0.0
    %4150 = vmatprep.subr.mxu0 0.0
    %4151 = vmatpush1.xpose.msra.mxu0 0.0
    %4152 = vmatprep.subr.mxu0 0.0
    %4153 = vmatpush1.xpose.msra.mxu0 0.0
    %4154 = vmatprep.subr.mxu0 0.0
    %4155 = vmatpush1.xpose.msra.mxu0 0.0
    %4156 = vmatprep.subr.mxu0 0.0
    %4157 = vmatpush1.xpose.msra.mxu0 0.0
    %4158 = vmatprep.subr.mxu0 0.0
    %4159 = vmatpush1.xpose.msra.mxu0 0.0
    %4160 = vmatprep.subr.mxu0 0.0
    %4161 = vmatpush1.xpose.msra.mxu0 0.0
    %4162 = vmatprep.subr.mxu0 0.0
    %4163 = vmatpush1.xpose.msra.mxu0 0.0
    %4164 = vmatprep.subr.mxu0 0.0
    %4165 = vmatpush1.xpose.msra.mxu0 0.0
    %4166 = vmatprep.subr.mxu0 0.0
    %4167 = vmatpush1.xpose.msra.mxu0 0.0
    %4168 = vmatprep.subr.mxu0 0.0
    %4169 = vmatpush1.xpose.msra.mxu0 0.0
    %4170 = vmatprep.subr.mxu0 0.0
    %4171 = vmatpush1.xpose.msra.mxu0 0.0
    %4172 = vmatprep.subr.mxu0 0.0
    %4173 = vmatpush1.xpose.msra.mxu0 0.0
    %4174 = vmatprep.subr.mxu0 0.0
    %4175 = vmatpush1.xpose.msra.mxu0 0.0
    %4176 = vmatprep.subr.mxu0 0.0
    %4177 = vmatpush1.xpose.msra.mxu0 0.0
    %4178 = vmatprep.subr.mxu0 0.0
    %4179 = vmatpush1.xpose.msra.mxu0 0.0
    %4180 = vmatprep.subr.mxu0 0.0
    %4181 = vmatpush1.xpose.msra.mxu0 0.0
    %4182 = vmatprep.subr.mxu0 0.0
    %4183 = vmatpush1.xpose.msra.mxu0 0.0
    %4184 = vmatprep.subr.mxu0 0.0
    %4185 = vmatpush1.xpose.msra.mxu0 0.0
    %4186 = vmatprep.subr.mxu0 0.0
    %4187 = vmatpush1.xpose.msra.mxu0 0.0
    %4188 = vmatprep.subr.mxu0 0.0
    %4189 = vmatpush1.xpose.msra.mxu0 0.0
    %4190 = vmatprep.mubr.f32.mxu0 0.0
    %4191 = vmatmul.mubr.f32.gmra.mrb[0].mxu0 %v4075
    %v4192 = vpop.f32.mrb[0].mxu0
    %v4193 = vadd.f32 %v738, %v4192
    %v4194 = vpop.f32.mrb[0].mxu0
    %4195 = vmatprep.mubr.f32.mxu0 0.0
    %4196 = vmatmul.mubr.f32.gmra.mrb[0].mxu0 %v4078
    %v4197 = vpop.f32.mrb[0].mxu0
    %v4198 = vadd.f32 %v738, %v4197
    %v4199 = vpop.f32.mrb[0].mxu0
    %4200 = vmatprep.mubr.f32.mxu0 0.0
    %4201 = vmatmul.mubr.f32.gmra.mrb[0].mxu0 %v4081
    %v4202 = vpop.f32.mrb[0].mxu0
    %v4203 = vadd.f32 %v738, %v4202
    %v4204 = vpop.f32.mrb[0].mxu0
    %4205 = vmatprep.mubr.f32.mxu0 0.0
    %4206 = vmatmul.mubr.f32.gmra.mrb[0].mxu0 %v4084
    %v4207 = vpop.f32.mrb[0].mxu0
    %v4208 = vadd.f32 %v738, %v4207
    %v4209 = vpop.f32.mrb[0].mxu0
    %4210 = vmatprep.mubr.f32.mxu0 0.0
    %4211 = vmatmul.mubr.f32.gmra.mrb[0].mxu0 %v4087
    %v4212 = vpop.f32.mrb[0].mxu0
    %v4213 = vadd.f32 %v738, %v4212
    %v4214 = vpop.f32.mrb[0].mxu0
    %4215 = vmatprep.mubr.f32.mxu0 0.0
    %4216 = vmatmul.mubr.f32.gmra.mrb[0].mxu0 %v4090
    %v4217 = vpop.f32.mrb[0].mxu0
    %v4218 = vadd.f32 %v738, %v4217
    %v4219 = vpop.f32.mrb[0].mxu0
    %4220 = vmatprep.mubr.f32.mxu0 0.0
    %4221 = vmatmul.mubr.f32.gmra.mrb[0].mxu0 %v4093
    %v4222 = vpop.f32.mrb[0].mxu0
    %v4223 = vadd.f32 %v738, %v4222
    %v4224 = vpop.f32.mrb[0].mxu0
    %4225 = vmatprep.mubr.f32.mxu0 0.0
    %4226 = vmatmul.mubr.f32.gmra.mrb[0].mxu0 %v4096
    %v4227 = vpop.f32.mrb[0].mxu0
    %v4228 = vadd.f32 %v738, %v4227
    %v4229 = vpop.f32.mrb[0].mxu0
    %4230 = vmatprep.mubr.f32.mxu0 0.0
    %4231 = vmatmul.mubr.f32.gmra.mrb[0].mxu0 %v4099
    %v4232 = vpop.f32.mrb[0].mxu0
    %v4233 = vadd.f32 %v738, %v4232
    %v4234 = vpop.f32.mrb[0].mxu0
    %4235 = vmatprep.mubr.f32.mxu0 0.0
    %4236 = vmatmul.mubr.f32.gmra.mrb[0].mxu0 %v4102
    %v4237 = vpop.f32.mrb[0].mxu0
    %v4238 = vadd.f32 %v738, %v4237
    %v4239 = vpop.f32.mrb[0].mxu0
    %4240 = vmatprep.mubr.f32.mxu0 0.0
    %4241 = vmatmul.mubr.f32.gmra.mrb[0].mxu0 %v4105
    %v4242 = vpop.f32.mrb[0].mxu0
    %v4243 = vadd.f32 %v738, %v4242
    %v4244 = vpop.f32.mrb[0].mxu0
    %4245 = vmatprep.mubr.f32.mxu0 0.0
    %4246 = vmatmul.mubr.f32.gmra.mrb[0].mxu0 %v4108
    %v4247 = vpop.f32.mrb[0].mxu0
    %v4248 = vadd.f32 %v738, %v4247
    %v4249 = vpop.f32.mrb[0].mxu0
    %4250 = vmatprep.mubr.f32.mxu0 0.0
    %4251 = vmatmul.mubr.f32.gmra.mrb[0].mxu0 %v4111
    %v4252 = vpop.f32.mrb[0].mxu0
    %v4253 = vadd.f32 %v738, %v4252
    %v4254 = vpop.f32.mrb[0].mxu0
    %4255 = vmatprep.mubr.f32.mxu0 0.0
    %4256 = vmatmul.mubr.f32.gmra.mrb[0].mxu0 %v4114
    %v4257 = vpop.f32.mrb[0].mxu0
    %v4258 = vadd.f32 %v738, %v4257
    %v4259 = vpop.f32.mrb[0].mxu0
    %4260 = vmatprep.mubr.f32.mxu0 0.0
    %4261 = vmatmul.mubr.f32.gmra.mrb[0].mxu0 %v4117
    %v4262 = vpop.f32.mrb[0].mxu0
    %v4263 = vadd.f32 %v738, %v4262
    %v4264 = vpop.f32.mrb[0].mxu0
    %4265 = vmatprep.mubr.f32.mxu0 0.0
    %4266 = vmatmul.mubr.f32.gmra.mrb[0].mxu0 %v4120
    %v4267 = vpop.f32.mrb[0].mxu0
    %v4268 = vadd.f32 %v738, %v4267
    %v4269 = vpop.f32.mrb[0].mxu0
    %4270 = vdwg.mxu0
    %v4271 = vsel %vm91, %v4193, -inf
    %4272 = vmax.xlane.f32.xlu0 %v4271
    %v4273 = vpop.xlane.xlu0 %4272
    %v4274 = vsel %vm91, %v4198, -inf
    %4275 = vmax.xlane.f32.xlu0 %v4274
    %v4276 = vpop.xlane.xlu0 %4275
    %v4277 = vsel %vm91, %v4203, -inf
    %4278 = vmax.xlane.f32.xlu0 %v4277
    %v4279 = vpop.xlane.xlu0 %4278
    %v4280 = vsel %vm91, %v4208, -inf
    %4281 = vmax.xlane.f32.xlu0 %v4280
    %v4282 = vpop.xlane.xlu0 %4281
    %v4283 = vsel %vm91, %v4213, -inf
    %4284 = vmax.xlane.f32.xlu0 %v4283
    %v4285 = vpop.xlane.xlu0 %4284
    %v4286 = vsel %vm91, %v4218, -inf
    %4287 = vmax.xlane.f32.xlu0 %v4286
    %v4288 = vpop.xlane.xlu0 %4287
    %v4289 = vsel %vm91, %v4223, -inf
    %4290 = vmax.xlane.f32.xlu0 %v4289
    %v4291 = vpop.xlane.xlu0 %4290
    %v4292 = vsel %vm91, %v4228, -inf
    %4293 = vmax.xlane.f32.xlu0 %v4292
    %v4294 = vpop.xlane.xlu0 %4293
    %v4295 = vsel %vm91, %v4233, -inf
    %4296 = vmax.xlane.f32.xlu0 %v4295
    %v4297 = vpop.xlane.xlu0 %4296
    %v4298 = vsel %vm91, %v4238, -inf
    %4299 = vmax.xlane.f32.xlu0 %v4298
    %v4300 = vpop.xlane.xlu0 %4299
    %v4301 = vsel %vm91, %v4243, -inf
    %4302 = vmax.xlane.f32.xlu0 %v4301
    %v4303 = vpop.xlane.xlu0 %4302
    %v4304 = vsel %vm91, %v4248, -inf
    %4305 = vmax.xlane.f32.xlu0 %v4304
    %v4306 = vpop.xlane.xlu0 %4305
    %v4307 = vsel %vm91, %v4253, -inf
    %4308 = vmax.xlane.f32.xlu0 %v4307
    %v4309 = vpop.xlane.xlu0 %4308
    %v4310 = vsel %vm91, %v4258, -inf
    %4311 = vmax.xlane.f32.xlu0 %v4310
    %v4312 = vpop.xlane.xlu0 %4311
    %v4313 = vsel %vm91, %v4263, -inf
    %4314 = vmax.xlane.f32.xlu0 %v4313
    %v4315 = vpop.xlane.xlu0 %4314
    %v4316 = vsel %vm91, %v4268, -inf
    %4317 = vmax.xlane.f32.xlu0 %v4316
    %v4318 = vpop.xlane.xlu0 %4317
    %v4319 = vsub.f32 %v4193, %v4273
    %v4320 = vsub.f32 %v4198, %v4276
    %v4321 = vsub.f32 %v4203, %v4279
    %v4322 = vsub.f32 %v4208, %v4282
    %v4323 = vsub.f32 %v4213, %v4285
    %v4324 = vsub.f32 %v4218, %v4288
    %v4325 = vsub.f32 %v4223, %v4291
    %v4326 = vsub.f32 %v4228, %v4294
    %v4327 = vsub.f32 %v4233, %v4297
    %v4328 = vsub.f32 %v4238, %v4300
    %v4329 = vsub.f32 %v4243, %v4303
    %v4330 = vsub.f32 %v4248, %v4306
    %v4331 = vsub.f32 %v4253, %v4309
    %v4332 = vsub.f32 %v4258, %v4312
    %v4333 = vsub.f32 %v4263, %v4315
    %v4334 = vsub.f32 %v4268, %v4318
    %v4335 = vmul.f32 %v4319, 1.442695
    %v4336 = vpow.pop %v4335
    %v4337 = vmul.f32 %v4320, 1.442695
    %v4338 = vpow.pop %v4337
    %v4339 = vmul.f32 %v4321, 1.442695
    %v4340 = vpow.pop %v4339
    %v4341 = vmul.f32 %v4322, 1.442695
    %v4342 = vpow.pop %v4341
    %v4343 = vmul.f32 %v4323, 1.442695
    %v4344 = vpow.pop %v4343
    %v4345 = vmul.f32 %v4324, 1.442695
    %v4346 = vpow.pop %v4345
    %v4347 = vmul.f32 %v4325, 1.442695
    %v4348 = vpow.pop %v4347
    %v4349 = vmul.f32 %v4326, 1.442695
    %v4350 = vpow.pop %v4349
    %v4351 = vmul.f32 %v4327, 1.442695
    %v4352 = vpow.pop %v4351
    %v4353 = vmul.f32 %v4328, 1.442695
    %v4354 = vpow.pop %v4353
    %v4355 = vmul.f32 %v4329, 1.442695
    %v4356 = vpow.pop %v4355
    %v4357 = vmul.f32 %v4330, 1.442695
    %v4358 = vpow.pop %v4357
    %v4359 = vmul.f32 %v4331, 1.442695
    %v4360 = vpow.pop %v4359
    %v4361 = vmul.f32 %v4332, 1.442695
    %v4362 = vpow.pop %v4361
    %v4363 = vmul.f32 %v4333, 1.442695
    %v4364 = vpow.pop %v4363
    %v4365 = vmul.f32 %v4334, 1.442695
    %v4366 = vpow.pop %v4365
    %v4367 = vsel %vm91, %v4336, 0.0
    %4368 = vadd.xlane.f32.xlu0 %v4367
    %v4369 = vpop.xlane.xlu0 %4368
    %v4370 = vsel %vm91, %v4338, 0.0
    %4371 = vadd.xlane.f32.xlu0 %v4370
    %v4372 = vpop.xlane.xlu0 %4371
    %v4373 = vsel %vm91, %v4340, 0.0
    %4374 = vadd.xlane.f32.xlu0 %v4373
    %v4375 = vpop.xlane.xlu0 %4374
    %v4376 = vsel %vm91, %v4342, 0.0
    %4377 = vadd.xlane.f32.xlu0 %v4376
    %v4378 = vpop.xlane.xlu0 %4377
    %v4379 = vsel %vm91, %v4344, 0.0
    %4380 = vadd.xlane.f32.xlu0 %v4379
    %v4381 = vpop.xlane.xlu0 %4380
    %v4382 = vsel %vm91, %v4346, 0.0
    %4383 = vadd.xlane.f32.xlu0 %v4382
    %v4384 = vpop.xlane.xlu0 %4383
    %v4385 = vsel %vm91, %v4348, 0.0
    %4386 = vadd.xlane.f32.xlu0 %v4385
    %v4387 = vpop.xlane.xlu0 %4386
    %v4388 = vsel %vm91, %v4350, 0.0
    %4389 = vadd.xlane.f32.xlu0 %v4388
    %v4390 = vpop.xlane.xlu0 %4389
    %v4391 = vsel %vm91, %v4352, 0.0
    %4392 = vadd.xlane.f32.xlu0 %v4391
    %v4393 = vpop.xlane.xlu0 %4392
    %v4394 = vsel %vm91, %v4354, 0.0
    %4395 = vadd.xlane.f32.xlu0 %v4394
    %v4396 = vpop.xlane.xlu0 %4395
    %v4397 = vsel %vm91, %v4356, 0.0
    %4398 = vadd.xlane.f32.xlu0 %v4397
    %v4399 = vpop.xlane.xlu0 %4398
    %v4400 = vsel %vm91, %v4358, 0.0
    %4401 = vadd.xlane.f32.xlu0 %v4400
    %v4402 = vpop.xlane.xlu0 %4401
    %v4403 = vsel %vm91, %v4360, 0.0
    %4404 = vadd.xlane.f32.xlu0 %v4403
    %v4405 = vpop.xlane.xlu0 %4404
    %v4406 = vsel %vm91, %v4362, 0.0
    %4407 = vadd.xlane.f32.xlu0 %v4406
    %v4408 = vpop.xlane.xlu0 %4407
    %v4409 = vsel %vm91, %v4364, 0.0
    %4410 = vadd.xlane.f32.xlu0 %v4409
    %v4411 = vpop.xlane.xlu0 %4410
    %v4412 = vsel %vm91, %v4366, 0.0
    %4413 = vadd.xlane.f32.xlu0 %v4412
    %v4414 = vpop.xlane.xlu0 %4413
    %v4415 = vrcp.pop %v4369
    %v4416 = vrcp.pop %v4372
    %v4417 = vrcp.pop %v4375
    %v4418 = vrcp.pop %v4378
    %v4419 = vrcp.pop %v4381
    %v4420 = vrcp.pop %v4384
    %v4421 = vrcp.pop %v4387
    %v4422 = vrcp.pop %v4390
    %v4423 = vrcp.pop %v4393
    %v4424 = vrcp.pop %v4396
    %v4425 = vrcp.pop %v4399
    %v4426 = vrcp.pop %v4402
    %v4427 = vrcp.pop %v4405
    %v4428 = vrcp.pop %v4408
    %v4429 = vrcp.pop %v4411
    %v4430 = vrcp.pop %v4414
    %v4431 = vmul.f32 %v4336, %v4415
    %v4432 = vmul.f32 %v4338, %v4416
    %v4433 = vmul.f32 %v4340, %v4417
    %v4434 = vmul.f32 %v4342, %v4418
    %v4435 = vmul.f32 %v4344, %v4419
    %v4436 = vmul.f32 %v4346, %v4420
    %v4437 = vmul.f32 %v4348, %v4421
    %v4438 = vmul.f32 %v4350, %v4422
    %v4439 = vmul.f32 %v4352, %v4423
    %v4440 = vmul.f32 %v4354, %v4424
    %v4441 = vmul.f32 %v4356, %v4425
    %v4442 = vmul.f32 %v4358, %v4426
    %v4443 = vmul.f32 %v4360, %v4427
    %v4444 = vmul.f32 %v4362, %v4428
    %v4445 = vmul.f32 %v4364, %v4429
    %v4446 = vmul.f32 %v4366, %v4430
    %4447 = vrot.lane.b32.xlu0 %v452, 64
    %v4448 = vpop.permute.xlu0 %4447
    %4449 = vrot.lane.b32.xlu0 %v457, 64
    %v4450 = vpop.permute.xlu0 %4449
    %v4454 = vsel %vm91, %v4431, 0
    %v4457 = vsel %vm91, %v4432, 0
    %v4460 = vsel %vm91, %v4433, 0
    %v4463 = vsel %vm91, %v4434, 0
    %v4466 = vsel %vm91, %v4435, 0
    %v4469 = vsel %vm91, %v4436, 0
    %v4472 = vsel %vm91, %v4437, 0
    %v4475 = vsel %vm91, %v4438, 0
    %v4478 = vsel %vm91, %v4439, 0
    %v4481 = vsel %vm91, %v4440, 0
    %v4484 = vsel %vm91, %v4441, 0
    %v4487 = vsel %vm91, %v4442, 0
    %v4490 = vsel %vm91, %v4443, 0
    %v4493 = vsel %vm91, %v4444, 0
    %v4496 = vsel %vm91, %v4445, 0
    %v4499 = vsel %vm91, %v4446, 0
    %4501 = vmatprep.subr.mxu0 0.0
    %4502 = vmatpush1.msra.mxu0 %v4448
    %4503 = vmatprep.subr.mxu0 0.0
    %4504 = vmatpush1.msra.mxu0 %v4450
    %4505 = vmatprep.subr.mxu0 0.0
    %4506 = vmatpush1.msra.mxu0 0.0
    %4507 = vmatprep.subr.mxu0 0.0
    %4508 = vmatpush1.msra.mxu0 0.0
    %4509 = vmatprep.subr.mxu0 0.0
    %4510 = vmatpush1.msra.mxu0 0.0
    %4511 = vmatprep.subr.mxu0 0.0
    %4512 = vmatpush1.msra.mxu0 0.0
    %4513 = vmatprep.subr.mxu0 0.0
    %4514 = vmatpush1.msra.mxu0 0.0
    %4515 = vmatprep.subr.mxu0 0.0
    %4516 = vmatpush1.msra.mxu0 0.0
    %4517 = vmatprep.subr.mxu0 0.0
    %4518 = vmatpush1.msra.mxu0 0.0
    %4519 = vmatprep.subr.mxu0 0.0
    %4520 = vmatpush1.msra.mxu0 0.0
    %4521 = vmatprep.subr.mxu0 0.0
    %4522 = vmatpush1.msra.mxu0 0.0
    %4523 = vmatprep.subr.mxu0 0.0
    %4524 = vmatpush1.msra.mxu0 0.0
    %4525 = vmatprep.subr.mxu0 0.0
    %4526 = vmatpush1.msra.mxu0 0.0
    %4527 = vmatprep.subr.mxu0 0.0
    %4528 = vmatpush1.msra.mxu0 0.0
    %4529 = vmatprep.subr.mxu0 0.0
    %4530 = vmatpush1.msra.mxu0 0.0
    %4531 = vmatprep.subr.mxu0 0.0
    %4532 = vmatpush1.msra.mxu0 0.0
    %4533 = vmatprep.subr.mxu0 0.0
    %4534 = vmatpush1.msra.mxu0 0.0
    %4535 = vmatprep.subr.mxu0 0.0
    %4536 = vmatpush1.msra.mxu0 0.0
    %4537 = vmatprep.subr.mxu0 0.0
    %4538 = vmatpush1.msra.mxu0 0.0
    %4539 = vmatprep.subr.mxu0 0.0
    %4540 = vmatpush1.msra.mxu0 0.0
    %4541 = vmatprep.subr.mxu0 0.0
    %4542 = vmatpush1.msra.mxu0 0.0
    %4543 = vmatprep.subr.mxu0 0.0
    %4544 = vmatpush1.msra.mxu0 0.0
    %4545 = vmatprep.subr.mxu0 0.0
    %4546 = vmatpush1.msra.mxu0 0.0
    %4547 = vmatprep.subr.mxu0 0.0
    %4548 = vmatpush1.msra.mxu0 0.0
    %4549 = vmatprep.subr.mxu0 0.0
    %4550 = vmatpush1.msra.mxu0 0.0
    %4551 = vmatprep.subr.mxu0 0.0
    %4552 = vmatpush1.msra.mxu0 0.0
    %4553 = vmatprep.subr.mxu0 0.0
    %4554 = vmatpush1.msra.mxu0 0.0
    %4555 = vmatprep.subr.mxu0 0.0
    %4556 = vmatpush1.msra.mxu0 0.0
    %4557 = vmatprep.subr.mxu0 0.0
    %4558 = vmatpush1.msra.mxu0 0.0
    %4559 = vmatprep.subr.mxu0 0.0
    %4560 = vmatpush1.msra.mxu0 0.0
    %4561 = vmatprep.subr.mxu0 0.0
    %4562 = vmatpush1.msra.mxu0 0.0
    %4563 = vmatprep.subr.mxu0 0.0
    %4564 = vmatpush1.msra.mxu0 0.0
    %4565 = vmatprep.mubr.f32.mxu0 0.0
    %4566 = vmatmul.mubr.f32.gmra.mrb[0].mxu0 %v4454
    %v4567 = vpop.f32.mrb[0].mxu0
    %v4568 = vadd.f32 0.0, %v4567
    %v4569 = vpop.f32.mrb[0].mxu0
    %4570 = vmatprep.mubr.f32.mxu0 0.0
    %4571 = vmatmul.mubr.f32.gmra.mrb[0].mxu0 %v4457
    %v4572 = vpop.f32.mrb[0].mxu0
    %v4573 = vadd.f32 0.0, %v4572
    %v4574 = vpop.f32.mrb[0].mxu0
    %4575 = vmatprep.mubr.f32.mxu0 0.0
    %4576 = vmatmul.mubr.f32.gmra.mrb[0].mxu0 %v4460
    %v4577 = vpop.f32.mrb[0].mxu0
    %v4578 = vadd.f32 0.0, %v4577
    %v4579 = vpop.f32.mrb[0].mxu0
    %4580 = vmatprep.mubr.f32.mxu0 0.0
    %4581 = vmatmul.mubr.f32.gmra.mrb[0].mxu0 %v4463
    %v4582 = vpop.f32.mrb[0].mxu0
    %v4583 = vadd.f32 0.0, %v4582
    %v4584 = vpop.f32.mrb[0].mxu0
    %4585 = vmatprep.mubr.f32.mxu0 0.0
    %4586 = vmatmul.mubr.f32.gmra.mrb[0].mxu0 %v4466
    %v4587 = vpop.f32.mrb[0].mxu0
    %v4588 = vadd.f32 0.0, %v4587
    %v4589 = vpop.f32.mrb[0].mxu0
    %4590 = vmatprep.mubr.f32.mxu0 0.0
    %4591 = vmatmul.mubr.f32.gmra.mrb[0].mxu0 %v4469
    %v4592 = vpop.f32.mrb[0].mxu0
    %v4593 = vadd.f32 0.0, %v4592
    %v4594 = vpop.f32.mrb[0].mxu0
    %4595 = vmatprep.mubr.f32.mxu0 0.0
    %4596 = vmatmul.mubr.f32.gmra.mrb[0].mxu0 %v4472
    %v4597 = vpop.f32.mrb[0].mxu0
    %v4598 = vadd.f32 0.0, %v4597
    %v4599 = vpop.f32.mrb[0].mxu0
    %4600 = vmatprep.mubr.f32.mxu0 0.0
    %4601 = vmatmul.mubr.f32.gmra.mrb[0].mxu0 %v4475
    %v4602 = vpop.f32.mrb[0].mxu0
    %v4603 = vadd.f32 0.0, %v4602
    %v4604 = vpop.f32.mrb[0].mxu0
    %4605 = vmatprep.mubr.f32.mxu0 0.0
    %4606 = vmatmul.mubr.f32.gmra.mrb[0].mxu0 %v4478
    %v4607 = vpop.f32.mrb[0].mxu0
    %v4608 = vadd.f32 0.0, %v4607
    %v4609 = vpop.f32.mrb[0].mxu0
    %4610 = vmatprep.mubr.f32.mxu0 0.0
    %4611 = vmatmul.mubr.f32.gmra.mrb[0].mxu0 %v4481
    %v4612 = vpop.f32.mrb[0].mxu0
    %v4613 = vadd.f32 0.0, %v4612
    %v4614 = vpop.f32.mrb[0].mxu0
    %4615 = vmatprep.mubr.f32.mxu0 0.0
    %4616 = vmatmul.mubr.f32.gmra.mrb[0].mxu0 %v4484
    %v4617 = vpop.f32.mrb[0].mxu0
    %v4618 = vadd.f32 0.0, %v4617
    %v4619 = vpop.f32.mrb[0].mxu0
    %4620 = vmatprep.mubr.f32.mxu0 0.0
    %4621 = vmatmul.mubr.f32.gmra.mrb[0].mxu0 %v4487
    %v4622 = vpop.f32.mrb[0].mxu0
    %v4623 = vadd.f32 0.0, %v4622
    %v4624 = vpop.f32.mrb[0].mxu0
    %4625 = vmatprep.mubr.f32.mxu0 0.0
    %4626 = vmatmul.mubr.f32.gmra.mrb[0].mxu0 %v4490
    %v4627 = vpop.f32.mrb[0].mxu0
    %v4628 = vadd.f32 0.0, %v4627
    %v4629 = vpop.f32.mrb[0].mxu0
    %4630 = vmatprep.mubr.f32.mxu0 0.0
    %4631 = vmatmul.mubr.f32.gmra.mrb[0].mxu0 %v4493
    %v4632 = vpop.f32.mrb[0].mxu0
    %v4633 = vadd.f32 0.0, %v4632
    %v4634 = vpop.f32.mrb[0].mxu0
    %4635 = vmatprep.mubr.f32.mxu0 0.0
    %4636 = vmatmul.mubr.f32.gmra.mrb[0].mxu0 %v4496
    %v4637 = vpop.f32.mrb[0].mxu0
    %v4638 = vadd.f32 0.0, %v4637
    %v4639 = vpop.f32.mrb[0].mxu0
    %4640 = vmatprep.mubr.f32.mxu0 0.0
    %4641 = vmatmul.mubr.f32.gmra.mrb[0].mxu0 %v4499
    %v4642 = vpop.f32.mrb[0].mxu0
    %v4643 = vadd.f32 0.0, %v4642
    %v4644 = vpop.f32.mrb[0].mxu0
    %4645 = vdwg.mxu0
    %v4646 = vmul.f32 %v4568, %v508
    %v4647 = vmul.f32 %v4573, %v509
    %v4648 = vmul.f32 %v4578, %v510
    %v4649 = vmul.f32 %v4583, %v511
    %v4650 = vmul.f32 %v4588, %v512
    %v4651 = vmul.f32 %v4593, %v513
    %v4652 = vmul.f32 %v4598, %v514
    %v4653 = vmul.f32 %v4603, %v515
    %v4654 = vmul.f32 %v4608, %v516
    %v4655 = vmul.f32 %v4613, %v517
    %v4656 = vmul.f32 %v4618, %v518
    %v4657 = vmul.f32 %v4623, %v519
    %v4658 = vmul.f32 %v4628, %v520
    %v4659 = vmul.f32 %v4633, %v521
    %v4660 = vmul.f32 %v4638, %v522
    %v4661 = vmul.f32 %v4643, %v523
    %4662 = vmatprep.subr.mxu0 0.0
    %4663 = vmatpush1.msra.mxu0 %v4646
    %4664 = vmatprep.subr.mxu0 0.0
    %4665 = vmatpush1.msra.mxu0 %v4647
    %4666 = vmatprep.subr.mxu0 0.0
    %4667 = vmatpush1.msra.mxu0 %v4648
    %4668 = vmatprep.subr.mxu0 0.0
    %4669 = vmatpush1.msra.mxu0 %v4649
    %4670 = vmatprep.subr.mxu0 0.0
    %4671 = vmatpush1.msra.mxu0 %v4650
    %4672 = vmatprep.subr.mxu0 0.0
    %4673 = vmatpush1.msra.mxu0 %v4651
    %4674 = vmatprep.subr.mxu0 0.0
    %4675 = vmatpush1.msra.mxu0 %v4652
    %4676 = vmatprep.subr.mxu0 0.0
    %4677 = vmatpush1.msra.mxu0 %v4653
    %4678 = vmatprep.subr.mxu0 0.0
    %4679 = vmatpush1.msra.mxu0 %v4654
    %4680 = vmatprep.subr.mxu0 0.0
    %4681 = vmatpush1.msra.mxu0 %v4655
    %4682 = vmatprep.subr.mxu0 0.0
    %4683 = vmatpush1.msra.mxu0 %v4656
    %4684 = vmatprep.subr.mxu0 0.0
    %4685 = vmatpush1.msra.mxu0 %v4657
    %4686 = vmatprep.subr.mxu0 0.0
    %4687 = vmatpush1.msra.mxu0 %v4658
    %4688 = vmatprep.subr.mxu0 0.0
    %4689 = vmatpush1.msra.mxu0 %v4659
    %4690 = vmatprep.subr.mxu0 0.0
    %4691 = vmatpush1.msra.mxu0 %v4660
    %4692 = vmatprep.subr.mxu0 0.0
    %4693 = vmatpush1.msra.mxu0 %v4661
    %4694 = vmatprep.subr.mxu0 0.0
    %4695 = vmatpush1.msra.mxu0 0.0
    %4696 = vmatprep.subr.mxu0 0.0
    %4697 = vmatpush1.msra.mxu0 0.0
    %4698 = vmatprep.subr.mxu0 0.0
    %4699 = vmatpush1.msra.mxu0 0.0
    %4700 = vmatprep.subr.mxu0 0.0
    %4701 = vmatpush1.msra.mxu0 0.0
    %4702 = vmatprep.subr.mxu0 0.0
    %4703 = vmatpush1.msra.mxu0 0.0
    %4704 = vmatprep.subr.mxu0 0.0
    %4705 = vmatpush1.msra.mxu0 0.0
    %4706 = vmatprep.subr.mxu0 0.0
    %4707 = vmatpush1.msra.mxu0 0.0
    %4708 = vmatprep.subr.mxu0 0.0
    %4709 = vmatpush1.msra.mxu0 0.0
    %4710 = vmatprep.subr.mxu0 0.0
    %4711 = vmatpush1.msra.mxu0 0.0
    %4712 = vmatprep.subr.mxu0 0.0
    %4713 = vmatpush1.msra.mxu0 0.0
    %4714 = vmatprep.subr.mxu0 0.0
    %4715 = vmatpush1.msra.mxu0 0.0
    %4716 = vmatprep.subr.mxu0 0.0
    %4717 = vmatpush1.msra.mxu0 0.0
    %4718 = vmatprep.subr.mxu0 0.0
    %4719 = vmatpush1.msra.mxu0 0.0
    %4720 = vmatprep.subr.mxu0 0.0
    %4721 = vmatpush1.msra.mxu0 0.0
    %4722 = vmatprep.subr.mxu0 0.0
    %4723 = vmatpush1.msra.mxu0 0.0
    %4724 = vmatprep.subr.mxu0 0.0
    %4725 = vmatpush1.msra.mxu0 0.0
    %4726 = vmatprep.mubr.f32.mxu0 0.0
    %4727 = vmatmul.mubr.f32.gmra.mrb[0].mxu0 %v506
    %v4728 = vpop.f32.mrb[0].mxu0
    %v4729 = vadd.f32 0.0, %v4728
    %v4730 = vpop.f32.mrb[0].mxu0
    %4731 = vmatprep.mubr.f32.mxu0 0.0
    %4732 = vmatmul.mubr.f32.gmra.mrb[0].mxu0 %v507
    %v4733 = vpop.f32.mrb[0].mxu0
    %v4734 = vadd.f32 0.0, %v4733
    %v4735 = vpop.f32.mrb[0].mxu0
    %4736 = vdwg.mxu0
    %4737 = vst.msk [vmem:[#allocation2 + $0x40] sm:$0xff] %vm296, %v4729
    %4738 = vst.msk [vmem:[#allocation2 + $0x48] sm:$0xff] %vm296, %v4734
    %4739 = vmatprep.subr.mxu0 0.0
    %4740 = vmatpush1.msra.mxu0 %v462
    %4741 = vmatprep.subr.mxu0 0.0
    %4742 = vmatpush1.msra.mxu0 %v467
    %4743 = vmatprep.subr.mxu0 0.0
    %4744 = vmatpush1.msra.mxu0 0.0
    %4745 = vmatprep.subr.mxu0 0.0
    %4746 = vmatpush1.msra.mxu0 0.0
    %4747 = vmatprep.subr.mxu0 0.0
    %4748 = vmatpush1.msra.mxu0 0.0
    %4749 = vmatprep.subr.mxu0 0.0
    %4750 = vmatpush1.msra.mxu0 0.0
    %4751 = vmatprep.subr.mxu0 0.0
    %4752 = vmatpush1.msra.mxu0 0.0
    %4753 = vmatprep.subr.mxu0 0.0
    %4754 = vmatpush1.msra.mxu0 0.0
    %4755 = vmatprep.subr.mxu0 0.0
    %4756 = vmatpush1.msra.mxu0 0.0
    %4757 = vmatprep.subr.mxu0 0.0
    %4758 = vmatpush1.msra.mxu0 0.0
    %4759 = vmatprep.subr.mxu0 0.0
    %4760 = vmatpush1.msra.mxu0 0.0
    %4761 = vmatprep.subr.mxu0 0.0
    %4762 = vmatpush1.msra.mxu0 0.0
    %4763 = vmatprep.subr.mxu0 0.0
    %4764 = vmatpush1.msra.mxu0 0.0
    %4765 = vmatprep.subr.mxu0 0.0
    %4766 = vmatpush1.msra.mxu0 0.0
    %4767 = vmatprep.subr.mxu0 0.0
    %4768 = vmatpush1.msra.mxu0 0.0
    %4769 = vmatprep.subr.mxu0 0.0
    %4770 = vmatpush1.msra.mxu0 0.0
    %4771 = vmatprep.subr.mxu0 0.0
    %4772 = vmatpush1.msra.mxu0 0.0
    %4773 = vmatprep.subr.mxu0 0.0
    %4774 = vmatpush1.msra.mxu0 0.0
    %4775 = vmatprep.subr.mxu0 0.0
    %4776 = vmatpush1.msra.mxu0 0.0
    %4777 = vmatprep.subr.mxu0 0.0
    %4778 = vmatpush1.msra.mxu0 0.0
    %4779 = vmatprep.subr.mxu0 0.0
    %4780 = vmatpush1.msra.mxu0 0.0
    %4781 = vmatprep.subr.mxu0 0.0
    %4782 = vmatpush1.msra.mxu0 0.0
    %4783 = vmatprep.subr.mxu0 0.0
    %4784 = vmatpush1.msra.mxu0 0.0
    %4785 = vmatprep.subr.mxu0 0.0
    %4786 = vmatpush1.msra.mxu0 0.0
    %4787 = vmatprep.subr.mxu0 0.0
    %4788 = vmatpush1.msra.mxu0 0.0
    %4789 = vmatprep.subr.mxu0 0.0
    %4790 = vmatpush1.msra.mxu0 0.0
    %4791 = vmatprep.subr.mxu0 0.0
    %4792 = vmatpush1.msra.mxu0 0.0
    %4793 = vmatprep.subr.mxu0 0.0
    %4794 = vmatpush1.msra.mxu0 0.0
    %4795 = vmatprep.subr.mxu0 0.0
    %4796 = vmatpush1.msra.mxu0 0.0
    %4797 = vmatprep.subr.mxu0 0.0
    %4798 = vmatpush1.msra.mxu0 0.0
    %4799 = vmatprep.subr.mxu0 0.0
    %4800 = vmatpush1.msra.mxu0 0.0
    %4801 = vmatprep.subr.mxu0 0.0
    %4802 = vmatpush1.msra.mxu0 0.0
    %4803 = vmatprep.mubr.f32.mxu0 0.0
    %4804 = vmatmul.mubr.f32.gmra.mrb[0].mxu0 %v526
    %v4805 = vpop.f32.mrb[0].mxu0
    %v4806 = vadd.f32 0.0, %v4805
    %v4807 = vpop.f32.mrb[0].mxu0
    %4808 = vmatprep.mubr.f32.mxu0 0.0
    %4809 = vmatmul.mubr.f32.gmra.mrb[0].mxu0 %v529
    %v4810 = vpop.f32.mrb[0].mxu0
    %v4811 = vadd.f32 0.0, %v4810
    %v4812 = vpop.f32.mrb[0].mxu0
    %4813 = vmatprep.mubr.f32.mxu0 0.0
    %4814 = vmatmul.mubr.f32.gmra.mrb[0].mxu0 %v532
    %v4815 = vpop.f32.mrb[0].mxu0
    %v4816 = vadd.f32 0.0, %v4815
    %v4817 = vpop.f32.mrb[0].mxu0
    %4818 = vmatprep.mubr.f32.mxu0 0.0
    %4819 = vmatmul.mubr.f32.gmra.mrb[0].mxu0 %v535
    %v4820 = vpop.f32.mrb[0].mxu0
    %v4821 = vadd.f32 0.0, %v4820
    %v4822 = vpop.f32.mrb[0].mxu0
    %4823 = vmatprep.mubr.f32.mxu0 0.0
    %4824 = vmatmul.mubr.f32.gmra.mrb[0].mxu0 %v538
    %v4825 = vpop.f32.mrb[0].mxu0
    %v4826 = vadd.f32 0.0, %v4825
    %v4827 = vpop.f32.mrb[0].mxu0
    %4828 = vmatprep.mubr.f32.mxu0 0.0
    %4829 = vmatmul.mubr.f32.gmra.mrb[0].mxu0 %v541
    %v4830 = vpop.f32.mrb[0].mxu0
    %v4831 = vadd.f32 0.0, %v4830
    %v4832 = vpop.f32.mrb[0].mxu0
    %4833 = vmatprep.mubr.f32.mxu0 0.0
    %4834 = vmatmul.mubr.f32.gmra.mrb[0].mxu0 %v544
    %v4835 = vpop.f32.mrb[0].mxu0
    %v4836 = vadd.f32 0.0, %v4835
    %v4837 = vpop.f32.mrb[0].mxu0
    %4838 = vmatprep.mubr.f32.mxu0 0.0
    %4839 = vmatmul.mubr.f32.gmra.mrb[0].mxu0 %v547
    %v4840 = vpop.f32.mrb[0].mxu0
    %v4841 = vadd.f32 0.0, %v4840
    %v4842 = vpop.f32.mrb[0].mxu0
    %4843 = vmatprep.mubr.f32.mxu0 0.0
    %4844 = vmatmul.mubr.f32.gmra.mrb[0].mxu0 %v550
    %v4845 = vpop.f32.mrb[0].mxu0
    %v4846 = vadd.f32 0.0, %v4845
    %v4847 = vpop.f32.mrb[0].mxu0
    %4848 = vmatprep.mubr.f32.mxu0 0.0
    %4849 = vmatmul.mubr.f32.gmra.mrb[0].mxu0 %v553
    %v4850 = vpop.f32.mrb[0].mxu0
    %v4851 = vadd.f32 0.0, %v4850
    %v4852 = vpop.f32.mrb[0].mxu0
    %4853 = vmatprep.mubr.f32.mxu0 0.0
    %4854 = vmatmul.mubr.f32.gmra.mrb[0].mxu0 %v556
    %v4855 = vpop.f32.mrb[0].mxu0
    %v4856 = vadd.f32 0.0, %v4855
    %v4857 = vpop.f32.mrb[0].mxu0
    %4858 = vmatprep.mubr.f32.mxu0 0.0
    %4859 = vmatmul.mubr.f32.gmra.mrb[0].mxu0 %v559
    %v4860 = vpop.f32.mrb[0].mxu0
    %v4861 = vadd.f32 0.0, %v4860
    %v4862 = vpop.f32.mrb[0].mxu0
    %4863 = vmatprep.mubr.f32.mxu0 0.0
    %4864 = vmatmul.mubr.f32.gmra.mrb[0].mxu0 %v562
    %v4865 = vpop.f32.mrb[0].mxu0
    %v4866 = vadd.f32 0.0, %v4865
    %v4867 = vpop.f32.mrb[0].mxu0
    %4868 = vmatprep.mubr.f32.mxu0 0.0
    %4869 = vmatmul.mubr.f32.gmra.mrb[0].mxu0 %v565
    %v4870 = vpop.f32.mrb[0].mxu0
    %v4871 = vadd.f32 0.0, %v4870
    %v4872 = vpop.f32.mrb[0].mxu0
    %4873 = vmatprep.mubr.f32.mxu0 0.0
    %4874 = vmatmul.mubr.f32.gmra.mrb[0].mxu0 %v568
    %v4875 = vpop.f32.mrb[0].mxu0
    %v4876 = vadd.f32 0.0, %v4875
    %v4877 = vpop.f32.mrb[0].mxu0
    %4878 = vmatprep.mubr.f32.mxu0 0.0
    %4879 = vmatmul.mubr.f32.gmra.mrb[0].mxu0 %v571
    %v4880 = vpop.f32.mrb[0].mxu0
    %v4881 = vadd.f32 0.0, %v4880
    %v4882 = vpop.f32.mrb[0].mxu0
    %4883 = vdwg.mxu0
    %v4884 = vmul.f32 %v4806, %v508
    %v4885 = vmul.f32 %v4811, %v509
    %v4886 = vmul.f32 %v4816, %v510
    %v4887 = vmul.f32 %v4821, %v511
    %v4888 = vmul.f32 %v4826, %v512
    %v4889 = vmul.f32 %v4831, %v513
    %v4890 = vmul.f32 %v4836, %v514
    %v4891 = vmul.f32 %v4841, %v515
    %v4892 = vmul.f32 %v4846, %v516
    %v4893 = vmul.f32 %v4851, %v517
    %v4894 = vmul.f32 %v4856, %v518
    %v4895 = vmul.f32 %v4861, %v519
    %v4896 = vmul.f32 %v4866, %v520
    %v4897 = vmul.f32 %v4871, %v521
    %v4898 = vmul.f32 %v4876, %v522
    %v4899 = vmul.f32 %v4881, %v523
    %4902 = vrot.lane.b32.xlu0 %v462, 96
    %v4903 = vpop.permute.xlu0 %4902
    %4904 = vrot.lane.b32.xlu0 %v467, 96
    %v4905 = vpop.permute.xlu0 %4904
    %v4907 = vsel %vm296, %v4884, 0
    %v4910 = vsel %vm296, %v4885, 0
    %v4913 = vsel %vm296, %v4886, 0
    %v4916 = vsel %vm296, %v4887, 0
    %v4919 = vsel %vm296, %v4888, 0
    %v4922 = vsel %vm296, %v4889, 0
    %v4925 = vsel %vm296, %v4890, 0
    %v4928 = vsel %vm296, %v4891, 0
    %v4931 = vsel %vm296, %v4892, 0
    %v4934 = vsel %vm296, %v4893, 0
    %v4937 = vsel %vm296, %v4894, 0
    %v4940 = vsel %vm296, %v4895, 0
    %v4943 = vsel %vm296, %v4896, 0
    %v4946 = vsel %vm296, %v4897, 0
    %v4949 = vsel %vm296, %v4898, 0
    %v4952 = vsel %vm296, %v4899, 0
    %v4954 = vsel %vm296, %v4903, 0
    %v4956 = vsel %vm296, %v4905, 0
    %4958 = vmatprep.subr.mxu0 0.0
    %4959 = vmatpush1.xpose.msra.mxu0 %v4954
    %4960 = vmatprep.subr.mxu0 0.0
    %4961 = vmatpush1.xpose.msra.mxu0 %v4956
    %4962 = vmatprep.subr.mxu0 0.0
    %4963 = vmatpush1.xpose.msra.mxu0 0.0
    %4964 = vmatprep.subr.mxu0 0.0
    %4965 = vmatpush1.xpose.msra.mxu0 0.0
    %4966 = vmatprep.subr.mxu0 0.0
    %4967 = vmatpush1.xpose.msra.mxu0 0.0
    %4968 = vmatprep.subr.mxu0 0.0
    %4969 = vmatpush1.xpose.msra.mxu0 0.0
    %4970 = vmatprep.subr.mxu0 0.0
    %4971 = vmatpush1.xpose.msra.mxu0 0.0
    %4972 = vmatprep.subr.mxu0 0.0
    %4973 = vmatpush1.xpose.msra.mxu0 0.0
    %4974 = vmatprep.subr.mxu0 0.0
    %4975 = vmatpush1.xpose.msra.mxu0 0.0
    %4976 = vmatprep.subr.mxu0 0.0
    %4977 = vmatpush1.xpose.msra.mxu0 0.0
    %4978 = vmatprep.subr.mxu0 0.0
    %4979 = vmatpush1.xpose.msra.mxu0 0.0
    %4980 = vmatprep.subr.mxu0 0.0
    %4981 = vmatpush1.xpose.msra.mxu0 0.0
    %4982 = vmatprep.subr.mxu0 0.0
    %4983 = vmatpush1.xpose.msra.mxu0 0.0
    %4984 = vmatprep.subr.mxu0 0.0
    %4985 = vmatpush1.xpose.msra.mxu0 0.0
    %4986 = vmatprep.subr.mxu0 0.0
    %4987 = vmatpush1.xpose.msra.mxu0 0.0
    %4988 = vmatprep.subr.mxu0 0.0
    %4989 = vmatpush1.xpose.msra.mxu0 0.0
    %4990 = vmatprep.subr.mxu0 0.0
    %4991 = vmatpush1.xpose.msra.mxu0 0.0
    %4992 = vmatprep.subr.mxu0 0.0
    %4993 = vmatpush1.xpose.msra.mxu0 0.0
    %4994 = vmatprep.subr.mxu0 0.0
    %4995 = vmatpush1.xpose.msra.mxu0 0.0
    %4996 = vmatprep.subr.mxu0 0.0
    %4997 = vmatpush1.xpose.msra.mxu0 0.0
    %4998 = vmatprep.subr.mxu0 0.0
    %4999 = vmatpush1.xpose.msra.mxu0 0.0
    %5000 = vmatprep.subr.mxu0 0.0
    %5001 = vmatpush1.xpose.msra.mxu0 0.0
    %5002 = vmatprep.subr.mxu0 0.0
    %5003 = vmatpush1.xpose.msra.mxu0 0.0
    %5004 = vmatprep.subr.mxu0 0.0
    %5005 = vmatpush1.xpose.msra.mxu0 0.0
    %5006 = vmatprep.subr.mxu0 0.0
    %5007 = vmatpush1.xpose.msra.mxu0 0.0
    %5008 = vmatprep.subr.mxu0 0.0
    %5009 = vmatpush1.xpose.msra.mxu0 0.0
    %5010 = vmatprep.subr.mxu0 0.0
    %5011 = vmatpush1.xpose.msra.mxu0 0.0
    %5012 = vmatprep.subr.mxu0 0.0
    %5013 = vmatpush1.xpose.msra.mxu0 0.0
    %5014 = vmatprep.subr.mxu0 0.0
    %5015 = vmatpush1.xpose.msra.mxu0 0.0
    %5016 = vmatprep.subr.mxu0 0.0
    %5017 = vmatpush1.xpose.msra.mxu0 0.0
    %5018 = vmatprep.subr.mxu0 0.0
    %5019 = vmatpush1.xpose.msra.mxu0 0.0
    %5020 = vmatprep.subr.mxu0 0.0
    %5021 = vmatpush1.xpose.msra.mxu0 0.0
    %5022 = vmatprep.mubr.f32.mxu0 0.0
    %5023 = vmatmul.mubr.f32.gmra.mrb[0].mxu0 %v4907
    %v5024 = vpop.f32.mrb[0].mxu0
    %v5025 = vadd.f32 %v738, %v5024
    %v5026 = vpop.f32.mrb[0].mxu0
    %5027 = vmatprep.mubr.f32.mxu0 0.0
    %5028 = vmatmul.mubr.f32.gmra.mrb[0].mxu0 %v4910
    %v5029 = vpop.f32.mrb[0].mxu0
    %v5030 = vadd.f32 %v738, %v5029
    %v5031 = vpop.f32.mrb[0].mxu0
    %5032 = vmatprep.mubr.f32.mxu0 0.0
    %5033 = vmatmul.mubr.f32.gmra.mrb[0].mxu0 %v4913
    %v5034 = vpop.f32.mrb[0].mxu0
    %v5035 = vadd.f32 %v738, %v5034
    %v5036 = vpop.f32.mrb[0].mxu0
    %5037 = vmatprep.mubr.f32.mxu0 0.0
    %5038 = vmatmul.mubr.f32.gmra.mrb[0].mxu0 %v4916
    %v5039 = vpop.f32.mrb[0].mxu0
    %v5040 = vadd.f32 %v738, %v5039
    %v5041 = vpop.f32.mrb[0].mxu0
    %5042 = vmatprep.mubr.f32.mxu0 0.0
    %5043 = vmatmul.mubr.f32.gmra.mrb[0].mxu0 %v4919
    %v5044 = vpop.f32.mrb[0].mxu0
    %v5045 = vadd.f32 %v738, %v5044
    %v5046 = vpop.f32.mrb[0].mxu0
    %5047 = vmatprep.mubr.f32.mxu0 0.0
    %5048 = vmatmul.mubr.f32.gmra.mrb[0].mxu0 %v4922
    %v5049 = vpop.f32.mrb[0].mxu0
    %v5050 = vadd.f32 %v738, %v5049
    %v5051 = vpop.f32.mrb[0].mxu0
    %5052 = vmatprep.mubr.f32.mxu0 0.0
    %5053 = vmatmul.mubr.f32.gmra.mrb[0].mxu0 %v4925
    %v5054 = vpop.f32.mrb[0].mxu0
    %v5055 = vadd.f32 %v738, %v5054
    %v5056 = vpop.f32.mrb[0].mxu0
    %5057 = vmatprep.mubr.f32.mxu0 0.0
    %5058 = vmatmul.mubr.f32.gmra.mrb[0].mxu0 %v4928
    %v5059 = vpop.f32.mrb[0].mxu0
    %v5060 = vadd.f32 %v738, %v5059
    %v5061 = vpop.f32.mrb[0].mxu0
    %5062 = vmatprep.mubr.f32.mxu0 0.0
    %5063 = vmatmul.mubr.f32.gmra.mrb[0].mxu0 %v4931
    %v5064 = vpop.f32.mrb[0].mxu0
    %v5065 = vadd.f32 %v738, %v5064
    %v5066 = vpop.f32.mrb[0].mxu0
    %5067 = vmatprep.mubr.f32.mxu0 0.0
    %5068 = vmatmul.mubr.f32.gmra.mrb[0].mxu0 %v4934
    %v5069 = vpop.f32.mrb[0].mxu0
    %v5070 = vadd.f32 %v738, %v5069
    %v5071 = vpop.f32.mrb[0].mxu0
    %5072 = vmatprep.mubr.f32.mxu0 0.0
    %5073 = vmatmul.mubr.f32.gmra.mrb[0].mxu0 %v4937
    %v5074 = vpop.f32.mrb[0].mxu0
    %v5075 = vadd.f32 %v738, %v5074
    %v5076 = vpop.f32.mrb[0].mxu0
    %5077 = vmatprep.mubr.f32.mxu0 0.0
    %5078 = vmatmul.mubr.f32.gmra.mrb[0].mxu0 %v4940
    %v5079 = vpop.f32.mrb[0].mxu0
    %v5080 = vadd.f32 %v738, %v5079
    %v5081 = vpop.f32.mrb[0].mxu0
    %5082 = vmatprep.mubr.f32.mxu0 0.0
    %5083 = vmatmul.mubr.f32.gmra.mrb[0].mxu0 %v4943
    %v5084 = vpop.f32.mrb[0].mxu0
    %v5085 = vadd.f32 %v738, %v5084
    %v5086 = vpop.f32.mrb[0].mxu0
    %5087 = vmatprep.mubr.f32.mxu0 0.0
    %5088 = vmatmul.mubr.f32.gmra.mrb[0].mxu0 %v4946
    %v5089 = vpop.f32.mrb[0].mxu0
    %v5090 = vadd.f32 %v738, %v5089
    %v5091 = vpop.f32.mrb[0].mxu0
    %5092 = vmatprep.mubr.f32.mxu0 0.0
    %5093 = vmatmul.mubr.f32.gmra.mrb[0].mxu0 %v4949
    %v5094 = vpop.f32.mrb[0].mxu0
    %v5095 = vadd.f32 %v738, %v5094
    %v5096 = vpop.f32.mrb[0].mxu0
    %5097 = vmatprep.mubr.f32.mxu0 0.0
    %5098 = vmatmul.mubr.f32.gmra.mrb[0].mxu0 %v4952
    %v5099 = vpop.f32.mrb[0].mxu0
    %v5100 = vadd.f32 %v738, %v5099
    %v5101 = vpop.f32.mrb[0].mxu0
    %5102 = vdwg.mxu0
    %v5103 = vsel %vm91, %v5025, -inf
    %5104 = vmax.xlane.f32.xlu0 %v5103
    %v5105 = vpop.xlane.xlu0 %5104
    %v5106 = vsel %vm91, %v5030, -inf
    %5107 = vmax.xlane.f32.xlu0 %v5106
    %v5108 = vpop.xlane.xlu0 %5107
    %v5109 = vsel %vm91, %v5035, -inf
    %5110 = vmax.xlane.f32.xlu0 %v5109
    %v5111 = vpop.xlane.xlu0 %5110
    %v5112 = vsel %vm91, %v5040, -inf
    %5113 = vmax.xlane.f32.xlu0 %v5112
    %v5114 = vpop.xlane.xlu0 %5113
    %v5115 = vsel %vm91, %v5045, -inf
    %5116 = vmax.xlane.f32.xlu0 %v5115
    %v5117 = vpop.xlane.xlu0 %5116
    %v5118 = vsel %vm91, %v5050, -inf
    %5119 = vmax.xlane.f32.xlu0 %v5118
    %v5120 = vpop.xlane.xlu0 %5119
    %v5121 = vsel %vm91, %v5055, -inf
    %5122 = vmax.xlane.f32.xlu0 %v5121
    %v5123 = vpop.xlane.xlu0 %5122
    %v5124 = vsel %vm91, %v5060, -inf
    %5125 = vmax.xlane.f32.xlu0 %v5124
    %v5126 = vpop.xlane.xlu0 %5125
    %v5127 = vsel %vm91, %v5065, -inf
    %5128 = vmax.xlane.f32.xlu0 %v5127
    %v5129 = vpop.xlane.xlu0 %5128
    %v5130 = vsel %vm91, %v5070, -inf
    %5131 = vmax.xlane.f32.xlu0 %v5130
    %v5132 = vpop.xlane.xlu0 %5131
    %v5133 = vsel %vm91, %v5075, -inf
    %5134 = vmax.xlane.f32.xlu0 %v5133
    %v5135 = vpop.xlane.xlu0 %5134
    %v5136 = vsel %vm91, %v5080, -inf
    %5137 = vmax.xlane.f32.xlu0 %v5136
    %v5138 = vpop.xlane.xlu0 %5137
    %v5139 = vsel %vm91, %v5085, -inf
    %5140 = vmax.xlane.f32.xlu0 %v5139
    %v5141 = vpop.xlane.xlu0 %5140
    %v5142 = vsel %vm91, %v5090, -inf
    %5143 = vmax.xlane.f32.xlu0 %v5142
    %v5144 = vpop.xlane.xlu0 %5143
    %v5145 = vsel %vm91, %v5095, -inf
    %5146 = vmax.xlane.f32.xlu0 %v5145
    %v5147 = vpop.xlane.xlu0 %5146
    %v5148 = vsel %vm91, %v5100, -inf
    %5149 = vmax.xlane.f32.xlu0 %v5148
    %v5150 = vpop.xlane.xlu0 %5149
    %v5151 = vsub.f32 %v5025, %v5105
    %v5152 = vsub.f32 %v5030, %v5108
    %v5153 = vsub.f32 %v5035, %v5111
    %v5154 = vsub.f32 %v5040, %v5114
    %v5155 = vsub.f32 %v5045, %v5117
    %v5156 = vsub.f32 %v5050, %v5120
    %v5157 = vsub.f32 %v5055, %v5123
    %v5158 = vsub.f32 %v5060, %v5126
    %v5159 = vsub.f32 %v5065, %v5129
    %v5160 = vsub.f32 %v5070, %v5132
    %v5161 = vsub.f32 %v5075, %v5135
    %v5162 = vsub.f32 %v5080, %v5138
    %v5163 = vsub.f32 %v5085, %v5141
    %v5164 = vsub.f32 %v5090, %v5144
    %v5165 = vsub.f32 %v5095, %v5147
    %v5166 = vsub.f32 %v5100, %v5150
    %v5167 = vmul.f32 %v5151, 1.442695
    %v5168 = vpow.pop %v5167
    %v5169 = vmul.f32 %v5152, 1.442695
    %v5170 = vpow.pop %v5169
    %v5171 = vmul.f32 %v5153, 1.442695
    %v5172 = vpow.pop %v5171
    %v5173 = vmul.f32 %v5154, 1.442695
    %v5174 = vpow.pop %v5173
    %v5175 = vmul.f32 %v5155, 1.442695
    %v5176 = vpow.pop %v5175
    %v5177 = vmul.f32 %v5156, 1.442695
    %v5178 = vpow.pop %v5177
    %v5179 = vmul.f32 %v5157, 1.442695
    %v5180 = vpow.pop %v5179
    %v5181 = vmul.f32 %v5158, 1.442695
    %v5182 = vpow.pop %v5181
    %v5183 = vmul.f32 %v5159, 1.442695
    %v5184 = vpow.pop %v5183
    %v5185 = vmul.f32 %v5160, 1.442695
    %v5186 = vpow.pop %v5185
    %v5187 = vmul.f32 %v5161, 1.442695
    %v5188 = vpow.pop %v5187
    %v5189 = vmul.f32 %v5162, 1.442695
    %v5190 = vpow.pop %v5189
    %v5191 = vmul.f32 %v5163, 1.442695
    %v5192 = vpow.pop %v5191
    %v5193 = vmul.f32 %v5164, 1.442695
    %v5194 = vpow.pop %v5193
    %v5195 = vmul.f32 %v5165, 1.442695
    %v5196 = vpow.pop %v5195
    %v5197 = vmul.f32 %v5166, 1.442695
    %v5198 = vpow.pop %v5197
    %v5199 = vsel %vm91, %v5168, 0.0
    %5200 = vadd.xlane.f32.xlu0 %v5199
    %v5201 = vpop.xlane.xlu0 %5200
    %v5202 = vsel %vm91, %v5170, 0.0
    %5203 = vadd.xlane.f32.xlu0 %v5202
    %v5204 = vpop.xlane.xlu0 %5203
    %v5205 = vsel %vm91, %v5172, 0.0
    %5206 = vadd.xlane.f32.xlu0 %v5205
    %v5207 = vpop.xlane.xlu0 %5206
    %v5208 = vsel %vm91, %v5174, 0.0
    %5209 = vadd.xlane.f32.xlu0 %v5208
    %v5210 = vpop.xlane.xlu0 %5209
    %v5211 = vsel %vm91, %v5176, 0.0
    %5212 = vadd.xlane.f32.xlu0 %v5211
    %v5213 = vpop.xlane.xlu0 %5212
    %v5214 = vsel %vm91, %v5178, 0.0
    %5215 = vadd.xlane.f32.xlu0 %v5214
    %v5216 = vpop.xlane.xlu0 %5215
    %v5217 = vsel %vm91, %v5180, 0.0
    %5218 = vadd.xlane.f32.xlu0 %v5217
    %v5219 = vpop.xlane.xlu0 %5218
    %v5220 = vsel %vm91, %v5182, 0.0
    %5221 = vadd.xlane.f32.xlu0 %v5220
    %v5222 = vpop.xlane.xlu0 %5221
    %v5223 = vsel %vm91, %v5184, 0.0
    %5224 = vadd.xlane.f32.xlu0 %v5223
    %v5225 = vpop.xlane.xlu0 %5224
    %v5226 = vsel %vm91, %v5186, 0.0
    %5227 = vadd.xlane.f32.xlu0 %v5226
    %v5228 = vpop.xlane.xlu0 %5227
    %v5229 = vsel %vm91, %v5188, 0.0
    %5230 = vadd.xlane.f32.xlu0 %v5229
    %v5231 = vpop.xlane.xlu0 %5230
    %v5232 = vsel %vm91, %v5190, 0.0
    %5233 = vadd.xlane.f32.xlu0 %v5232
    %v5234 = vpop.xlane.xlu0 %5233
    %v5235 = vsel %vm91, %v5192, 0.0
    %5236 = vadd.xlane.f32.xlu0 %v5235
    %v5237 = vpop.xlane.xlu0 %5236
    %v5238 = vsel %vm91, %v5194, 0.0
    %5239 = vadd.xlane.f32.xlu0 %v5238
    %v5240 = vpop.xlane.xlu0 %5239
    %v5241 = vsel %vm91, %v5196, 0.0
    %5242 = vadd.xlane.f32.xlu0 %v5241
    %v5243 = vpop.xlane.xlu0 %5242
    %v5244 = vsel %vm91, %v5198, 0.0
    %5245 = vadd.xlane.f32.xlu0 %v5244
    %v5246 = vpop.xlane.xlu0 %5245
    %v5247 = vrcp.pop %v5201
    %v5248 = vrcp.pop %v5204
    %v5249 = vrcp.pop %v5207
    %v5250 = vrcp.pop %v5210
    %v5251 = vrcp.pop %v5213
    %v5252 = vrcp.pop %v5216
    %v5253 = vrcp.pop %v5219
    %v5254 = vrcp.pop %v5222
    %v5255 = vrcp.pop %v5225
    %v5256 = vrcp.pop %v5228
    %v5257 = vrcp.pop %v5231
    %v5258 = vrcp.pop %v5234
    %v5259 = vrcp.pop %v5237
    %v5260 = vrcp.pop %v5240
    %v5261 = vrcp.pop %v5243
    %v5262 = vrcp.pop %v5246
    %v5263 = vmul.f32 %v5168, %v5247
    %v5264 = vmul.f32 %v5170, %v5248
    %v5265 = vmul.f32 %v5172, %v5249
    %v5266 = vmul.f32 %v5174, %v5250
    %v5267 = vmul.f32 %v5176, %v5251
    %v5268 = vmul.f32 %v5178, %v5252
    %v5269 = vmul.f32 %v5180, %v5253
    %v5270 = vmul.f32 %v5182, %v5254
    %v5271 = vmul.f32 %v5184, %v5255
    %v5272 = vmul.f32 %v5186, %v5256
    %v5273 = vmul.f32 %v5188, %v5257
    %v5274 = vmul.f32 %v5190, %v5258
    %v5275 = vmul.f32 %v5192, %v5259
    %v5276 = vmul.f32 %v5194, %v5260
    %v5277 = vmul.f32 %v5196, %v5261
    %v5278 = vmul.f32 %v5198, %v5262
    %5279 = vrot.lane.b32.xlu0 %v462, 64
    %v5280 = vpop.permute.xlu0 %5279
    %5281 = vrot.lane.b32.xlu0 %v467, 64
    %v5282 = vpop.permute.xlu0 %5281
    %v5286 = vsel %vm91, %v5263, 0
    %v5289 = vsel %vm91, %v5264, 0
    %v5292 = vsel %vm91, %v5265, 0
    %v5295 = vsel %vm91, %v5266, 0
    %v5298 = vsel %vm91, %v5267, 0
    %v5301 = vsel %vm91, %v5268, 0
    %v5304 = vsel %vm91, %v5269, 0
    %v5307 = vsel %vm91, %v5270, 0
    %v5310 = vsel %vm91, %v5271, 0
    %v5313 = vsel %vm91, %v5272, 0
    %v5316 = vsel %vm91, %v5273, 0
    %v5319 = vsel %vm91, %v5274, 0
    %v5322 = vsel %vm91, %v5275, 0
    %v5325 = vsel %vm91, %v5276, 0
    %v5328 = vsel %vm91, %v5277, 0
    %v5331 = vsel %vm91, %v5278, 0
    %5333 = vmatprep.subr.mxu0 0.0
    %5334 = vmatpush1.msra.mxu0 %v5280
    %5335 = vmatprep.subr.mxu0 0.0
    %5336 = vmatpush1.msra.mxu0 %v5282
    %5337 = vmatprep.subr.mxu0 0.0
    %5338 = vmatpush1.msra.mxu0 0.0
    %5339 = vmatprep.subr.mxu0 0.0
    %5340 = vmatpush1.msra.mxu0 0.0
    %5341 = vmatprep.subr.mxu0 0.0
    %5342 = vmatpush1.msra.mxu0 0.0
    %5343 = vmatprep.subr.mxu0 0.0
    %5344 = vmatpush1.msra.mxu0 0.0
    %5345 = vmatprep.subr.mxu0 0.0
    %5346 = vmatpush1.msra.mxu0 0.0
    %5347 = vmatprep.subr.mxu0 0.0
    %5348 = vmatpush1.msra.mxu0 0.0
    %5349 = vmatprep.subr.mxu0 0.0
    %5350 = vmatpush1.msra.mxu0 0.0
    %5351 = vmatprep.subr.mxu0 0.0
    %5352 = vmatpush1.msra.mxu0 0.0
    %5353 = vmatprep.subr.mxu0 0.0
    %5354 = vmatpush1.msra.mxu0 0.0
    %5355 = vmatprep.subr.mxu0 0.0
    %5356 = vmatpush1.msra.mxu0 0.0
    %5357 = vmatprep.subr.mxu0 0.0
    %5358 = vmatpush1.msra.mxu0 0.0
    %5359 = vmatprep.subr.mxu0 0.0
    %5360 = vmatpush1.msra.mxu0 0.0
    %5361 = vmatprep.subr.mxu0 0.0
    %5362 = vmatpush1.msra.mxu0 0.0
    %5363 = vmatprep.subr.mxu0 0.0
    %5364 = vmatpush1.msra.mxu0 0.0
    %5365 = vmatprep.subr.mxu0 0.0
    %5366 = vmatpush1.msra.mxu0 0.0
    %5367 = vmatprep.subr.mxu0 0.0
    %5368 = vmatpush1.msra.mxu0 0.0
    %5369 = vmatprep.subr.mxu0 0.0
    %5370 = vmatpush1.msra.mxu0 0.0
    %5371 = vmatprep.subr.mxu0 0.0
    %5372 = vmatpush1.msra.mxu0 0.0
    %5373 = vmatprep.subr.mxu0 0.0
    %5374 = vmatpush1.msra.mxu0 0.0
    %5375 = vmatprep.subr.mxu0 0.0
    %5376 = vmatpush1.msra.mxu0 0.0
    %5377 = vmatprep.subr.mxu0 0.0
    %5378 = vmatpush1.msra.mxu0 0.0
    %5379 = vmatprep.subr.mxu0 0.0
    %5380 = vmatpush1.msra.mxu0 0.0
    %5381 = vmatprep.subr.mxu0 0.0
    %5382 = vmatpush1.msra.mxu0 0.0
    %5383 = vmatprep.subr.mxu0 0.0
    %5384 = vmatpush1.msra.mxu0 0.0
    %5385 = vmatprep.subr.mxu0 0.0
    %5386 = vmatpush1.msra.mxu0 0.0
    %5387 = vmatprep.subr.mxu0 0.0
    %5388 = vmatpush1.msra.mxu0 0.0
    %5389 = vmatprep.subr.mxu0 0.0
    %5390 = vmatpush1.msra.mxu0 0.0
    %5391 = vmatprep.subr.mxu0 0.0
    %5392 = vmatpush1.msra.mxu0 0.0
    %5393 = vmatprep.subr.mxu0 0.0
    %5394 = vmatpush1.msra.mxu0 0.0
    %5395 = vmatprep.subr.mxu0 0.0
    %5396 = vmatpush1.msra.mxu0 0.0
    %5397 = vmatprep.mubr.f32.mxu0 0.0
    %5398 = vmatmul.mubr.f32.gmra.mrb[0].mxu0 %v5286
    %v5399 = vpop.f32.mrb[0].mxu0
    %v5400 = vadd.f32 0.0, %v5399
    %v5401 = vpop.f32.mrb[0].mxu0
    %5402 = vmatprep.mubr.f32.mxu0 0.0
    %5403 = vmatmul.mubr.f32.gmra.mrb[0].mxu0 %v5289
    %v5404 = vpop.f32.mrb[0].mxu0
    %v5405 = vadd.f32 0.0, %v5404
    %v5406 = vpop.f32.mrb[0].mxu0
    %5407 = vmatprep.mubr.f32.mxu0 0.0
    %5408 = vmatmul.mubr.f32.gmra.mrb[0].mxu0 %v5292
    %v5409 = vpop.f32.mrb[0].mxu0
    %v5410 = vadd.f32 0.0, %v5409
    %v5411 = vpop.f32.mrb[0].mxu0
    %5412 = vmatprep.mubr.f32.mxu0 0.0
    %5413 = vmatmul.mubr.f32.gmra.mrb[0].mxu0 %v5295
    %v5414 = vpop.f32.mrb[0].mxu0
    %v5415 = vadd.f32 0.0, %v5414
    %v5416 = vpop.f32.mrb[0].mxu0
    %5417 = vmatprep.mubr.f32.mxu0 0.0
    %5418 = vmatmul.mubr.f32.gmra.mrb[0].mxu0 %v5298
    %v5419 = vpop.f32.mrb[0].mxu0
    %v5420 = vadd.f32 0.0, %v5419
    %v5421 = vpop.f32.mrb[0].mxu0
    %5422 = vmatprep.mubr.f32.mxu0 0.0
    %5423 = vmatmul.mubr.f32.gmra.mrb[0].mxu0 %v5301
    %v5424 = vpop.f32.mrb[0].mxu0
    %v5425 = vadd.f32 0.0, %v5424
    %v5426 = vpop.f32.mrb[0].mxu0
    %5427 = vmatprep.mubr.f32.mxu0 0.0
    %5428 = vmatmul.mubr.f32.gmra.mrb[0].mxu0 %v5304
    %v5429 = vpop.f32.mrb[0].mxu0
    %v5430 = vadd.f32 0.0, %v5429
    %v5431 = vpop.f32.mrb[0].mxu0
    %5432 = vmatprep.mubr.f32.mxu0 0.0
    %5433 = vmatmul.mubr.f32.gmra.mrb[0].mxu0 %v5307
    %v5434 = vpop.f32.mrb[0].mxu0
    %v5435 = vadd.f32 0.0, %v5434
    %v5436 = vpop.f32.mrb[0].mxu0
    %5437 = vmatprep.mubr.f32.mxu0 0.0
    %5438 = vmatmul.mubr.f32.gmra.mrb[0].mxu0 %v5310
    %v5439 = vpop.f32.mrb[0].mxu0
    %v5440 = vadd.f32 0.0, %v5439
    %v5441 = vpop.f32.mrb[0].mxu0
    %5442 = vmatprep.mubr.f32.mxu0 0.0
    %5443 = vmatmul.mubr.f32.gmra.mrb[0].mxu0 %v5313
    %v5444 = vpop.f32.mrb[0].mxu0
    %v5445 = vadd.f32 0.0, %v5444
    %v5446 = vpop.f32.mrb[0].mxu0
    %5447 = vmatprep.mubr.f32.mxu0 0.0
    %5448 = vmatmul.mubr.f32.gmra.mrb[0].mxu0 %v5316
    %v5449 = vpop.f32.mrb[0].mxu0
    %v5450 = vadd.f32 0.0, %v5449
    %v5451 = vpop.f32.mrb[0].mxu0
    %5452 = vmatprep.mubr.f32.mxu0 0.0
    %5453 = vmatmul.mubr.f32.gmra.mrb[0].mxu0 %v5319
    %v5454 = vpop.f32.mrb[0].mxu0
    %v5455 = vadd.f32 0.0, %v5454
    %v5456 = vpop.f32.mrb[0].mxu0
    %5457 = vmatprep.mubr.f32.mxu0 0.0
    %5458 = vmatmul.mubr.f32.gmra.mrb[0].mxu0 %v5322
    %v5459 = vpop.f32.mrb[0].mxu0
    %v5460 = vadd.f32 0.0, %v5459
    %v5461 = vpop.f32.mrb[0].mxu0
    %5462 = vmatprep.mubr.f32.mxu0 0.0
    %5463 = vmatmul.mubr.f32.gmra.mrb[0].mxu0 %v5325
    %v5464 = vpop.f32.mrb[0].mxu0
    %v5465 = vadd.f32 0.0, %v5464
    %v5466 = vpop.f32.mrb[0].mxu0
    %5467 = vmatprep.mubr.f32.mxu0 0.0
    %5468 = vmatmul.mubr.f32.gmra.mrb[0].mxu0 %v5328
    %v5469 = vpop.f32.mrb[0].mxu0
    %v5470 = vadd.f32 0.0, %v5469
    %v5471 = vpop.f32.mrb[0].mxu0
    %5472 = vmatprep.mubr.f32.mxu0 0.0
    %5473 = vmatmul.mubr.f32.gmra.mrb[0].mxu0 %v5331
    %v5474 = vpop.f32.mrb[0].mxu0
    %v5475 = vadd.f32 0.0, %v5474
    %v5476 = vpop.f32.mrb[0].mxu0
    %5477 = vdwg.mxu0
    %v5478 = vmul.f32 %v5400, %v508
    %v5479 = vmul.f32 %v5405, %v509
    %v5480 = vmul.f32 %v5410, %v510
    %v5481 = vmul.f32 %v5415, %v511
    %v5482 = vmul.f32 %v5420, %v512
    %v5483 = vmul.f32 %v5425, %v513
    %v5484 = vmul.f32 %v5430, %v514
    %v5485 = vmul.f32 %v5435, %v515
    %v5486 = vmul.f32 %v5440, %v516
    %v5487 = vmul.f32 %v5445, %v517
    %v5488 = vmul.f32 %v5450, %v518
    %v5489 = vmul.f32 %v5455, %v519
    %v5490 = vmul.f32 %v5460, %v520
    %v5491 = vmul.f32 %v5465, %v521
    %v5492 = vmul.f32 %v5470, %v522
    %v5493 = vmul.f32 %v5475, %v523
    %5494 = vmatprep.subr.mxu0 0.0
    %5495 = vmatpush1.msra.mxu0 %v5478
    %5496 = vmatprep.subr.mxu0 0.0
    %5497 = vmatpush1.msra.mxu0 %v5479
    %5498 = vmatprep.subr.mxu0 0.0
    %5499 = vmatpush1.msra.mxu0 %v5480
    %5500 = vmatprep.subr.mxu0 0.0
    %5501 = vmatpush1.msra.mxu0 %v5481
    %5502 = vmatprep.subr.mxu0 0.0
    %5503 = vmatpush1.msra.mxu0 %v5482
    %5504 = vmatprep.subr.mxu0 0.0
    %5505 = vmatpush1.msra.mxu0 %v5483
    %5506 = vmatprep.subr.mxu0 0.0
    %5507 = vmatpush1.msra.mxu0 %v5484
    %5508 = vmatprep.subr.mxu0 0.0
    %5509 = vmatpush1.msra.mxu0 %v5485
    %5510 = vmatprep.subr.mxu0 0.0
    %5511 = vmatpush1.msra.mxu0 %v5486
    %5512 = vmatprep.subr.mxu0 0.0
    %5513 = vmatpush1.msra.mxu0 %v5487
    %5514 = vmatprep.subr.mxu0 0.0
    %5515 = vmatpush1.msra.mxu0 %v5488
    %5516 = vmatprep.subr.mxu0 0.0
    %5517 = vmatpush1.msra.mxu0 %v5489
    %5518 = vmatprep.subr.mxu0 0.0
    %5519 = vmatpush1.msra.mxu0 %v5490
    %5520 = vmatprep.subr.mxu0 0.0
    %5521 = vmatpush1.msra.mxu0 %v5491
    %5522 = vmatprep.subr.mxu0 0.0
    %5523 = vmatpush1.msra.mxu0 %v5492
    %5524 = vmatprep.subr.mxu0 0.0
    %5525 = vmatpush1.msra.mxu0 %v5493
    %5526 = vmatprep.subr.mxu0 0.0
    %5527 = vmatpush1.msra.mxu0 0.0
    %5528 = vmatprep.subr.mxu0 0.0
    %5529 = vmatpush1.msra.mxu0 0.0
    %5530 = vmatprep.subr.mxu0 0.0
    %5531 = vmatpush1.msra.mxu0 0.0
    %5532 = vmatprep.subr.mxu0 0.0
    %5533 = vmatpush1.msra.mxu0 0.0
    %5534 = vmatprep.subr.mxu0 0.0
    %5535 = vmatpush1.msra.mxu0 0.0
    %5536 = vmatprep.subr.mxu0 0.0
    %5537 = vmatpush1.msra.mxu0 0.0
    %5538 = vmatprep.subr.mxu0 0.0
    %5539 = vmatpush1.msra.mxu0 0.0
    %5540 = vmatprep.subr.mxu0 0.0
    %5541 = vmatpush1.msra.mxu0 0.0
    %5542 = vmatprep.subr.mxu0 0.0
    %5543 = vmatpush1.msra.mxu0 0.0
    %5544 = vmatprep.subr.mxu0 0.0
    %5545 = vmatpush1.msra.mxu0 0.0
    %5546 = vmatprep.subr.mxu0 0.0
    %5547 = vmatpush1.msra.mxu0 0.0
    %5548 = vmatprep.subr.mxu0 0.0
    %5549 = vmatpush1.msra.mxu0 0.0
    %5550 = vmatprep.subr.mxu0 0.0
    %5551 = vmatpush1.msra.mxu0 0.0
    %5552 = vmatprep.subr.mxu0 0.0
    %5553 = vmatpush1.msra.mxu0 0.0
    %5554 = vmatprep.subr.mxu0 0.0
    %5555 = vmatpush1.msra.mxu0 0.0
    %5556 = vmatprep.subr.mxu0 0.0
    %5557 = vmatpush1.msra.mxu0 0.0
    %5558 = vmatprep.mubr.f32.mxu0 0.0
    %5559 = vmatmul.mubr.f32.gmra.mrb[0].mxu0 %v506
    %v5560 = vpop.f32.mrb[0].mxu0
    %v5561 = vadd.f32 0.0, %v5560
    %v5562 = vpop.f32.mrb[0].mxu0
    %5563 = vmatprep.mubr.f32.mxu0 0.0
    %5564 = vmatmul.mubr.f32.gmra.mrb[0].mxu0 %v507
    %v5565 = vpop.f32.mrb[0].mxu0
    %v5566 = vadd.f32 0.0, %v5565
    %v5567 = vpop.f32.mrb[0].mxu0
    %5568 = vdwg.mxu0
    %5569 = vst.msk [vmem:[#allocation2 + $0x50] sm:$0xff] %vm296, %v5561
    %5570 = vst.msk [vmem:[#allocation2 + $0x58] sm:$0xff] %vm296, %v5566
    %5571 = vmatprep.subr.mxu0 0.0
    %5572 = vmatpush1.msra.mxu0 %v472
    %5573 = vmatprep.subr.mxu0 0.0
    %5574 = vmatpush1.msra.mxu0 %v477
    %5575 = vmatprep.subr.mxu0 0.0
    %5576 = vmatpush1.msra.mxu0 0.0
    %5577 = vmatprep.subr.mxu0 0.0
    %5578 = vmatpush1.msra.mxu0 0.0
    %5579 = vmatprep.subr.mxu0 0.0
    %5580 = vmatpush1.msra.mxu0 0.0
    %5581 = vmatprep.subr.mxu0 0.0
    %5582 = vmatpush1.msra.mxu0 0.0
    %5583 = vmatprep.subr.mxu0 0.0
    %5584 = vmatpush1.msra.mxu0 0.0
    %5585 = vmatprep.subr.mxu0 0.0
    %5586 = vmatpush1.msra.mxu0 0.0
    %5587 = vmatprep.subr.mxu0 0.0
    %5588 = vmatpush1.msra.mxu0 0.0
    %5589 = vmatprep.subr.mxu0 0.0
    %5590 = vmatpush1.msra.mxu0 0.0
    %5591 = vmatprep.subr.mxu0 0.0
    %5592 = vmatpush1.msra.mxu0 0.0
    %5593 = vmatprep.subr.mxu0 0.0
    %5594 = vmatpush1.msra.mxu0 0.0
    %5595 = vmatprep.subr.mxu0 0.0
    %5596 = vmatpush1.msra.mxu0 0.0
    %5597 = vmatprep.subr.mxu0 0.0
    %5598 = vmatpush1.msra.mxu0 0.0
    %5599 = vmatprep.subr.mxu0 0.0
    %5600 = vmatpush1.msra.mxu0 0.0
    %5601 = vmatprep.subr.mxu0 0.0
    %5602 = vmatpush1.msra.mxu0 0.0
    %5603 = vmatprep.subr.mxu0 0.0
    %5604 = vmatpush1.msra.mxu0 0.0
    %5605 = vmatprep.subr.mxu0 0.0
    %5606 = vmatpush1.msra.mxu0 0.0
    %5607 = vmatprep.subr.mxu0 0.0
    %5608 = vmatpush1.msra.mxu0 0.0
    %5609 = vmatprep.subr.mxu0 0.0
    %5610 = vmatpush1.msra.mxu0 0.0
    %5611 = vmatprep.subr.mxu0 0.0
    %5612 = vmatpush1.msra.mxu0 0.0
    %5613 = vmatprep.subr.mxu0 0.0
    %5614 = vmatpush1.msra.mxu0 0.0
    %5615 = vmatprep.subr.mxu0 0.0
    %5616 = vmatpush1.msra.mxu0 0.0
    %5617 = vmatprep.subr.mxu0 0.0
    %5618 = vmatpush1.msra.mxu0 0.0
    %5619 = vmatprep.subr.mxu0 0.0
    %5620 = vmatpush1.msra.mxu0 0.0
    %5621 = vmatprep.subr.mxu0 0.0
    %5622 = vmatpush1.msra.mxu0 0.0
    %5623 = vmatprep.subr.mxu0 0.0
    %5624 = vmatpush1.msra.mxu0 0.0
    %5625 = vmatprep.subr.mxu0 0.0
    %5626 = vmatpush1.msra.mxu0 0.0
    %5627 = vmatprep.subr.mxu0 0.0
    %5628 = vmatpush1.msra.mxu0 0.0
    %5629 = vmatprep.subr.mxu0 0.0
    %5630 = vmatpush1.msra.mxu0 0.0
    %5631 = vmatprep.subr.mxu0 0.0
    %5632 = vmatpush1.msra.mxu0 0.0
    %5633 = vmatprep.subr.mxu0 0.0
    %5634 = vmatpush1.msra.mxu0 0.0
    %5635 = vmatprep.mubr.f32.mxu0 0.0
    %5636 = vmatmul.mubr.f32.gmra.mrb[0].mxu0 %v526
    %v5637 = vpop.f32.mrb[0].mxu0
    %v5638 = vadd.f32 0.0, %v5637
    %v5639 = vpop.f32.mrb[0].mxu0
    %5640 = vmatprep.mubr.f32.mxu0 0.0
    %5641 = vmatmul.mubr.f32.gmra.mrb[0].mxu0 %v529
    %v5642 = vpop.f32.mrb[0].mxu0
    %v5643 = vadd.f32 0.0, %v5642
    %v5644 = vpop.f32.mrb[0].mxu0
    %5645 = vmatprep.mubr.f32.mxu0 0.0
    %5646 = vmatmul.mubr.f32.gmra.mrb[0].mxu0 %v532
    %v5647 = vpop.f32.mrb[0].mxu0
    %v5648 = vadd.f32 0.0, %v5647
    %v5649 = vpop.f32.mrb[0].mxu0
    %5650 = vmatprep.mubr.f32.mxu0 0.0
    %5651 = vmatmul.mubr.f32.gmra.mrb[0].mxu0 %v535
    %v5652 = vpop.f32.mrb[0].mxu0
    %v5653 = vadd.f32 0.0, %v5652
    %v5654 = vpop.f32.mrb[0].mxu0
    %5655 = vmatprep.mubr.f32.mxu0 0.0
    %5656 = vmatmul.mubr.f32.gmra.mrb[0].mxu0 %v538
    %v5657 = vpop.f32.mrb[0].mxu0
    %v5658 = vadd.f32 0.0, %v5657
    %v5659 = vpop.f32.mrb[0].mxu0
    %5660 = vmatprep.mubr.f32.mxu0 0.0
    %5661 = vmatmul.mubr.f32.gmra.mrb[0].mxu0 %v541
    %v5662 = vpop.f32.mrb[0].mxu0
    %v5663 = vadd.f32 0.0, %v5662
    %v5664 = vpop.f32.mrb[0].mxu0
    %5665 = vmatprep.mubr.f32.mxu0 0.0
    %5666 = vmatmul.mubr.f32.gmra.mrb[0].mxu0 %v544
    %v5667 = vpop.f32.mrb[0].mxu0
    %v5668 = vadd.f32 0.0, %v5667
    %v5669 = vpop.f32.mrb[0].mxu0
    %5670 = vmatprep.mubr.f32.mxu0 0.0
    %5671 = vmatmul.mubr.f32.gmra.mrb[0].mxu0 %v547
    %v5672 = vpop.f32.mrb[0].mxu0
    %v5673 = vadd.f32 0.0, %v5672
    %v5674 = vpop.f32.mrb[0].mxu0
    %5675 = vmatprep.mubr.f32.mxu0 0.0
    %5676 = vmatmul.mubr.f32.gmra.mrb[0].mxu0 %v550
    %v5677 = vpop.f32.mrb[0].mxu0
    %v5678 = vadd.f32 0.0, %v5677
    %v5679 = vpop.f32.mrb[0].mxu0
    %5680 = vmatprep.mubr.f32.mxu0 0.0
    %5681 = vmatmul.mubr.f32.gmra.mrb[0].mxu0 %v553
    %v5682 = vpop.f32.mrb[0].mxu0
    %v5683 = vadd.f32 0.0, %v5682
    %v5684 = vpop.f32.mrb[0].mxu0
    %5685 = vmatprep.mubr.f32.mxu0 0.0
    %5686 = vmatmul.mubr.f32.gmra.mrb[0].mxu0 %v556
    %v5687 = vpop.f32.mrb[0].mxu0
    %v5688 = vadd.f32 0.0, %v5687
    %v5689 = vpop.f32.mrb[0].mxu0
    %5690 = vmatprep.mubr.f32.mxu0 0.0
    %5691 = vmatmul.mubr.f32.gmra.mrb[0].mxu0 %v559
    %v5692 = vpop.f32.mrb[0].mxu0
    %v5693 = vadd.f32 0.0, %v5692
    %v5694 = vpop.f32.mrb[0].mxu0
    %5695 = vmatprep.mubr.f32.mxu0 0.0
    %5696 = vmatmul.mubr.f32.gmra.mrb[0].mxu0 %v562
    %v5697 = vpop.f32.mrb[0].mxu0
    %v5698 = vadd.f32 0.0, %v5697
    %v5699 = vpop.f32.mrb[0].mxu0
    %5700 = vmatprep.mubr.f32.mxu0 0.0
    %5701 = vmatmul.mubr.f32.gmra.mrb[0].mxu0 %v565
    %v5702 = vpop.f32.mrb[0].mxu0
    %v5703 = vadd.f32 0.0, %v5702
    %v5704 = vpop.f32.mrb[0].mxu0
    %5705 = vmatprep.mubr.f32.mxu0 0.0
    %5706 = vmatmul.mubr.f32.gmra.mrb[0].mxu0 %v568
    %v5707 = vpop.f32.mrb[0].mxu0
    %v5708 = vadd.f32 0.0, %v5707
    %v5709 = vpop.f32.mrb[0].mxu0
    %5710 = vmatprep.mubr.f32.mxu0 0.0
    %5711 = vmatmul.mubr.f32.gmra.mrb[0].mxu0 %v571
    %v5712 = vpop.f32.mrb[0].mxu0
    %v5713 = vadd.f32 0.0, %v5712
    %v5714 = vpop.f32.mrb[0].mxu0
    %5715 = vdwg.mxu0
    %v5716 = vmul.f32 %v5638, %v508
    %v5717 = vmul.f32 %v5643, %v509
    %v5718 = vmul.f32 %v5648, %v510
    %v5719 = vmul.f32 %v5653, %v511
    %v5720 = vmul.f32 %v5658, %v512
    %v5721 = vmul.f32 %v5663, %v513
    %v5722 = vmul.f32 %v5668, %v514
    %v5723 = vmul.f32 %v5673, %v515
    %v5724 = vmul.f32 %v5678, %v516
    %v5725 = vmul.f32 %v5683, %v517
    %v5726 = vmul.f32 %v5688, %v518
    %v5727 = vmul.f32 %v5693, %v519
    %v5728 = vmul.f32 %v5698, %v520
    %v5729 = vmul.f32 %v5703, %v521
    %v5730 = vmul.f32 %v5708, %v522
    %v5731 = vmul.f32 %v5713, %v523
    %5734 = vrot.lane.b32.xlu0 %v472, 96
    %v5735 = vpop.permute.xlu0 %5734
    %5736 = vrot.lane.b32.xlu0 %v477, 96
    %v5737 = vpop.permute.xlu0 %5736
    %v5739 = vsel %vm296, %v5716, 0
    %v5742 = vsel %vm296, %v5717, 0
    %v5745 = vsel %vm296, %v5718, 0
    %v5748 = vsel %vm296, %v5719, 0
    %v5751 = vsel %vm296, %v5720, 0
    %v5754 = vsel %vm296, %v5721, 0
    %v5757 = vsel %vm296, %v5722, 0
    %v5760 = vsel %vm296, %v5723, 0
    %v5763 = vsel %vm296, %v5724, 0
    %v5766 = vsel %vm296, %v5725, 0
    %v5769 = vsel %vm296, %v5726, 0
    %v5772 = vsel %vm296, %v5727, 0
    %v5775 = vsel %vm296, %v5728, 0
    %v5778 = vsel %vm296, %v5729, 0
    %v5781 = vsel %vm296, %v5730, 0
    %v5784 = vsel %vm296, %v5731, 0
    %v5786 = vsel %vm296, %v5735, 0
    %v5788 = vsel %vm296, %v5737, 0
    %5790 = vmatprep.subr.mxu0 0.0
    %5791 = vmatpush1.xpose.msra.mxu0 %v5786
    %5792 = vmatprep.subr.mxu0 0.0
    %5793 = vmatpush1.xpose.msra.mxu0 %v5788
    %5794 = vmatprep.subr.mxu0 0.0
    %5795 = vmatpush1.xpose.msra.mxu0 0.0
    %5796 = vmatprep.subr.mxu0 0.0
    %5797 = vmatpush1.xpose.msra.mxu0 0.0
    %5798 = vmatprep.subr.mxu0 0.0
    %5799 = vmatpush1.xpose.msra.mxu0 0.0
    %5800 = vmatprep.subr.mxu0 0.0
    %5801 = vmatpush1.xpose.msra.mxu0 0.0
    %5802 = vmatprep.subr.mxu0 0.0
    %5803 = vmatpush1.xpose.msra.mxu0 0.0
    %5804 = vmatprep.subr.mxu0 0.0
    %5805 = vmatpush1.xpose.msra.mxu0 0.0
    %5806 = vmatprep.subr.mxu0 0.0
    %5807 = vmatpush1.xpose.msra.mxu0 0.0
    %5808 = vmatprep.subr.mxu0 0.0
    %5809 = vmatpush1.xpose.msra.mxu0 0.0
    %5810 = vmatprep.subr.mxu0 0.0
    %5811 = vmatpush1.xpose.msra.mxu0 0.0
    %5812 = vmatprep.subr.mxu0 0.0
    %5813 = vmatpush1.xpose.msra.mxu0 0.0
    %5814 = vmatprep.subr.mxu0 0.0
    %5815 = vmatpush1.xpose.msra.mxu0 0.0
    %5816 = vmatprep.subr.mxu0 0.0
    %5817 = vmatpush1.xpose.msra.mxu0 0.0
    %5818 = vmatprep.subr.mxu0 0.0
    %5819 = vmatpush1.xpose.msra.mxu0 0.0
    %5820 = vmatprep.subr.mxu0 0.0
    %5821 = vmatpush1.xpose.msra.mxu0 0.0
    %5822 = vmatprep.subr.mxu0 0.0
    %5823 = vmatpush1.xpose.msra.mxu0 0.0
    %5824 = vmatprep.subr.mxu0 0.0
    %5825 = vmatpush1.xpose.msra.mxu0 0.0
    %5826 = vmatprep.subr.mxu0 0.0
    %5827 = vmatpush1.xpose.msra.mxu0 0.0
    %5828 = vmatprep.subr.mxu0 0.0
    %5829 = vmatpush1.xpose.msra.mxu0 0.0
    %5830 = vmatprep.subr.mxu0 0.0
    %5831 = vmatpush1.xpose.msra.mxu0 0.0
    %5832 = vmatprep.subr.mxu0 0.0
    %5833 = vmatpush1.xpose.msra.mxu0 0.0
    %5834 = vmatprep.subr.mxu0 0.0
    %5835 = vmatpush1.xpose.msra.mxu0 0.0
    %5836 = vmatprep.subr.mxu0 0.0
    %5837 = vmatpush1.xpose.msra.mxu0 0.0
    %5838 = vmatprep.subr.mxu0 0.0
    %5839 = vmatpush1.xpose.msra.mxu0 0.0
    %5840 = vmatprep.subr.mxu0 0.0
    %5841 = vmatpush1.xpose.msra.mxu0 0.0
    %5842 = vmatprep.subr.mxu0 0.0
    %5843 = vmatpush1.xpose.msra.mxu0 0.0
    %5844 = vmatprep.subr.mxu0 0.0
    %5845 = vmatpush1.xpose.msra.mxu0 0.0
    %5846 = vmatprep.subr.mxu0 0.0
    %5847 = vmatpush1.xpose.msra.mxu0 0.0
    %5848 = vmatprep.subr.mxu0 0.0
    %5849 = vmatpush1.xpose.msra.mxu0 0.0
    %5850 = vmatprep.subr.mxu0 0.0
    %5851 = vmatpush1.xpose.msra.mxu0 0.0
    %5852 = vmatprep.subr.mxu0 0.0
    %5853 = vmatpush1.xpose.msra.mxu0 0.0
    %5854 = vmatprep.mubr.f32.mxu0 0.0
    %5855 = vmatmul.mubr.f32.gmra.mrb[0].mxu0 %v5739
    %v5856 = vpop.f32.mrb[0].mxu0
    %v5857 = vadd.f32 %v738, %v5856
    %v5858 = vpop.f32.mrb[0].mxu0
    %5859 = vmatprep.mubr.f32.mxu0 0.0
    %5860 = vmatmul.mubr.f32.gmra.mrb[0].mxu0 %v5742
    %v5861 = vpop.f32.mrb[0].mxu0
    %v5862 = vadd.f32 %v738, %v5861
    %v5863 = vpop.f32.mrb[0].mxu0
    %5864 = vmatprep.mubr.f32.mxu0 0.0
    %5865 = vmatmul.mubr.f32.gmra.mrb[0].mxu0 %v5745
    %v5866 = vpop.f32.mrb[0].mxu0
    %v5867 = vadd.f32 %v738, %v5866
    %v5868 = vpop.f32.mrb[0].mxu0
    %5869 = vmatprep.mubr.f32.mxu0 0.0
    %5870 = vmatmul.mubr.f32.gmra.mrb[0].mxu0 %v5748
    %v5871 = vpop.f32.mrb[0].mxu0
    %v5872 = vadd.f32 %v738, %v5871
    %v5873 = vpop.f32.mrb[0].mxu0
    %5874 = vmatprep.mubr.f32.mxu0 0.0
    %5875 = vmatmul.mubr.f32.gmra.mrb[0].mxu0 %v5751
    %v5876 = vpop.f32.mrb[0].mxu0
    %v5877 = vadd.f32 %v738, %v5876
    %v5878 = vpop.f32.mrb[0].mxu0
    %5879 = vmatprep.mubr.f32.mxu0 0.0
    %5880 = vmatmul.mubr.f32.gmra.mrb[0].mxu0 %v5754
    %v5881 = vpop.f32.mrb[0].mxu0
    %v5882 = vadd.f32 %v738, %v5881
    %v5883 = vpop.f32.mrb[0].mxu0
    %5884 = vmatprep.mubr.f32.mxu0 0.0
    %5885 = vmatmul.mubr.f32.gmra.mrb[0].mxu0 %v5757
    %v5886 = vpop.f32.mrb[0].mxu0
    %v5887 = vadd.f32 %v738, %v5886
    %v5888 = vpop.f32.mrb[0].mxu0
    %5889 = vmatprep.mubr.f32.mxu0 0.0
    %5890 = vmatmul.mubr.f32.gmra.mrb[0].mxu0 %v5760
    %v5891 = vpop.f32.mrb[0].mxu0
    %v5892 = vadd.f32 %v738, %v5891
    %v5893 = vpop.f32.mrb[0].mxu0
    %5894 = vmatprep.mubr.f32.mxu0 0.0
    %5895 = vmatmul.mubr.f32.gmra.mrb[0].mxu0 %v5763
    %v5896 = vpop.f32.mrb[0].mxu0
    %v5897 = vadd.f32 %v738, %v5896
    %v5898 = vpop.f32.mrb[0].mxu0
    %5899 = vmatprep.mubr.f32.mxu0 0.0
    %5900 = vmatmul.mubr.f32.gmra.mrb[0].mxu0 %v5766
    %v5901 = vpop.f32.mrb[0].mxu0
    %v5902 = vadd.f32 %v738, %v5901
    %v5903 = vpop.f32.mrb[0].mxu0
    %5904 = vmatprep.mubr.f32.mxu0 0.0
    %5905 = vmatmul.mubr.f32.gmra.mrb[0].mxu0 %v5769
    %v5906 = vpop.f32.mrb[0].mxu0
    %v5907 = vadd.f32 %v738, %v5906
    %v5908 = vpop.f32.mrb[0].mxu0
    %5909 = vmatprep.mubr.f32.mxu0 0.0
    %5910 = vmatmul.mubr.f32.gmra.mrb[0].mxu0 %v5772
    %v5911 = vpop.f32.mrb[0].mxu0
    %v5912 = vadd.f32 %v738, %v5911
    %v5913 = vpop.f32.mrb[0].mxu0
    %5914 = vmatprep.mubr.f32.mxu0 0.0
    %5915 = vmatmul.mubr.f32.gmra.mrb[0].mxu0 %v5775
    %v5916 = vpop.f32.mrb[0].mxu0
    %v5917 = vadd.f32 %v738, %v5916
    %v5918 = vpop.f32.mrb[0].mxu0
    %5919 = vmatprep.mubr.f32.mxu0 0.0
    %5920 = vmatmul.mubr.f32.gmra.mrb[0].mxu0 %v5778
    %v5921 = vpop.f32.mrb[0].mxu0
    %v5922 = vadd.f32 %v738, %v5921
    %v5923 = vpop.f32.mrb[0].mxu0
    %5924 = vmatprep.mubr.f32.mxu0 0.0
    %5925 = vmatmul.mubr.f32.gmra.mrb[0].mxu0 %v5781
    %v5926 = vpop.f32.mrb[0].mxu0
    %v5927 = vadd.f32 %v738, %v5926
    %v5928 = vpop.f32.mrb[0].mxu0
    %5929 = vmatprep.mubr.f32.mxu0 0.0
    %5930 = vmatmul.mubr.f32.gmra.mrb[0].mxu0 %v5784
    %v5931 = vpop.f32.mrb[0].mxu0
    %v5932 = vadd.f32 %v738, %v5931
    %v5933 = vpop.f32.mrb[0].mxu0
    %5934 = vdwg.mxu0
    %v5935 = vsel %vm91, %v5857, -inf
    %5936 = vmax.xlane.f32.xlu0 %v5935
    %v5937 = vpop.xlane.xlu0 %5936
    %v5938 = vsel %vm91, %v5862, -inf
    %5939 = vmax.xlane.f32.xlu0 %v5938
    %v5940 = vpop.xlane.xlu0 %5939
    %v5941 = vsel %vm91, %v5867, -inf
    %5942 = vmax.xlane.f32.xlu0 %v5941
    %v5943 = vpop.xlane.xlu0 %5942
    %v5944 = vsel %vm91, %v5872, -inf
    %5945 = vmax.xlane.f32.xlu0 %v5944
    %v5946 = vpop.xlane.xlu0 %5945
    %v5947 = vsel %vm91, %v5877, -inf
    %5948 = vmax.xlane.f32.xlu0 %v5947
    %v5949 = vpop.xlane.xlu0 %5948
    %v5950 = vsel %vm91, %v5882, -inf
    %5951 = vmax.xlane.f32.xlu0 %v5950
    %v5952 = vpop.xlane.xlu0 %5951
    %v5953 = vsel %vm91, %v5887, -inf
    %5954 = vmax.xlane.f32.xlu0 %v5953
    %v5955 = vpop.xlane.xlu0 %5954
    %v5956 = vsel %vm91, %v5892, -inf
    %5957 = vmax.xlane.f32.xlu0 %v5956
    %v5958 = vpop.xlane.xlu0 %5957
    %v5959 = vsel %vm91, %v5897, -inf
    %5960 = vmax.xlane.f32.xlu0 %v5959
    %v5961 = vpop.xlane.xlu0 %5960
    %v5962 = vsel %vm91, %v5902, -inf
    %5963 = vmax.xlane.f32.xlu0 %v5962
    %v5964 = vpop.xlane.xlu0 %5963
    %v5965 = vsel %vm91, %v5907, -inf
    %5966 = vmax.xlane.f32.xlu0 %v5965
    %v5967 = vpop.xlane.xlu0 %5966
    %v5968 = vsel %vm91, %v5912, -inf
    %5969 = vmax.xlane.f32.xlu0 %v5968
    %v5970 = vpop.xlane.xlu0 %5969
    %v5971 = vsel %vm91, %v5917, -inf
    %5972 = vmax.xlane.f32.xlu0 %v5971
    %v5973 = vpop.xlane.xlu0 %5972
    %v5974 = vsel %vm91, %v5922, -inf
    %5975 = vmax.xlane.f32.xlu0 %v5974
    %v5976 = vpop.xlane.xlu0 %5975
    %v5977 = vsel %vm91, %v5927, -inf
    %5978 = vmax.xlane.f32.xlu0 %v5977
    %v5979 = vpop.xlane.xlu0 %5978
    %v5980 = vsel %vm91, %v5932, -inf
    %5981 = vmax.xlane.f32.xlu0 %v5980
    %v5982 = vpop.xlane.xlu0 %5981
    %v5983 = vsub.f32 %v5857, %v5937
    %v5984 = vsub.f32 %v5862, %v5940
    %v5985 = vsub.f32 %v5867, %v5943
    %v5986 = vsub.f32 %v5872, %v5946
    %v5987 = vsub.f32 %v5877, %v5949
    %v5988 = vsub.f32 %v5882, %v5952
    %v5989 = vsub.f32 %v5887, %v5955
    %v5990 = vsub.f32 %v5892, %v5958
    %v5991 = vsub.f32 %v5897, %v5961
    %v5992 = vsub.f32 %v5902, %v5964
    %v5993 = vsub.f32 %v5907, %v5967
    %v5994 = vsub.f32 %v5912, %v5970
    %v5995 = vsub.f32 %v5917, %v5973
    %v5996 = vsub.f32 %v5922, %v5976
    %v5997 = vsub.f32 %v5927, %v5979
    %v5998 = vsub.f32 %v5932, %v5982
    %v5999 = vmul.f32 %v5983, 1.442695
    %v6000 = vpow.pop %v5999
    %v6001 = vmul.f32 %v5984, 1.442695
    %v6002 = vpow.pop %v6001
    %v6003 = vmul.f32 %v5985, 1.442695
    %v6004 = vpow.pop %v6003
    %v6005 = vmul.f32 %v5986, 1.442695
    %v6006 = vpow.pop %v6005
    %v6007 = vmul.f32 %v5987, 1.442695
    %v6008 = vpow.pop %v6007
    %v6009 = vmul.f32 %v5988, 1.442695
    %v6010 = vpow.pop %v6009
    %v6011 = vmul.f32 %v5989, 1.442695
    %v6012 = vpow.pop %v6011
    %v6013 = vmul.f32 %v5990, 1.442695
    %v6014 = vpow.pop %v6013
    %v6015 = vmul.f32 %v5991, 1.442695
    %v6016 = vpow.pop %v6015
    %v6017 = vmul.f32 %v5992, 1.442695
    %v6018 = vpow.pop %v6017
    %v6019 = vmul.f32 %v5993, 1.442695
    %v6020 = vpow.pop %v6019
    %v6021 = vmul.f32 %v5994, 1.442695
    %v6022 = vpow.pop %v6021
    %v6023 = vmul.f32 %v5995, 1.442695
    %v6024 = vpow.pop %v6023
    %v6025 = vmul.f32 %v5996, 1.442695
    %v6026 = vpow.pop %v6025
    %v6027 = vmul.f32 %v5997, 1.442695
    %v6028 = vpow.pop %v6027
    %v6029 = vmul.f32 %v5998, 1.442695
    %v6030 = vpow.pop %v6029
    %v6031 = vsel %vm91, %v6000, 0.0
    %6032 = vadd.xlane.f32.xlu0 %v6031
    %v6033 = vpop.xlane.xlu0 %6032
    %v6034 = vsel %vm91, %v6002, 0.0
    %6035 = vadd.xlane.f32.xlu0 %v6034
    %v6036 = vpop.xlane.xlu0 %6035
    %v6037 = vsel %vm91, %v6004, 0.0
    %6038 = vadd.xlane.f32.xlu0 %v6037
    %v6039 = vpop.xlane.xlu0 %6038
    %v6040 = vsel %vm91, %v6006, 0.0
    %6041 = vadd.xlane.f32.xlu0 %v6040
    %v6042 = vpop.xlane.xlu0 %6041
    %v6043 = vsel %vm91, %v6008, 0.0
    %6044 = vadd.xlane.f32.xlu0 %v6043
    %v6045 = vpop.xlane.xlu0 %6044
    %v6046 = vsel %vm91, %v6010, 0.0
    %6047 = vadd.xlane.f32.xlu0 %v6046
    %v6048 = vpop.xlane.xlu0 %6047
    %v6049 = vsel %vm91, %v6012, 0.0
    %6050 = vadd.xlane.f32.xlu0 %v6049
    %v6051 = vpop.xlane.xlu0 %6050
    %v6052 = vsel %vm91, %v6014, 0.0
    %6053 = vadd.xlane.f32.xlu0 %v6052
    %v6054 = vpop.xlane.xlu0 %6053
    %v6055 = vsel %vm91, %v6016, 0.0
    %6056 = vadd.xlane.f32.xlu0 %v6055
    %v6057 = vpop.xlane.xlu0 %6056
    %v6058 = vsel %vm91, %v6018, 0.0
    %6059 = vadd.xlane.f32.xlu0 %v6058
    %v6060 = vpop.xlane.xlu0 %6059
    %v6061 = vsel %vm91, %v6020, 0.0
    %6062 = vadd.xlane.f32.xlu0 %v6061
    %v6063 = vpop.xlane.xlu0 %6062
    %v6064 = vsel %vm91, %v6022, 0.0
    %6065 = vadd.xlane.f32.xlu0 %v6064
    %v6066 = vpop.xlane.xlu0 %6065
    %v6067 = vsel %vm91, %v6024, 0.0
    %6068 = vadd.xlane.f32.xlu0 %v6067
    %v6069 = vpop.xlane.xlu0 %6068
    %v6070 = vsel %vm91, %v6026, 0.0
    %6071 = vadd.xlane.f32.xlu0 %v6070
    %v6072 = vpop.xlane.xlu0 %6071
    %v6073 = vsel %vm91, %v6028, 0.0
    %6074 = vadd.xlane.f32.xlu0 %v6073
    %v6075 = vpop.xlane.xlu0 %6074
    %v6076 = vsel %vm91, %v6030, 0.0
    %6077 = vadd.xlane.f32.xlu0 %v6076
    %v6078 = vpop.xlane.xlu0 %6077
    %v6079 = vrcp.pop %v6033
    %v6080 = vrcp.pop %v6036
    %v6081 = vrcp.pop %v6039
    %v6082 = vrcp.pop %v6042
    %v6083 = vrcp.pop %v6045
    %v6084 = vrcp.pop %v6048
    %v6085 = vrcp.pop %v6051
    %v6086 = vrcp.pop %v6054
    %v6087 = vrcp.pop %v6057
    %v6088 = vrcp.pop %v6060
    %v6089 = vrcp.pop %v6063
    %v6090 = vrcp.pop %v6066
    %v6091 = vrcp.pop %v6069
    %v6092 = vrcp.pop %v6072
    %v6093 = vrcp.pop %v6075
    %v6094 = vrcp.pop %v6078
    %v6095 = vmul.f32 %v6000, %v6079
    %v6096 = vmul.f32 %v6002, %v6080
    %v6097 = vmul.f32 %v6004, %v6081
    %v6098 = vmul.f32 %v6006, %v6082
    %v6099 = vmul.f32 %v6008, %v6083
    %v6100 = vmul.f32 %v6010, %v6084
    %v6101 = vmul.f32 %v6012, %v6085
    %v6102 = vmul.f32 %v6014, %v6086
    %v6103 = vmul.f32 %v6016, %v6087
    %v6104 = vmul.f32 %v6018, %v6088
    %v6105 = vmul.f32 %v6020, %v6089
    %v6106 = vmul.f32 %v6022, %v6090
    %v6107 = vmul.f32 %v6024, %v6091
    %v6108 = vmul.f32 %v6026, %v6092
    %v6109 = vmul.f32 %v6028, %v6093
    %v6110 = vmul.f32 %v6030, %v6094
    %6111 = vrot.lane.b32.xlu0 %v472, 64
    %v6112 = vpop.permute.xlu0 %6111
    %6113 = vrot.lane.b32.xlu0 %v477, 64
    %v6114 = vpop.permute.xlu0 %6113
    %v6118 = vsel %vm91, %v6095, 0
    %v6121 = vsel %vm91, %v6096, 0
    %v6124 = vsel %vm91, %v6097, 0
    %v6127 = vsel %vm91, %v6098, 0
    %v6130 = vsel %vm91, %v6099, 0
    %v6133 = vsel %vm91, %v6100, 0
    %v6136 = vsel %vm91, %v6101, 0
    %v6139 = vsel %vm91, %v6102, 0
    %v6142 = vsel %vm91, %v6103, 0
    %v6145 = vsel %vm91, %v6104, 0
    %v6148 = vsel %vm91, %v6105, 0
    %v6151 = vsel %vm91, %v6106, 0
    %v6154 = vsel %vm91, %v6107, 0
    %v6157 = vsel %vm91, %v6108, 0
    %v6160 = vsel %vm91, %v6109, 0
    %v6163 = vsel %vm91, %v6110, 0
    %6165 = vmatprep.subr.mxu0 0.0
    %6166 = vmatpush1.msra.mxu0 %v6112
    %6167 = vmatprep.subr.mxu0 0.0
    %6168 = vmatpush1.msra.mxu0 %v6114
    %6169 = vmatprep.subr.mxu0 0.0
    %6170 = vmatpush1.msra.mxu0 0.0
    %6171 = vmatprep.subr.mxu0 0.0
    %6172 = vmatpush1.msra.mxu0 0.0
    %6173 = vmatprep.subr.mxu0 0.0
    %6174 = vmatpush1.msra.mxu0 0.0
    %6175 = vmatprep.subr.mxu0 0.0
    %6176 = vmatpush1.msra.mxu0 0.0
    %6177 = vmatprep.subr.mxu0 0.0
    %6178 = vmatpush1.msra.mxu0 0.0
    %6179 = vmatprep.subr.mxu0 0.0
    %6180 = vmatpush1.msra.mxu0 0.0
    %6181 = vmatprep.subr.mxu0 0.0
    %6182 = vmatpush1.msra.mxu0 0.0
    %6183 = vmatprep.subr.mxu0 0.0
    %6184 = vmatpush1.msra.mxu0 0.0
    %6185 = vmatprep.subr.mxu0 0.0
    %6186 = vmatpush1.msra.mxu0 0.0
    %6187 = vmatprep.subr.mxu0 0.0
    %6188 = vmatpush1.msra.mxu0 0.0
    %6189 = vmatprep.subr.mxu0 0.0
    %6190 = vmatpush1.msra.mxu0 0.0
    %6191 = vmatprep.subr.mxu0 0.0
    %6192 = vmatpush1.msra.mxu0 0.0
    %6193 = vmatprep.subr.mxu0 0.0
    %6194 = vmatpush1.msra.mxu0 0.0
    %6195 = vmatprep.subr.mxu0 0.0
    %6196 = vmatpush1.msra.mxu0 0.0
    %6197 = vmatprep.subr.mxu0 0.0
    %6198 = vmatpush1.msra.mxu0 0.0
    %6199 = vmatprep.subr.mxu0 0.0
    %6200 = vmatpush1.msra.mxu0 0.0
    %6201 = vmatprep.subr.mxu0 0.0
    %6202 = vmatpush1.msra.mxu0 0.0
    %6203 = vmatprep.subr.mxu0 0.0
    %6204 = vmatpush1.msra.mxu0 0.0
    %6205 = vmatprep.subr.mxu0 0.0
    %6206 = vmatpush1.msra.mxu0 0.0
    %6207 = vmatprep.subr.mxu0 0.0
    %6208 = vmatpush1.msra.mxu0 0.0
    %6209 = vmatprep.subr.mxu0 0.0
    %6210 = vmatpush1.msra.mxu0 0.0
    %6211 = vmatprep.subr.mxu0 0.0
    %6212 = vmatpush1.msra.mxu0 0.0
    %6213 = vmatprep.subr.mxu0 0.0
    %6214 = vmatpush1.msra.mxu0 0.0
    %6215 = vmatprep.subr.mxu0 0.0
    %6216 = vmatpush1.msra.mxu0 0.0
    %6217 = vmatprep.subr.mxu0 0.0
    %6218 = vmatpush1.msra.mxu0 0.0
    %6219 = vmatprep.subr.mxu0 0.0
    %6220 = vmatpush1.msra.mxu0 0.0
    %6221 = vmatprep.subr.mxu0 0.0
    %6222 = vmatpush1.msra.mxu0 0.0
    %6223 = vmatprep.subr.mxu0 0.0
    %6224 = vmatpush1.msra.mxu0 0.0
    %6225 = vmatprep.subr.mxu0 0.0
    %6226 = vmatpush1.msra.mxu0 0.0
    %6227 = vmatprep.subr.mxu0 0.0
    %6228 = vmatpush1.msra.mxu0 0.0
    %6229 = vmatprep.mubr.f32.mxu0 0.0
    %6230 = vmatmul.mubr.f32.gmra.mrb[0].mxu0 %v6118
    %v6231 = vpop.f32.mrb[0].mxu0
    %v6232 = vadd.f32 0.0, %v6231
    %v6233 = vpop.f32.mrb[0].mxu0
    %6234 = vmatprep.mubr.f32.mxu0 0.0
    %6235 = vmatmul.mubr.f32.gmra.mrb[0].mxu0 %v6121
    %v6236 = vpop.f32.mrb[0].mxu0
    %v6237 = vadd.f32 0.0, %v6236
    %v6238 = vpop.f32.mrb[0].mxu0
    %6239 = vmatprep.mubr.f32.mxu0 0.0
    %6240 = vmatmul.mubr.f32.gmra.mrb[0].mxu0 %v6124
    %v6241 = vpop.f32.mrb[0].mxu0
    %v6242 = vadd.f32 0.0, %v6241
    %v6243 = vpop.f32.mrb[0].mxu0
    %6244 = vmatprep.mubr.f32.mxu0 0.0
    %6245 = vmatmul.mubr.f32.gmra.mrb[0].mxu0 %v6127
    %v6246 = vpop.f32.mrb[0].mxu0
    %v6247 = vadd.f32 0.0, %v6246
    %v6248 = vpop.f32.mrb[0].mxu0
    %6249 = vmatprep.mubr.f32.mxu0 0.0
    %6250 = vmatmul.mubr.f32.gmra.mrb[0].mxu0 %v6130
    %v6251 = vpop.f32.mrb[0].mxu0
    %v6252 = vadd.f32 0.0, %v6251
    %v6253 = vpop.f32.mrb[0].mxu0
    %6254 = vmatprep.mubr.f32.mxu0 0.0
    %6255 = vmatmul.mubr.f32.gmra.mrb[0].mxu0 %v6133
    %v6256 = vpop.f32.mrb[0].mxu0
    %v6257 = vadd.f32 0.0, %v6256
    %v6258 = vpop.f32.mrb[0].mxu0
    %6259 = vmatprep.mubr.f32.mxu0 0.0
    %6260 = vmatmul.mubr.f32.gmra.mrb[0].mxu0 %v6136
    %v6261 = vpop.f32.mrb[0].mxu0
    %v6262 = vadd.f32 0.0, %v6261
    %v6263 = vpop.f32.mrb[0].mxu0
    %6264 = vmatprep.mubr.f32.mxu0 0.0
    %6265 = vmatmul.mubr.f32.gmra.mrb[0].mxu0 %v6139
    %v6266 = vpop.f32.mrb[0].mxu0
    %v6267 = vadd.f32 0.0, %v6266
    %v6268 = vpop.f32.mrb[0].mxu0
    %6269 = vmatprep.mubr.f32.mxu0 0.0
    %6270 = vmatmul.mubr.f32.gmra.mrb[0].mxu0 %v6142
    %v6271 = vpop.f32.mrb[0].mxu0
    %v6272 = vadd.f32 0.0, %v6271
    %v6273 = vpop.f32.mrb[0].mxu0
    %6274 = vmatprep.mubr.f32.mxu0 0.0
    %6275 = vmatmul.mubr.f32.gmra.mrb[0].mxu0 %v6145
    %v6276 = vpop.f32.mrb[0].mxu0
    %v6277 = vadd.f32 0.0, %v6276
    %v6278 = vpop.f32.mrb[0].mxu0
    %6279 = vmatprep.mubr.f32.mxu0 0.0
    %6280 = vmatmul.mubr.f32.gmra.mrb[0].mxu0 %v6148
    %v6281 = vpop.f32.mrb[0].mxu0
    %v6282 = vadd.f32 0.0, %v6281
    %v6283 = vpop.f32.mrb[0].mxu0
    %6284 = vmatprep.mubr.f32.mxu0 0.0
    %6285 = vmatmul.mubr.f32.gmra.mrb[0].mxu0 %v6151
    %v6286 = vpop.f32.mrb[0].mxu0
    %v6287 = vadd.f32 0.0, %v6286
    %v6288 = vpop.f32.mrb[0].mxu0
    %6289 = vmatprep.mubr.f32.mxu0 0.0
    %6290 = vmatmul.mubr.f32.gmra.mrb[0].mxu0 %v6154
    %v6291 = vpop.f32.mrb[0].mxu0
    %v6292 = vadd.f32 0.0, %v6291
    %v6293 = vpop.f32.mrb[0].mxu0
    %6294 = vmatprep.mubr.f32.mxu0 0.0
    %6295 = vmatmul.mubr.f32.gmra.mrb[0].mxu0 %v6157
    %v6296 = vpop.f32.mrb[0].mxu0
    %v6297 = vadd.f32 0.0, %v6296
    %v6298 = vpop.f32.mrb[0].mxu0
    %6299 = vmatprep.mubr.f32.mxu0 0.0
    %6300 = vmatmul.mubr.f32.gmra.mrb[0].mxu0 %v6160
    %v6301 = vpop.f32.mrb[0].mxu0
    %v6302 = vadd.f32 0.0, %v6301
    %v6303 = vpop.f32.mrb[0].mxu0
    %6304 = vmatprep.mubr.f32.mxu0 0.0
    %6305 = vmatmul.mubr.f32.gmra.mrb[0].mxu0 %v6163
    %v6306 = vpop.f32.mrb[0].mxu0
    %v6307 = vadd.f32 0.0, %v6306
    %v6308 = vpop.f32.mrb[0].mxu0
    %6309 = vdwg.mxu0
    %v6310 = vmul.f32 %v6232, %v508
    %v6311 = vmul.f32 %v6237, %v509
    %v6312 = vmul.f32 %v6242, %v510
    %v6313 = vmul.f32 %v6247, %v511
    %v6314 = vmul.f32 %v6252, %v512
    %v6315 = vmul.f32 %v6257, %v513
    %v6316 = vmul.f32 %v6262, %v514
    %v6317 = vmul.f32 %v6267, %v515
    %v6318 = vmul.f32 %v6272, %v516
    %v6319 = vmul.f32 %v6277, %v517
    %v6320 = vmul.f32 %v6282, %v518
    %v6321 = vmul.f32 %v6287, %v519
    %v6322 = vmul.f32 %v6292, %v520
    %v6323 = vmul.f32 %v6297, %v521
    %v6324 = vmul.f32 %v6302, %v522
    %v6325 = vmul.f32 %v6307, %v523
    %6326 = vmatprep.subr.mxu0 0.0
    %6327 = vmatpush1.msra.mxu0 %v6310
    %6328 = vmatprep.subr.mxu0 0.0
    %6329 = vmatpush1.msra.mxu0 %v6311
    %6330 = vmatprep.subr.mxu0 0.0
    %6331 = vmatpush1.msra.mxu0 %v6312
    %6332 = vmatprep.subr.mxu0 0.0
    %6333 = vmatpush1.msra.mxu0 %v6313
    %6334 = vmatprep.subr.mxu0 0.0
    %6335 = vmatpush1.msra.mxu0 %v6314
    %6336 = vmatprep.subr.mxu0 0.0
    %6337 = vmatpush1.msra.mxu0 %v6315
    %6338 = vmatprep.subr.mxu0 0.0
    %6339 = vmatpush1.msra.mxu0 %v6316
    %6340 = vmatprep.subr.mxu0 0.0
    %6341 = vmatpush1.msra.mxu0 %v6317
    %6342 = vmatprep.subr.mxu0 0.0
    %6343 = vmatpush1.msra.mxu0 %v6318
    %6344 = vmatprep.subr.mxu0 0.0
    %6345 = vmatpush1.msra.mxu0 %v6319
    %6346 = vmatprep.subr.mxu0 0.0
    %6347 = vmatpush1.msra.mxu0 %v6320
    %6348 = vmatprep.subr.mxu0 0.0
    %6349 = vmatpush1.msra.mxu0 %v6321
    %6350 = vmatprep.subr.mxu0 0.0
    %6351 = vmatpush1.msra.mxu0 %v6322
    %6352 = vmatprep.subr.mxu0 0.0
    %6353 = vmatpush1.msra.mxu0 %v6323
    %6354 = vmatprep.subr.mxu0 0.0
    %6355 = vmatpush1.msra.mxu0 %v6324
    %6356 = vmatprep.subr.mxu0 0.0
    %6357 = vmatpush1.msra.mxu0 %v6325
    %6358 = vmatprep.subr.mxu0 0.0
    %6359 = vmatpush1.msra.mxu0 0.0
    %6360 = vmatprep.subr.mxu0 0.0
    %6361 = vmatpush1.msra.mxu0 0.0
    %6362 = vmatprep.subr.mxu0 0.0
    %6363 = vmatpush1.msra.mxu0 0.0
    %6364 = vmatprep.subr.mxu0 0.0
    %6365 = vmatpush1.msra.mxu0 0.0
    %6366 = vmatprep.subr.mxu0 0.0
    %6367 = vmatpush1.msra.mxu0 0.0
    %6368 = vmatprep.subr.mxu0 0.0
    %6369 = vmatpush1.msra.mxu0 0.0
    %6370 = vmatprep.subr.mxu0 0.0
    %6371 = vmatpush1.msra.mxu0 0.0
    %6372 = vmatprep.subr.mxu0 0.0
    %6373 = vmatpush1.msra.mxu0 0.0
    %6374 = vmatprep.subr.mxu0 0.0
    %6375 = vmatpush1.msra.mxu0 0.0
    %6376 = vmatprep.subr.mxu0 0.0
    %6377 = vmatpush1.msra.mxu0 0.0
    %6378 = vmatprep.subr.mxu0 0.0
    %6379 = vmatpush1.msra.mxu0 0.0
    %6380 = vmatprep.subr.mxu0 0.0
    %6381 = vmatpush1.msra.mxu0 0.0
    %6382 = vmatprep.subr.mxu0 0.0
    %6383 = vmatpush1.msra.mxu0 0.0
    %6384 = vmatprep.subr.mxu0 0.0
    %6385 = vmatpush1.msra.mxu0 0.0
    %6386 = vmatprep.subr.mxu0 0.0
    %6387 = vmatpush1.msra.mxu0 0.0
    %6388 = vmatprep.subr.mxu0 0.0
    %6389 = vmatpush1.msra.mxu0 0.0
    %6390 = vmatprep.mubr.f32.mxu0 0.0
    %6391 = vmatmul.mubr.f32.gmra.mrb[0].mxu0 %v506
    %v6392 = vpop.f32.mrb[0].mxu0
    %v6393 = vadd.f32 0.0, %v6392
    %v6394 = vpop.f32.mrb[0].mxu0
    %6395 = vmatprep.mubr.f32.mxu0 0.0
    %6396 = vmatmul.mubr.f32.gmra.mrb[0].mxu0 %v507
    %v6397 = vpop.f32.mrb[0].mxu0
    %v6398 = vadd.f32 0.0, %v6397
    %v6399 = vpop.f32.mrb[0].mxu0
    %6400 = vdwg.mxu0
    %6401 = vst.msk [vmem:[#allocation2 + $0x60] sm:$0xff] %vm296, %v6393
    %6402 = vst.msk [vmem:[#allocation2 + $0x68] sm:$0xff] %vm296, %v6398
    %6403 = vmatprep.subr.mxu0 0.0
    %6404 = vmatpush1.msra.mxu0 %v482
    %6405 = vmatprep.subr.mxu0 0.0
    %6406 = vmatpush1.msra.mxu0 %v487
    %6407 = vmatprep.subr.mxu0 0.0
    %6408 = vmatpush1.msra.mxu0 0.0
    %6409 = vmatprep.subr.mxu0 0.0
    %6410 = vmatpush1.msra.mxu0 0.0
    %6411 = vmatprep.subr.mxu0 0.0
    %6412 = vmatpush1.msra.mxu0 0.0
    %6413 = vmatprep.subr.mxu0 0.0
    %6414 = vmatpush1.msra.mxu0 0.0
    %6415 = vmatprep.subr.mxu0 0.0
    %6416 = vmatpush1.msra.mxu0 0.0
    %6417 = vmatprep.subr.mxu0 0.0
    %6418 = vmatpush1.msra.mxu0 0.0
    %6419 = vmatprep.subr.mxu0 0.0
    %6420 = vmatpush1.msra.mxu0 0.0
    %6421 = vmatprep.subr.mxu0 0.0
    %6422 = vmatpush1.msra.mxu0 0.0
    %6423 = vmatprep.subr.mxu0 0.0
    %6424 = vmatpush1.msra.mxu0 0.0
    %6425 = vmatprep.subr.mxu0 0.0
    %6426 = vmatpush1.msra.mxu0 0.0
    %6427 = vmatprep.subr.mxu0 0.0
    %6428 = vmatpush1.msra.mxu0 0.0
    %6429 = vmatprep.subr.mxu0 0.0
    %6430 = vmatpush1.msra.mxu0 0.0
    %6431 = vmatprep.subr.mxu0 0.0
    %6432 = vmatpush1.msra.mxu0 0.0
    %6433 = vmatprep.subr.mxu0 0.0
    %6434 = vmatpush1.msra.mxu0 0.0
    %6435 = vmatprep.subr.mxu0 0.0
    %6436 = vmatpush1.msra.mxu0 0.0
    %6437 = vmatprep.subr.mxu0 0.0
    %6438 = vmatpush1.msra.mxu0 0.0
    %6439 = vmatprep.subr.mxu0 0.0
    %6440 = vmatpush1.msra.mxu0 0.0
    %6441 = vmatprep.subr.mxu0 0.0
    %6442 = vmatpush1.msra.mxu0 0.0
    %6443 = vmatprep.subr.mxu0 0.0
    %6444 = vmatpush1.msra.mxu0 0.0
    %6445 = vmatprep.subr.mxu0 0.0
    %6446 = vmatpush1.msra.mxu0 0.0
    %6447 = vmatprep.subr.mxu0 0.0
    %6448 = vmatpush1.msra.mxu0 0.0
    %6449 = vmatprep.subr.mxu0 0.0
    %6450 = vmatpush1.msra.mxu0 0.0
    %6451 = vmatprep.subr.mxu0 0.0
    %6452 = vmatpush1.msra.mxu0 0.0
    %6453 = vmatprep.subr.mxu0 0.0
    %6454 = vmatpush1.msra.mxu0 0.0
    %6455 = vmatprep.subr.mxu0 0.0
    %6456 = vmatpush1.msra.mxu0 0.0
    %6457 = vmatprep.subr.mxu0 0.0
    %6458 = vmatpush1.msra.mxu0 0.0
    %6459 = vmatprep.subr.mxu0 0.0
    %6460 = vmatpush1.msra.mxu0 0.0
    %6461 = vmatprep.subr.mxu0 0.0
    %6462 = vmatpush1.msra.mxu0 0.0
    %6463 = vmatprep.subr.mxu0 0.0
    %6464 = vmatpush1.msra.mxu0 0.0
    %6465 = vmatprep.subr.mxu0 0.0
    %6466 = vmatpush1.msra.mxu0 0.0
    %6467 = vmatprep.mubr.f32.mxu0 0.0
    %6468 = vmatmul.mubr.f32.gmra.mrb[0].mxu0 %v526
    %v6469 = vpop.f32.mrb[0].mxu0
    %v6470 = vadd.f32 0.0, %v6469
    %v6471 = vpop.f32.mrb[0].mxu0
    %6472 = vmatprep.mubr.f32.mxu0 0.0
    %6473 = vmatmul.mubr.f32.gmra.mrb[0].mxu0 %v529
    %v6474 = vpop.f32.mrb[0].mxu0
    %v6475 = vadd.f32 0.0, %v6474
    %v6476 = vpop.f32.mrb[0].mxu0
    %6477 = vmatprep.mubr.f32.mxu0 0.0
    %6478 = vmatmul.mubr.f32.gmra.mrb[0].mxu0 %v532
    %v6479 = vpop.f32.mrb[0].mxu0
    %v6480 = vadd.f32 0.0, %v6479
    %v6481 = vpop.f32.mrb[0].mxu0
    %6482 = vmatprep.mubr.f32.mxu0 0.0
    %6483 = vmatmul.mubr.f32.gmra.mrb[0].mxu0 %v535
    %v6484 = vpop.f32.mrb[0].mxu0
    %v6485 = vadd.f32 0.0, %v6484
    %v6486 = vpop.f32.mrb[0].mxu0
    %6487 = vmatprep.mubr.f32.mxu0 0.0
    %6488 = vmatmul.mubr.f32.gmra.mrb[0].mxu0 %v538
    %v6489 = vpop.f32.mrb[0].mxu0
    %v6490 = vadd.f32 0.0, %v6489
    %v6491 = vpop.f32.mrb[0].mxu0
    %6492 = vmatprep.mubr.f32.mxu0 0.0
    %6493 = vmatmul.mubr.f32.gmra.mrb[0].mxu0 %v541
    %v6494 = vpop.f32.mrb[0].mxu0
    %v6495 = vadd.f32 0.0, %v6494
    %v6496 = vpop.f32.mrb[0].mxu0
    %6497 = vmatprep.mubr.f32.mxu0 0.0
    %6498 = vmatmul.mubr.f32.gmra.mrb[0].mxu0 %v544
    %v6499 = vpop.f32.mrb[0].mxu0
    %v6500 = vadd.f32 0.0, %v6499
    %v6501 = vpop.f32.mrb[0].mxu0
    %6502 = vmatprep.mubr.f32.mxu0 0.0
    %6503 = vmatmul.mubr.f32.gmra.mrb[0].mxu0 %v547
    %v6504 = vpop.f32.mrb[0].mxu0
    %v6505 = vadd.f32 0.0, %v6504
    %v6506 = vpop.f32.mrb[0].mxu0
    %6507 = vmatprep.mubr.f32.mxu0 0.0
    %6508 = vmatmul.mubr.f32.gmra.mrb[0].mxu0 %v550
    %v6509 = vpop.f32.mrb[0].mxu0
    %v6510 = vadd.f32 0.0, %v6509
    %v6511 = vpop.f32.mrb[0].mxu0
    %6512 = vmatprep.mubr.f32.mxu0 0.0
    %6513 = vmatmul.mubr.f32.gmra.mrb[0].mxu0 %v553
    %v6514 = vpop.f32.mrb[0].mxu0
    %v6515 = vadd.f32 0.0, %v6514
    %v6516 = vpop.f32.mrb[0].mxu0
    %6517 = vmatprep.mubr.f32.mxu0 0.0
    %6518 = vmatmul.mubr.f32.gmra.mrb[0].mxu0 %v556
    %v6519 = vpop.f32.mrb[0].mxu0
    %v6520 = vadd.f32 0.0, %v6519
    %v6521 = vpop.f32.mrb[0].mxu0
    %6522 = vmatprep.mubr.f32.mxu0 0.0
    %6523 = vmatmul.mubr.f32.gmra.mrb[0].mxu0 %v559
    %v6524 = vpop.f32.mrb[0].mxu0
    %v6525 = vadd.f32 0.0, %v6524
    %v6526 = vpop.f32.mrb[0].mxu0
    %6527 = vmatprep.mubr.f32.mxu0 0.0
    %6528 = vmatmul.mubr.f32.gmra.mrb[0].mxu0 %v562
    %v6529 = vpop.f32.mrb[0].mxu0
    %v6530 = vadd.f32 0.0, %v6529
    %v6531 = vpop.f32.mrb[0].mxu0
    %6532 = vmatprep.mubr.f32.mxu0 0.0
    %6533 = vmatmul.mubr.f32.gmra.mrb[0].mxu0 %v565
    %v6534 = vpop.f32.mrb[0].mxu0
    %v6535 = vadd.f32 0.0, %v6534
    %v6536 = vpop.f32.mrb[0].mxu0
    %6537 = vmatprep.mubr.f32.mxu0 0.0
    %6538 = vmatmul.mubr.f32.gmra.mrb[0].mxu0 %v568
    %v6539 = vpop.f32.mrb[0].mxu0
    %v6540 = vadd.f32 0.0, %v6539
    %v6541 = vpop.f32.mrb[0].mxu0
    %6542 = vmatprep.mubr.f32.mxu0 0.0
    %6543 = vmatmul.mubr.f32.gmra.mrb[0].mxu0 %v571
    %v6544 = vpop.f32.mrb[0].mxu0
    %v6545 = vadd.f32 0.0, %v6544
    %v6546 = vpop.f32.mrb[0].mxu0
    %6547 = vdwg.mxu0
    %v6548 = vmul.f32 %v6470, %v508
    %v6549 = vmul.f32 %v6475, %v509
    %v6550 = vmul.f32 %v6480, %v510
    %v6551 = vmul.f32 %v6485, %v511
    %v6552 = vmul.f32 %v6490, %v512
    %v6553 = vmul.f32 %v6495, %v513
    %v6554 = vmul.f32 %v6500, %v514
    %v6555 = vmul.f32 %v6505, %v515
    %v6556 = vmul.f32 %v6510, %v516
    %v6557 = vmul.f32 %v6515, %v517
    %v6558 = vmul.f32 %v6520, %v518
    %v6559 = vmul.f32 %v6525, %v519
    %v6560 = vmul.f32 %v6530, %v520
    %v6561 = vmul.f32 %v6535, %v521
    %v6562 = vmul.f32 %v6540, %v522
    %v6563 = vmul.f32 %v6545, %v523
    %6566 = vrot.lane.b32.xlu0 %v482, 96
    %v6567 = vpop.permute.xlu0 %6566
    %6568 = vrot.lane.b32.xlu0 %v487, 96
    %v6569 = vpop.permute.xlu0 %6568
    %v6571 = vsel %vm296, %v6548, 0
    %v6574 = vsel %vm296, %v6549, 0
    %v6577 = vsel %vm296, %v6550, 0
    %v6580 = vsel %vm296, %v6551, 0
    %v6583 = vsel %vm296, %v6552, 0
    %v6586 = vsel %vm296, %v6553, 0
    %v6589 = vsel %vm296, %v6554, 0
    %v6592 = vsel %vm296, %v6555, 0
    %v6595 = vsel %vm296, %v6556, 0
    %v6598 = vsel %vm296, %v6557, 0
    %v6601 = vsel %vm296, %v6558, 0
    %v6604 = vsel %vm296, %v6559, 0
    %v6607 = vsel %vm296, %v6560, 0
    %v6610 = vsel %vm296, %v6561, 0
    %v6613 = vsel %vm296, %v6562, 0
    %v6616 = vsel %vm296, %v6563, 0
    %v6618 = vsel %vm296, %v6567, 0
    %v6620 = vsel %vm296, %v6569, 0
    %6622 = vmatprep.subr.mxu0 0.0
    %6623 = vmatpush1.xpose.msra.mxu0 %v6618
    %6624 = vmatprep.subr.mxu0 0.0
    %6625 = vmatpush1.xpose.msra.mxu0 %v6620
    %6626 = vmatprep.subr.mxu0 0.0
    %6627 = vmatpush1.xpose.msra.mxu0 0.0
    %6628 = vmatprep.subr.mxu0 0.0
    %6629 = vmatpush1.xpose.msra.mxu0 0.0
    %6630 = vmatprep.subr.mxu0 0.0
    %6631 = vmatpush1.xpose.msra.mxu0 0.0
    %6632 = vmatprep.subr.mxu0 0.0
    %6633 = vmatpush1.xpose.msra.mxu0 0.0
    %6634 = vmatprep.subr.mxu0 0.0
    %6635 = vmatpush1.xpose.msra.mxu0 0.0
    %6636 = vmatprep.subr.mxu0 0.0
    %6637 = vmatpush1.xpose.msra.mxu0 0.0
    %6638 = vmatprep.subr.mxu0 0.0
    %6639 = vmatpush1.xpose.msra.mxu0 0.0
    %6640 = vmatprep.subr.mxu0 0.0
    %6641 = vmatpush1.xpose.msra.mxu0 0.0
    %6642 = vmatprep.subr.mxu0 0.0
    %6643 = vmatpush1.xpose.msra.mxu0 0.0
    %6644 = vmatprep.subr.mxu0 0.0
    %6645 = vmatpush1.xpose.msra.mxu0 0.0
    %6646 = vmatprep.subr.mxu0 0.0
    %6647 = vmatpush1.xpose.msra.mxu0 0.0
    %6648 = vmatprep.subr.mxu0 0.0
    %6649 = vmatpush1.xpose.msra.mxu0 0.0
    %6650 = vmatprep.subr.mxu0 0.0
    %6651 = vmatpush1.xpose.msra.mxu0 0.0
    %6652 = vmatprep.subr.mxu0 0.0
    %6653 = vmatpush1.xpose.msra.mxu0 0.0
    %6654 = vmatprep.subr.mxu0 0.0
    %6655 = vmatpush1.xpose.msra.mxu0 0.0
    %6656 = vmatprep.subr.mxu0 0.0
    %6657 = vmatpush1.xpose.msra.mxu0 0.0
    %6658 = vmatprep.subr.mxu0 0.0
    %6659 = vmatpush1.xpose.msra.mxu0 0.0
    %6660 = vmatprep.subr.mxu0 0.0
    %6661 = vmatpush1.xpose.msra.mxu0 0.0
    %6662 = vmatprep.subr.mxu0 0.0
    %6663 = vmatpush1.xpose.msra.mxu0 0.0
    %6664 = vmatprep.subr.mxu0 0.0
    %6665 = vmatpush1.xpose.msra.mxu0 0.0
    %6666 = vmatprep.subr.mxu0 0.0
    %6667 = vmatpush1.xpose.msra.mxu0 0.0
    %6668 = vmatprep.subr.mxu0 0.0
    %6669 = vmatpush1.xpose.msra.mxu0 0.0
    %6670 = vmatprep.subr.mxu0 0.0
    %6671 = vmatpush1.xpose.msra.mxu0 0.0
    %6672 = vmatprep.subr.mxu0 0.0
    %6673 = vmatpush1.xpose.msra.mxu0 0.0
    %6674 = vmatprep.subr.mxu0 0.0
    %6675 = vmatpush1.xpose.msra.mxu0 0.0
    %6676 = vmatprep.subr.mxu0 0.0
    %6677 = vmatpush1.xpose.msra.mxu0 0.0
    %6678 = vmatprep.subr.mxu0 0.0
    %6679 = vmatpush1.xpose.msra.mxu0 0.0
    %6680 = vmatprep.subr.mxu0 0.0
    %6681 = vmatpush1.xpose.msra.mxu0 0.0
    %6682 = vmatprep.subr.mxu0 0.0
    %6683 = vmatpush1.xpose.msra.mxu0 0.0
    %6684 = vmatprep.subr.mxu0 0.0
    %6685 = vmatpush1.xpose.msra.mxu0 0.0
    %6686 = vmatprep.mubr.f32.mxu0 0.0
    %6687 = vmatmul.mubr.f32.gmra.mrb[0].mxu0 %v6571
    %v6688 = vpop.f32.mrb[0].mxu0
    %v6689 = vadd.f32 %v738, %v6688
    %v6690 = vpop.f32.mrb[0].mxu0
    %6691 = vmatprep.mubr.f32.mxu0 0.0
    %6692 = vmatmul.mubr.f32.gmra.mrb[0].mxu0 %v6574
    %v6693 = vpop.f32.mrb[0].mxu0
    %v6694 = vadd.f32 %v738, %v6693
    %v6695 = vpop.f32.mrb[0].mxu0
    %6696 = vmatprep.mubr.f32.mxu0 0.0
    %6697 = vmatmul.mubr.f32.gmra.mrb[0].mxu0 %v6577
    %v6698 = vpop.f32.mrb[0].mxu0
    %v6699 = vadd.f32 %v738, %v6698
    %v6700 = vpop.f32.mrb[0].mxu0
    %6701 = vmatprep.mubr.f32.mxu0 0.0
    %6702 = vmatmul.mubr.f32.gmra.mrb[0].mxu0 %v6580
    %v6703 = vpop.f32.mrb[0].mxu0
    %v6704 = vadd.f32 %v738, %v6703
    %v6705 = vpop.f32.mrb[0].mxu0
    %6706 = vmatprep.mubr.f32.mxu0 0.0
    %6707 = vmatmul.mubr.f32.gmra.mrb[0].mxu0 %v6583
    %v6708 = vpop.f32.mrb[0].mxu0
    %v6709 = vadd.f32 %v738, %v6708
    %v6710 = vpop.f32.mrb[0].mxu0
    %6711 = vmatprep.mubr.f32.mxu0 0.0
    %6712 = vmatmul.mubr.f32.gmra.mrb[0].mxu0 %v6586
    %v6713 = vpop.f32.mrb[0].mxu0
    %v6714 = vadd.f32 %v738, %v6713
    %v6715 = vpop.f32.mrb[0].mxu0
    %6716 = vmatprep.mubr.f32.mxu0 0.0
    %6717 = vmatmul.mubr.f32.gmra.mrb[0].mxu0 %v6589
    %v6718 = vpop.f32.mrb[0].mxu0
    %v6719 = vadd.f32 %v738, %v6718
    %v6720 = vpop.f32.mrb[0].mxu0
    %6721 = vmatprep.mubr.f32.mxu0 0.0
    %6722 = vmatmul.mubr.f32.gmra.mrb[0].mxu0 %v6592
    %v6723 = vpop.f32.mrb[0].mxu0
    %v6724 = vadd.f32 %v738, %v6723
    %v6725 = vpop.f32.mrb[0].mxu0
    %6726 = vmatprep.mubr.f32.mxu0 0.0
    %6727 = vmatmul.mubr.f32.gmra.mrb[0].mxu0 %v6595
    %v6728 = vpop.f32.mrb[0].mxu0
    %v6729 = vadd.f32 %v738, %v6728
    %v6730 = vpop.f32.mrb[0].mxu0
    %6731 = vmatprep.mubr.f32.mxu0 0.0
    %6732 = vmatmul.mubr.f32.gmra.mrb[0].mxu0 %v6598
    %v6733 = vpop.f32.mrb[0].mxu0
    %v6734 = vadd.f32 %v738, %v6733
    %v6735 = vpop.f32.mrb[0].mxu0
    %6736 = vmatprep.mubr.f32.mxu0 0.0
    %6737 = vmatmul.mubr.f32.gmra.mrb[0].mxu0 %v6601
    %v6738 = vpop.f32.mrb[0].mxu0
    %v6739 = vadd.f32 %v738, %v6738
    %v6740 = vpop.f32.mrb[0].mxu0
    %6741 = vmatprep.mubr.f32.mxu0 0.0
    %6742 = vmatmul.mubr.f32.gmra.mrb[0].mxu0 %v6604
    %v6743 = vpop.f32.mrb[0].mxu0
    %v6744 = vadd.f32 %v738, %v6743
    %v6745 = vpop.f32.mrb[0].mxu0
    %6746 = vmatprep.mubr.f32.mxu0 0.0
    %6747 = vmatmul.mubr.f32.gmra.mrb[0].mxu0 %v6607
    %v6748 = vpop.f32.mrb[0].mxu0
    %v6749 = vadd.f32 %v738, %v6748
    %v6750 = vpop.f32.mrb[0].mxu0
    %6751 = vmatprep.mubr.f32.mxu0 0.0
    %6752 = vmatmul.mubr.f32.gmra.mrb[0].mxu0 %v6610
    %v6753 = vpop.f32.mrb[0].mxu0
    %v6754 = vadd.f32 %v738, %v6753
    %v6755 = vpop.f32.mrb[0].mxu0
    %6756 = vmatprep.mubr.f32.mxu0 0.0
    %6757 = vmatmul.mubr.f32.gmra.mrb[0].mxu0 %v6613
    %v6758 = vpop.f32.mrb[0].mxu0
    %v6759 = vadd.f32 %v738, %v6758
    %v6760 = vpop.f32.mrb[0].mxu0
    %6761 = vmatprep.mubr.f32.mxu0 0.0
    %6762 = vmatmul.mubr.f32.gmra.mrb[0].mxu0 %v6616
    %v6763 = vpop.f32.mrb[0].mxu0
    %v6764 = vadd.f32 %v738, %v6763
    %v6765 = vpop.f32.mrb[0].mxu0
    %6766 = vdwg.mxu0
    %v6767 = vsel %vm91, %v6689, -inf
    %6768 = vmax.xlane.f32.xlu0 %v6767
    %v6769 = vpop.xlane.xlu0 %6768
    %v6770 = vsel %vm91, %v6694, -inf
    %6771 = vmax.xlane.f32.xlu0 %v6770
    %v6772 = vpop.xlane.xlu0 %6771
    %v6773 = vsel %vm91, %v6699, -inf
    %6774 = vmax.xlane.f32.xlu0 %v6773
    %v6775 = vpop.xlane.xlu0 %6774
    %v6776 = vsel %vm91, %v6704, -inf
    %6777 = vmax.xlane.f32.xlu0 %v6776
    %v6778 = vpop.xlane.xlu0 %6777
    %v6779 = vsel %vm91, %v6709, -inf
    %6780 = vmax.xlane.f32.xlu0 %v6779
    %v6781 = vpop.xlane.xlu0 %6780
    %v6782 = vsel %vm91, %v6714, -inf
    %6783 = vmax.xlane.f32.xlu0 %v6782
    %v6784 = vpop.xlane.xlu0 %6783
    %v6785 = vsel %vm91, %v6719, -inf
    %6786 = vmax.xlane.f32.xlu0 %v6785
    %v6787 = vpop.xlane.xlu0 %6786
    %v6788 = vsel %vm91, %v6724, -inf
    %6789 = vmax.xlane.f32.xlu0 %v6788
    %v6790 = vpop.xlane.xlu0 %6789
    %v6791 = vsel %vm91, %v6729, -inf
    %6792 = vmax.xlane.f32.xlu0 %v6791
    %v6793 = vpop.xlane.xlu0 %6792
    %v6794 = vsel %vm91, %v6734, -inf
    %6795 = vmax.xlane.f32.xlu0 %v6794
    %v6796 = vpop.xlane.xlu0 %6795
    %v6797 = vsel %vm91, %v6739, -inf
    %6798 = vmax.xlane.f32.xlu0 %v6797
    %v6799 = vpop.xlane.xlu0 %6798
    %v6800 = vsel %vm91, %v6744, -inf
    %6801 = vmax.xlane.f32.xlu0 %v6800
    %v6802 = vpop.xlane.xlu0 %6801
    %v6803 = vsel %vm91, %v6749, -inf
    %6804 = vmax.xlane.f32.xlu0 %v6803
    %v6805 = vpop.xlane.xlu0 %6804
    %v6806 = vsel %vm91, %v6754, -inf
    %6807 = vmax.xlane.f32.xlu0 %v6806
    %v6808 = vpop.xlane.xlu0 %6807
    %v6809 = vsel %vm91, %v6759, -inf
    %6810 = vmax.xlane.f32.xlu0 %v6809
    %v6811 = vpop.xlane.xlu0 %6810
    %v6812 = vsel %vm91, %v6764, -inf
    %6813 = vmax.xlane.f32.xlu0 %v6812
    %v6814 = vpop.xlane.xlu0 %6813
    %v6815 = vsub.f32 %v6689, %v6769
    %v6816 = vsub.f32 %v6694, %v6772
    %v6817 = vsub.f32 %v6699, %v6775
    %v6818 = vsub.f32 %v6704, %v6778
    %v6819 = vsub.f32 %v6709, %v6781
    %v6820 = vsub.f32 %v6714, %v6784
    %v6821 = vsub.f32 %v6719, %v6787
    %v6822 = vsub.f32 %v6724, %v6790
    %v6823 = vsub.f32 %v6729, %v6793
    %v6824 = vsub.f32 %v6734, %v6796
    %v6825 = vsub.f32 %v6739, %v6799
    %v6826 = vsub.f32 %v6744, %v6802
    %v6827 = vsub.f32 %v6749, %v6805
    %v6828 = vsub.f32 %v6754, %v6808
    %v6829 = vsub.f32 %v6759, %v6811
    %v6830 = vsub.f32 %v6764, %v6814
    %v6831 = vmul.f32 %v6815, 1.442695
    %v6832 = vpow.pop %v6831
    %v6833 = vmul.f32 %v6816, 1.442695
    %v6834 = vpow.pop %v6833
    %v6835 = vmul.f32 %v6817, 1.442695
    %v6836 = vpow.pop %v6835
    %v6837 = vmul.f32 %v6818, 1.442695
    %v6838 = vpow.pop %v6837
    %v6839 = vmul.f32 %v6819, 1.442695
    %v6840 = vpow.pop %v6839
    %v6841 = vmul.f32 %v6820, 1.442695
    %v6842 = vpow.pop %v6841
    %v6843 = vmul.f32 %v6821, 1.442695
    %v6844 = vpow.pop %v6843
    %v6845 = vmul.f32 %v6822, 1.442695
    %v6846 = vpow.pop %v6845
    %v6847 = vmul.f32 %v6823, 1.442695
    %v6848 = vpow.pop %v6847
    %v6849 = vmul.f32 %v6824, 1.442695
    %v6850 = vpow.pop %v6849
    %v6851 = vmul.f32 %v6825, 1.442695
    %v6852 = vpow.pop %v6851
    %v6853 = vmul.f32 %v6826, 1.442695
    %v6854 = vpow.pop %v6853
    %v6855 = vmul.f32 %v6827, 1.442695
    %v6856 = vpow.pop %v6855
    %v6857 = vmul.f32 %v6828, 1.442695
    %v6858 = vpow.pop %v6857
    %v6859 = vmul.f32 %v6829, 1.442695
    %v6860 = vpow.pop %v6859
    %v6861 = vmul.f32 %v6830, 1.442695
    %v6862 = vpow.pop %v6861
    %v6863 = vsel %vm91, %v6832, 0.0
    %6864 = vadd.xlane.f32.xlu0 %v6863
    %v6865 = vpop.xlane.xlu0 %6864
    %v6866 = vsel %vm91, %v6834, 0.0
    %6867 = vadd.xlane.f32.xlu0 %v6866
    %v6868 = vpop.xlane.xlu0 %6867
    %v6869 = vsel %vm91, %v6836, 0.0
    %6870 = vadd.xlane.f32.xlu0 %v6869
    %v6871 = vpop.xlane.xlu0 %6870
    %v6872 = vsel %vm91, %v6838, 0.0
    %6873 = vadd.xlane.f32.xlu0 %v6872
    %v6874 = vpop.xlane.xlu0 %6873
    %v6875 = vsel %vm91, %v6840, 0.0
    %6876 = vadd.xlane.f32.xlu0 %v6875
    %v6877 = vpop.xlane.xlu0 %6876
    %v6878 = vsel %vm91, %v6842, 0.0
    %6879 = vadd.xlane.f32.xlu0 %v6878
    %v6880 = vpop.xlane.xlu0 %6879
    %v6881 = vsel %vm91, %v6844, 0.0
    %6882 = vadd.xlane.f32.xlu0 %v6881
    %v6883 = vpop.xlane.xlu0 %6882
    %v6884 = vsel %vm91, %v6846, 0.0
    %6885 = vadd.xlane.f32.xlu0 %v6884
    %v6886 = vpop.xlane.xlu0 %6885
    %v6887 = vsel %vm91, %v6848, 0.0
    %6888 = vadd.xlane.f32.xlu0 %v6887
    %v6889 = vpop.xlane.xlu0 %6888
    %v6890 = vsel %vm91, %v6850, 0.0
    %6891 = vadd.xlane.f32.xlu0 %v6890
    %v6892 = vpop.xlane.xlu0 %6891
    %v6893 = vsel %vm91, %v6852, 0.0
    %6894 = vadd.xlane.f32.xlu0 %v6893
    %v6895 = vpop.xlane.xlu0 %6894
    %v6896 = vsel %vm91, %v6854, 0.0
    %6897 = vadd.xlane.f32.xlu0 %v6896
    %v6898 = vpop.xlane.xlu0 %6897
    %v6899 = vsel %vm91, %v6856, 0.0
    %6900 = vadd.xlane.f32.xlu0 %v6899
    %v6901 = vpop.xlane.xlu0 %6900
    %v6902 = vsel %vm91, %v6858, 0.0
    %6903 = vadd.xlane.f32.xlu0 %v6902
    %v6904 = vpop.xlane.xlu0 %6903
    %v6905 = vsel %vm91, %v6860, 0.0
    %6906 = vadd.xlane.f32.xlu0 %v6905
    %v6907 = vpop.xlane.xlu0 %6906
    %v6908 = vsel %vm91, %v6862, 0.0
    %6909 = vadd.xlane.f32.xlu0 %v6908
    %v6910 = vpop.xlane.xlu0 %6909
    %v6911 = vrcp.pop %v6865
    %v6912 = vrcp.pop %v6868
    %v6913 = vrcp.pop %v6871
    %v6914 = vrcp.pop %v6874
    %v6915 = vrcp.pop %v6877
    %v6916 = vrcp.pop %v6880
    %v6917 = vrcp.pop %v6883
    %v6918 = vrcp.pop %v6886
    %v6919 = vrcp.pop %v6889
    %v6920 = vrcp.pop %v6892
    %v6921 = vrcp.pop %v6895
    %v6922 = vrcp.pop %v6898
    %v6923 = vrcp.pop %v6901
    %v6924 = vrcp.pop %v6904
    %v6925 = vrcp.pop %v6907
    %v6926 = vrcp.pop %v6910
    %v6927 = vmul.f32 %v6832, %v6911
    %v6928 = vmul.f32 %v6834, %v6912
    %v6929 = vmul.f32 %v6836, %v6913
    %v6930 = vmul.f32 %v6838, %v6914
    %v6931 = vmul.f32 %v6840, %v6915
    %v6932 = vmul.f32 %v6842, %v6916
    %v6933 = vmul.f32 %v6844, %v6917
    %v6934 = vmul.f32 %v6846, %v6918
    %v6935 = vmul.f32 %v6848, %v6919
    %v6936 = vmul.f32 %v6850, %v6920
    %v6937 = vmul.f32 %v6852, %v6921
    %v6938 = vmul.f32 %v6854, %v6922
    %v6939 = vmul.f32 %v6856, %v6923
    %v6940 = vmul.f32 %v6858, %v6924
    %v6941 = vmul.f32 %v6860, %v6925
    %v6942 = vmul.f32 %v6862, %v6926
    %6943 = vrot.lane.b32.xlu0 %v482, 64
    %v6944 = vpop.permute.xlu0 %6943
    %6945 = vrot.lane.b32.xlu0 %v487, 64
    %v6946 = vpop.permute.xlu0 %6945
    %v6950 = vsel %vm91, %v6927, 0
    %v6953 = vsel %vm91, %v6928, 0
    %v6956 = vsel %vm91, %v6929, 0
    %v6959 = vsel %vm91, %v6930, 0
    %v6962 = vsel %vm91, %v6931, 0
    %v6965 = vsel %vm91, %v6932, 0
    %v6968 = vsel %vm91, %v6933, 0
    %v6971 = vsel %vm91, %v6934, 0
    %v6974 = vsel %vm91, %v6935, 0
    %v6977 = vsel %vm91, %v6936, 0
    %v6980 = vsel %vm91, %v6937, 0
    %v6983 = vsel %vm91, %v6938, 0
    %v6986 = vsel %vm91, %v6939, 0
    %v6989 = vsel %vm91, %v6940, 0
    %v6992 = vsel %vm91, %v6941, 0
    %v6995 = vsel %vm91, %v6942, 0
    %6997 = vmatprep.subr.mxu0 0.0
    %6998 = vmatpush1.msra.mxu0 %v6944
    %6999 = vmatprep.subr.mxu0 0.0
    %7000 = vmatpush1.msra.mxu0 %v6946
    %7001 = vmatprep.subr.mxu0 0.0
    %7002 = vmatpush1.msra.mxu0 0.0
    %7003 = vmatprep.subr.mxu0 0.0
    %7004 = vmatpush1.msra.mxu0 0.0
    %7005 = vmatprep.subr.mxu0 0.0
    %7006 = vmatpush1.msra.mxu0 0.0
    %7007 = vmatprep.subr.mxu0 0.0
    %7008 = vmatpush1.msra.mxu0 0.0
    %7009 = vmatprep.subr.mxu0 0.0
    %7010 = vmatpush1.msra.mxu0 0.0
    %7011 = vmatprep.subr.mxu0 0.0
    %7012 = vmatpush1.msra.mxu0 0.0
    %7013 = vmatprep.subr.mxu0 0.0
    %7014 = vmatpush1.msra.mxu0 0.0
    %7015 = vmatprep.subr.mxu0 0.0
    %7016 = vmatpush1.msra.mxu0 0.0
    %7017 = vmatprep.subr.mxu0 0.0
    %7018 = vmatpush1.msra.mxu0 0.0
    %7019 = vmatprep.subr.mxu0 0.0
    %7020 = vmatpush1.msra.mxu0 0.0
    %7021 = vmatprep.subr.mxu0 0.0
    %7022 = vmatpush1.msra.mxu0 0.0
    %7023 = vmatprep.subr.mxu0 0.0
    %7024 = vmatpush1.msra.mxu0 0.0
    %7025 = vmatprep.subr.mxu0 0.0
    %7026 = vmatpush1.msra.mxu0 0.0
    %7027 = vmatprep.subr.mxu0 0.0
    %7028 = vmatpush1.msra.mxu0 0.0
    %7029 = vmatprep.subr.mxu0 0.0
    %7030 = vmatpush1.msra.mxu0 0.0
    %7031 = vmatprep.subr.mxu0 0.0
    %7032 = vmatpush1.msra.mxu0 0.0
    %7033 = vmatprep.subr.mxu0 0.0
    %7034 = vmatpush1.msra.mxu0 0.0
    %7035 = vmatprep.subr.mxu0 0.0
    %7036 = vmatpush1.msra.mxu0 0.0
    %7037 = vmatprep.subr.mxu0 0.0
    %7038 = vmatpush1.msra.mxu0 0.0
    %7039 = vmatprep.subr.mxu0 0.0
    %7040 = vmatpush1.msra.mxu0 0.0
    %7041 = vmatprep.subr.mxu0 0.0
    %7042 = vmatpush1.msra.mxu0 0.0
    %7043 = vmatprep.subr.mxu0 0.0
    %7044 = vmatpush1.msra.mxu0 0.0
    %7045 = vmatprep.subr.mxu0 0.0
    %7046 = vmatpush1.msra.mxu0 0.0
    %7047 = vmatprep.subr.mxu0 0.0
    %7048 = vmatpush1.msra.mxu0 0.0
    %7049 = vmatprep.subr.mxu0 0.0
    %7050 = vmatpush1.msra.mxu0 0.0
    %7051 = vmatprep.subr.mxu0 0.0
    %7052 = vmatpush1.msra.mxu0 0.0
    %7053 = vmatprep.subr.mxu0 0.0
    %7054 = vmatpush1.msra.mxu0 0.0
    %7055 = vmatprep.subr.mxu0 0.0
    %7056 = vmatpush1.msra.mxu0 0.0
    %7057 = vmatprep.subr.mxu0 0.0
    %7058 = vmatpush1.msra.mxu0 0.0
    %7059 = vmatprep.subr.mxu0 0.0
    %7060 = vmatpush1.msra.mxu0 0.0
    %7061 = vmatprep.mubr.f32.mxu0 0.0
    %7062 = vmatmul.mubr.f32.gmra.mrb[0].mxu0 %v6950
    %v7063 = vpop.f32.mrb[0].mxu0
    %v7064 = vadd.f32 0.0, %v7063
    %v7065 = vpop.f32.mrb[0].mxu0
    %7066 = vmatprep.mubr.f32.mxu0 0.0
    %7067 = vmatmul.mubr.f32.gmra.mrb[0].mxu0 %v6953
    %v7068 = vpop.f32.mrb[0].mxu0
    %v7069 = vadd.f32 0.0, %v7068
    %v7070 = vpop.f32.mrb[0].mxu0
    %7071 = vmatprep.mubr.f32.mxu0 0.0
    %7072 = vmatmul.mubr.f32.gmra.mrb[0].mxu0 %v6956
    %v7073 = vpop.f32.mrb[0].mxu0
    %v7074 = vadd.f32 0.0, %v7073
    %v7075 = vpop.f32.mrb[0].mxu0
    %7076 = vmatprep.mubr.f32.mxu0 0.0
    %7077 = vmatmul.mubr.f32.gmra.mrb[0].mxu0 %v6959
    %v7078 = vpop.f32.mrb[0].mxu0
    %v7079 = vadd.f32 0.0, %v7078
    %v7080 = vpop.f32.mrb[0].mxu0
    %7081 = vmatprep.mubr.f32.mxu0 0.0
    %7082 = vmatmul.mubr.f32.gmra.mrb[0].mxu0 %v6962
    %v7083 = vpop.f32.mrb[0].mxu0
    %v7084 = vadd.f32 0.0, %v7083
    %v7085 = vpop.f32.mrb[0].mxu0
    %7086 = vmatprep.mubr.f32.mxu0 0.0
    %7087 = vmatmul.mubr.f32.gmra.mrb[0].mxu0 %v6965
    %v7088 = vpop.f32.mrb[0].mxu0
    %v7089 = vadd.f32 0.0, %v7088
    %v7090 = vpop.f32.mrb[0].mxu0
    %7091 = vmatprep.mubr.f32.mxu0 0.0
    %7092 = vmatmul.mubr.f32.gmra.mrb[0].mxu0 %v6968
    %v7093 = vpop.f32.mrb[0].mxu0
    %v7094 = vadd.f32 0.0, %v7093
    %v7095 = vpop.f32.mrb[0].mxu0
    %7096 = vmatprep.mubr.f32.mxu0 0.0
    %7097 = vmatmul.mubr.f32.gmra.mrb[0].mxu0 %v6971
    %v7098 = vpop.f32.mrb[0].mxu0
    %v7099 = vadd.f32 0.0, %v7098
    %v7100 = vpop.f32.mrb[0].mxu0
    %7101 = vmatprep.mubr.f32.mxu0 0.0
    %7102 = vmatmul.mubr.f32.gmra.mrb[0].mxu0 %v6974
    %v7103 = vpop.f32.mrb[0].mxu0
    %v7104 = vadd.f32 0.0, %v7103
    %v7105 = vpop.f32.mrb[0].mxu0
    %7106 = vmatprep.mubr.f32.mxu0 0.0
    %7107 = vmatmul.mubr.f32.gmra.mrb[0].mxu0 %v6977
    %v7108 = vpop.f32.mrb[0].mxu0
    %v7109 = vadd.f32 0.0, %v7108
    %v7110 = vpop.f32.mrb[0].mxu0
    %7111 = vmatprep.mubr.f32.mxu0 0.0
    %7112 = vmatmul.mubr.f32.gmra.mrb[0].mxu0 %v6980
    %v7113 = vpop.f32.mrb[0].mxu0
    %v7114 = vadd.f32 0.0, %v7113
    %v7115 = vpop.f32.mrb[0].mxu0
    %7116 = vmatprep.mubr.f32.mxu0 0.0
    %7117 = vmatmul.mubr.f32.gmra.mrb[0].mxu0 %v6983
    %v7118 = vpop.f32.mrb[0].mxu0
    %v7119 = vadd.f32 0.0, %v7118
    %v7120 = vpop.f32.mrb[0].mxu0
    %7121 = vmatprep.mubr.f32.mxu0 0.0
    %7122 = vmatmul.mubr.f32.gmra.mrb[0].mxu0 %v6986
    %v7123 = vpop.f32.mrb[0].mxu0
    %v7124 = vadd.f32 0.0, %v7123
    %v7125 = vpop.f32.mrb[0].mxu0
    %7126 = vmatprep.mubr.f32.mxu0 0.0
    %7127 = vmatmul.mubr.f32.gmra.mrb[0].mxu0 %v6989
    %v7128 = vpop.f32.mrb[0].mxu0
    %v7129 = vadd.f32 0.0, %v7128
    %v7130 = vpop.f32.mrb[0].mxu0
    %7131 = vmatprep.mubr.f32.mxu0 0.0
    %7132 = vmatmul.mubr.f32.gmra.mrb[0].mxu0 %v6992
    %v7133 = vpop.f32.mrb[0].mxu0
    %v7134 = vadd.f32 0.0, %v7133
    %v7135 = vpop.f32.mrb[0].mxu0
    %7136 = vmatprep.mubr.f32.mxu0 0.0
    %7137 = vmatmul.mubr.f32.gmra.mrb[0].mxu0 %v6995
    %v7138 = vpop.f32.mrb[0].mxu0
    %v7139 = vadd.f32 0.0, %v7138
    %v7140 = vpop.f32.mrb[0].mxu0
    %7141 = vdwg.mxu0
    %v7142 = vmul.f32 %v7064, %v508
    %v7143 = vmul.f32 %v7069, %v509
    %v7144 = vmul.f32 %v7074, %v510
    %v7145 = vmul.f32 %v7079, %v511
    %v7146 = vmul.f32 %v7084, %v512
    %v7147 = vmul.f32 %v7089, %v513
    %v7148 = vmul.f32 %v7094, %v514
    %v7149 = vmul.f32 %v7099, %v515
    %v7150 = vmul.f32 %v7104, %v516
    %v7151 = vmul.f32 %v7109, %v517
    %v7152 = vmul.f32 %v7114, %v518
    %v7153 = vmul.f32 %v7119, %v519
    %v7154 = vmul.f32 %v7124, %v520
    %v7155 = vmul.f32 %v7129, %v521
    %v7156 = vmul.f32 %v7134, %v522
    %v7157 = vmul.f32 %v7139, %v523
    %7158 = vmatprep.subr.mxu0 0.0
    %7159 = vmatpush1.msra.mxu0 %v7142
    %7160 = vmatprep.subr.mxu0 0.0
    %7161 = vmatpush1.msra.mxu0 %v7143
    %7162 = vmatprep.subr.mxu0 0.0
    %7163 = vmatpush1.msra.mxu0 %v7144
    %7164 = vmatprep.subr.mxu0 0.0
    %7165 = vmatpush1.msra.mxu0 %v7145
    %7166 = vmatprep.subr.mxu0 0.0
    %7167 = vmatpush1.msra.mxu0 %v7146
    %7168 = vmatprep.subr.mxu0 0.0
    %7169 = vmatpush1.msra.mxu0 %v7147
    %7170 = vmatprep.subr.mxu0 0.0
    %7171 = vmatpush1.msra.mxu0 %v7148
    %7172 = vmatprep.subr.mxu0 0.0
    %7173 = vmatpush1.msra.mxu0 %v7149
    %7174 = vmatprep.subr.mxu0 0.0
    %7175 = vmatpush1.msra.mxu0 %v7150
    %7176 = vmatprep.subr.mxu0 0.0
    %7177 = vmatpush1.msra.mxu0 %v7151
    %7178 = vmatprep.subr.mxu0 0.0
    %7179 = vmatpush1.msra.mxu0 %v7152
    %7180 = vmatprep.subr.mxu0 0.0
    %7181 = vmatpush1.msra.mxu0 %v7153
    %7182 = vmatprep.subr.mxu0 0.0
    %7183 = vmatpush1.msra.mxu0 %v7154
    %7184 = vmatprep.subr.mxu0 0.0
    %7185 = vmatpush1.msra.mxu0 %v7155
    %7186 = vmatprep.subr.mxu0 0.0
    %7187 = vmatpush1.msra.mxu0 %v7156
    %7188 = vmatprep.subr.mxu0 0.0
    %7189 = vmatpush1.msra.mxu0 %v7157
    %7190 = vmatprep.subr.mxu0 0.0
    %7191 = vmatpush1.msra.mxu0 0.0
    %7192 = vmatprep.subr.mxu0 0.0
    %7193 = vmatpush1.msra.mxu0 0.0
    %7194 = vmatprep.subr.mxu0 0.0
    %7195 = vmatpush1.msra.mxu0 0.0
    %7196 = vmatprep.subr.mxu0 0.0
    %7197 = vmatpush1.msra.mxu0 0.0
    %7198 = vmatprep.subr.mxu0 0.0
    %7199 = vmatpush1.msra.mxu0 0.0
    %7200 = vmatprep.subr.mxu0 0.0
    %7201 = vmatpush1.msra.mxu0 0.0
    %7202 = vmatprep.subr.mxu0 0.0
    %7203 = vmatpush1.msra.mxu0 0.0
    %7204 = vmatprep.subr.mxu0 0.0
    %7205 = vmatpush1.msra.mxu0 0.0
    %7206 = vmatprep.subr.mxu0 0.0
    %7207 = vmatpush1.msra.mxu0 0.0
    %7208 = vmatprep.subr.mxu0 0.0
    %7209 = vmatpush1.msra.mxu0 0.0
    %7210 = vmatprep.subr.mxu0 0.0
    %7211 = vmatpush1.msra.mxu0 0.0
    %7212 = vmatprep.subr.mxu0 0.0
    %7213 = vmatpush1.msra.mxu0 0.0
    %7214 = vmatprep.subr.mxu0 0.0
    %7215 = vmatpush1.msra.mxu0 0.0
    %7216 = vmatprep.subr.mxu0 0.0
    %7217 = vmatpush1.msra.mxu0 0.0
    %7218 = vmatprep.subr.mxu0 0.0
    %7219 = vmatpush1.msra.mxu0 0.0
    %7220 = vmatprep.subr.mxu0 0.0
    %7221 = vmatpush1.msra.mxu0 0.0
    %7222 = vmatprep.mubr.f32.mxu0 0.0
    %7223 = vmatmul.mubr.f32.gmra.mrb[0].mxu0 %v506
    %v7224 = vpop.f32.mrb[0].mxu0
    %v7225 = vadd.f32 0.0, %v7224
    %v7226 = vpop.f32.mrb[0].mxu0
    %7227 = vmatprep.mubr.f32.mxu0 0.0
    %7228 = vmatmul.mubr.f32.gmra.mrb[0].mxu0 %v507
    %v7229 = vpop.f32.mrb[0].mxu0
    %v7230 = vadd.f32 0.0, %v7229
    %v7231 = vpop.f32.mrb[0].mxu0
    %7232 = vdwg.mxu0
    %7233 = vst.msk [vmem:[#allocation2 + $0x70] sm:$0xff] %vm296, %v7225
    %7234 = vst.msk [vmem:[#allocation2 + $0x78] sm:$0xff] %vm296, %v7230
    %v7235 = vld [vmem:[%s9] sm:$0x1]
    %v7236 = vld [vmem:[%s9 + $0x1] sm:$0x1]
    %v7237 = vld [vmem:[%s9 + $0x2] sm:$0x1]
    %v7238 = vld [vmem:[%s9 + $0x3] sm:$0x1]
    %v7239 = vld [vmem:[%s9 + $0x4] sm:$0x1]
    %v7240 = vld [vmem:[%s9 + $0x5] sm:$0x1]
    %v7241 = vld [vmem:[%s9 + $0x6] sm:$0x1]
    %v7242 = vld [vmem:[%s9 + $0x7] sm:$0x1]
    %v7243 = vld [vmem:[#allocation2] sm:$0xff]
    %v7244 = vld [vmem:[#allocation2 + $0x8] sm:$0xff]
    %v7245 = vld [vmem:[#allocation2 + $0x10] sm:$0xff]
    %v7246 = vld [vmem:[#allocation2 + $0x18] sm:$0xff]
    %v7247 = vld [vmem:[#allocation2 + $0x20] sm:$0xff]
    %v7248 = vld [vmem:[#allocation2 + $0x28] sm:$0xff]
    %v7249 = vld [vmem:[#allocation2 + $0x30] sm:$0xff]
    %v7250 = vld [vmem:[#allocation2 + $0x38] sm:$0xff]
    %v7251 = vld [vmem:[#allocation2 + $0x40] sm:$0xff]
    %v7252 = vld [vmem:[#allocation2 + $0x48] sm:$0xff]
    %v7253 = vld [vmem:[#allocation2 + $0x50] sm:$0xff]
    %v7254 = vld [vmem:[#allocation2 + $0x58] sm:$0xff]
    %v7255 = vld [vmem:[#allocation2 + $0x60] sm:$0xff]
    %v7256 = vld [vmem:[#allocation2 + $0x68] sm:$0xff]
    %v7257 = vld [vmem:[#allocation2 + $0x70] sm:$0xff]
    %v7258 = vld [vmem:[#allocation2 + $0x78] sm:$0xff]
    %v7259 = vld [vmem:[%s5] sm:$0xff]
    %v7260 = vld [vmem:[%s5 + $0x8] sm:$0xff]
    %v7261 = vld [vmem:[%s5 + $0x10] sm:$0xff]
    %v7262 = vld [vmem:[%s5 + $0x18] sm:$0xff]
    %v7263 = vlaneseq
    %v7264 = vshrl.u32 %v7263, 7
    %v7265 = vsub.s32 0, %v7264
    %v7266 = vrot.slane %v7235, %v7265
    %v7268 = vsel %vm296, %v7243, 0
    %v7271 = vsel %vm296, %v7244, 0
    %v7274 = vsel %vm296, %v7245, 0
    %v7277 = vsel %vm296, %v7246, 0
    %v7280 = vsel %vm296, %v7247, 0
    %v7283 = vsel %vm296, %v7248, 0
    %v7286 = vsel %vm296, %v7249, 0
    %v7289 = vsel %vm296, %v7250, 0
    %v7292 = vsel %vm296, %v7251, 0
    %v7295 = vsel %vm296, %v7252, 0
    %v7298 = vsel %vm296, %v7253, 0
    %v7301 = vsel %vm296, %v7254, 0
    %v7304 = vsel %vm296, %v7255, 0
    %v7307 = vsel %vm296, %v7256, 0
    %v7310 = vsel %vm296, %v7257, 0
    %v7313 = vsel %vm296, %v7258, 0
    %7315 = vmatprep.subr.mxu0 0.0
    %7316 = vmatpush1.msra.mxu0 %v7259
    %7317 = vmatprep.subr.mxu0 0.0
    %7318 = vmatpush1.msra.mxu0 %v7260
    %7319 = vmatprep.subr.mxu0 0.0
    %7320 = vmatpush1.msra.mxu0 %v7261
    %7321 = vmatprep.subr.mxu0 0.0
    %7322 = vmatpush1.msra.mxu0 %v7262
    %7323 = vmatprep.subr.mxu0 0.0
    %7324 = vmatpush1.msra.mxu0 0.0
    %7325 = vmatprep.subr.mxu0 0.0
    %7326 = vmatpush1.msra.mxu0 0.0
    %7327 = vmatprep.subr.mxu0 0.0
    %7328 = vmatpush1.msra.mxu0 0.0
    %7329 = vmatprep.subr.mxu0 0.0
    %7330 = vmatpush1.msra.mxu0 0.0
    %7331 = vmatprep.subr.mxu0 0.0
    %7332 = vmatpush1.msra.mxu0 0.0
    %7333 = vmatprep.subr.mxu0 0.0
    %7334 = vmatpush1.msra.mxu0 0.0
    %7335 = vmatprep.subr.mxu0 0.0
    %7336 = vmatpush1.msra.mxu0 0.0
    %7337 = vmatprep.subr.mxu0 0.0
    %7338 = vmatpush1.msra.mxu0 0.0
    %7339 = vmatprep.subr.mxu0 0.0
    %7340 = vmatpush1.msra.mxu0 0.0
    %7341 = vmatprep.subr.mxu0 0.0
    %7342 = vmatpush1.msra.mxu0 0.0
    %7343 = vmatprep.subr.mxu0 0.0
    %7344 = vmatpush1.msra.mxu0 0.0
    %7345 = vmatprep.subr.mxu0 0.0
    %7346 = vmatpush1.msra.mxu0 0.0
    %7347 = vmatprep.subr.mxu0 0.0
    %7348 = vmatpush1.msra.mxu0 0.0
    %7349 = vmatprep.subr.mxu0 0.0
    %7350 = vmatpush1.msra.mxu0 0.0
    %7351 = vmatprep.subr.mxu0 0.0
    %7352 = vmatpush1.msra.mxu0 0.0
    %7353 = vmatprep.subr.mxu0 0.0
    %7354 = vmatpush1.msra.mxu0 0.0
    %7355 = vmatprep.subr.mxu0 0.0
    %7356 = vmatpush1.msra.mxu0 0.0
    %7357 = vmatprep.subr.mxu0 0.0
    %7358 = vmatpush1.msra.mxu0 0.0
    %7359 = vmatprep.subr.mxu0 0.0
    %7360 = vmatpush1.msra.mxu0 0.0
    %7361 = vmatprep.subr.mxu0 0.0
    %7362 = vmatpush1.msra.mxu0 0.0
    %7363 = vmatprep.subr.mxu0 0.0
    %7364 = vmatpush1.msra.mxu0 0.0
    %7365 = vmatprep.subr.mxu0 0.0
    %7366 = vmatpush1.msra.mxu0 0.0
    %7367 = vmatprep.subr.mxu0 0.0
    %7368 = vmatpush1.msra.mxu0 0.0
    %7369 = vmatprep.subr.mxu0 0.0
    %7370 = vmatpush1.msra.mxu0 0.0
    %7371 = vmatprep.subr.mxu0 0.0
    %7372 = vmatpush1.msra.mxu0 0.0
    %7373 = vmatprep.subr.mxu0 0.0
    %7374 = vmatpush1.msra.mxu0 0.0
    %7375 = vmatprep.subr.mxu0 0.0
    %7376 = vmatpush1.msra.mxu0 0.0
    %7377 = vmatprep.subr.mxu0 0.0
    %7378 = vmatpush1.msra.mxu0 0.0
    %7379 = vmatprep.mubr.f32.mxu0 0.0
    %7380 = vmatmul.mubr.f32.gmra.mrb[0].mxu0 %v7268
    %v7381 = vpop.f32.mrb[0].mxu0
    %v7382 = vadd.f32 %v7266, %v7381
    %v7383 = vpop.f32.mrb[0].mxu0
    %7384 = vmatprep.mubr.f32.mxu0 0.0
    %7385 = vmatmul.mubr.f32.gmra.mrb[0].mxu0 %v7271
    %v7386 = vpop.f32.mrb[0].mxu0
    %v7387 = vadd.f32 %v7266, %v7386
    %v7388 = vpop.f32.mrb[0].mxu0
    %7389 = vmatprep.mubr.f32.mxu0 0.0
    %7390 = vmatmul.mubr.f32.gmra.mrb[0].mxu0 %v7274
    %v7391 = vpop.f32.mrb[0].mxu0
    %v7392 = vadd.f32 %v7266, %v7391
    %v7393 = vpop.f32.mrb[0].mxu0
    %7394 = vmatprep.mubr.f32.mxu0 0.0
    %7395 = vmatmul.mubr.f32.gmra.mrb[0].mxu0 %v7277
    %v7396 = vpop.f32.mrb[0].mxu0
    %v7397 = vadd.f32 %v7266, %v7396
    %v7398 = vpop.f32.mrb[0].mxu0
    %7399 = vmatprep.mubr.f32.mxu0 0.0
    %7400 = vmatmul.mubr.f32.gmra.mrb[0].mxu0 %v7280
    %v7401 = vpop.f32.mrb[0].mxu0
    %v7402 = vadd.f32 %v7266, %v7401
    %v7403 = vpop.f32.mrb[0].mxu0
    %7404 = vmatprep.mubr.f32.mxu0 0.0
    %7405 = vmatmul.mubr.f32.gmra.mrb[0].mxu0 %v7283
    %v7406 = vpop.f32.mrb[0].mxu0
    %v7407 = vadd.f32 %v7266, %v7406
    %v7408 = vpop.f32.mrb[0].mxu0
    %7409 = vmatprep.mubr.f32.mxu0 0.0
    %7410 = vmatmul.mubr.f32.gmra.mrb[0].mxu0 %v7286
    %v7411 = vpop.f32.mrb[0].mxu0
    %v7412 = vadd.f32 %v7266, %v7411
    %v7413 = vpop.f32.mrb[0].mxu0
    %7414 = vmatprep.mubr.f32.mxu0 0.0
    %7415 = vmatmul.mubr.f32.gmra.mrb[0].mxu0 %v7289
    %v7416 = vpop.f32.mrb[0].mxu0
    %v7417 = vadd.f32 %v7266, %v7416
    %v7418 = vpop.f32.mrb[0].mxu0
    %7419 = vmatprep.mubr.f32.mxu0 0.0
    %7420 = vmatmul.mubr.f32.gmra.mrb[0].mxu0 %v7292
    %v7421 = vpop.f32.mrb[0].mxu0
    %v7422 = vadd.f32 %v7266, %v7421
    %v7423 = vpop.f32.mrb[0].mxu0
    %7424 = vmatprep.mubr.f32.mxu0 0.0
    %7425 = vmatmul.mubr.f32.gmra.mrb[0].mxu0 %v7295
    %v7426 = vpop.f32.mrb[0].mxu0
    %v7427 = vadd.f32 %v7266, %v7426
    %v7428 = vpop.f32.mrb[0].mxu0
    %7429 = vmatprep.mubr.f32.mxu0 0.0
    %7430 = vmatmul.mubr.f32.gmra.mrb[0].mxu0 %v7298
    %v7431 = vpop.f32.mrb[0].mxu0
    %v7432 = vadd.f32 %v7266, %v7431
    %v7433 = vpop.f32.mrb[0].mxu0
    %7434 = vmatprep.mubr.f32.mxu0 0.0
    %7435 = vmatmul.mubr.f32.gmra.mrb[0].mxu0 %v7301
    %v7436 = vpop.f32.mrb[0].mxu0
    %v7437 = vadd.f32 %v7266, %v7436
    %v7438 = vpop.f32.mrb[0].mxu0
    %7439 = vmatprep.mubr.f32.mxu0 0.0
    %7440 = vmatmul.mubr.f32.gmra.mrb[0].mxu0 %v7304
    %v7441 = vpop.f32.mrb[0].mxu0
    %v7442 = vadd.f32 %v7266, %v7441
    %v7443 = vpop.f32.mrb[0].mxu0
    %7444 = vmatprep.mubr.f32.mxu0 0.0
    %7445 = vmatmul.mubr.f32.gmra.mrb[0].mxu0 %v7307
    %v7446 = vpop.f32.mrb[0].mxu0
    %v7447 = vadd.f32 %v7266, %v7446
    %v7448 = vpop.f32.mrb[0].mxu0
    %7449 = vmatprep.mubr.f32.mxu0 0.0
    %7450 = vmatmul.mubr.f32.gmra.mrb[0].mxu0 %v7310
    %v7451 = vpop.f32.mrb[0].mxu0
    %v7452 = vadd.f32 %v7266, %v7451
    %v7453 = vpop.f32.mrb[0].mxu0
    %7454 = vmatprep.mubr.f32.mxu0 0.0
    %7455 = vmatmul.mubr.f32.gmra.mrb[0].mxu0 %v7313
    %v7456 = vpop.f32.mrb[0].mxu0
    %v7457 = vadd.f32 %v7266, %v7456
    %v7458 = vpop.f32.mrb[0].mxu0
    %7459 = vdwg.mxu0
    %v7460 = vadd.f32 %v207, %v7382
    %v7461 = vadd.f32 %v212, %v7387
    %v7462 = vadd.f32 %v217, %v7392
    %v7463 = vadd.f32 %v222, %v7397
    %v7464 = vadd.f32 %v227, %v7402
    %v7465 = vadd.f32 %v232, %v7407
    %v7466 = vadd.f32 %v237, %v7412
    %v7467 = vadd.f32 %v242, %v7417
    %v7468 = vadd.f32 %v247, %v7422
    %v7469 = vadd.f32 %v252, %v7427
    %v7470 = vadd.f32 %v257, %v7432
    %v7471 = vadd.f32 %v262, %v7437
    %v7472 = vadd.f32 %v267, %v7442
    %v7473 = vadd.f32 %v272, %v7447
    %v7474 = vadd.f32 %v277, %v7452
    %v7475 = vadd.f32 %v282, %v7457
    %v7476 = vsel %vm296, %v7460, 0.0
    %7477 = vadd.xlane.f32.xlu0 %v7476
    %v7478 = vpop.xlane.xlu0 %7477
    %v7479 = vsel %vm296, %v7461, 0.0
    %7480 = vadd.xlane.f32.xlu0 %v7479
    %v7481 = vpop.xlane.xlu0 %7480
    %v7482 = vsel %vm296, %v7462, 0.0
    %7483 = vadd.xlane.f32.xlu0 %v7482
    %v7484 = vpop.xlane.xlu0 %7483
    %v7485 = vsel %vm296, %v7463, 0.0
    %7486 = vadd.xlane.f32.xlu0 %v7485
    %v7487 = vpop.xlane.xlu0 %7486
    %v7488 = vsel %vm296, %v7464, 0.0
    %7489 = vadd.xlane.f32.xlu0 %v7488
    %v7490 = vpop.xlane.xlu0 %7489
    %v7491 = vsel %vm296, %v7465, 0.0
    %7492 = vadd.xlane.f32.xlu0 %v7491
    %v7493 = vpop.xlane.xlu0 %7492
    %v7494 = vsel %vm296, %v7466, 0.0
    %7495 = vadd.xlane.f32.xlu0 %v7494
    %v7496 = vpop.xlane.xlu0 %7495
    %v7497 = vsel %vm296, %v7467, 0.0
    %7498 = vadd.xlane.f32.xlu0 %v7497
    %v7499 = vpop.xlane.xlu0 %7498
    %v7500 = vsel %vm296, %v7468, 0.0
    %7501 = vadd.xlane.f32.xlu0 %v7500
    %v7502 = vpop.xlane.xlu0 %7501
    %v7503 = vsel %vm296, %v7469, 0.0
    %7504 = vadd.xlane.f32.xlu0 %v7503
    %v7505 = vpop.xlane.xlu0 %7504
    %v7506 = vsel %vm296, %v7470, 0.0
    %7507 = vadd.xlane.f32.xlu0 %v7506
    %v7508 = vpop.xlane.xlu0 %7507
    %v7509 = vsel %vm296, %v7471, 0.0
    %7510 = vadd.xlane.f32.xlu0 %v7509
    %v7511 = vpop.xlane.xlu0 %7510
    %v7512 = vsel %vm296, %v7472, 0.0
    %7513 = vadd.xlane.f32.xlu0 %v7512
    %v7514 = vpop.xlane.xlu0 %7513
    %v7515 = vsel %vm296, %v7473, 0.0
    %7516 = vadd.xlane.f32.xlu0 %v7515
    %v7517 = vpop.xlane.xlu0 %7516
    %v7518 = vsel %vm296, %v7474, 0.0
    %7519 = vadd.xlane.f32.xlu0 %v7518
    %v7520 = vpop.xlane.xlu0 %7519
    %v7521 = vsel %vm296, %v7475, 0.0
    %7522 = vadd.xlane.f32.xlu0 %v7521
    %v7523 = vpop.xlane.xlu0 %7522
    %v7524 = vrcp.pop 32.0
    %v7525 = vmul.f32 %v7478, %v7524
    %v7526 = vmul.f32 %v7481, %v7524
    %v7527 = vmul.f32 %v7484, %v7524
    %v7528 = vmul.f32 %v7487, %v7524
    %v7529 = vmul.f32 %v7490, %v7524
    %v7530 = vmul.f32 %v7493, %v7524
    %v7531 = vmul.f32 %v7496, %v7524
    %v7532 = vmul.f32 %v7499, %v7524
    %v7533 = vmul.f32 %v7502, %v7524
    %v7534 = vmul.f32 %v7505, %v7524
    %v7535 = vmul.f32 %v7508, %v7524
    %v7536 = vmul.f32 %v7511, %v7524
    %v7537 = vmul.f32 %v7514, %v7524
    %v7538 = vmul.f32 %v7517, %v7524
    %v7539 = vmul.f32 %v7520, %v7524
    %v7540 = vmul.f32 %v7523, %v7524
    %v7541 = vsub.f32 %v7460, %v7525
    %v7542 = vsub.f32 %v7461, %v7526
    %v7543 = vsub.f32 %v7462, %v7527
    %v7544 = vsub.f32 %v7463, %v7528
    %v7545 = vsub.f32 %v7464, %v7529
    %v7546 = vsub.f32 %v7465, %v7530
    %v7547 = vsub.f32 %v7466, %v7531
    %v7548 = vsub.f32 %v7467, %v7532
    %v7549 = vsub.f32 %v7468, %v7533
    %v7550 = vsub.f32 %v7469, %v7534
    %v7551 = vsub.f32 %v7470, %v7535
    %v7552 = vsub.f32 %v7471, %v7536
    %v7553 = vsub.f32 %v7472, %v7537
    %v7554 = vsub.f32 %v7473, %v7538
    %v7555 = vsub.f32 %v7474, %v7539
    %v7556 = vsub.f32 %v7475, %v7540
    %v7557 = vmul.f32 %v7541, %v7541
    %v7558 = vmul.f32 %v7542, %v7542
    %v7559 = vmul.f32 %v7543, %v7543
    %v7560 = vmul.f32 %v7544, %v7544
    %v7561 = vmul.f32 %v7545, %v7545
    %v7562 = vmul.f32 %v7546, %v7546
    %v7563 = vmul.f32 %v7547, %v7547
    %v7564 = vmul.f32 %v7548, %v7548
    %v7565 = vmul.f32 %v7549, %v7549
    %v7566 = vmul.f32 %v7550, %v7550
    %v7567 = vmul.f32 %v7551, %v7551
    %v7568 = vmul.f32 %v7552, %v7552
    %v7569 = vmul.f32 %v7553, %v7553
    %v7570 = vmul.f32 %v7554, %v7554
    %v7571 = vmul.f32 %v7555, %v7555
    %v7572 = vmul.f32 %v7556, %v7556
    %v7573 = vsel %vm296, %v7557, 0.0
    %7574 = vadd.xlane.f32.xlu0 %v7573
    %v7575 = vpop.xlane.xlu0 %7574
    %v7576 = vsel %vm296, %v7558, 0.0
    %7577 = vadd.xlane.f32.xlu0 %v7576
    %v7578 = vpop.xlane.xlu0 %7577
    %v7579 = vsel %vm296, %v7559, 0.0
    %7580 = vadd.xlane.f32.xlu0 %v7579
    %v7581 = vpop.xlane.xlu0 %7580
    %v7582 = vsel %vm296, %v7560, 0.0
    %7583 = vadd.xlane.f32.xlu0 %v7582
    %v7584 = vpop.xlane.xlu0 %7583
    %v7585 = vsel %vm296, %v7561, 0.0
    %7586 = vadd.xlane.f32.xlu0 %v7585
    %v7587 = vpop.xlane.xlu0 %7586
    %v7588 = vsel %vm296, %v7562, 0.0
    %7589 = vadd.xlane.f32.xlu0 %v7588
    %v7590 = vpop.xlane.xlu0 %7589
    %v7591 = vsel %vm296, %v7563, 0.0
    %7592 = vadd.xlane.f32.xlu0 %v7591
    %v7593 = vpop.xlane.xlu0 %7592
    %v7594 = vsel %vm296, %v7564, 0.0
    %7595 = vadd.xlane.f32.xlu0 %v7594
    %v7596 = vpop.xlane.xlu0 %7595
    %v7597 = vsel %vm296, %v7565, 0.0
    %7598 = vadd.xlane.f32.xlu0 %v7597
    %v7599 = vpop.xlane.xlu0 %7598
    %v7600 = vsel %vm296, %v7566, 0.0
    %7601 = vadd.xlane.f32.xlu0 %v7600
    %v7602 = vpop.xlane.xlu0 %7601
    %v7603 = vsel %vm296, %v7567, 0.0
    %7604 = vadd.xlane.f32.xlu0 %v7603
    %v7605 = vpop.xlane.xlu0 %7604
    %v7606 = vsel %vm296, %v7568, 0.0
    %7607 = vadd.xlane.f32.xlu0 %v7606
    %v7608 = vpop.xlane.xlu0 %7607
    %v7609 = vsel %vm296, %v7569, 0.0
    %7610 = vadd.xlane.f32.xlu0 %v7609
    %v7611 = vpop.xlane.xlu0 %7610
    %v7612 = vsel %vm296, %v7570, 0.0
    %7613 = vadd.xlane.f32.xlu0 %v7612
    %v7614 = vpop.xlane.xlu0 %7613
    %v7615 = vsel %vm296, %v7571, 0.0
    %7616 = vadd.xlane.f32.xlu0 %v7615
    %v7617 = vpop.xlane.xlu0 %7616
    %v7618 = vsel %vm296, %v7572, 0.0
    %7619 = vadd.xlane.f32.xlu0 %v7618
    %v7620 = vpop.xlane.xlu0 %7619
    %v7621 = vmul.f32 %v7575, %v7524
    %v7622 = vmul.f32 %v7578, %v7524
    %v7623 = vmul.f32 %v7581, %v7524
    %v7624 = vmul.f32 %v7584, %v7524
    %v7625 = vmul.f32 %v7587, %v7524
    %v7626 = vmul.f32 %v7590, %v7524
    %v7627 = vmul.f32 %v7593, %v7524
    %v7628 = vmul.f32 %v7596, %v7524
    %v7629 = vmul.f32 %v7599, %v7524
    %v7630 = vmul.f32 %v7602, %v7524
    %v7631 = vmul.f32 %v7605, %v7524
    %v7632 = vmul.f32 %v7608, %v7524
    %v7633 = vmul.f32 %v7611, %v7524
    %v7634 = vmul.f32 %v7614, %v7524
    %v7635 = vmul.f32 %v7617, %v7524
    %v7636 = vmul.f32 %v7620, %v7524
    %v7637 = vadd.f32 %v7621, 1e-05
    %v7638 = vadd.f32 %v7622, 1e-05
    %v7639 = vadd.f32 %v7623, 1e-05
    %v7640 = vadd.f32 %v7624, 1e-05
    %v7641 = vadd.f32 %v7625, 1e-05
    %v7642 = vadd.f32 %v7626, 1e-05
    %v7643 = vadd.f32 %v7627, 1e-05
    %v7644 = vadd.f32 %v7628, 1e-05
    %v7645 = vadd.f32 %v7629, 1e-05
    %v7646 = vadd.f32 %v7630, 1e-05
    %v7647 = vadd.f32 %v7631, 1e-05
    %v7648 = vadd.f32 %v7632, 1e-05
    %v7649 = vadd.f32 %v7633, 1e-05
    %v7650 = vadd.f32 %v7634, 1e-05
    %v7651 = vadd.f32 %v7635, 1e-05
    %v7652 = vadd.f32 %v7636, 1e-05
    %v7653 = vrsqrt.pop %v7637
    %v7654 = vrsqrt.pop %v7638
    %v7655 = vrsqrt.pop %v7639
    %v7656 = vrsqrt.pop %v7640
    %v7657 = vrsqrt.pop %v7641
    %v7658 = vrsqrt.pop %v7642
    %v7659 = vrsqrt.pop %v7643
    %v7660 = vrsqrt.pop %v7644
    %v7661 = vrsqrt.pop %v7645
    %v7662 = vrsqrt.pop %v7646
    %v7663 = vrsqrt.pop %v7647
    %v7664 = vrsqrt.pop %v7648
    %v7665 = vrsqrt.pop %v7649
    %v7666 = vrsqrt.pop %v7650
    %v7667 = vrsqrt.pop %v7651
    %v7668 = vrsqrt.pop %v7652
    %v7669 = vmul.f32 %v7541, %v7653
    %v7670 = vmul.f32 %v7542, %v7654
    %v7671 = vmul.f32 %v7543, %v7655
    %v7672 = vmul.f32 %v7544, %v7656
    %v7673 = vmul.f32 %v7545, %v7657
    %v7674 = vmul.f32 %v7546, %v7658
    %v7675 = vmul.f32 %v7547, %v7659
    %v7676 = vmul.f32 %v7548, %v7660
    %v7677 = vmul.f32 %v7549, %v7661
    %v7678 = vmul.f32 %v7550, %v7662
    %v7679 = vmul.f32 %v7551, %v7663
    %v7680 = vmul.f32 %v7552, %v7664
    %v7681 = vmul.f32 %v7553, %v7665
    %v7682 = vmul.f32 %v7554, %v7666
    %v7683 = vmul.f32 %v7555, %v7667
    %v7684 = vmul.f32 %v7556, %v7668
    %v7685 = vlaneseq
    %v7686 = vshrl.u32 %v7685, 7
    %v7687 = vsub.s32 0, %v7686
    %v7688 = vrot.slane %v7236, %v7687
    %v7689 = vmul.f32 %v7669, %v7688
    %v7690 = vmul.f32 %v7670, %v7688
    %v7691 = vmul.f32 %v7671, %v7688
    %v7692 = vmul.f32 %v7672, %v7688
    %v7693 = vmul.f32 %v7673, %v7688
    %v7694 = vmul.f32 %v7674, %v7688
    %v7695 = vmul.f32 %v7675, %v7688
    %v7696 = vmul.f32 %v7676, %v7688
    %v7697 = vmul.f32 %v7677, %v7688
    %v7698 = vmul.f32 %v7678, %v7688
    %v7699 = vmul.f32 %v7679, %v7688
    %v7700 = vmul.f32 %v7680, %v7688
    %v7701 = vmul.f32 %v7681, %v7688
    %v7702 = vmul.f32 %v7682, %v7688
    %v7703 = vmul.f32 %v7683, %v7688
    %v7704 = vmul.f32 %v7684, %v7688
    %v7705 = vlaneseq
    %v7706 = vshrl.u32 %v7705, 7
    %v7707 = vsub.s32 0, %v7706
    %v7708 = vrot.slane %v7237, %v7707
    %v7709 = vadd.f32 %v7689, %v7708
    %v7710 = vadd.f32 %v7690, %v7708
    %v7711 = vadd.f32 %v7691, %v7708
    %v7712 = vadd.f32 %v7692, %v7708
    %v7713 = vadd.f32 %v7693, %v7708
    %v7714 = vadd.f32 %v7694, %v7708
    %v7715 = vadd.f32 %v7695, %v7708
    %v7716 = vadd.f32 %v7696, %v7708
    %v7717 = vadd.f32 %v7697, %v7708
    %v7718 = vadd.f32 %v7698, %v7708
    %v7719 = vadd.f32 %v7699, %v7708
    %v7720 = vadd.f32 %v7700, %v7708
    %v7721 = vadd.f32 %v7701, %v7708
    %v7722 = vadd.f32 %v7702, %v7708
    %v7723 = vadd.f32 %v7703, %v7708
    %v7724 = vadd.f32 %v7704, %v7708
    %v7725 = vld [vmem:[%s6] sm:$0xff]
    %v7726 = vld [vmem:[%s6 + $0x8] sm:$0xff]
    %v7727 = vld [vmem:[%s6 + $0x10] sm:$0xff]
    %v7728 = vld [vmem:[%s6 + $0x18] sm:$0xff]
    %v7729 = vld [vmem:[%s7] sm:$0x1]
    %v7731 = vlaneseq
    %v7732 = vshrl.u32 %v7731, 7
    %v7733 = vsub.s32 0, %v7732
    %v7734 = vrot.slane %v7729, %v7733
    %v7737 = vsel %vm296, %v7709, 0
    %v7740 = vsel %vm296, %v7710, 0
    %v7743 = vsel %vm296, %v7711, 0
    %v7746 = vsel %vm296, %v7712, 0
    %v7749 = vsel %vm296, %v7713, 0
    %v7752 = vsel %vm296, %v7714, 0
    %v7755 = vsel %vm296, %v7715, 0
    %v7758 = vsel %vm296, %v7716, 0
    %v7761 = vsel %vm296, %v7717, 0
    %v7764 = vsel %vm296, %v7718, 0
    %v7767 = vsel %vm296, %v7719, 0
    %v7770 = vsel %vm296, %v7720, 0
    %v7773 = vsel %vm296, %v7721, 0
    %v7776 = vsel %vm296, %v7722, 0
    %v7779 = vsel %vm296, %v7723, 0
    %v7782 = vsel %vm296, %v7724, 0
    %7784 = vmatprep.subr.mxu0 0.0
    %7785 = vmatpush1.msra.mxu0 %v7725
    %7786 = vmatprep.subr.mxu0 0.0
    %7787 = vmatpush1.msra.mxu0 %v7726
    %7788 = vmatprep.subr.mxu0 0.0
    %7789 = vmatpush1.msra.mxu0 %v7727
    %7790 = vmatprep.subr.mxu0 0.0
    %7791 = vmatpush1.msra.mxu0 %v7728
    %7792 = vmatprep.subr.mxu0 0.0
    %7793 = vmatpush1.msra.mxu0 0.0
    %7794 = vmatprep.subr.mxu0 0.0
    %7795 = vmatpush1.msra.mxu0 0.0
    %7796 = vmatprep.subr.mxu0 0.0
    %7797 = vmatpush1.msra.mxu0 0.0
    %7798 = vmatprep.subr.mxu0 0.0
    %7799 = vmatpush1.msra.mxu0 0.0
    %7800 = vmatprep.subr.mxu0 0.0
    %7801 = vmatpush1.msra.mxu0 0.0
    %7802 = vmatprep.subr.mxu0 0.0
    %7803 = vmatpush1.msra.mxu0 0.0
    %7804 = vmatprep.subr.mxu0 0.0
    %7805 = vmatpush1.msra.mxu0 0.0
    %7806 = vmatprep.subr.mxu0 0.0
    %7807 = vmatpush1.msra.mxu0 0.0
    %7808 = vmatprep.subr.mxu0 0.0
    %7809 = vmatpush1.msra.mxu0 0.0
    %7810 = vmatprep.subr.mxu0 0.0
    %7811 = vmatpush1.msra.mxu0 0.0
    %7812 = vmatprep.subr.mxu0 0.0
    %7813 = vmatpush1.msra.mxu0 0.0
    %7814 = vmatprep.subr.mxu0 0.0
    %7815 = vmatpush1.msra.mxu0 0.0
    %7816 = vmatprep.subr.mxu0 0.0
    %7817 = vmatpush1.msra.mxu0 0.0
    %7818 = vmatprep.subr.mxu0 0.0
    %7819 = vmatpush1.msra.mxu0 0.0
    %7820 = vmatprep.subr.mxu0 0.0
    %7821 = vmatpush1.msra.mxu0 0.0
    %7822 = vmatprep.subr.mxu0 0.0
    %7823 = vmatpush1.msra.mxu0 0.0
    %7824 = vmatprep.subr.mxu0 0.0
    %7825 = vmatpush1.msra.mxu0 0.0
    %7826 = vmatprep.subr.mxu0 0.0
    %7827 = vmatpush1.msra.mxu0 0.0
    %7828 = vmatprep.subr.mxu0 0.0
    %7829 = vmatpush1.msra.mxu0 0.0
    %7830 = vmatprep.subr.mxu0 0.0
    %7831 = vmatpush1.msra.mxu0 0.0
    %7832 = vmatprep.subr.mxu0 0.0
    %7833 = vmatpush1.msra.mxu0 0.0
    %7834 = vmatprep.subr.mxu0 0.0
    %7835 = vmatpush1.msra.mxu0 0.0
    %7836 = vmatprep.subr.mxu0 0.0
    %7837 = vmatpush1.msra.mxu0 0.0
    %7838 = vmatprep.subr.mxu0 0.0
    %7839 = vmatpush1.msra.mxu0 0.0
    %7840 = vmatprep.subr.mxu0 0.0
    %7841 = vmatpush1.msra.mxu0 0.0
    %7842 = vmatprep.subr.mxu0 0.0
    %7843 = vmatpush1.msra.mxu0 0.0
    %7844 = vmatprep.subr.mxu0 0.0
    %7845 = vmatpush1.msra.mxu0 0.0
    %7846 = vmatprep.subr.mxu0 0.0
    %7847 = vmatpush1.msra.mxu0 0.0
    %7848 = vmatprep.mubr.f32.mxu0 0.0
    %7849 = vmatmul.mubr.f32.gmra.mrb[0].mxu0 %v7737
    %v7850 = vpop.f32.mrb[0].mxu0
    %v7851 = vadd.f32 %v7734, %v7850
    %v7852 = vpop.f32.mrb[0].mxu0
    %7853 = vmatprep.mubr.f32.mxu0 0.0
    %7854 = vmatmul.mubr.f32.gmra.mrb[0].mxu0 %v7740
    %v7855 = vpop.f32.mrb[0].mxu0
    %v7856 = vadd.f32 %v7734, %v7855
    %v7857 = vpop.f32.mrb[0].mxu0
    %7858 = vmatprep.mubr.f32.mxu0 0.0
    %7859 = vmatmul.mubr.f32.gmra.mrb[0].mxu0 %v7743
    %v7860 = vpop.f32.mrb[0].mxu0
    %v7861 = vadd.f32 %v7734, %v7860
    %v7862 = vpop.f32.mrb[0].mxu0
    %7863 = vmatprep.mubr.f32.mxu0 0.0
    %7864 = vmatmul.mubr.f32.gmra.mrb[0].mxu0 %v7746
    %v7865 = vpop.f32.mrb[0].mxu0
    %v7866 = vadd.f32 %v7734, %v7865
    %v7867 = vpop.f32.mrb[0].mxu0
    %7868 = vmatprep.mubr.f32.mxu0 0.0
    %7869 = vmatmul.mubr.f32.gmra.mrb[0].mxu0 %v7749
    %v7870 = vpop.f32.mrb[0].mxu0
    %v7871 = vadd.f32 %v7734, %v7870
    %v7872 = vpop.f32.mrb[0].mxu0
    %7873 = vmatprep.mubr.f32.mxu0 0.0
    %7874 = vmatmul.mubr.f32.gmra.mrb[0].mxu0 %v7752
    %v7875 = vpop.f32.mrb[0].mxu0
    %v7876 = vadd.f32 %v7734, %v7875
    %v7877 = vpop.f32.mrb[0].mxu0
    %7878 = vmatprep.mubr.f32.mxu0 0.0
    %7879 = vmatmul.mubr.f32.gmra.mrb[0].mxu0 %v7755
    %v7880 = vpop.f32.mrb[0].mxu0
    %v7881 = vadd.f32 %v7734, %v7880
    %v7882 = vpop.f32.mrb[0].mxu0
    %7883 = vmatprep.mubr.f32.mxu0 0.0
    %7884 = vmatmul.mubr.f32.gmra.mrb[0].mxu0 %v7758
    %v7885 = vpop.f32.mrb[0].mxu0
    %v7886 = vadd.f32 %v7734, %v7885
    %v7887 = vpop.f32.mrb[0].mxu0
    %7888 = vmatprep.mubr.f32.mxu0 0.0
    %7889 = vmatmul.mubr.f32.gmra.mrb[0].mxu0 %v7761
    %v7890 = vpop.f32.mrb[0].mxu0
    %v7891 = vadd.f32 %v7734, %v7890
    %v7892 = vpop.f32.mrb[0].mxu0
    %7893 = vmatprep.mubr.f32.mxu0 0.0
    %7894 = vmatmul.mubr.f32.gmra.mrb[0].mxu0 %v7764
    %v7895 = vpop.f32.mrb[0].mxu0
    %v7896 = vadd.f32 %v7734, %v7895
    %v7897 = vpop.f32.mrb[0].mxu0
    %7898 = vmatprep.mubr.f32.mxu0 0.0
    %7899 = vmatmul.mubr.f32.gmra.mrb[0].mxu0 %v7767
    %v7900 = vpop.f32.mrb[0].mxu0
    %v7901 = vadd.f32 %v7734, %v7900
    %v7902 = vpop.f32.mrb[0].mxu0
    %7903 = vmatprep.mubr.f32.mxu0 0.0
    %7904 = vmatmul.mubr.f32.gmra.mrb[0].mxu0 %v7770
    %v7905 = vpop.f32.mrb[0].mxu0
    %v7906 = vadd.f32 %v7734, %v7905
    %v7907 = vpop.f32.mrb[0].mxu0
    %7908 = vmatprep.mubr.f32.mxu0 0.0
    %7909 = vmatmul.mubr.f32.gmra.mrb[0].mxu0 %v7773
    %v7910 = vpop.f32.mrb[0].mxu0
    %v7911 = vadd.f32 %v7734, %v7910
    %v7912 = vpop.f32.mrb[0].mxu0
    %7913 = vmatprep.mubr.f32.mxu0 0.0
    %7914 = vmatmul.mubr.f32.gmra.mrb[0].mxu0 %v7776
    %v7915 = vpop.f32.mrb[0].mxu0
    %v7916 = vadd.f32 %v7734, %v7915
    %v7917 = vpop.f32.mrb[0].mxu0
    %7918 = vmatprep.mubr.f32.mxu0 0.0
    %7919 = vmatmul.mubr.f32.gmra.mrb[0].mxu0 %v7779
    %v7920 = vpop.f32.mrb[0].mxu0
    %v7921 = vadd.f32 %v7734, %v7920
    %v7922 = vpop.f32.mrb[0].mxu0
    %7923 = vmatprep.mubr.f32.mxu0 0.0
    %7924 = vmatmul.mubr.f32.gmra.mrb[0].mxu0 %v7782
    %v7925 = vpop.f32.mrb[0].mxu0
    %v7926 = vadd.f32 %v7734, %v7925
    %v7927 = vpop.f32.mrb[0].mxu0
    %7928 = vdwg.mxu0
    %v7929 = vmax.f32 %v7851, 0.0
    %v7930 = vmax.f32 %v7856, 0.0
    %v7931 = vmax.f32 %v7861, 0.0
    %v7932 = vmax.f32 %v7866, 0.0
    %v7933 = vmax.f32 %v7871, 0.0
    %v7934 = vmax.f32 %v7876, 0.0
    %v7935 = vmax.f32 %v7881, 0.0
    %v7936 = vmax.f32 %v7886, 0.0
    %v7937 = vmax.f32 %v7891, 0.0
    %v7938 = vmax.f32 %v7896, 0.0
    %v7939 = vmax.f32 %v7901, 0.0
    %v7940 = vmax.f32 %v7906, 0.0
    %v7941 = vmax.f32 %v7911, 0.0
    %v7942 = vmax.f32 %v7916, 0.0
    %v7943 = vmax.f32 %v7921, 0.0
    %v7944 = vmax.f32 %v7926, 0.0
    %v7945 = vld [vmem:[%s8] sm:$0xff]
    %v7946 = vld [vmem:[%s8 + $0x8] sm:$0xff]
    %v7947 = vld [vmem:[%s8 + $0x10] sm:$0xff]
    %v7948 = vld [vmem:[%s8 + $0x18] sm:$0xff]
    %v7949 = vld [vmem:[%s8 + $0x20] sm:$0xff]
    %v7950 = vld [vmem:[%s8 + $0x28] sm:$0xff]
    %v7951 = vld [vmem:[%s8 + $0x30] sm:$0xff]
    %v7952 = vld [vmem:[%s8 + $0x38] sm:$0xff]
    %v7953 = vlaneseq
    %v7954 = vshrl.u32 %v7953, 7
    %v7955 = vsub.s32 0, %v7954
    %v7956 = vrot.slane %v7238, %v7955
    %vm7957 = vcmask 523264
    %v7959 = vsel %vm7957, %v7929, 0
    %v7962 = vsel %vm7957, %v7930, 0
    %v7965 = vsel %vm7957, %v7931, 0
    %v7968 = vsel %vm7957, %v7932, 0
    %v7971 = vsel %vm7957, %v7933, 0
    %v7974 = vsel %vm7957, %v7934, 0
    %v7977 = vsel %vm7957, %v7935, 0
    %v7980 = vsel %vm7957, %v7936, 0
    %v7983 = vsel %vm7957, %v7937, 0
    %v7986 = vsel %vm7957, %v7938, 0
    %v7989 = vsel %vm7957, %v7939, 0
    %v7992 = vsel %vm7957, %v7940, 0
    %v7995 = vsel %vm7957, %v7941, 0
    %v7998 = vsel %vm7957, %v7942, 0
    %v8001 = vsel %vm7957, %v7943, 0
    %v8004 = vsel %vm7957, %v7944, 0
    %8006 = vmatprep.subr.mxu0 0.0
    %8007 = vmatpush1.msra.mxu0 %v7945
    %8008 = vmatprep.subr.mxu0 0.0
    %8009 = vmatpush1.msra.mxu0 %v7946
    %8010 = vmatprep.subr.mxu0 0.0
    %8011 = vmatpush1.msra.mxu0 %v7947
    %8012 = vmatprep.subr.mxu0 0.0
    %8013 = vmatpush1.msra.mxu0 %v7948
    %8014 = vmatprep.subr.mxu0 0.0
    %8015 = vmatpush1.msra.mxu0 %v7949
    %8016 = vmatprep.subr.mxu0 0.0
    %8017 = vmatpush1.msra.mxu0 %v7950
    %8018 = vmatprep.subr.mxu0 0.0
    %8019 = vmatpush1.msra.mxu0 %v7951
    %8020 = vmatprep.subr.mxu0 0.0
    %8021 = vmatpush1.msra.mxu0 %v7952
    %8022 = vmatprep.subr.mxu0 0.0
    %8023 = vmatpush1.msra.mxu0 0.0
    %8024 = vmatprep.subr.mxu0 0.0
    %8025 = vmatpush1.msra.mxu0 0.0
    %8026 = vmatprep.subr.mxu0 0.0
    %8027 = vmatpush1.msra.mxu0 0.0
    %8028 = vmatprep.subr.mxu0 0.0
    %8029 = vmatpush1.msra.mxu0 0.0
    %8030 = vmatprep.subr.mxu0 0.0
    %8031 = vmatpush1.msra.mxu0 0.0
    %8032 = vmatprep.subr.mxu0 0.0
    %8033 = vmatpush1.msra.mxu0 0.0
    %8034 = vmatprep.subr.mxu0 0.0
    %8035 = vmatpush1.msra.mxu0 0.0
    %8036 = vmatprep.subr.mxu0 0.0
    %8037 = vmatpush1.msra.mxu0 0.0
    %8038 = vmatprep.subr.mxu0 0.0
    %8039 = vmatpush1.msra.mxu0 0.0
    %8040 = vmatprep.subr.mxu0 0.0
    %8041 = vmatpush1.msra.mxu0 0.0
    %8042 = vmatprep.subr.mxu0 0.0
    %8043 = vmatpush1.msra.mxu0 0.0
    %8044 = vmatprep.subr.mxu0 0.0
    %8045 = vmatpush1.msra.mxu0 0.0
    %8046 = vmatprep.subr.mxu0 0.0
    %8047 = vmatpush1.msra.mxu0 0.0
    %8048 = vmatprep.subr.mxu0 0.0
    %8049 = vmatpush1.msra.mxu0 0.0
    %8050 = vmatprep.subr.mxu0 0.0
    %8051 = vmatpush1.msra.mxu0 0.0
    %8052 = vmatprep.subr.mxu0 0.0
    %8053 = vmatpush1.msra.mxu0 0.0
    %8054 = vmatprep.subr.mxu0 0.0
    %8055 = vmatpush1.msra.mxu0 0.0
    %8056 = vmatprep.subr.mxu0 0.0
    %8057 = vmatpush1.msra.mxu0 0.0
    %8058 = vmatprep.subr.mxu0 0.0
    %8059 = vmatpush1.msra.mxu0 0.0
    %8060 = vmatprep.subr.mxu0 0.0
    %8061 = vmatpush1.msra.mxu0 0.0
    %8062 = vmatprep.subr.mxu0 0.0
    %8063 = vmatpush1.msra.mxu0 0.0
    %8064 = vmatprep.subr.mxu0 0.0
    %8065 = vmatpush1.msra.mxu0 0.0
    %8066 = vmatprep.subr.mxu0 0.0
    %8067 = vmatpush1.msra.mxu0 0.0
    %8068 = vmatprep.subr.mxu0 0.0
    %8069 = vmatpush1.msra.mxu0 0.0
    %8070 = vmatprep.mubr.f32.mxu0 0.0
    %8071 = vmatmul.mubr.f32.gmra.mrb[0].mxu0 %v7959
    %v8072 = vpop.f32.mrb[0].mxu0
    %v8073 = vadd.f32 %v7956, %v8072
    %v8074 = vpop.f32.mrb[0].mxu0
    %8075 = vmatprep.mubr.f32.mxu0 0.0
    %8076 = vmatmul.mubr.f32.gmra.mrb[0].mxu0 %v7962
    %v8077 = vpop.f32.mrb[0].mxu0
    %v8078 = vadd.f32 %v7956, %v8077
    %v8079 = vpop.f32.mrb[0].mxu0
    %8080 = vmatprep.mubr.f32.mxu0 0.0
    %8081 = vmatmul.mubr.f32.gmra.mrb[0].mxu0 %v7965
    %v8082 = vpop.f32.mrb[0].mxu0
    %v8083 = vadd.f32 %v7956, %v8082
    %v8084 = vpop.f32.mrb[0].mxu0
    %8085 = vmatprep.mubr.f32.mxu0 0.0
    %8086 = vmatmul.mubr.f32.gmra.mrb[0].mxu0 %v7968
    %v8087 = vpop.f32.mrb[0].mxu0
    %v8088 = vadd.f32 %v7956, %v8087
    %v8089 = vpop.f32.mrb[0].mxu0
    %8090 = vmatprep.mubr.f32.mxu0 0.0
    %8091 = vmatmul.mubr.f32.gmra.mrb[0].mxu0 %v7971
    %v8092 = vpop.f32.mrb[0].mxu0
    %v8093 = vadd.f32 %v7956, %v8092
    %v8094 = vpop.f32.mrb[0].mxu0
    %8095 = vmatprep.mubr.f32.mxu0 0.0
    %8096 = vmatmul.mubr.f32.gmra.mrb[0].mxu0 %v7974
    %v8097 = vpop.f32.mrb[0].mxu0
    %v8098 = vadd.f32 %v7956, %v8097
    %v8099 = vpop.f32.mrb[0].mxu0
    %8100 = vmatprep.mubr.f32.mxu0 0.0
    %8101 = vmatmul.mubr.f32.gmra.mrb[0].mxu0 %v7977
    %v8102 = vpop.f32.mrb[0].mxu0
    %v8103 = vadd.f32 %v7956, %v8102
    %v8104 = vpop.f32.mrb[0].mxu0
    %8105 = vmatprep.mubr.f32.mxu0 0.0
    %8106 = vmatmul.mubr.f32.gmra.mrb[0].mxu0 %v7980
    %v8107 = vpop.f32.mrb[0].mxu0
    %v8108 = vadd.f32 %v7956, %v8107
    %v8109 = vpop.f32.mrb[0].mxu0
    %8110 = vmatprep.mubr.f32.mxu0 0.0
    %8111 = vmatmul.mubr.f32.gmra.mrb[0].mxu0 %v7983
    %v8112 = vpop.f32.mrb[0].mxu0
    %v8113 = vadd.f32 %v7956, %v8112
    %v8114 = vpop.f32.mrb[0].mxu0
    %8115 = vmatprep.mubr.f32.mxu0 0.0
    %8116 = vmatmul.mubr.f32.gmra.mrb[0].mxu0 %v7986
    %v8117 = vpop.f32.mrb[0].mxu0
    %v8118 = vadd.f32 %v7956, %v8117
    %v8119 = vpop.f32.mrb[0].mxu0
    %8120 = vmatprep.mubr.f32.mxu0 0.0
    %8121 = vmatmul.mubr.f32.gmra.mrb[0].mxu0 %v7989
    %v8122 = vpop.f32.mrb[0].mxu0
    %v8123 = vadd.f32 %v7956, %v8122
    %v8124 = vpop.f32.mrb[0].mxu0
    %8125 = vmatprep.mubr.f32.mxu0 0.0
    %8126 = vmatmul.mubr.f32.gmra.mrb[0].mxu0 %v7992
    %v8127 = vpop.f32.mrb[0].mxu0
    %v8128 = vadd.f32 %v7956, %v8127
    %v8129 = vpop.f32.mrb[0].mxu0
    %8130 = vmatprep.mubr.f32.mxu0 0.0
    %8131 = vmatmul.mubr.f32.gmra.mrb[0].mxu0 %v7995
    %v8132 = vpop.f32.mrb[0].mxu0
    %v8133 = vadd.f32 %v7956, %v8132
    %v8134 = vpop.f32.mrb[0].mxu0
    %8135 = vmatprep.mubr.f32.mxu0 0.0
    %8136 = vmatmul.mubr.f32.gmra.mrb[0].mxu0 %v7998
    %v8137 = vpop.f32.mrb[0].mxu0
    %v8138 = vadd.f32 %v7956, %v8137
    %v8139 = vpop.f32.mrb[0].mxu0
    %8140 = vmatprep.mubr.f32.mxu0 0.0
    %8141 = vmatmul.mubr.f32.gmra.mrb[0].mxu0 %v8001
    %v8142 = vpop.f32.mrb[0].mxu0
    %v8143 = vadd.f32 %v7956, %v8142
    %v8144 = vpop.f32.mrb[0].mxu0
    %8145 = vmatprep.mubr.f32.mxu0 0.0
    %8146 = vmatmul.mubr.f32.gmra.mrb[0].mxu0 %v8004
    %v8147 = vpop.f32.mrb[0].mxu0
    %v8148 = vadd.f32 %v7956, %v8147
    %v8149 = vpop.f32.mrb[0].mxu0
    %8150 = vdwg.mxu0
    %v8151 = vadd.f32 %v7709, %v8073
    %v8152 = vadd.f32 %v7710, %v8078
    %v8153 = vadd.f32 %v7711, %v8083
    %v8154 = vadd.f32 %v7712, %v8088
    %v8155 = vadd.f32 %v7713, %v8093
    %v8156 = vadd.f32 %v7714, %v8098
    %v8157 = vadd.f32 %v7715, %v8103
    %v8158 = vadd.f32 %v7716, %v8108
    %v8159 = vadd.f32 %v7717, %v8113
    %v8160 = vadd.f32 %v7718, %v8118
    %v8161 = vadd.f32 %v7719, %v8123
    %v8162 = vadd.f32 %v7720, %v8128
    %v8163 = vadd.f32 %v7721, %v8133
    %v8164 = vadd.f32 %v7722, %v8138
    %v8165 = vadd.f32 %v7723, %v8143
    %v8166 = vadd.f32 %v7724, %v8148
    %v8167 = vsel %vm296, %v8151, 0.0
    %8168 = vadd.xlane.f32.xlu0 %v8167
    %v8169 = vpop.xlane.xlu0 %8168
    %v8170 = vsel %vm296, %v8152, 0.0
    %8171 = vadd.xlane.f32.xlu0 %v8170
    %v8172 = vpop.xlane.xlu0 %8171
    %v8173 = vsel %vm296, %v8153, 0.0
    %8174 = vadd.xlane.f32.xlu0 %v8173
    %v8175 = vpop.xlane.xlu0 %8174
    %v8176 = vsel %vm296, %v8154, 0.0
    %8177 = vadd.xlane.f32.xlu0 %v8176
    %v8178 = vpop.xlane.xlu0 %8177
    %v8179 = vsel %vm296, %v8155, 0.0
    %8180 = vadd.xlane.f32.xlu0 %v8179
    %v8181 = vpop.xlane.xlu0 %8180
    %v8182 = vsel %vm296, %v8156, 0.0
    %8183 = vadd.xlane.f32.xlu0 %v8182
    %v8184 = vpop.xlane.xlu0 %8183
    %v8185 = vsel %vm296, %v8157, 0.0
    %8186 = vadd.xlane.f32.xlu0 %v8185
    %v8187 = vpop.xlane.xlu0 %8186
    %v8188 = vsel %vm296, %v8158, 0.0
    %8189 = vadd.xlane.f32.xlu0 %v8188
    %v8190 = vpop.xlane.xlu0 %8189
    %v8191 = vsel %vm296, %v8159, 0.0
    %8192 = vadd.xlane.f32.xlu0 %v8191
    %v8193 = vpop.xlane.xlu0 %8192
    %v8194 = vsel %vm296, %v8160, 0.0
    %8195 = vadd.xlane.f32.xlu0 %v8194
    %v8196 = vpop.xlane.xlu0 %8195
    %v8197 = vsel %vm296, %v8161, 0.0
    %8198 = vadd.xlane.f32.xlu0 %v8197
    %v8199 = vpop.xlane.xlu0 %8198
    %v8200 = vsel %vm296, %v8162, 0.0
    %8201 = vadd.xlane.f32.xlu0 %v8200
    %v8202 = vpop.xlane.xlu0 %8201
    %v8203 = vsel %vm296, %v8163, 0.0
    %8204 = vadd.xlane.f32.xlu0 %v8203
    %v8205 = vpop.xlane.xlu0 %8204
    %v8206 = vsel %vm296, %v8164, 0.0
    %8207 = vadd.xlane.f32.xlu0 %v8206
    %v8208 = vpop.xlane.xlu0 %8207
    %v8209 = vsel %vm296, %v8165, 0.0
    %8210 = vadd.xlane.f32.xlu0 %v8209
    %v8211 = vpop.xlane.xlu0 %8210
    %v8212 = vsel %vm296, %v8166, 0.0
    %8213 = vadd.xlane.f32.xlu0 %v8212
    %v8214 = vpop.xlane.xlu0 %8213
    %v8215 = vmul.f32 %v8169, %v7524
    %v8216 = vmul.f32 %v8172, %v7524
    %v8217 = vmul.f32 %v8175, %v7524
    %v8218 = vmul.f32 %v8178, %v7524
    %v8219 = vmul.f32 %v8181, %v7524
    %v8220 = vmul.f32 %v8184, %v7524
    %v8221 = vmul.f32 %v8187, %v7524
    %v8222 = vmul.f32 %v8190, %v7524
    %v8223 = vmul.f32 %v8193, %v7524
    %v8224 = vmul.f32 %v8196, %v7524
    %v8225 = vmul.f32 %v8199, %v7524
    %v8226 = vmul.f32 %v8202, %v7524
    %v8227 = vmul.f32 %v8205, %v7524
    %v8228 = vmul.f32 %v8208, %v7524
    %v8229 = vmul.f32 %v8211, %v7524
    %v8230 = vmul.f32 %v8214, %v7524
    %v8231 = vsub.f32 %v8151, %v8215
    %v8232 = vsub.f32 %v8152, %v8216
    %v8233 = vsub.f32 %v8153, %v8217
    %v8234 = vsub.f32 %v8154, %v8218
    %v8235 = vsub.f32 %v8155, %v8219
    %v8236 = vsub.f32 %v8156, %v8220
    %v8237 = vsub.f32 %v8157, %v8221
    %v8238 = vsub.f32 %v8158, %v8222
    %v8239 = vsub.f32 %v8159, %v8223
    %v8240 = vsub.f32 %v8160, %v8224
    %v8241 = vsub.f32 %v8161, %v8225
    %v8242 = vsub.f32 %v8162, %v8226
    %v8243 = vsub.f32 %v8163, %v8227
    %v8244 = vsub.f32 %v8164, %v8228
    %v8245 = vsub.f32 %v8165, %v8229
    %v8246 = vsub.f32 %v8166, %v8230
    %v8247 = vmul.f32 %v8231, %v8231
    %v8248 = vmul.f32 %v8232, %v8232
    %v8249 = vmul.f32 %v8233, %v8233
    %v8250 = vmul.f32 %v8234, %v8234
    %v8251 = vmul.f32 %v8235, %v8235
    %v8252 = vmul.f32 %v8236, %v8236
    %v8253 = vmul.f32 %v8237, %v8237
    %v8254 = vmul.f32 %v8238, %v8238
    %v8255 = vmul.f32 %v8239, %v8239
    %v8256 = vmul.f32 %v8240, %v8240
    %v8257 = vmul.f32 %v8241, %v8241
    %v8258 = vmul.f32 %v8242, %v8242
    %v8259 = vmul.f32 %v8243, %v8243
    %v8260 = vmul.f32 %v8244, %v8244
    %v8261 = vmul.f32 %v8245, %v8245
    %v8262 = vmul.f32 %v8246, %v8246
    %v8263 = vsel %vm296, %v8247, 0.0
    %8264 = vadd.xlane.f32.xlu0 %v8263
    %v8265 = vpop.xlane.xlu0 %8264
    %v8266 = vsel %vm296, %v8248, 0.0
    %8267 = vadd.xlane.f32.xlu0 %v8266
    %v8268 = vpop.xlane.xlu0 %8267
    %v8269 = vsel %vm296, %v8249, 0.0
    %8270 = vadd.xlane.f32.xlu0 %v8269
    %v8271 = vpop.xlane.xlu0 %8270
    %v8272 = vsel %vm296, %v8250, 0.0
    %8273 = vadd.xlane.f32.xlu0 %v8272
    %v8274 = vpop.xlane.xlu0 %8273
    %v8275 = vsel %vm296, %v8251, 0.0
    %8276 = vadd.xlane.f32.xlu0 %v8275
    %v8277 = vpop.xlane.xlu0 %8276
    %v8278 = vsel %vm296, %v8252, 0.0
    %8279 = vadd.xlane.f32.xlu0 %v8278
    %v8280 = vpop.xlane.xlu0 %8279
    %v8281 = vsel %vm296, %v8253, 0.0
    %8282 = vadd.xlane.f32.xlu0 %v8281
    %v8283 = vpop.xlane.xlu0 %8282
    %v8284 = vsel %vm296, %v8254, 0.0
    %8285 = vadd.xlane.f32.xlu0 %v8284
    %v8286 = vpop.xlane.xlu0 %8285
    %v8287 = vsel %vm296, %v8255, 0.0
    %8288 = vadd.xlane.f32.xlu0 %v8287
    %v8289 = vpop.xlane.xlu0 %8288
    %v8290 = vsel %vm296, %v8256, 0.0
    %8291 = vadd.xlane.f32.xlu0 %v8290
    %v8292 = vpop.xlane.xlu0 %8291
    %v8293 = vsel %vm296, %v8257, 0.0
    %8294 = vadd.xlane.f32.xlu0 %v8293
    %v8295 = vpop.xlane.xlu0 %8294
    %v8296 = vsel %vm296, %v8258, 0.0
    %8297 = vadd.xlane.f32.xlu0 %v8296
    %v8298 = vpop.xlane.xlu0 %8297
    %v8299 = vsel %vm296, %v8259, 0.0
    %8300 = vadd.xlane.f32.xlu0 %v8299
    %v8301 = vpop.xlane.xlu0 %8300
    %v8302 = vsel %vm296, %v8260, 0.0
    %8303 = vadd.xlane.f32.xlu0 %v8302
    %v8304 = vpop.xlane.xlu0 %8303
    %v8305 = vsel %vm296, %v8261, 0.0
    %8306 = vadd.xlane.f32.xlu0 %v8305
    %v8307 = vpop.xlane.xlu0 %8306
    %v8308 = vsel %vm296, %v8262, 0.0
    %8309 = vadd.xlane.f32.xlu0 %v8308
    %v8310 = vpop.xlane.xlu0 %8309
    %v8311 = vmul.f32 %v8265, %v7524
    %v8312 = vmul.f32 %v8268, %v7524
    %v8313 = vmul.f32 %v8271, %v7524
    %v8314 = vmul.f32 %v8274, %v7524
    %v8315 = vmul.f32 %v8277, %v7524
    %v8316 = vmul.f32 %v8280, %v7524
    %v8317 = vmul.f32 %v8283, %v7524
    %v8318 = vmul.f32 %v8286, %v7524
    %v8319 = vmul.f32 %v8289, %v7524
    %v8320 = vmul.f32 %v8292, %v7524
    %v8321 = vmul.f32 %v8295, %v7524
    %v8322 = vmul.f32 %v8298, %v7524
    %v8323 = vmul.f32 %v8301, %v7524
    %v8324 = vmul.f32 %v8304, %v7524
    %v8325 = vmul.f32 %v8307, %v7524
    %v8326 = vmul.f32 %v8310, %v7524
    %v8327 = vadd.f32 %v8311, 1e-05
    %v8328 = vadd.f32 %v8312, 1e-05
    %v8329 = vadd.f32 %v8313, 1e-05
    %v8330 = vadd.f32 %v8314, 1e-05
    %v8331 = vadd.f32 %v8315, 1e-05
    %v8332 = vadd.f32 %v8316, 1e-05
    %v8333 = vadd.f32 %v8317, 1e-05
    %v8334 = vadd.f32 %v8318, 1e-05
    %v8335 = vadd.f32 %v8319, 1e-05
    %v8336 = vadd.f32 %v8320, 1e-05
    %v8337 = vadd.f32 %v8321, 1e-05
    %v8338 = vadd.f32 %v8322, 1e-05
    %v8339 = vadd.f32 %v8323, 1e-05
    %v8340 = vadd.f32 %v8324, 1e-05
    %v8341 = vadd.f32 %v8325, 1e-05
    %v8342 = vadd.f32 %v8326, 1e-05
    %v8343 = vrsqrt.pop %v8327
    %v8344 = vrsqrt.pop %v8328
    %v8345 = vrsqrt.pop %v8329
    %v8346 = vrsqrt.pop %v8330
    %v8347 = vrsqrt.pop %v8331
    %v8348 = vrsqrt.pop %v8332
    %v8349 = vrsqrt.pop %v8333
    %v8350 = vrsqrt.pop %v8334
    %v8351 = vrsqrt.pop %v8335
    %v8352 = vrsqrt.pop %v8336
    %v8353 = vrsqrt.pop %v8337
    %v8354 = vrsqrt.pop %v8338
    %v8355 = vrsqrt.pop %v8339
    %v8356 = vrsqrt.pop %v8340
    %v8357 = vrsqrt.pop %v8341
    %v8358 = vrsqrt.pop %v8342
    %v8359 = vmul.f32 %v8231, %v8343
    %v8360 = vmul.f32 %v8232, %v8344
    %v8361 = vmul.f32 %v8233, %v8345
    %v8362 = vmul.f32 %v8234, %v8346
    %v8363 = vmul.f32 %v8235, %v8347
    %v8364 = vmul.f32 %v8236, %v8348
    %v8365 = vmul.f32 %v8237, %v8349
    %v8366 = vmul.f32 %v8238, %v8350
    %v8367 = vmul.f32 %v8239, %v8351
    %v8368 = vmul.f32 %v8240, %v8352
    %v8369 = vmul.f32 %v8241, %v8353
    %v8370 = vmul.f32 %v8242, %v8354
    %v8371 = vmul.f32 %v8243, %v8355
    %v8372 = vmul.f32 %v8244, %v8356
    %v8373 = vmul.f32 %v8245, %v8357
    %v8374 = vmul.f32 %v8246, %v8358
    %v8375 = vlaneseq
    %v8376 = vshrl.u32 %v8375, 7
    %v8377 = vsub.s32 0, %v8376
    %v8378 = vrot.slane %v7239, %v8377
    %v8379 = vmul.f32 %v8359, %v8378
    %v8380 = vmul.f32 %v8360, %v8378
    %v8381 = vmul.f32 %v8361, %v8378
    %v8382 = vmul.f32 %v8362, %v8378
    %v8383 = vmul.f32 %v8363, %v8378
    %v8384 = vmul.f32 %v8364, %v8378
    %v8385 = vmul.f32 %v8365, %v8378
    %v8386 = vmul.f32 %v8366, %v8378
    %v8387 = vmul.f32 %v8367, %v8378
    %v8388 = vmul.f32 %v8368, %v8378
    %v8389 = vmul.f32 %v8369, %v8378
    %v8390 = vmul.f32 %v8370, %v8378
    %v8391 = vmul.f32 %v8371, %v8378
    %v8392 = vmul.f32 %v8372, %v8378
    %v8393 = vmul.f32 %v8373, %v8378
    %v8394 = vmul.f32 %v8374, %v8378
    %v8395 = vlaneseq
    %v8396 = vshrl.u32 %v8395, 7
    %v8397 = vsub.s32 0, %v8396
    %v8398 = vrot.slane %v7240, %v8397
    %v8399 = vadd.f32 %v8379, %v8398
    %v8400 = vadd.f32 %v8380, %v8398
    %v8401 = vadd.f32 %v8381, %v8398
    %v8402 = vadd.f32 %v8382, %v8398
    %v8403 = vadd.f32 %v8383, %v8398
    %v8404 = vadd.f32 %v8384, %v8398
    %v8405 = vadd.f32 %v8385, %v8398
    %v8406 = vadd.f32 %v8386, %v8398
    %v8407 = vadd.f32 %v8387, %v8398
    %v8408 = vadd.f32 %v8388, %v8398
    %v8409 = vadd.f32 %v8389, %v8398
    %v8410 = vadd.f32 %v8390, %v8398
    %v8411 = vadd.f32 %v8391, %v8398
    %v8412 = vadd.f32 %v8392, %v8398
    %v8413 = vadd.f32 %v8393, %v8398
    %v8414 = vadd.f32 %v8394, %v8398
    %v8415 = vld [vmem:[%s16] sm:$0xff]
    %8416 = vmatprep.subr.mxu0 0.0
    %8417 = vmatpush1.msra.mxu0 %v8399
    %8418 = vmatprep.subr.mxu0 0.0
    %8419 = vmatpush1.msra.mxu0 %v8400
    %8420 = vmatprep.subr.mxu0 0.0
    %8421 = vmatpush1.msra.mxu0 %v8401
    %8422 = vmatprep.subr.mxu0 0.0
    %8423 = vmatpush1.msra.mxu0 %v8402
    %8424 = vmatprep.subr.mxu0 0.0
    %8425 = vmatpush1.msra.mxu0 %v8403
    %8426 = vmatprep.subr.mxu0 0.0
    %8427 = vmatpush1.msra.mxu0 %v8404
    %8428 = vmatprep.subr.mxu0 0.0
    %8429 = vmatpush1.msra.mxu0 %v8405
    %8430 = vmatprep.subr.mxu0 0.0
    %8431 = vmatpush1.msra.mxu0 %v8406
    %8432 = vmatprep.subr.mxu0 0.0
    %8433 = vmatpush1.msra.mxu0 %v8407
    %8434 = vmatprep.subr.mxu0 0.0
    %8435 = vmatpush1.msra.mxu0 %v8408
    %8436 = vmatprep.subr.mxu0 0.0
    %8437 = vmatpush1.msra.mxu0 %v8409
    %8438 = vmatprep.subr.mxu0 0.0
    %8439 = vmatpush1.msra.mxu0 %v8410
    %8440 = vmatprep.subr.mxu0 0.0
    %8441 = vmatpush1.msra.mxu0 %v8411
    %8442 = vmatprep.subr.mxu0 0.0
    %8443 = vmatpush1.msra.mxu0 %v8412
    %8444 = vmatprep.subr.mxu0 0.0
    %8445 = vmatpush1.msra.mxu0 %v8413
    %8446 = vmatprep.subr.mxu0 0.0
    %8447 = vmatpush1.msra.mxu0 %v8414
    %8448 = vmatprep.subr.mxu0 0.0
    %8449 = vmatpush1.msra.mxu0 0.0
    %8450 = vmatprep.subr.mxu0 0.0
    %8451 = vmatpush1.msra.mxu0 0.0
    %8452 = vmatprep.subr.mxu0 0.0
    %8453 = vmatpush1.msra.mxu0 0.0
    %8454 = vmatprep.subr.mxu0 0.0
    %8455 = vmatpush1.msra.mxu0 0.0
    %8456 = vmatprep.subr.mxu0 0.0
    %8457 = vmatpush1.msra.mxu0 0.0
    %8458 = vmatprep.subr.mxu0 0.0
    %8459 = vmatpush1.msra.mxu0 0.0
    %8460 = vmatprep.subr.mxu0 0.0
    %8461 = vmatpush1.msra.mxu0 0.0
    %8462 = vmatprep.subr.mxu0 0.0
    %8463 = vmatpush1.msra.mxu0 0.0
    %8464 = vmatprep.subr.mxu0 0.0
    %8465 = vmatpush1.msra.mxu0 0.0
    %8466 = vmatprep.subr.mxu0 0.0
    %8467 = vmatpush1.msra.mxu0 0.0
    %8468 = vmatprep.subr.mxu0 0.0
    %8469 = vmatpush1.msra.mxu0 0.0
    %8470 = vmatprep.subr.mxu0 0.0
    %8471 = vmatpush1.msra.mxu0 0.0
    %8472 = vmatprep.subr.mxu0 0.0
    %8473 = vmatpush1.msra.mxu0 0.0
    %8474 = vmatprep.subr.mxu0 0.0
    %8475 = vmatpush1.msra.mxu0 0.0
    %8476 = vmatprep.subr.mxu0 0.0
    %8477 = vmatpush1.msra.mxu0 0.0
    %8478 = vmatprep.subr.mxu0 0.0
    %8479 = vmatpush1.msra.mxu0 0.0
    %8480 = vmatprep.mubr.f32.mxu0 0.0
    %8481 = vmatmul.mubr.f32.gmra.mrb[0].mxu0 %v8415
    %v8482 = vpop.f32.mrb[0].mxu0
    %v8483 = vadd.f32 0.0, %v8482
    %v8484 = vpop.f32.mrb[0].mxu0
    %8485 = vdwg.mxu0
    %v8486 = vsel %vm296, %v8483, 0.0
    %8487 = vadd.xlane.f32.xlu0 %v8486
    %v8488 = vpop.xlane.xlu0 %8487
    %v8489 = vmul.f32 %v8488, %v7524
    %v8490 = vsub.f32 %v8483, %v8489
    %v8491 = vmul.f32 %v8490, %v8490
    %v8492 = vsel %vm296, %v8491, 0.0
    %8493 = vadd.xlane.f32.xlu0 %v8492
    %v8494 = vpop.xlane.xlu0 %8493
    %v8495 = vmul.f32 %v8494, %v7524
    %v8496 = vadd.f32 %v8495, 1e-05
    %v8497 = vrsqrt.pop %v8496
    %v8498 = vmul.f32 %v8490, %v8497
    %v8499 = vlaneseq
    %v8500 = vshrl.u32 %v8499, 7
    %v8501 = vsub.s32 0, %v8500
    %v8502 = vrot.slane %v7241, %v8501
    %v8503 = vmul.f32 %v8498, %v8502
    %v8504 = vlaneseq
    %v8505 = vshrl.u32 %v8504, 7
    %v8506 = vsub.s32 0, %v8505
    %v8507 = vrot.slane %v7242, %v8506
    %v8508 = vadd.f32 %v8503, %v8507
    %v8509 = vld [vmem:[%s10] sm:$0xff]
    %v8510 = vld [vmem:[%s10 + $0x8] sm:$0xff]
    %v8511 = vld [vmem:[%s10 + $0x10] sm:$0xff]
    %v8512 = vld [vmem:[%s10 + $0x18] sm:$0xff]
    %v8513 = vld [vmem:[%s11] sm:$0x1]
    %v8515 = vlaneseq
    %v8516 = vshrl.u32 %v8515, 7
    %v8517 = vsub.s32 0, %v8516
    %v8518 = vrot.slane %v8513, %v8517
    %v8521 = vsel %vm296, %v8508, 0
    %8523 = vmatprep.subr.mxu0 0.0
    %8524 = vmatpush1.msra.mxu0 %v8509
    %8525 = vmatprep.subr.mxu0 0.0
    %8526 = vmatpush1.msra.mxu0 %v8510
    %8527 = vmatprep.subr.mxu0 0.0
    %8528 = vmatpush1.msra.mxu0 %v8511
    %8529 = vmatprep.subr.mxu0 0.0
    %8530 = vmatpush1.msra.mxu0 %v8512
    %8531 = vmatprep.subr.mxu0 0.0
    %8532 = vmatpush1.msra.mxu0 0.0
    %8533 = vmatprep.subr.mxu0 0.0
    %8534 = vmatpush1.msra.mxu0 0.0
    %8535 = vmatprep.subr.mxu0 0.0
    %8536 = vmatpush1.msra.mxu0 0.0
    %8537 = vmatprep.subr.mxu0 0.0
    %8538 = vmatpush1.msra.mxu0 0.0
    %8539 = vmatprep.subr.mxu0 0.0
    %8540 = vmatpush1.msra.mxu0 0.0
    %8541 = vmatprep.subr.mxu0 0.0
    %8542 = vmatpush1.msra.mxu0 0.0
    %8543 = vmatprep.subr.mxu0 0.0
    %8544 = vmatpush1.msra.mxu0 0.0
    %8545 = vmatprep.subr.mxu0 0.0
    %8546 = vmatpush1.msra.mxu0 0.0
    %8547 = vmatprep.subr.mxu0 0.0
    %8548 = vmatpush1.msra.mxu0 0.0
    %8549 = vmatprep.subr.mxu0 0.0
    %8550 = vmatpush1.msra.mxu0 0.0
    %8551 = vmatprep.subr.mxu0 0.0
    %8552 = vmatpush1.msra.mxu0 0.0
    %8553 = vmatprep.subr.mxu0 0.0
    %8554 = vmatpush1.msra.mxu0 0.0
    %8555 = vmatprep.subr.mxu0 0.0
    %8556 = vmatpush1.msra.mxu0 0.0
    %8557 = vmatprep.subr.mxu0 0.0
    %8558 = vmatpush1.msra.mxu0 0.0
    %8559 = vmatprep.subr.mxu0 0.0
    %8560 = vmatpush1.msra.mxu0 0.0
    %8561 = vmatprep.subr.mxu0 0.0
    %8562 = vmatpush1.msra.mxu0 0.0
    %8563 = vmatprep.subr.mxu0 0.0
    %8564 = vmatpush1.msra.mxu0 0.0
    %8565 = vmatprep.subr.mxu0 0.0
    %8566 = vmatpush1.msra.mxu0 0.0
    %8567 = vmatprep.subr.mxu0 0.0
    %8568 = vmatpush1.msra.mxu0 0.0
    %8569 = vmatprep.subr.mxu0 0.0
    %8570 = vmatpush1.msra.mxu0 0.0
    %8571 = vmatprep.subr.mxu0 0.0
    %8572 = vmatpush1.msra.mxu0 0.0
    %8573 = vmatprep.subr.mxu0 0.0
    %8574 = vmatpush1.msra.mxu0 0.0
    %8575 = vmatprep.subr.mxu0 0.0
    %8576 = vmatpush1.msra.mxu0 0.0
    %8577 = vmatprep.subr.mxu0 0.0
    %8578 = vmatpush1.msra.mxu0 0.0
    %8579 = vmatprep.subr.mxu0 0.0
    %8580 = vmatpush1.msra.mxu0 0.0
    %8581 = vmatprep.subr.mxu0 0.0
    %8582 = vmatpush1.msra.mxu0 0.0
    %8583 = vmatprep.subr.mxu0 0.0
    %8584 = vmatpush1.msra.mxu0 0.0
    %8585 = vmatprep.subr.mxu0 0.0
    %8586 = vmatpush1.msra.mxu0 0.0
    %8587 = vmatprep.mubr.f32.mxu0 0.0
    %8588 = vmatmul.mubr.f32.gmra.mrb[0].mxu0 %v8521
    %v8589 = vpop.f32.mrb[0].mxu0
    %v8590 = vadd.f32 %v8518, %v8589
    %v8591 = vpop.f32.mrb[0].mxu0
    %8592 = vdwg.mxu0
    %vm8593 = vcmask 64512
    %8594 = vst.msk [vmem:[#allocation3] sm:$0xff] %vm8593, %v8590
    // Predicated region
    $region70: #{tpu_custom_call.1} parent=1 // pred_check
      _
    $region71: #{tpu_custom_call.1} parent=1 // pred_check_branch
      %8596 = sbr.rel (0) target = $region73
    $region72: #{tpu_custom_call.1} parent=1 // pred_region
      %s8598 = ssub.s32 128, 128
      %8599 = vsyncadd [#allocation4], %s8598
      %s8601 = sshll.u32 [#allocation3], 4
      %s8602 = int_to_ptr.vmem [resolvable:$true] %s8601
      %8604 = dma.vmem_to_hbm [thread:$0]  %s8602, 128, %s17, [#allocation4]
    $region73: #{tpu_custom_call.1} parent=1 // pred_fallthru
      _
    // Predicated region
    $region74: #{tpu_custom_call.1} parent=1 // pred_check
      _
    $region75: #{tpu_custom_call.1} parent=1 // pred_check_branch
      %8606 = sbr.rel (0) target = $region77
    $region76: #{tpu_custom_call.1} parent=1 // pred_region
      %8607 = dma.done [#allocation4], 128
    $region77: #{tpu_custom_call.1} parent=1 // pred_fallthru
      _
    %8608 = vsyncpa [#allocation4], 1

</llo_original>
